<compile_context>
chip_gen: v7x
topology: tpu7x:2x2x1
jax: 0.10.0
libtpu: 0.0.40
codegen_flags: <defaults>
</compile_context>

<pallas_src>
import numpy as np
import jax
import jax.numpy as jnp
from jax import lax
from jax.experimental import pallas as pl
from jax.experimental.pallas import tpu as pltpu


# ----------------------------------------------------------------------------
# Geometry of the zero-padded (row, channel) rasters at the three resolutions
# ----------------------------------------------------------------------------
def _geom(H, W):
    assert H % 4 == 0 and W % 4 == 0, "spatial dims must be divisible by 4"
    H2, W2, H4, W4 = H // 2, W // 2, H // 4, W // 4
    Wp16, Mp16 = W + 2, (H + 2) * (W + 2)
    Wp8, Mp8 = W2 + 2, (H2 + 2) * (W2 + 2)
    Wp4, Mp4 = W4 + 2, (H4 + 2) * (W4 + 2)
    lo16, hi16 = Wp16 + 1, Mp16 - Wp16 - 1
    lo8, hi8 = Wp8 + 1, Mp8 - Wp8 - 1
    lo4, hi4 = Wp4 + 1, Mp4 - Wp4 - 1
    return dict(H2=H2, W2=W2, H4=H4, W4=W4,
                Wp16=Wp16, Mp16=Mp16, Wp8=Wp8, Mp8=Mp8, Wp4=Wp4, Mp4=Mp4,
                lo16=lo16, hi16=hi16, lo8=lo8, hi8=hi8, lo4=lo4, hi4=hi4)


def _prow(h, w, Wp):
    """Row index of pixel (h, w) inside a zero-padded (H+2, W+2) raster."""
    return (h + 1) * Wp + (w + 1)


# ----------------------------------------------------------------------------
# Layout constants (built once with numpy, passed as kernel inputs)
# ----------------------------------------------------------------------------
def _build_constants(H, W):
    g = _geom(H, W)
    H2, W2, H4, W4 = g["H2"], g["W2"], g["H4"], g["W4"]
    Wp16, Wp8, Wp4 = g["Wp16"], g["Wp8"], g["Wp4"]
    Mp8, Mp4 = g["Mp8"], g["Mp4"]
    lo16, hi16 = g["lo16"], g["hi16"]
    lo8, hi8 = g["lo8"], g["hi8"]
    lo4, hi4 = g["lo4"], g["hi4"]
    R16, R8, R4 = hi16 - lo16, hi8 - lo8, hi4 - lo4

    # stride-2 selection: full-res slab conv rows -> zero-padded half-res raster
    sd16 = np.zeros((Mp8, R16), np.float32)
    for ho in range(H2):
        for wo in range(W2):
            sd16[_prow(ho, wo, Wp8), _prow(2 * ho, 2 * wo, Wp16) - lo16] = 1.0
    sd8 = np.zeros((Mp4, R8), np.float32)
    for ho in range(H4):
        for wo in range(W4):
            sd8[_prow(ho, wo, Wp4), _prow(2 * ho, 2 * wo, Wp8) - lo8] = 1.0

    # decoder-1 ConvTranspose interleave scatter, slab rows only: (4, R8, R4)
    u4s = np.zeros((4, R8, R4), np.float32)
    for a in range(2):
        for b in range(2):
            t = a * 2 + b
            for i in range(H4):
                for j in range(W4):
                    u4s[t, _prow(2 * i + a, 2 * j + b, Wp8) - lo8,
                        _prow(i, j, Wp4) - lo4] = 1.0

    # decoder-2 scatter with the compact gather folded in: (4, H*W, R8)
    u8c = np.zeros((4, H * W, R8), np.float32)
    for a in range(2):
        for b in range(2):
            t = a * 2 + b
            for i in range(H2):
                for j in range(W2):
                    u8c[t, (2 * i + a) * W + (2 * j + b),
                        _prow(i, j, Wp8) - lo8] = 1.0

    # validity mask over the full-res conv slab (zeros at lateral pad columns)
    m16s = np.zeros((R16, 1), np.float32)
    for h in range(H):
        for w in range(W):
            m16s[_prow(h, w, Wp16) - lo16, 0] = 1.0

    bf = jnp.bfloat16
    return dict(sd16=jnp.asarray(sd16, bf), sd8=jnp.asarray(sd8, bf),
                u4s=jnp.asarray(u4s, bf), u8c=jnp.asarray(u8c, bf),
                m16s=jnp.asarray(m16s, jnp.float32))


# ----------------------------------------------------------------------------
# Parameters (PyTorch-like uniform fan-in init) and one-time prepacking
# ----------------------------------------------------------------------------
def init_params(key, input_channels=8):
    keys = jax.random.split(key, 14)

    def conv_p(kw_, kb_, cout, cin, kh, kwid):
        s = float(1.0 / np.sqrt(cin * kh * kwid))
        w = jax.random.uniform(kw_, (cout, cin, kh, kwid), jnp.float32, -s, s)
        b = jax.random.uniform(kb_, (cout,), jnp.float32, -s, s)
        return w, b

    def convT_p(kw_, kb_, cin, cout, kh, kwid):
        s = float(1.0 / np.sqrt(cin * kh * kwid))
        w = jax.random.uniform(kw_, (cin, cout, kh, kwid), jnp.float32, -s, s)
        b = jax.random.uniform(kb_, (cout,), jnp.float32, -s, s)
        return w, b

    return {
        "enc1": conv_p(keys[0], keys[1], 32, input_channels, 3, 3),
        "enc2": conv_p(keys[2], keys[3], 64, 32, 3, 3),
        "enc3": conv_p(keys[4], keys[5], 128, 64, 3, 3),
        "bottleneck": conv_p(keys[6], keys[7], 128, 128, 3, 3),
        "dec1": convT_p(keys[8], keys[9], 128, 64, 2, 2),
        "dec2": convT_p(keys[10], keys[11], 64 + 64, 32, 2, 2),
        "out": conv_p(keys[12], keys[13], 8, 64, 1, 1),
    }


def pack_params(params, H=16, W=16):
    """One-time prepacking: im2col conv weights, N-packed ConvTranspose taps."""
    bf, f32 = jnp.bfloat16, jnp.float32

    def conv_cat(w):                 # (Cout, Cin, 3, 3) -> (9*Cin, Cout)
        cout, cin = w.shape[0], w.shape[1]
        return jnp.transpose(w, (2, 3, 1, 0)).reshape(9 * cin, cout).astype(bf)

    def convT_packN(w):              # (Cin, Cout, 2, 2) -> (Cin, 4*Cout), tap-major N
        cin, cout = w.shape[0], w.shape[1]
        return jnp.transpose(w, (0, 2, 3, 1)).reshape(cin, 4 * cout).astype(bf)

    def row_bias(b):
        return b.reshape(1, -1).astype(f32)

    w1, b1 = params["enc1"]
    w2, b2 = params["enc2"]
    w3, b3 = params["enc3"]
    w4, b4 = params["bottleneck"]
    wt1, bt1 = params["dec1"]
    wt2, bt2 = params["dec2"]
    wo, bo = params["out"]

    n_d2 = wt2.shape[1]                                   # 32: d2 channels in concat
    wo2 = wo.reshape(wo.shape[0], wo.shape[1])            # (8, 64)

    packed = dict(
        w1=conv_cat(w1), b1=row_bias(b1),
        w2=conv_cat(w2), b2=row_bias(b2),
        w3=conv_cat(w3), b3=row_bias(b3),
        w4=conv_cat(w4), b4=row_bias(b4),
        wt1p=convT_packN(wt1), bt1=row_bias(bt1),
        wt2p=convT_packN(wt2), bt2=row_bias(bt2),         # cat([d1, x2]) channel order
        wod=wo2[:, :n_d2].astype(bf),                     # d2 part of final concat
        wox=wo2[:, n_d2:].astype(bf),                     # x1 part of final concat
        bo=bo.reshape(-1, 1).astype(f32),
    )
    packed.update(_build_constants(H, W))
    return packed


_ARG_ORDER = ("w1", "b1", "m16s", "w2", "b2", "sd16", "w3", "b3", "sd8",
              "w4", "b4", "wt1p", "bt1", "u4s", "wt2p", "bt2", "u8c",
              "wod", "wox", "bo")


# ----------------------------------------------------------------------------
# The fused Pallas kernel (one grid step == one image)
# ----------------------------------------------------------------------------
def _make_kernel(H, W):
    g = _geom(H, W)
    Wp16, Mp16, lo16, hi16 = g["Wp16"], g["Mp16"], g["lo16"], g["hi16"]
    Wp8, Mp8, lo8, hi8 = g["Wp8"], g["Mp8"], g["lo8"], g["hi8"]
    Wp4, Mp4, lo4, hi4 = g["Wp4"], g["Mp4"], g["lo4"], g["hi4"]
    F32, BF16 = jnp.float32, jnp.bfloat16

    def mm(a, b):                                   # (m,k)@(k,n) -> f32 (m,n)
        return jnp.dot(a, b, preferred_element_type=F32)

    def mm_t(a, b):                                 # (m,k)@(n,k)^T -> f32 (m,n)
        return lax.dot_general(a, b, (((1,), (1,)), ((), ())),
                               preferred_element_type=F32)

    def conv3x3(src, w_ref, b_ref, Wp, lo, hi):
        """3x3 stride-1 pad-1 conv as ONE big-K MXU dot (in-register im2col)."""
        pieces = []
        for a in range(3):
            for bb in range(3):
                d = (a - 1) * Wp + (bb - 1)
                pieces.append(src[lo + d:hi + d, :])
        im2col = jnp.concatenate(pieces, axis=1).astype(BF16)   # (hi-lo, 9*Cin)
        return mm(im2col, w_ref[...]) + b_ref[...]              # f32

    def kernel(x_ref,
               w1_ref, b1_ref, m16_ref,
               w2_ref, b2_ref, sd16_ref,
               w3_ref, b3_ref, sd8_ref,
               w4_ref, b4_ref,
               wt1p_ref, bt1_ref, u4s_ref,
               wt2p_ref, bt2_ref, u8c_ref,
               wod_ref, wox_ref, bo_ref,
               o_ref,
               x1p, x1c, x2p):
        # keep the enc1-skip border rows (never written below) at exact zero;
        # only 2*(W+3) rows -- cheap, and safe under "parallel" grid semantics.
        x1p[0:lo16, :] = jnp.zeros((lo16, 32), F32)
        x1p[hi16:Mp16, :] = jnp.zeros((Mp16 - hi16, 32), F32)

        xin = x_ref[0]                                   # (Mp16, Cin), pre-padded

        # --- encoder1: 3x3 s1 p1 + ReLU --------------------------------------
        y1 = jnp.maximum(conv3x3(xin, w1_ref, b1_ref, Wp16, lo16, hi16), 0.0)
        y1 = y1 * m16_ref[...]                  # zero the lateral pad columns
        x1p[lo16:hi16, :] = y1                  # padded skip (read by encoder2)
        for h in range(H):                      # compact skip (read by output conv)
            x1c[h * W:(h + 1) * W, :] = y1[h * Wp16:h * Wp16 + W, :]

        # --- encoder2: 3x3 s2 p1 + ReLU (stride-1 conv + row selection) ------
        y2 = jnp.maximum(conv3x3(x1p, w2_ref, b2_ref, Wp16, lo16, hi16), 0.0)
        x2p[...] = mm(sd16_ref[...], y2.astype(BF16))    # (Mp8, 64), zero borders

        # --- encoder3: 3x3 s2 p1 + ReLU ---------------------------------------
        y3 = jnp.maximum(conv3x3(x2p, w3_ref, b3_ref, Wp8, lo8, hi8), 0.0)
        x3p = mm(sd8_ref[...], y3.astype(BF16))          # (Mp4, 128) value

        # --- bottleneck: 3x3 s1 p1 + ReLU (slab rows only) --------------------
        y4 = jnp.maximum(conv3x3(x3p, w4_ref, b4_ref, Wp4, lo4, hi4), 0.0)
        y4 = y4.astype(BF16)                             # (hi4-lo4, 128)

        # --- decoder1: ConvTranspose 2x2 s2 (128 -> 64) + ReLU -----------------
        taps1 = mm(y4, wt1p_ref[...]).astype(BF16)       # (hi4-lo4, 4*64), one wide dot
        acc = None
        for t in range(4):
            c = mm(u4s_ref[t], taps1[:, 64 * t:64 * (t + 1)])   # (hi8-lo8, 64)
            acc = c if acc is None else acc + c
        d1 = jnp.maximum(acc + bt1_ref[...], 0.0)        # (hi8-lo8, 64) f32

        # --- decoder2: ConvTranspose 2x2 s2 on concat([d1, x2]) -> 32 + ReLU ---
        cat1 = jnp.concatenate([d1, x2p[lo8:hi8, :]], axis=1).astype(BF16)
        taps2 = mm(cat1, wt2p_ref[...]).astype(BF16)     # (hi8-lo8, 4*32), one wide dot
        acc = None
        for t in range(4):
            c = mm(u8c_ref[t], taps2[:, 32 * t:32 * (t + 1)])   # (H*W, 32) compact
            acc = c if acc is None else acc + c
        d2c = jnp.maximum(acc + bt2_ref[...], 0.0).astype(BF16)  # (H*W, 32)

        # --- output: 1x1 conv on concat([d2, x1]); lane-dense (Cout, H*W) ------
        out = (mm_t(wod_ref[...], d2c)
               + mm_t(wox_ref[...], x1c[...].astype(BF16))
               + bo_ref[...])
        o_ref[0] = out.astype(o_ref.dtype)

    return kernel


# ----------------------------------------------------------------------------
# Public forward (matches UNet.forward; NCHW in, NCHW out)
# ----------------------------------------------------------------------------
def unet_forward(packed, x_nchw):
    N, C, H, W = x_nchw.shape
    g = _geom(H, W)
    Mp16, Mp8 = g["Mp16"], g["Mp8"]
    HW = H * W
    c_out = packed["bo"].shape[0]

    # NCHW -> zero-padded (row, channel) raster, one image per grid step.
    xpad = jnp.pad(x_nchw, ((0, 0), (0, 0), (1, 1), (1, 1)))
    xpad = jnp.transpose(xpad, (0, 2, 3, 1)).reshape(N, Mp16, C)
    xpad = xpad.astype(jnp.float32)

    consts = [packed[k] for k in _ARG_ORDER]

    def _const_spec(a):
        nd = a.ndim
        return pl.BlockSpec(a.shape, lambda i, _nd=nd: (0,) * _nd)

    cost = pl.CostEstimate(
        flops=int(46e6) * N,                   # ~45 MF of bf16 matmul per image
        transcendentals=0,
        bytes_accessed=N * (Mp16 * C + c_out * HW) * 4 + 900_000)

    out = pl.pallas_call(
        _make_kernel(H, W),
        out_shape=jax.ShapeDtypeStruct((N, c_out, HW), jnp.float32),
        grid=(N,),
        in_specs=[pl.BlockSpec((1, Mp16, C), lambda i: (i, 0, 0))]
                 + [_const_spec(a) for a in consts],
        out_specs=pl.BlockSpec((1, c_out, HW), lambda i: (i, 0, 0)),
        scratch_shapes=[
            pltpu.VMEM((Mp16, 32), jnp.float32),   # x1p : padded enc1 skip
            pltpu.VMEM((HW, 32), jnp.float32),     # x1c : compact enc1 skip
            pltpu.VMEM((Mp8, 64), jnp.float32),    # x2p : padded enc2 skip
        ],
        compiler_params=pltpu.CompilerParams(
            dimension_semantics=("parallel",)),    # batch across TCs on v7x
        cost_estimate=cost,
    )(xpad, *consts)

    # TODO(synk): on single-TC chips (v5e/v6e) folding the batch into the row
    # dimension (grid=(1,)) would shave one ~0.35us grid step; kept grid=(N,)
    # "parallel" for v7x core parallelism and simplicity.
    return out.reshape(N, c_out, H, W)


if __name__ == "__main__":
    key = jax.random.PRNGKey(0)
    pkey, xkey = jax.random.split(key)
    params = init_params(pkey, input_channels=8)
    packed = pack_params(params, H=16, W=16)               # one-time prepacking
    x = jax.random.normal(xkey, (2, 8, 16, 16), jnp.float32)   # NCHW like PyTorch

    fwd = jax.jit(unet_forward)
    out = jax.block_until_ready(fwd(packed, x))
    assert out.shape == (2, 8, 16, 16), out.shape
    assert out.dtype == jnp.float32
    assert bool(jnp.all(jnp.isfinite(out)))
    print("KERNEL_OK")
</pallas_src>

<mosaic_0001>
module attributes {stable_mosaic.version = 11 : i64} {
  func.func @kernel(%arg0: i32, %arg1: memref<1x324x8xf32, #tpu.memory_space<vmem>>, %arg2: memref<72x32xbf16, #tpu.memory_space<vmem>>, %arg3: memref<1x32xf32, #tpu.memory_space<vmem>>, %arg4: memref<286x1xf32, #tpu.memory_space<vmem>>, %arg5: memref<288x64xbf16, #tpu.memory_space<vmem>>, %arg6: memref<1x64xf32, #tpu.memory_space<vmem>>, %arg7: memref<100x286xbf16, #tpu.memory_space<vmem>>, %arg8: memref<576x128xbf16, #tpu.memory_space<vmem>>, %arg9: memref<1x128xf32, #tpu.memory_space<vmem>>, %arg10: memref<36x78xbf16, #tpu.memory_space<vmem>>, %arg11: memref<1152x128xbf16, #tpu.memory_space<vmem>>, %arg12: memref<1x128xf32, #tpu.memory_space<vmem>>, %arg13: memref<128x256xbf16, #tpu.memory_space<vmem>>, %arg14: memref<1x64xf32, #tpu.memory_space<vmem>>, %arg15: memref<4x78x22xbf16, #tpu.memory_space<vmem>>, %arg16: memref<128x128xbf16, #tpu.memory_space<vmem>>, %arg17: memref<1x32xf32, #tpu.memory_space<vmem>>, %arg18: memref<4x256x78xbf16, #tpu.memory_space<vmem>>, %arg19: memref<8x32xbf16, #tpu.memory_space<vmem>>, %arg20: memref<8x32xbf16, #tpu.memory_space<vmem>>, %arg21: memref<8x1xf32, #tpu.memory_space<vmem>>, %arg22: memref<1x8x256xf32, #tpu.memory_space<vmem>>, %arg23: memref<324x32xf32, #tpu.memory_space<vmem>>, %arg24: memref<256x32xf32, #tpu.memory_space<vmem>>, %arg25: memref<100x64xf32, #tpu.memory_space<vmem>>) attributes {dimension_semantics = [#tpu.dimension_semantics<parallel>], iteration_bounds = array<i64: 2>, scalar_prefetch = 0 : i64, scratch_operands = 3 : i64, tpu.core_type = #tpu.core_type<tc>, window_params = [{transform_indices = @transform_0, window_bounds = array<i64: 1, 324, 8>}, {pipeline_mode = #tpu.pipeline_mode<synchronous>, transform_indices = @transform_1, window_bounds = array<i64: 72, 32>}, {pipeline_mode = #tpu.pipeline_mode<synchronous>, transform_indices = @transform_2, window_bounds = array<i64: 1, 32>}, {pipeline_mode = #tpu.pipeline_mode<synchronous>, transform_indices = @transform_3, window_bounds = array<i64: 286, 1>}, {pipeline_mode = #tpu.pipeline_mode<synchronous>, transform_indices = @transform_4, window_bounds = array<i64: 288, 64>}, {pipeline_mode = #tpu.pipeline_mode<synchronous>, transform_indices = @transform_5, window_bounds = array<i64: 1, 64>}, {pipeline_mode = #tpu.pipeline_mode<synchronous>, transform_indices = @transform_6, window_bounds = array<i64: 100, 286>}, {pipeline_mode = #tpu.pipeline_mode<synchronous>, transform_indices = @transform_7, window_bounds = array<i64: 576, 128>}, {pipeline_mode = #tpu.pipeline_mode<synchronous>, transform_indices = @transform_8, window_bounds = array<i64: 1, 128>}, {pipeline_mode = #tpu.pipeline_mode<synchronous>, transform_indices = @transform_9, window_bounds = array<i64: 36, 78>}, {pipeline_mode = #tpu.pipeline_mode<synchronous>, transform_indices = @transform_10, window_bounds = array<i64: 1152, 128>}, {pipeline_mode = #tpu.pipeline_mode<synchronous>, transform_indices = @transform_11, window_bounds = array<i64: 1, 128>}, {pipeline_mode = #tpu.pipeline_mode<synchronous>, transform_indices = @transform_12, window_bounds = array<i64: 128, 256>}, {pipeline_mode = #tpu.pipeline_mode<synchronous>, transform_indices = @transform_13, window_bounds = array<i64: 1, 64>}, {pipeline_mode = #tpu.pipeline_mode<synchronous>, transform_indices = @transform_14, window_bounds = array<i64: 4, 78, 22>}, {pipeline_mode = #tpu.pipeline_mode<synchronous>, transform_indices = @transform_15, window_bounds = array<i64: 128, 128>}, {pipeline_mode = #tpu.pipeline_mode<synchronous>, transform_indices = @transform_16, window_bounds = array<i64: 1, 32>}, {pipeline_mode = #tpu.pipeline_mode<synchronous>, transform_indices = @transform_17, window_bounds = array<i64: 4, 256, 78>}, {pipeline_mode = #tpu.pipeline_mode<synchronous>, transform_indices = @transform_18, window_bounds = array<i64: 8, 32>}, {pipeline_mode = #tpu.pipeline_mode<synchronous>, transform_indices = @transform_19, window_bounds = array<i64: 8, 32>}, {pipeline_mode = #tpu.pipeline_mode<synchronous>, transform_indices = @transform_20, window_bounds = array<i64: 8, 1>}, {transform_indices = @transform_21, window_bounds = array<i64: 1, 8, 256>}]} {
    %cst = arith.constant 0.000000e+00 : f32
    %0 = vector.broadcast %cst : f32 to vector<19x32xf32>
    %c0 = arith.constant 0 : index
    %c0_0 = arith.constant 0 : index
    %1 = vector.load %arg23[%c0, %c0_0] : memref<324x32xf32, #tpu.memory_space<vmem>>, vector<19x32xf32>
    tpu.vector_store %arg23[%c0, %c0_0], %0 {strides = array<i32>} : memref<324x32xf32, #tpu.memory_space<vmem>>, vector<19x32xf32>,
    %cst_1 = arith.constant 0.000000e+00 : f32
    %2 = vector.broadcast %cst_1 : f32 to vector<19x32xf32>
    %c305 = arith.constant 305 : index
    %c0_2 = arith.constant 0 : index
    %3 = vector.load %arg23[%c305, %c0_2] : memref<324x32xf32, #tpu.memory_space<vmem>>, vector<19x32xf32>
    tpu.vector_store %arg23[%c305, %c0_2], %2 {strides = array<i32>} : memref<324x32xf32, #tpu.memory_space<vmem>>, vector<19x32xf32>,
    %c0_3 = arith.constant 0 : index
    %c0_4 = arith.constant 0 : index
    %c0_5 = arith.constant 0 : index
    %4 = vector.load %arg1[%c0_3, %c0_4, %c0_5] : memref<1x324x8xf32, #tpu.memory_space<vmem>>, vector<1x324x8xf32>
    %5 = vector.shape_cast %4 : vector<1x324x8xf32> to vector<324x8xf32>
    %6 = vector.extract_strided_slice %5 {offsets = [0, 0], sizes = [286, 8], strides = [1, 1]} : vector<324x8xf32> to vector<286x8xf32>
    %7 = vector.extract_strided_slice %5 {offsets = [1, 0], sizes = [286, 8], strides = [1, 1]} : vector<324x8xf32> to vector<286x8xf32>
    %8 = vector.extract_strided_slice %5 {offsets = [2, 0], sizes = [286, 8], strides = [1, 1]} : vector<324x8xf32> to vector<286x8xf32>
    %9 = vector.extract_strided_slice %5 {offsets = [18, 0], sizes = [286, 8], strides = [1, 1]} : vector<324x8xf32> to vector<286x8xf32>
    %10 = vector.extract_strided_slice %5 {offsets = [19, 0], sizes = [286, 8], strides = [1, 1]} : vector<324x8xf32> to vector<286x8xf32>
    %11 = vector.extract_strided_slice %5 {offsets = [20, 0], sizes = [286, 8], strides = [1, 1]} : vector<324x8xf32> to vector<286x8xf32>
    %12 = vector.extract_strided_slice %5 {offsets = [36, 0], sizes = [286, 8], strides = [1, 1]} : vector<324x8xf32> to vector<286x8xf32>
    %13 = vector.extract_strided_slice %5 {offsets = [37, 0], sizes = [286, 8], strides = [1, 1]} : vector<324x8xf32> to vector<286x8xf32>
    %14 = vector.extract_strided_slice %5 {offsets = [38, 0], sizes = [286, 8], strides = [1, 1]} : vector<324x8xf32> to vector<286x8xf32>
    %15 = tpu.concatenate %6, %7, %8, %9, %10, %11, %12, %13, %14 in 1 : vector<286x8xf32>, vector<286x8xf32>, vector<286x8xf32>, vector<286x8xf32>, vector<286x8xf32>, vector<286x8xf32>, vector<286x8xf32>, vector<286x8xf32>, vector<286x8xf32> -> vector<286x72xf32>
    %16 = arith.truncf %15 : vector<286x72xf32> to vector<286x72xbf16>
    %c0_6 = arith.constant 0 : index
    %c0_7 = arith.constant 0 : index
    %17 = vector.load %arg2[%c0_6, %c0_7] : memref<72x32xbf16, #tpu.memory_space<vmem>>, vector<72x32xbf16>
    %cst_8 = arith.constant dense<0.000000e+00> : vector<286x32xf32>
    %18 = tpu.matmul %16, %17, %cst_8 {dimension_numbers = #tpu.dot_dimension_numbers<[1], [0], [0], [1], [0, 0, 1, 1], [], []>} : vector<286x72xbf16>, vector<72x32xbf16>, vector<286x32xf32> -> vector<286x32xf32>
    %c0_9 = arith.constant 0 : index
    %c0_10 = arith.constant 0 : index
    %19 = vector.load %arg3[%c0_9, %c0_10] : memref<1x32xf32, #tpu.memory_space<vmem>>, vector<1x32xf32>
    %20 = vector.broadcast %19 : vector<1x32xf32> to vector<286x32xf32>
    %21 = arith.addf %18, %20 : vector<286x32xf32>
    %cst_11 = arith.constant 0.000000e+00 : f32
    %22 = vector.broadcast %cst_11 : f32 to vector<286x32xf32>
    %23 = arith.maximumf %21, %22 : vector<286x32xf32>
    %c0_12 = arith.constant 0 : index
    %c0_13 = arith.constant 0 : index
    %24 = vector.load %arg4[%c0_12, %c0_13] : memref<286x1xf32, #tpu.memory_space<vmem>>, vector<286x1xf32>
    %25 = vector.broadcast %24 : vector<286x1xf32> to vector<286x32xf32>
    %26 = arith.mulf %23, %25 : vector<286x32xf32>
    %c19 = arith.constant 19 : index
    %c0_14 = arith.constant 0 : index
    %27 = vector.load %arg23[%c19, %c0_14] : memref<324x32xf32, #tpu.memory_space<vmem>>, vector<286x32xf32>
    tpu.vector_store %arg23[%c19, %c0_14], %26 {strides = array<i32>} : memref<324x32xf32, #tpu.memory_space<vmem>>, vector<286x32xf32>,
    %28 = vector.extract_strided_slice %26 {offsets = [0, 0], sizes = [16, 32], strides = [1, 1]} : vector<286x32xf32> to vector<16x32xf32>
    %c0_15 = arith.constant 0 : index
    %c0_16 = arith.constant 0 : index
    %29 = vector.load %arg24[%c0_15, %c0_16] : memref<256x32xf32, #tpu.memory_space<vmem>>, vector<16x32xf32>
    tpu.vector_store %arg24[%c0_15, %c0_16], %28 {strides = array<i32>} : memref<256x32xf32, #tpu.memory_space<vmem>>, vector<16x32xf32>,
    %30 = vector.extract_strided_slice %26 {offsets = [18, 0], sizes = [16, 32], strides = [1, 1]} : vector<286x32xf32> to vector<16x32xf32>
    %c16 = arith.constant 16 : index
    %c0_17 = arith.constant 0 : index
    %31 = vector.load %arg24[%c16, %c0_17] : memref<256x32xf32, #tpu.memory_space<vmem>>, vector<16x32xf32>
    tpu.vector_store %arg24[%c16, %c0_17], %30 {strides = array<i32>} : memref<256x32xf32, #tpu.memory_space<vmem>>, vector<16x32xf32>,
    %32 = vector.extract_strided_slice %26 {offsets = [36, 0], sizes = [16, 32], strides = [1, 1]} : vector<286x32xf32> to vector<16x32xf32>
    %c32 = arith.constant 32 : index
    %c0_18 = arith.constant 0 : index
    %33 = vector.load %arg24[%c32, %c0_18] : memref<256x32xf32, #tpu.memory_space<vmem>>, vector<16x32xf32>
    tpu.vector_store %arg24[%c32, %c0_18], %32 {strides = array<i32>} : memref<256x32xf32, #tpu.memory_space<vmem>>, vector<16x32xf32>,
    %34 = vector.extract_strided_slice %26 {offsets = [54, 0], sizes = [16, 32], strides = [1, 1]} : vector<286x32xf32> to vector<16x32xf32>
    %c48 = arith.constant 48 : index
    %c0_19 = arith.constant 0 : index
    %35 = vector.load %arg24[%c48, %c0_19] : memref<256x32xf32, #tpu.memory_space<vmem>>, vector<16x32xf32>
    tpu.vector_store %arg24[%c48, %c0_19], %34 {strides = array<i32>} : memref<256x32xf32, #tpu.memory_space<vmem>>, vector<16x32xf32>,
    %36 = vector.extract_strided_slice %26 {offsets = [72, 0], sizes = [16, 32], strides = [1, 1]} : vector<286x32xf32> to vector<16x32xf32>
    %c64 = arith.constant 64 : index
    %c0_20 = arith.constant 0 : index
    %37 = vector.load %arg24[%c64, %c0_20] : memref<256x32xf32, #tpu.memory_space<vmem>>, vector<16x32xf32>
    tpu.vector_store %arg24[%c64, %c0_20], %36 {strides = array<i32>} : memref<256x32xf32, #tpu.memory_space<vmem>>, vector<16x32xf32>,
    %38 = vector.extract_strided_slice %26 {offsets = [90, 0], sizes = [16, 32], strides = [1, 1]} : vector<286x32xf32> to vector<16x32xf32>
    %c80 = arith.constant 80 : index
    %c0_21 = arith.constant 0 : index
    %39 = vector.load %arg24[%c80, %c0_21] : memref<256x32xf32, #tpu.memory_space<vmem>>, vector<16x32xf32>
    tpu.vector_store %arg24[%c80, %c0_21], %38 {strides = array<i32>} : memref<256x32xf32, #tpu.memory_space<vmem>>, vector<16x32xf32>,
    %40 = vector.extract_strided_slice %26 {offsets = [108, 0], sizes = [16, 32], strides = [1, 1]} : vector<286x32xf32> to vector<16x32xf32>
    %c96 = arith.constant 96 : index
    %c0_22 = arith.constant 0 : index
    %41 = vector.load %arg24[%c96, %c0_22] : memref<256x32xf32, #tpu.memory_space<vmem>>, vector<16x32xf32>
    tpu.vector_store %arg24[%c96, %c0_22], %40 {strides = array<i32>} : memref<256x32xf32, #tpu.memory_space<vmem>>, vector<16x32xf32>,
    %42 = vector.extract_strided_slice %26 {offsets = [126, 0], sizes = [16, 32], strides = [1, 1]} : vector<286x32xf32> to vector<16x32xf32>
    %c112 = arith.constant 112 : index
    %c0_23 = arith.constant 0 : index
    %43 = vector.load %arg24[%c112, %c0_23] : memref<256x32xf32, #tpu.memory_space<vmem>>, vector<16x32xf32>
    tpu.vector_store %arg24[%c112, %c0_23], %42 {strides = array<i32>} : memref<256x32xf32, #tpu.memory_space<vmem>>, vector<16x32xf32>,
    %44 = vector.extract_strided_slice %26 {offsets = [144, 0], sizes = [16, 32], strides = [1, 1]} : vector<286x32xf32> to vector<16x32xf32>
    %c128 = arith.constant 128 : index
    %c0_24 = arith.constant 0 : index
    %45 = vector.load %arg24[%c128, %c0_24] : memref<256x32xf32, #tpu.memory_space<vmem>>, vector<16x32xf32>
    tpu.vector_store %arg24[%c128, %c0_24], %44 {strides = array<i32>} : memref<256x32xf32, #tpu.memory_space<vmem>>, vector<16x32xf32>,
    %46 = vector.extract_strided_slice %26 {offsets = [162, 0], sizes = [16, 32], strides = [1, 1]} : vector<286x32xf32> to vector<16x32xf32>
    %c144 = arith.constant 144 : index
    %c0_25 = arith.constant 0 : index
    %47 = vector.load %arg24[%c144, %c0_25] : memref<256x32xf32, #tpu.memory_space<vmem>>, vector<16x32xf32>
    tpu.vector_store %arg24[%c144, %c0_25], %46 {strides = array<i32>} : memref<256x32xf32, #tpu.memory_space<vmem>>, vector<16x32xf32>,
    %48 = vector.extract_strided_slice %26 {offsets = [180, 0], sizes = [16, 32], strides = [1, 1]} : vector<286x32xf32> to vector<16x32xf32>
    %c160 = arith.constant 160 : index
    %c0_26 = arith.constant 0 : index
    %49 = vector.load %arg24[%c160, %c0_26] : memref<256x32xf32, #tpu.memory_space<vmem>>, vector<16x32xf32>
    tpu.vector_store %arg24[%c160, %c0_26], %48 {strides = array<i32>} : memref<256x32xf32, #tpu.memory_space<vmem>>, vector<16x32xf32>,
    %50 = vector.extract_strided_slice %26 {offsets = [198, 0], sizes = [16, 32], strides = [1, 1]} : vector<286x32xf32> to vector<16x32xf32>
    %c176 = arith.constant 176 : index
    %c0_27 = arith.constant 0 : index
    %51 = vector.load %arg24[%c176, %c0_27] : memref<256x32xf32, #tpu.memory_space<vmem>>, vector<16x32xf32>
    tpu.vector_store %arg24[%c176, %c0_27], %50 {strides = array<i32>} : memref<256x32xf32, #tpu.memory_space<vmem>>, vector<16x32xf32>,
    %52 = vector.extract_strided_slice %26 {offsets = [216, 0], sizes = [16, 32], strides = [1, 1]} : vector<286x32xf32> to vector<16x32xf32>
    %c192 = arith.constant 192 : index
    %c0_28 = arith.constant 0 : index
    %53 = vector.load %arg24[%c192, %c0_28] : memref<256x32xf32, #tpu.memory_space<vmem>>, vector<16x32xf32>
    tpu.vector_store %arg24[%c192, %c0_28], %52 {strides = array<i32>} : memref<256x32xf32, #tpu.memory_space<vmem>>, vector<16x32xf32>,
    %54 = vector.extract_strided_slice %26 {offsets = [234, 0], sizes = [16, 32], strides = [1, 1]} : vector<286x32xf32> to vector<16x32xf32>
    %c208 = arith.constant 208 : index
    %c0_29 = arith.constant 0 : index
    %55 = vector.load %arg24[%c208, %c0_29] : memref<256x32xf32, #tpu.memory_space<vmem>>, vector<16x32xf32>
    tpu.vector_store %arg24[%c208, %c0_29], %54 {strides = array<i32>} : memref<256x32xf32, #tpu.memory_space<vmem>>, vector<16x32xf32>,
    %56 = vector.extract_strided_slice %26 {offsets = [252, 0], sizes = [16, 32], strides = [1, 1]} : vector<286x32xf32> to vector<16x32xf32>
    %c224 = arith.constant 224 : index
    %c0_30 = arith.constant 0 : index
    %57 = vector.load %arg24[%c224, %c0_30] : memref<256x32xf32, #tpu.memory_space<vmem>>, vector<16x32xf32>
    tpu.vector_store %arg24[%c224, %c0_30], %56 {strides = array<i32>} : memref<256x32xf32, #tpu.memory_space<vmem>>, vector<16x32xf32>,
    %58 = vector.extract_strided_slice %26 {offsets = [270, 0], sizes = [16, 32], strides = [1, 1]} : vector<286x32xf32> to vector<16x32xf32>
    %c240 = arith.constant 240 : index
    %c0_31 = arith.constant 0 : index
    %59 = vector.load %arg24[%c240, %c0_31] : memref<256x32xf32, #tpu.memory_space<vmem>>, vector<16x32xf32>
    tpu.vector_store %arg24[%c240, %c0_31], %58 {strides = array<i32>} : memref<256x32xf32, #tpu.memory_space<vmem>>, vector<16x32xf32>,
    %c0_32 = arith.constant 0 : index
    %c0_33 = arith.constant 0 : index
    %60 = vector.load %arg23[%c0_32, %c0_33] : memref<324x32xf32, #tpu.memory_space<vmem>>, vector<286x32xf32>
    %c1 = arith.constant 1 : index
    %c0_34 = arith.constant 0 : index
    %61 = vector.load %arg23[%c1, %c0_34] : memref<324x32xf32, #tpu.memory_space<vmem>>, vector<286x32xf32>
    %c2 = arith.constant 2 : index
    %c0_35 = arith.constant 0 : index
    %62 = vector.load %arg23[%c2, %c0_35] : memref<324x32xf32, #tpu.memory_space<vmem>>, vector<286x32xf32>
    %c18 = arith.constant 18 : index
    %c0_36 = arith.constant 0 : index
    %63 = vector.load %arg23[%c18, %c0_36] : memref<324x32xf32, #tpu.memory_space<vmem>>, vector<286x32xf32>
    %c19_37 = arith.constant 19 : index
    %c0_38 = arith.constant 0 : index
    %64 = vector.load %arg23[%c19_37, %c0_38] : memref<324x32xf32, #tpu.memory_space<vmem>>, vector<286x32xf32>
    %c20 = arith.constant 20 : index
    %c0_39 = arith.constant 0 : index
    %65 = vector.load %arg23[%c20, %c0_39] : memref<324x32xf32, #tpu.memory_space<vmem>>, vector<286x32xf32>
    %c36 = arith.constant 36 : index
    %c0_40 = arith.constant 0 : index
    %66 = vector.load %arg23[%c36, %c0_40] : memref<324x32xf32, #tpu.memory_space<vmem>>, vector<286x32xf32>
    %c37 = arith.constant 37 : index
    %c0_41 = arith.constant 0 : index
    %67 = vector.load %arg23[%c37, %c0_41] : memref<324x32xf32, #tpu.memory_space<vmem>>, vector<286x32xf32>
    %c38 = arith.constant 38 : index
    %c0_42 = arith.constant 0 : index
    %68 = vector.load %arg23[%c38, %c0_42] : memref<324x32xf32, #tpu.memory_space<vmem>>, vector<286x32xf32>
    %69 = tpu.concatenate %60, %61, %62, %63, %64, %65, %66, %67, %68 in 1 : vector<286x32xf32>, vector<286x32xf32>, vector<286x32xf32>, vector<286x32xf32>, vector<286x32xf32>, vector<286x32xf32>, vector<286x32xf32>, vector<286x32xf32>, vector<286x32xf32> -> vector<286x288xf32>
    %70 = arith.truncf %69 : vector<286x288xf32> to vector<286x288xbf16>
    %c0_43 = arith.constant 0 : index
    %c0_44 = arith.constant 0 : index
    %71 = vector.load %arg5[%c0_43, %c0_44] : memref<288x64xbf16, #tpu.memory_space<vmem>>, vector<288x64xbf16>
    %cst_45 = arith.constant dense<0.000000e+00> : vector<286x64xf32>
    %72 = tpu.matmul %70, %71, %cst_45 {dimension_numbers = #tpu.dot_dimension_numbers<[1], [0], [0], [1], [0, 0, 1, 1], [], []>} : vector<286x288xbf16>, vector<288x64xbf16>, vector<286x64xf32> -> vector<286x64xf32>
    %c0_46 = arith.constant 0 : index
    %c0_47 = arith.constant 0 : index
    %73 = vector.load %arg6[%c0_46, %c0_47] : memref<1x64xf32, #tpu.memory_space<vmem>>, vector<1x64xf32>
    %74 = vector.broadcast %73 : vector<1x64xf32> to vector<286x64xf32>
    %75 = arith.addf %72, %74 : vector<286x64xf32>
    %cst_48 = arith.constant 0.000000e+00 : f32
    %76 = vector.broadcast %cst_48 : f32 to vector<286x64xf32>
    %77 = arith.maximumf %75, %76 : vector<286x64xf32>
    %c0_49 = arith.constant 0 : index
    %c0_50 = arith.constant 0 : index
    %78 = vector.load %arg7[%c0_49, %c0_50] : memref<100x286xbf16, #tpu.memory_space<vmem>>, vector<100x286xbf16>
    %79 = arith.truncf %77 : vector<286x64xf32> to vector<286x64xbf16>
    %cst_51 = arith.constant dense<0.000000e+00> : vector<100x64xf32>
    %80 = tpu.matmul %78, %79, %cst_51 {dimension_numbers = #tpu.dot_dimension_numbers<[1], [0], [0], [1], [0, 0, 1, 1], [], []>} : vector<100x286xbf16>, vector<286x64xbf16>, vector<100x64xf32> -> vector<100x64xf32>
    %c0_52 = arith.constant 0 : index
    %c0_53 = arith.constant 0 : index
    %81 = vector.load %arg25[%c0_52, %c0_53] : memref<100x64xf32, #tpu.memory_space<vmem>>, vector<100x64xf32>
    tpu.vector_store %arg25[%c0_52, %c0_53], %80 {strides = array<i32>} : memref<100x64xf32, #tpu.memory_space<vmem>>, vector<100x64xf32>,
    %c0_54 = arith.constant 0 : index
    %c0_55 = arith.constant 0 : index
    %82 = vector.load %arg25[%c0_54, %c0_55] : memref<100x64xf32, #tpu.memory_space<vmem>>, vector<78x64xf32>
    %c1_56 = arith.constant 1 : index
    %c0_57 = arith.constant 0 : index
    %83 = vector.load %arg25[%c1_56, %c0_57] : memref<100x64xf32, #tpu.memory_space<vmem>>, vector<78x64xf32>
    %c2_58 = arith.constant 2 : index
    %c0_59 = arith.constant 0 : index
    %84 = vector.load %arg25[%c2_58, %c0_59] : memref<100x64xf32, #tpu.memory_space<vmem>>, vector<78x64xf32>
    %c10 = arith.constant 10 : index
    %c0_60 = arith.constant 0 : index
    %85 = vector.load %arg25[%c10, %c0_60] : memref<100x64xf32, #tpu.memory_space<vmem>>, vector<78x64xf32>
    %c11 = arith.constant 11 : index
    %c0_61 = arith.constant 0 : index
    %86 = vector.load %arg25[%c11, %c0_61] : memref<100x64xf32, #tpu.memory_space<vmem>>, vector<78x64xf32>
    %c12 = arith.constant 12 : index
    %c0_62 = arith.constant 0 : index
    %87 = vector.load %arg25[%c12, %c0_62] : memref<100x64xf32, #tpu.memory_space<vmem>>, vector<78x64xf32>
    %c20_63 = arith.constant 20 : index
    %c0_64 = arith.constant 0 : index
    %88 = vector.load %arg25[%c20_63, %c0_64] : memref<100x64xf32, #tpu.memory_space<vmem>>, vector<78x64xf32>
    %c21 = arith.constant 21 : index
    %c0_65 = arith.constant 0 : index
    %89 = vector.load %arg25[%c21, %c0_65] : memref<100x64xf32, #tpu.memory_space<vmem>>, vector<78x64xf32>
    %c22 = arith.constant 22 : index
    %c0_66 = arith.constant 0 : index
    %90 = vector.load %arg25[%c22, %c0_66] : memref<100x64xf32, #tpu.memory_space<vmem>>, vector<78x64xf32>
    %91 = tpu.concatenate %82, %83, %84, %85, %86, %87, %88, %89, %90 in 1 : vector<78x64xf32>, vector<78x64xf32>, vector<78x64xf32>, vector<78x64xf32>, vector<78x64xf32>, vector<78x64xf32>, vector<78x64xf32>, vector<78x64xf32>, vector<78x64xf32> -> vector<78x576xf32>
    %92 = arith.truncf %91 : vector<78x576xf32> to vector<78x576xbf16>
    %c0_67 = arith.constant 0 : index
    %c0_68 = arith.constant 0 : index
    %93 = vector.load %arg8[%c0_67, %c0_68] : memref<576x128xbf16, #tpu.memory_space<vmem>>, vector<576x128xbf16>
    %cst_69 = arith.constant dense<0.000000e+00> : vector<78x128xf32>
    %94 = tpu.matmul %92, %93, %cst_69 {dimension_numbers = #tpu.dot_dimension_numbers<[1], [0], [0], [1], [0, 0, 1, 1], [], []>} : vector<78x576xbf16>, vector<576x128xbf16>, vector<78x128xf32> -> vector<78x128xf32>
    %c0_70 = arith.constant 0 : index
    %c0_71 = arith.constant 0 : index
    %95 = vector.load %arg9[%c0_70, %c0_71] : memref<1x128xf32, #tpu.memory_space<vmem>>, vector<1x128xf32>
    %96 = vector.broadcast %95 : vector<1x128xf32> to vector<78x128xf32>
    %97 = arith.addf %94, %96 : vector<78x128xf32>
    %cst_72 = arith.constant 0.000000e+00 : f32
    %98 = vector.broadcast %cst_72 : f32 to vector<78x128xf32>
    %99 = arith.maximumf %97, %98 : vector<78x128xf32>
    %c0_73 = arith.constant 0 : index
    %c0_74 = arith.constant 0 : index
    %100 = vector.load %arg10[%c0_73, %c0_74] : memref<36x78xbf16, #tpu.memory_space<vmem>>, vector<36x78xbf16>
    %101 = arith.truncf %99 : vector<78x128xf32> to vector<78x128xbf16>
    %cst_75 = arith.constant dense<0.000000e+00> : vector<36x128xf32>
    %102 = tpu.matmul %100, %101, %cst_75 {dimension_numbers = #tpu.dot_dimension_numbers<[1], [0], [0], [1], [0, 0, 1, 1], [], []>} : vector<36x78xbf16>, vector<78x128xbf16>, vector<36x128xf32> -> vector<36x128xf32>
    %103 = vector.extract_strided_slice %102 {offsets = [0, 0], sizes = [22, 128], strides = [1, 1]} : vector<36x128xf32> to vector<22x128xf32>
    %104 = vector.extract_strided_slice %102 {offsets = [1, 0], sizes = [22, 128], strides = [1, 1]} : vector<36x128xf32> to vector<22x128xf32>
    %105 = vector.extract_strided_slice %102 {offsets = [2, 0], sizes = [22, 128], strides = [1, 1]} : vector<36x128xf32> to vector<22x128xf32>
    %106 = vector.extract_strided_slice %102 {offsets = [6, 0], sizes = [22, 128], strides = [1, 1]} : vector<36x128xf32> to vector<22x128xf32>
    %107 = vector.extract_strided_slice %102 {offsets = [7, 0], sizes = [22, 128], strides = [1, 1]} : vector<36x128xf32> to vector<22x128xf32>
    %108 = vector.extract_strided_slice %102 {offsets = [8, 0], sizes = [22, 128], strides = [1, 1]} : vector<36x128xf32> to vector<22x128xf32>
    %109 = vector.extract_strided_slice %102 {offsets = [12, 0], sizes = [22, 128], strides = [1, 1]} : vector<36x128xf32> to vector<22x128xf32>
    %110 = vector.extract_strided_slice %102 {offsets = [13, 0], sizes = [22, 128], strides = [1, 1]} : vector<36x128xf32> to vector<22x128xf32>
    %111 = vector.extract_strided_slice %102 {offsets = [14, 0], sizes = [22, 128], strides = [1, 1]} : vector<36x128xf32> to vector<22x128xf32>
    %112 = tpu.concatenate %103, %104, %105, %106, %107, %108, %109, %110, %111 in 1 : vector<22x128xf32>, vector<22x128xf32>, vector<22x128xf32>, vector<22x128xf32>, vector<22x128xf32>, vector<22x128xf32>, vector<22x128xf32>, vector<22x128xf32>, vector<22x128xf32> -> vector<22x1152xf32>
    %113 = arith.truncf %112 : vector<22x1152xf32> to vector<22x1152xbf16>
    %c0_76 = arith.constant 0 : index
    %c0_77 = arith.constant 0 : index
    %114 = vector.load %arg11[%c0_76, %c0_77] : memref<1152x128xbf16, #tpu.memory_space<vmem>>, vector<1152x128xbf16>
    %cst_78 = arith.constant dense<0.000000e+00> : vector<22x128xf32>
    %115 = tpu.matmul %113, %114, %cst_78 {dimension_numbers = #tpu.dot_dimension_numbers<[1], [0], [0], [1], [0, 0, 1, 1], [], []>} : vector<22x1152xbf16>, vector<1152x128xbf16>, vector<22x128xf32> -> vector<22x128xf32>
    %c0_79 = arith.constant 0 : index
    %c0_80 = arith.constant 0 : index
    %116 = vector.load %arg12[%c0_79, %c0_80] : memref<1x128xf32, #tpu.memory_space<vmem>>, vector<1x128xf32>
    %117 = vector.broadcast %116 : vector<1x128xf32> to vector<22x128xf32>
    %118 = arith.addf %115, %117 : vector<22x128xf32>
    %cst_81 = arith.constant 0.000000e+00 : f32
    %119 = vector.broadcast %cst_81 : f32 to vector<22x128xf32>
    %120 = arith.maximumf %118, %119 : vector<22x128xf32>
    %121 = arith.truncf %120 : vector<22x128xf32> to vector<22x128xbf16>
    %c0_82 = arith.constant 0 : index
    %c0_83 = arith.constant 0 : index
    %122 = vector.load %arg13[%c0_82, %c0_83] : memref<128x256xbf16, #tpu.memory_space<vmem>>, vector<128x256xbf16>
    %cst_84 = arith.constant dense<0.000000e+00> : vector<22x256xf32>
    %123 = tpu.matmul %121, %122, %cst_84 {dimension_numbers = #tpu.dot_dimension_numbers<[1], [0], [0], [1], [0, 0, 1, 1], [], []>} : vector<22x128xbf16>, vector<128x256xbf16>, vector<22x256xf32> -> vector<22x256xf32>
    %124 = arith.truncf %123 : vector<22x256xf32> to vector<22x256xbf16>
    %c0_85 = arith.constant 0 : index
    %c0_86 = arith.constant 0 : index
    %c0_87 = arith.constant 0 : index
    %125 = vector.load %arg15[%c0_85, %c0_86, %c0_87] : memref<4x78x22xbf16, #tpu.memory_space<vmem>>, vector<1x78x22xbf16>
    %126 = vector.shape_cast %125 : vector<1x78x22xbf16> to vector<78x22xbf16>
    %127 = vector.extract_strided_slice %124 {offsets = [0, 0], sizes = [22, 64], strides = [1, 1]} : vector<22x256xbf16> to vector<22x64xbf16>
    %cst_88 = arith.constant dense<0.000000e+00> : vector<78x64xf32>
    %128 = tpu.matmul %126, %127, %cst_88 {dimension_numbers = #tpu.dot_dimension_numbers<[1], [0], [0], [1], [0, 0, 1, 1], [], []>} : vector<78x22xbf16>, vector<22x64xbf16>, vector<78x64xf32> -> vector<78x64xf32>
    %c1_89 = arith.constant 1 : index
    %c0_90 = arith.constant 0 : index
    %c0_91 = arith.constant 0 : index
    %129 = vector.load %arg15[%c1_89, %c0_90, %c0_91] : memref<4x78x22xbf16, #tpu.memory_space<vmem>>, vector<1x78x22xbf16>
    %130 = vector.shape_cast %129 : vector<1x78x22xbf16> to vector<78x22xbf16>
    %131 = vector.extract_strided_slice %124 {offsets = [0, 64], sizes = [22, 64], strides = [1, 1]} : vector<22x256xbf16> to vector<22x64xbf16>
    %cst_92 = arith.constant dense<0.000000e+00> : vector<78x64xf32>
    %132 = tpu.matmul %130, %131, %cst_92 {dimension_numbers = #tpu.dot_dimension_numbers<[1], [0], [0], [1], [0, 0, 1, 1], [], []>} : vector<78x22xbf16>, vector<22x64xbf16>, vector<78x64xf32> -> vector<78x64xf32>
    %133 = arith.addf %128, %132 : vector<78x64xf32>
    %c2_93 = arith.constant 2 : index
    %c0_94 = arith.constant 0 : index
    %c0_95 = arith.constant 0 : index
    %134 = vector.load %arg15[%c2_93, %c0_94, %c0_95] : memref<4x78x22xbf16, #tpu.memory_space<vmem>>, vector<1x78x22xbf16>
    %135 = vector.shape_cast %134 : vector<1x78x22xbf16> to vector<78x22xbf16>
    %136 = vector.extract_strided_slice %124 {offsets = [0, 128], sizes = [22, 64], strides = [1, 1]} : vector<22x256xbf16> to vector<22x64xbf16>
    %cst_96 = arith.constant dense<0.000000e+00> : vector<78x64xf32>
    %137 = tpu.matmul %135, %136, %cst_96 {dimension_numbers = #tpu.dot_dimension_numbers<[1], [0], [0], [1], [0, 0, 1, 1], [], []>} : vector<78x22xbf16>, vector<22x64xbf16>, vector<78x64xf32> -> vector<78x64xf32>
    %138 = arith.addf %133, %137 : vector<78x64xf32>
    %c3 = arith.constant 3 : index
    %c0_97 = arith.constant 0 : index
    %c0_98 = arith.constant 0 : index
    %139 = vector.load %arg15[%c3, %c0_97, %c0_98] : memref<4x78x22xbf16, #tpu.memory_space<vmem>>, vector<1x78x22xbf16>
    %140 = vector.shape_cast %139 : vector<1x78x22xbf16> to vector<78x22xbf16>
    %141 = vector.extract_strided_slice %124 {offsets = [0, 192], sizes = [22, 64], strides = [1, 1]} : vector<22x256xbf16> to vector<22x64xbf16>
    %cst_99 = arith.constant dense<0.000000e+00> : vector<78x64xf32>
    %142 = tpu.matmul %140, %141, %cst_99 {dimension_numbers = #tpu.dot_dimension_numbers<[1], [0], [0], [1], [0, 0, 1, 1], [], []>} : vector<78x22xbf16>, vector<22x64xbf16>, vector<78x64xf32> -> vector<78x64xf32>
    %143 = arith.addf %138, %142 : vector<78x64xf32>
    %c0_100 = arith.constant 0 : index
    %c0_101 = arith.constant 0 : index
    %144 = vector.load %arg14[%c0_100, %c0_101] : memref<1x64xf32, #tpu.memory_space<vmem>>, vector<1x64xf32>
    %145 = vector.broadcast %144 : vector<1x64xf32> to vector<78x64xf32>
    %146 = arith.addf %143, %145 : vector<78x64xf32>
    %cst_102 = arith.constant 0.000000e+00 : f32
    %147 = vector.broadcast %cst_102 : f32 to vector<78x64xf32>
    %148 = arith.maximumf %146, %147 : vector<78x64xf32>
    %c11_103 = arith.constant 11 : index
    %c0_104 = arith.constant 0 : index
    %149 = vector.load %arg25[%c11_103, %c0_104] : memref<100x64xf32, #tpu.memory_space<vmem>>, vector<78x64xf32>
    %150 = tpu.concatenate %148, %149 in 1 : vector<78x64xf32>, vector<78x64xf32> -> vector<78x128xf32>
    %151 = arith.truncf %150 : vector<78x128xf32> to vector<78x128xbf16>
    %c0_105 = arith.constant 0 : index
    %c0_106 = arith.constant 0 : index
    %152 = vector.load %arg16[%c0_105, %c0_106] : memref<128x128xbf16, #tpu.memory_space<vmem>>, vector<128x128xbf16>
    %cst_107 = arith.constant dense<0.000000e+00> : vector<78x128xf32>
    %153 = tpu.matmul %151, %152, %cst_107 {dimension_numbers = #tpu.dot_dimension_numbers<[1], [0], [0], [1], [0, 0, 1, 1], [], []>} : vector<78x128xbf16>, vector<128x128xbf16>, vector<78x128xf32> -> vector<78x128xf32>
    %154 = arith.truncf %153 : vector<78x128xf32> to vector<78x128xbf16>
    %c0_108 = arith.constant 0 : index
    %c0_109 = arith.constant 0 : index
    %c0_110 = arith.constant 0 : index
    %155 = vector.load %arg18[%c0_108, %c0_109, %c0_110] : memref<4x256x78xbf16, #tpu.memory_space<vmem>>, vector<1x256x78xbf16>
    %156 = vector.shape_cast %155 : vector<1x256x78xbf16> to vector<256x78xbf16>
    %157 = vector.extract_strided_slice %154 {offsets = [0, 0], sizes = [78, 32], strides = [1, 1]} : vector<78x128xbf16> to vector<78x32xbf16>
    %cst_111 = arith.constant dense<0.000000e+00> : vector<256x32xf32>
    %158 = tpu.matmul %156, %157, %cst_111 {dimension_numbers = #tpu.dot_dimension_numbers<[1], [0], [0], [1], [0, 0, 1, 1], [], []>} : vector<256x78xbf16>, vector<78x32xbf16>, vector<256x32xf32> -> vector<256x32xf32>
    %c1_112 = arith.constant 1 : index
    %c0_113 = arith.constant 0 : index
    %c0_114 = arith.constant 0 : index
    %159 = vector.load %arg18[%c1_112, %c0_113, %c0_114] : memref<4x256x78xbf16, #tpu.memory_space<vmem>>, vector<1x256x78xbf16>
    %160 = vector.shape_cast %159 : vector<1x256x78xbf16> to vector<256x78xbf16>
    %161 = vector.extract_strided_slice %154 {offsets = [0, 32], sizes = [78, 32], strides = [1, 1]} : vector<78x128xbf16> to vector<78x32xbf16>
    %cst_115 = arith.constant dense<0.000000e+00> : vector<256x32xf32>
    %162 = tpu.matmul %160, %161, %cst_115 {dimension_numbers = #tpu.dot_dimension_numbers<[1], [0], [0], [1], [0, 0, 1, 1], [], []>} : vector<256x78xbf16>, vector<78x32xbf16>, vector<256x32xf32> -> vector<256x32xf32>
    %163 = arith.addf %158, %162 : vector<256x32xf32>
    %c2_116 = arith.constant 2 : index
    %c0_117 = arith.constant 0 : index
    %c0_118 = arith.constant 0 : index
    %164 = vector.load %arg18[%c2_116, %c0_117, %c0_118] : memref<4x256x78xbf16, #tpu.memory_space<vmem>>, vector<1x256x78xbf16>
    %165 = vector.shape_cast %164 : vector<1x256x78xbf16> to vector<256x78xbf16>
    %166 = vector.extract_strided_slice %154 {offsets = [0, 64], sizes = [78, 32], strides = [1, 1]} : vector<78x128xbf16> to vector<78x32xbf16>
    %cst_119 = arith.constant dense<0.000000e+00> : vector<256x32xf32>
    %167 = tpu.matmul %165, %166, %cst_119 {dimension_numbers = #tpu.dot_dimension_numbers<[1], [0], [0], [1], [0, 0, 1, 1], [], []>} : vector<256x78xbf16>, vector<78x32xbf16>, vector<256x32xf32> -> vector<256x32xf32>
    %168 = arith.addf %163, %167 : vector<256x32xf32>
    %c3_120 = arith.constant 3 : index
    %c0_121 = arith.constant 0 : index
    %c0_122 = arith.constant 0 : index
    %169 = vector.load %arg18[%c3_120, %c0_121, %c0_122] : memref<4x256x78xbf16, #tpu.memory_space<vmem>>, vector<1x256x78xbf16>
    %170 = vector.shape_cast %169 : vector<1x256x78xbf16> to vector<256x78xbf16>
    %171 = vector.extract_strided_slice %154 {offsets = [0, 96], sizes = [78, 32], strides = [1, 1]} : vector<78x128xbf16> to vector<78x32xbf16>
    %cst_123 = arith.constant dense<0.000000e+00> : vector<256x32xf32>
    %172 = tpu.matmul %170, %171, %cst_123 {dimension_numbers = #tpu.dot_dimension_numbers<[1], [0], [0], [1], [0, 0, 1, 1], [], []>} : vector<256x78xbf16>, vector<78x32xbf16>, vector<256x32xf32> -> vector<256x32xf32>
    %173 = arith.addf %168, %172 : vector<256x32xf32>
    %c0_124 = arith.constant 0 : index
    %c0_125 = arith.constant 0 : index
    %174 = vector.load %arg17[%c0_124, %c0_125] : memref<1x32xf32, #tpu.memory_space<vmem>>, vector<1x32xf32>
    %175 = vector.broadcast %174 : vector<1x32xf32> to vector<256x32xf32>
    %176 = arith.addf %173, %175 : vector<256x32xf32>
    %cst_126 = arith.constant 0.000000e+00 : f32
    %177 = vector.broadcast %cst_126 : f32 to vector<256x32xf32>
    %178 = arith.maximumf %176, %177 : vector<256x32xf32>
    %179 = arith.truncf %178 : vector<256x32xf32> to vector<256x32xbf16>
    %c0_127 = arith.constant 0 : index
    %c0_128 = arith.constant 0 : index
    %180 = vector.load %arg19[%c0_127, %c0_128] : memref<8x32xbf16, #tpu.memory_space<vmem>>, vector<8x32xbf16>
    %cst_129 = arith.constant dense<0.000000e+00> : vector<8x256xf32>
    %181 = tpu.matmul %180, %179, %cst_129 {dimension_numbers = #tpu.dot_dimension_numbers<[1], [1], [0], [0], [0, 0, 1, 0], [], []>} : vector<8x32xbf16>, vector<256x32xbf16>, vector<8x256xf32> -> vector<8x256xf32>
    %c0_130 = arith.constant 0 : index
    %c0_131 = arith.constant 0 : index
    %182 = vector.load %arg20[%c0_130, %c0_131] : memref<8x32xbf16, #tpu.memory_space<vmem>>, vector<8x32xbf16>
    %c0_132 = arith.constant 0 : index
    %c0_133 = arith.constant 0 : index
    %183 = vector.load %arg24[%c0_132, %c0_133] : memref<256x32xf32, #tpu.memory_space<vmem>>, vector<256x32xf32>
    %184 = arith.truncf %183 : vector<256x32xf32> to vector<256x32xbf16>
    %cst_134 = arith.constant dense<0.000000e+00> : vector<8x256xf32>
    %185 = tpu.matmul %182, %184, %cst_134 {dimension_numbers = #tpu.dot_dimension_numbers<[1], [1], [0], [0], [0, 0, 1, 0], [], []>} : vector<8x32xbf16>, vector<256x32xbf16>, vector<8x256xf32> -> vector<8x256xf32>
    %186 = arith.addf %181, %185 : vector<8x256xf32>
    %c0_135 = arith.constant 0 : index
    %c0_136 = arith.constant 0 : index
    %187 = vector.load %arg21[%c0_135, %c0_136] : memref<8x1xf32, #tpu.memory_space<vmem>>, vector<8x1xf32>
    %188 = vector.broadcast %187 : vector<8x1xf32> to vector<8x256xf32>
    %189 = arith.addf %186, %188 : vector<8x256xf32>
    %c0_137 = arith.constant 0 : index
    %c0_138 = arith.constant 0 : index
    %c0_139 = arith.constant 0 : index
    %190 = vector.load %arg22[%c0_137, %c0_138, %c0_139] : memref<1x8x256xf32, #tpu.memory_space<vmem>>, vector<1x8x256xf32>
    %191 = vector.shape_cast %190 : vector<1x8x256xf32> to vector<8x256xf32>
    %192 = vector.shape_cast %189 : vector<8x256xf32> to vector<1x8x256xf32>
    tpu.vector_store %arg22[%c0_137, %c0_138, %c0_139], %192 {strides = array<i32>} : memref<1x8x256xf32, #tpu.memory_space<vmem>>, vector<1x8x256xf32>,
    return
  }
  func.func @transform_0(%arg0: i32) -> (i32, i32, i32) {
    %c0_i32 = arith.constant 0 : i32
    %c0_i32_0 = arith.constant 0 : i32
    %c0_i32_1 = arith.constant 0 : i32
    return %arg0, %c0_i32, %c0_i32_0 : i32, i32, i32
  }
  func.func @transform_1(%arg0: i32) -> (i32, i32) {
    %c0_i32 = arith.constant 0 : i32
    %c0_i32_0 = arith.constant 0 : i32
    %c0_i32_1 = arith.constant 0 : i32
    return %c0_i32, %c0_i32_0 : i32, i32
  }
  func.func @transform_2(%arg0: i32) -> (i32, i32) {
    %c0_i32 = arith.constant 0 : i32
    %c0_i32_0 = arith.constant 0 : i32
    %c0_i32_1 = arith.constant 0 : i32
    return %c0_i32, %c0_i32_0 : i32, i32
  }
  func.func @transform_3(%arg0: i32) -> (i32, i32) {
    %c0_i32 = arith.constant 0 : i32
    %c0_i32_0 = arith.constant 0 : i32
    %c0_i32_1 = arith.constant 0 : i32
    return %c0_i32, %c0_i32_0 : i32, i32
  }
  func.func @transform_4(%arg0: i32) -> (i32, i32) {
    %c0_i32 = arith.constant 0 : i32
    %c0_i32_0 = arith.constant 0 : i32
    %c0_i32_1 = arith.constant 0 : i32
    return %c0_i32, %c0_i32_0 : i32, i32
  }
  func.func @transform_5(%arg0: i32) -> (i32, i32) {
    %c0_i32 = arith.constant 0 : i32
    %c0_i32_0 = arith.constant 0 : i32
    %c0_i32_1 = arith.constant 0 : i32
    return %c0_i32, %c0_i32_0 : i32, i32
  }
  func.func @transform_6(%arg0: i32) -> (i32, i32) {
    %c0_i32 = arith.constant 0 : i32
    %c0_i32_0 = arith.constant 0 : i32
    %c0_i32_1 = arith.constant 0 : i32
    return %c0_i32, %c0_i32_0 : i32, i32
  }
  func.func @transform_7(%arg0: i32) -> (i32, i32) {
    %c0_i32 = arith.constant 0 : i32
    %c0_i32_0 = arith.constant 0 : i32
    %c0_i32_1 = arith.constant 0 : i32
    return %c0_i32, %c0_i32_0 : i32, i32
  }
  func.func @transform_8(%arg0: i32) -> (i32, i32) {
    %c0_i32 = arith.constant 0 : i32
    %c0_i32_0 = arith.constant 0 : i32
    %c0_i32_1 = arith.constant 0 : i32
    return %c0_i32, %c0_i32_0 : i32, i32
  }
  func.func @transform_9(%arg0: i32) -> (i32, i32) {
    %c0_i32 = arith.constant 0 : i32
    %c0_i32_0 = arith.constant 0 : i32
    %c0_i32_1 = arith.constant 0 : i32
    return %c0_i32, %c0_i32_0 : i32, i32
  }
  func.func @transform_10(%arg0: i32) -> (i32, i32) {
    %c0_i32 = arith.constant 0 : i32
    %c0_i32_0 = arith.constant 0 : i32
    %c0_i32_1 = arith.constant 0 : i32
    return %c0_i32, %c0_i32_0 : i32, i32
  }
  func.func @transform_11(%arg0: i32) -> (i32, i32) {
    %c0_i32 = arith.constant 0 : i32
    %c0_i32_0 = arith.constant 0 : i32
    %c0_i32_1 = arith.constant 0 : i32
    return %c0_i32, %c0_i32_0 : i32, i32
  }
  func.func @transform_12(%arg0: i32) -> (i32, i32) {
    %c0_i32 = arith.constant 0 : i32
    %c0_i32_0 = arith.constant 0 : i32
    %c0_i32_1 = arith.constant 0 : i32
    return %c0_i32, %c0_i32_0 : i32, i32
  }
  func.func @transform_13(%arg0: i32) -> (i32, i32) {
    %c0_i32 = arith.constant 0 : i32
    %c0_i32_0 = arith.constant 0 : i32
    %c0_i32_1 = arith.constant 0 : i32
    return %c0_i32, %c0_i32_0 : i32, i32
  }
  func.func @transform_14(%arg0: i32) -> (i32, i32, i32) {
    %c0_i32 = arith.constant 0 : i32
    %c0_i32_0 = arith.constant 0 : i32
    %c0_i32_1 = arith.constant 0 : i32
    %c0_i32_2 = arith.constant 0 : i32
    return %c0_i32, %c0_i32_0, %c0_i32_1 : i32, i32, i32
  }
  func.func @transform_15(%arg0: i32) -> (i32, i32) {
    %c0_i32 = arith.constant 0 : i32
    %c0_i32_0 = arith.constant 0 : i32
    %c0_i32_1 = arith.constant 0 : i32
    return %c0_i32, %c0_i32_0 : i32, i32
  }
  func.func @transform_16(%arg0: i32) -> (i32, i32) {
    %c0_i32 = arith.constant 0 : i32
    %c0_i32_0 = arith.constant 0 : i32
    %c0_i32_1 = arith.constant 0 : i32
    return %c0_i32, %c0_i32_0 : i32, i32
  }
  func.func @transform_17(%arg0: i32) -> (i32, i32, i32) {
    %c0_i32 = arith.constant 0 : i32
    %c0_i32_0 = arith.constant 0 : i32
    %c0_i32_1 = arith.constant 0 : i32
    %c0_i32_2 = arith.constant 0 : i32
    return %c0_i32, %c0_i32_0, %c0_i32_1 : i32, i32, i32
  }
  func.func @transform_18(%arg0: i32) -> (i32, i32) {
    %c0_i32 = arith.constant 0 : i32
    %c0_i32_0 = arith.constant 0 : i32
    %c0_i32_1 = arith.constant 0 : i32
    return %c0_i32, %c0_i32_0 : i32, i32
  }
  func.func @transform_19(%arg0: i32) -> (i32, i32) {
    %c0_i32 = arith.constant 0 : i32
    %c0_i32_0 = arith.constant 0 : i32
    %c0_i32_1 = arith.constant 0 : i32
    return %c0_i32, %c0_i32_0 : i32, i32
  }
  func.func @transform_20(%arg0: i32) -> (i32, i32) {
    %c0_i32 = arith.constant 0 : i32
    %c0_i32_0 = arith.constant 0 : i32
    %c0_i32_1 = arith.constant 0 : i32
    return %c0_i32, %c0_i32_0 : i32, i32
  }
  func.func @transform_21(%arg0: i32) -> (i32, i32, i32) {
    %c0_i32 = arith.constant 0 : i32
    %c0_i32_0 = arith.constant 0 : i32
    %c0_i32_1 = arith.constant 0 : i32
    return %arg0, %c0_i32, %c0_i32_0 : i32, i32, i32
  }
}

</mosaic_0001>

<llo_original>
// kernel: unet_forward.1
$region0: #{unet_forward.1}
  #allocation0 [shape = 'u32[]', space=smem, size = 0x4, offset = 0x4, fixed_abs, tag = 'smem constant byte address 0x4 - core index']
  #allocation1 [shape = 'u32[144,128]{1,0:T(1,128)}', space=vmem, size = 0x12000, scoped, tag = 'internal scratch']
  #allocation2 [shape = 'f32[324,32]{1,0:T(8,128)}', space=vmem, size = 0x29000, scoped, tag = 'scratch operand']
  #allocation3 [shape = 'f32[256,32]{1,0:T(8,128)}', space=vmem, size = 0x20000, scoped, tag = 'scratch operand']
  #allocation4 [shape = 'f32[100,64]{1,0:T(8,128)}', space=vmem, size = 0xd000, scoped, tag = 'scratch operand']
  %s0 = inlined_call_operand.vmem [shape: f32[2,324,8], index: 0, kind: input, shape index: {}]
  %s1 = inlined_call_operand.vmem [shape: bf16[72,32], index: 1, kind: input, shape index: {}]
  %s2 = inlined_call_operand.vmem [shape: f32[1,32], index: 2, kind: input, shape index: {}]
  %s3 = inlined_call_operand.vmem [shape: f32[286,1], index: 3, kind: input, shape index: {}]
  %s4 = inlined_call_operand.vmem [shape: bf16[288,64], index: 4, kind: input, shape index: {}]
  %s5 = inlined_call_operand.vmem [shape: f32[1,64], index: 5, kind: input, shape index: {}]
  %s6 = inlined_call_operand.vmem [shape: bf16[100,286], index: 6, kind: input, shape index: {}]
  %s7 = inlined_call_operand.vmem [shape: bf16[576,128], index: 7, kind: input, shape index: {}]
  %s8 = inlined_call_operand.vmem [shape: f32[1,128], index: 8, kind: input, shape index: {}]
  %s9 = inlined_call_operand.vmem [shape: bf16[36,78], index: 9, kind: input, shape index: {}]
  %s10 = inlined_call_operand.vmem [shape: bf16[1152,128], index: 10, kind: input, shape index: {}]
  %s11 = inlined_call_operand.vmem [shape: f32[1,128], index: 11, kind: input, shape index: {}]
  %s12 = inlined_call_operand.vmem [shape: bf16[128,256], index: 12, kind: input, shape index: {}]
  %s13 = inlined_call_operand.vmem [shape: f32[1,64], index: 13, kind: input, shape index: {}]
  %s14 = inlined_call_operand.vmem [shape: bf16[4,78,22], index: 14, kind: input, shape index: {}]
  %s15 = inlined_call_operand.vmem [shape: bf16[128,128], index: 15, kind: input, shape index: {}]
  %s16 = inlined_call_operand.vmem [shape: f32[1,32], index: 16, kind: input, shape index: {}]
  %s17 = inlined_call_operand.vmem [shape: bf16[4,256,78], index: 17, kind: input, shape index: {}]
  %s18 = inlined_call_operand.vmem [shape: bf16[8,32], index: 18, kind: input, shape index: {}]
  %s19 = inlined_call_operand.vmem [shape: bf16[8,32], index: 19, kind: input, shape index: {}]
  %s20 = inlined_call_operand.vmem [shape: f32[8,1], index: 20, kind: input, shape index: {}]
  %s21 = inlined_call_operand.vmem [shape: f32[2,8,256], index: 21, kind: output, shape index: {}]
  %s22 = sld [smem:[#allocation0]]
  $region117: #{unet_forward.1} parent=0
    _
  %s24 = ssub.s32 1, %s22
  %s25 = scalar_select 0, %s24, %s22
  loop: start=0, step=1, limit=4
  $region2: #{unet_forward.1} parent=0 // loop_pre_header
    _
  $region3: #{unet_forward.1} parent=0 // loop_header
    %s27 = sphi 0, %s31
    %p28 = scmp.ge.s32.totalorder %s27, 4
    %s37 = sphi 0, %s39
    %s40 = sphi 0, %s37
    %s41 = sphi 0, %s40
    %s57 = sphi 0, %s41
    %s61 = sphi 0, %s61
    %s63 = sphi 0, %s61
    %s64 = sphi 0, %s63
    %s78 = sphi 0, %s64
    %s82 = sphi 0, %s82
    %s84 = sphi 0, %s82
    %s85 = sphi 0, %s84
    %s99 = sphi 0, %s85
    %s103 = sphi 0, %s103
    %s105 = sphi 0, %s103
    %s106 = sphi 0, %s105
    %s120 = sphi 0, %s106
    %s124 = sphi 0, %s124
    %s126 = sphi 0, %s124
    %s127 = sphi 0, %s126
    %s141 = sphi 0, %s127
    %s145 = sphi 0, %s145
    %s147 = sphi 0, %s145
    %s148 = sphi 0, %s147
    %s162 = sphi 0, %s148
    %s166 = sphi 0, %s166
    %s168 = sphi 0, %s166
    %s169 = sphi 0, %s168
    %s183 = sphi 0, %s169
    %s187 = sphi 0, %s187
    %s189 = sphi 0, %s187
    %s190 = sphi 0, %s189
    %s204 = sphi 0, %s190
    %s208 = sphi 0, %s208
    %s210 = sphi 0, %s208
    %s211 = sphi 0, %s210
    %s225 = sphi 0, %s211
    %s229 = sphi 0, %s229
    %s231 = sphi 0, %s229
    %s232 = sphi 0, %s231
    %s246 = sphi 0, %s232
    %s250 = sphi 0, %s250
    %s252 = sphi 0, %s250
    %s253 = sphi 0, %s252
    %s267 = sphi 0, %s253
    %s271 = sphi 0, %s271
    %s273 = sphi 0, %s271
    %s274 = sphi 0, %s273
    %s288 = sphi 0, %s274
    %s292 = sphi 0, %s292
    %s294 = sphi 0, %s292
    %s295 = sphi 0, %s294
    %s309 = sphi 0, %s295
    %s313 = sphi 0, %s313
    %s315 = sphi 0, %s313
    %s316 = sphi 0, %s315
    %s330 = sphi 0, %s316
    %s334 = sphi 0, %s334
    %s336 = sphi 0, %s334
    %s337 = sphi 0, %s336
    %s351 = sphi 0, %s337
    %s355 = sphi 0, %s355
    %s357 = sphi 0, %s355
    %s358 = sphi 0, %s357
    %s372 = sphi 0, %s358
    %s376 = sphi 0, %s376
    %s378 = sphi 0, %s376
    %s379 = sphi 0, %s378
    %s393 = sphi 0, %s379
    %s397 = sphi 0, %s397
    %s399 = sphi 0, %s397
    %s400 = sphi 0, %s399
    %s414 = sphi 0, %s400
    %s418 = sphi 0, %s418
    %s420 = sphi 0, %s418
    %s421 = sphi 0, %s420
    %s435 = sphi 0, %s421
    %s439 = sphi 0, %s439
    %s441 = sphi 0, %s439
    %s442 = sphi 0, %s441
    %s456 = sphi 0, %s442
    %s460 = sphi 0, %s460
    %s462 = sphi 0, %s460
    %s463 = sphi 0, %s462
    %s477 = sphi 0, %s463
    %s483 = sphi 0, %s485
    %s486 = sphi 0, %s483
    %s487 = sphi 0, %s486
    %s503 = sphi 0, %s487
  $region4: #{unet_forward.1} parent=0 // loop_header_branch
    %30 = sbr.rel (%p28) target = $region8
  $region5: #{unet_forward.1} parent=0 // loop_body
    %s32 = ssub.s32 %s27, 1
    %s33 = ssub.s32 %s27, 2
    %s34 = sadd.s32 %s27, 1
    %s35 = ssub.s32 %s27, %s34
    %p36 = scmp.eq.s32.totalorder %s35, 0
    %s38 = sadd.s32 %s37, 1
    %s39 = scalar_select %p36, %s37, %s38
    %p42 = pneg %p36
    %p43 = scmp.eq.s32.totalorder %s27, 1
    %p44 = por %p42, %p43
    %p45 = scmp.ne.s32.totalorder %s37, %s40
    %p46 = scmp.eq.s32.totalorder %s27, 0
    %p47 = por %p45, %p46
    %p48 = scmp.ne.s32.totalorder %s37, %s40
    %p49 = scmp.eq.s32.totalorder %s32, 1
    %p50 = por %p48, %p49
    %p51 = scmp.ne.s32.totalorder %s40, %s41
    %p52 = scmp.eq.s32.totalorder %s32, 0
    %p53 = por %p51, %p52
    %p54 = scmp.ne.s32.totalorder %s40, %s41
    %p55 = scmp.eq.s32.totalorder %s33, 1
    %p56 = por %p54, %p55
    %p58 = scmp.ne.s32.totalorder %s41, %s57
    %p59 = scmp.eq.s32.totalorder %s33, 0
    %p60 = por %p58, %p59
    %s62 = sadd.s32 %s61, 1
    %p65 = scmp.eq.s32.totalorder %s27, 1
    %p66 = scmp.ne.s32.totalorder %s61, %s63
    %p67 = scmp.eq.s32.totalorder %s27, 0
    %p68 = por %p66, %p67
    %p69 = scmp.ne.s32.totalorder %s61, %s63
    %p70 = scmp.eq.s32.totalorder %s32, 1
    %p71 = por %p69, %p70
    %p72 = scmp.ne.s32.totalorder %s63, %s64
    %p73 = scmp.eq.s32.totalorder %s32, 0
    %p74 = por %p72, %p73
    %p75 = scmp.ne.s32.totalorder %s63, %s64
    %p76 = scmp.eq.s32.totalorder %s33, 1
    %p77 = por %p75, %p76
    %p79 = scmp.ne.s32.totalorder %s64, %s78
    %p80 = scmp.eq.s32.totalorder %s33, 0
    %p81 = por %p79, %p80
    %s83 = sadd.s32 %s82, 1
    %p86 = scmp.eq.s32.totalorder %s27, 1
    %p87 = scmp.ne.s32.totalorder %s82, %s84
    %p88 = scmp.eq.s32.totalorder %s27, 0
    %p89 = por %p87, %p88
    %p90 = scmp.ne.s32.totalorder %s82, %s84
    %p91 = scmp.eq.s32.totalorder %s32, 1
    %p92 = por %p90, %p91
    %p93 = scmp.ne.s32.totalorder %s84, %s85
    %p94 = scmp.eq.s32.totalorder %s32, 0
    %p95 = por %p93, %p94
    %p96 = scmp.ne.s32.totalorder %s84, %s85
    %p97 = scmp.eq.s32.totalorder %s33, 1
    %p98 = por %p96, %p97
    %p100 = scmp.ne.s32.totalorder %s85, %s99
    %p101 = scmp.eq.s32.totalorder %s33, 0
    %p102 = por %p100, %p101
    %s104 = sadd.s32 %s103, 1
    %p107 = scmp.eq.s32.totalorder %s27, 1
    %p108 = scmp.ne.s32.totalorder %s103, %s105
    %p109 = scmp.eq.s32.totalorder %s27, 0
    %p110 = por %p108, %p109
    %p111 = scmp.ne.s32.totalorder %s103, %s105
    %p112 = scmp.eq.s32.totalorder %s32, 1
    %p113 = por %p111, %p112
    %p114 = scmp.ne.s32.totalorder %s105, %s106
    %p115 = scmp.eq.s32.totalorder %s32, 0
    %p116 = por %p114, %p115
    %p117 = scmp.ne.s32.totalorder %s105, %s106
    %p118 = scmp.eq.s32.totalorder %s33, 1
    %p119 = por %p117, %p118
    %p121 = scmp.ne.s32.totalorder %s106, %s120
    %p122 = scmp.eq.s32.totalorder %s33, 0
    %p123 = por %p121, %p122
    %s125 = sadd.s32 %s124, 1
    %p128 = scmp.eq.s32.totalorder %s27, 1
    %p129 = scmp.ne.s32.totalorder %s124, %s126
    %p130 = scmp.eq.s32.totalorder %s27, 0
    %p131 = por %p129, %p130
    %p132 = scmp.ne.s32.totalorder %s124, %s126
    %p133 = scmp.eq.s32.totalorder %s32, 1
    %p134 = por %p132, %p133
    %p135 = scmp.ne.s32.totalorder %s126, %s127
    %p136 = scmp.eq.s32.totalorder %s32, 0
    %p137 = por %p135, %p136
    %p138 = scmp.ne.s32.totalorder %s126, %s127
    %p139 = scmp.eq.s32.totalorder %s33, 1
    %p140 = por %p138, %p139
    %p142 = scmp.ne.s32.totalorder %s127, %s141
    %p143 = scmp.eq.s32.totalorder %s33, 0
    %p144 = por %p142, %p143
    %s146 = sadd.s32 %s145, 1
    %p149 = scmp.eq.s32.totalorder %s27, 1
    %p150 = scmp.ne.s32.totalorder %s145, %s147
    %p151 = scmp.eq.s32.totalorder %s27, 0
    %p152 = por %p150, %p151
    %p153 = scmp.ne.s32.totalorder %s145, %s147
    %p154 = scmp.eq.s32.totalorder %s32, 1
    %p155 = por %p153, %p154
    %p156 = scmp.ne.s32.totalorder %s147, %s148
    %p157 = scmp.eq.s32.totalorder %s32, 0
    %p158 = por %p156, %p157
    %p159 = scmp.ne.s32.totalorder %s147, %s148
    %p160 = scmp.eq.s32.totalorder %s33, 1
    %p161 = por %p159, %p160
    %p163 = scmp.ne.s32.totalorder %s148, %s162
    %p164 = scmp.eq.s32.totalorder %s33, 0
    %p165 = por %p163, %p164
    %s167 = sadd.s32 %s166, 1
    %p170 = scmp.eq.s32.totalorder %s27, 1
    %p171 = scmp.ne.s32.totalorder %s166, %s168
    %p172 = scmp.eq.s32.totalorder %s27, 0
    %p173 = por %p171, %p172
    %p174 = scmp.ne.s32.totalorder %s166, %s168
    %p175 = scmp.eq.s32.totalorder %s32, 1
    %p176 = por %p174, %p175
    %p177 = scmp.ne.s32.totalorder %s168, %s169
    %p178 = scmp.eq.s32.totalorder %s32, 0
    %p179 = por %p177, %p178
    %p180 = scmp.ne.s32.totalorder %s168, %s169
    %p181 = scmp.eq.s32.totalorder %s33, 1
    %p182 = por %p180, %p181
    %p184 = scmp.ne.s32.totalorder %s169, %s183
    %p185 = scmp.eq.s32.totalorder %s33, 0
    %p186 = por %p184, %p185
    %s188 = sadd.s32 %s187, 1
    %p191 = scmp.eq.s32.totalorder %s27, 1
    %p192 = scmp.ne.s32.totalorder %s187, %s189
    %p193 = scmp.eq.s32.totalorder %s27, 0
    %p194 = por %p192, %p193
    %p195 = scmp.ne.s32.totalorder %s187, %s189
    %p196 = scmp.eq.s32.totalorder %s32, 1
    %p197 = por %p195, %p196
    %p198 = scmp.ne.s32.totalorder %s189, %s190
    %p199 = scmp.eq.s32.totalorder %s32, 0
    %p200 = por %p198, %p199
    %p201 = scmp.ne.s32.totalorder %s189, %s190
    %p202 = scmp.eq.s32.totalorder %s33, 1
    %p203 = por %p201, %p202
    %p205 = scmp.ne.s32.totalorder %s190, %s204
    %p206 = scmp.eq.s32.totalorder %s33, 0
    %p207 = por %p205, %p206
    %s209 = sadd.s32 %s208, 1
    %p212 = scmp.eq.s32.totalorder %s27, 1
    %p213 = scmp.ne.s32.totalorder %s208, %s210
    %p214 = scmp.eq.s32.totalorder %s27, 0
    %p215 = por %p213, %p214
    %p216 = scmp.ne.s32.totalorder %s208, %s210
    %p217 = scmp.eq.s32.totalorder %s32, 1
    %p218 = por %p216, %p217
    %p219 = scmp.ne.s32.totalorder %s210, %s211
    %p220 = scmp.eq.s32.totalorder %s32, 0
    %p221 = por %p219, %p220
    %p222 = scmp.ne.s32.totalorder %s210, %s211
    %p223 = scmp.eq.s32.totalorder %s33, 1
    %p224 = por %p222, %p223
    %p226 = scmp.ne.s32.totalorder %s211, %s225
    %p227 = scmp.eq.s32.totalorder %s33, 0
    %p228 = por %p226, %p227
    %s230 = sadd.s32 %s229, 1
    %p233 = scmp.eq.s32.totalorder %s27, 1
    %p234 = scmp.ne.s32.totalorder %s229, %s231
    %p235 = scmp.eq.s32.totalorder %s27, 0
    %p236 = por %p234, %p235
    %p237 = scmp.ne.s32.totalorder %s229, %s231
    %p238 = scmp.eq.s32.totalorder %s32, 1
    %p239 = por %p237, %p238
    %p240 = scmp.ne.s32.totalorder %s231, %s232
    %p241 = scmp.eq.s32.totalorder %s32, 0
    %p242 = por %p240, %p241
    %p243 = scmp.ne.s32.totalorder %s231, %s232
    %p244 = scmp.eq.s32.totalorder %s33, 1
    %p245 = por %p243, %p244
    %p247 = scmp.ne.s32.totalorder %s232, %s246
    %p248 = scmp.eq.s32.totalorder %s33, 0
    %p249 = por %p247, %p248
    %s251 = sadd.s32 %s250, 1
    %p254 = scmp.eq.s32.totalorder %s27, 1
    %p255 = scmp.ne.s32.totalorder %s250, %s252
    %p256 = scmp.eq.s32.totalorder %s27, 0
    %p257 = por %p255, %p256
    %p258 = scmp.ne.s32.totalorder %s250, %s252
    %p259 = scmp.eq.s32.totalorder %s32, 1
    %p260 = por %p258, %p259
    %p261 = scmp.ne.s32.totalorder %s252, %s253
    %p262 = scmp.eq.s32.totalorder %s32, 0
    %p263 = por %p261, %p262
    %p264 = scmp.ne.s32.totalorder %s252, %s253
    %p265 = scmp.eq.s32.totalorder %s33, 1
    %p266 = por %p264, %p265
    %p268 = scmp.ne.s32.totalorder %s253, %s267
    %p269 = scmp.eq.s32.totalorder %s33, 0
    %p270 = por %p268, %p269
    %s272 = sadd.s32 %s271, 1
    %p275 = scmp.eq.s32.totalorder %s27, 1
    %p276 = scmp.ne.s32.totalorder %s271, %s273
    %p277 = scmp.eq.s32.totalorder %s27, 0
    %p278 = por %p276, %p277
    %p279 = scmp.ne.s32.totalorder %s271, %s273
    %p280 = scmp.eq.s32.totalorder %s32, 1
    %p281 = por %p279, %p280
    %p282 = scmp.ne.s32.totalorder %s273, %s274
    %p283 = scmp.eq.s32.totalorder %s32, 0
    %p284 = por %p282, %p283
    %p285 = scmp.ne.s32.totalorder %s273, %s274
    %p286 = scmp.eq.s32.totalorder %s33, 1
    %p287 = por %p285, %p286
    %p289 = scmp.ne.s32.totalorder %s274, %s288
    %p290 = scmp.eq.s32.totalorder %s33, 0
    %p291 = por %p289, %p290
    %s293 = sadd.s32 %s292, 1
    %p296 = scmp.eq.s32.totalorder %s27, 1
    %p297 = scmp.ne.s32.totalorder %s292, %s294
    %p298 = scmp.eq.s32.totalorder %s27, 0
    %p299 = por %p297, %p298
    %p300 = scmp.ne.s32.totalorder %s292, %s294
    %p301 = scmp.eq.s32.totalorder %s32, 1
    %p302 = por %p300, %p301
    %p303 = scmp.ne.s32.totalorder %s294, %s295
    %p304 = scmp.eq.s32.totalorder %s32, 0
    %p305 = por %p303, %p304
    %p306 = scmp.ne.s32.totalorder %s294, %s295
    %p307 = scmp.eq.s32.totalorder %s33, 1
    %p308 = por %p306, %p307
    %p310 = scmp.ne.s32.totalorder %s295, %s309
    %p311 = scmp.eq.s32.totalorder %s33, 0
    %p312 = por %p310, %p311
    %s314 = sadd.s32 %s313, 1
    %p317 = scmp.eq.s32.totalorder %s27, 1
    %p318 = scmp.ne.s32.totalorder %s313, %s315
    %p319 = scmp.eq.s32.totalorder %s27, 0
    %p320 = por %p318, %p319
    %p321 = scmp.ne.s32.totalorder %s313, %s315
    %p322 = scmp.eq.s32.totalorder %s32, 1
    %p323 = por %p321, %p322
    %p324 = scmp.ne.s32.totalorder %s315, %s316
    %p325 = scmp.eq.s32.totalorder %s32, 0
    %p326 = por %p324, %p325
    %p327 = scmp.ne.s32.totalorder %s315, %s316
    %p328 = scmp.eq.s32.totalorder %s33, 1
    %p329 = por %p327, %p328
    %p331 = scmp.ne.s32.totalorder %s316, %s330
    %p332 = scmp.eq.s32.totalorder %s33, 0
    %p333 = por %p331, %p332
    %s335 = sadd.s32 %s334, 1
    %p338 = scmp.eq.s32.totalorder %s27, 1
    %p339 = scmp.ne.s32.totalorder %s334, %s336
    %p340 = scmp.eq.s32.totalorder %s27, 0
    %p341 = por %p339, %p340
    %p342 = scmp.ne.s32.totalorder %s334, %s336
    %p343 = scmp.eq.s32.totalorder %s32, 1
    %p344 = por %p342, %p343
    %p345 = scmp.ne.s32.totalorder %s336, %s337
    %p346 = scmp.eq.s32.totalorder %s32, 0
    %p347 = por %p345, %p346
    %p348 = scmp.ne.s32.totalorder %s336, %s337
    %p349 = scmp.eq.s32.totalorder %s33, 1
    %p350 = por %p348, %p349
    %p352 = scmp.ne.s32.totalorder %s337, %s351
    %p353 = scmp.eq.s32.totalorder %s33, 0
    %p354 = por %p352, %p353
    %s356 = sadd.s32 %s355, 1
    %p359 = scmp.eq.s32.totalorder %s27, 1
    %p360 = scmp.ne.s32.totalorder %s355, %s357
    %p361 = scmp.eq.s32.totalorder %s27, 0
    %p362 = por %p360, %p361
    %p363 = scmp.ne.s32.totalorder %s355, %s357
    %p364 = scmp.eq.s32.totalorder %s32, 1
    %p365 = por %p363, %p364
    %p366 = scmp.ne.s32.totalorder %s357, %s358
    %p367 = scmp.eq.s32.totalorder %s32, 0
    %p368 = por %p366, %p367
    %p369 = scmp.ne.s32.totalorder %s357, %s358
    %p370 = scmp.eq.s32.totalorder %s33, 1
    %p371 = por %p369, %p370
    %p373 = scmp.ne.s32.totalorder %s358, %s372
    %p374 = scmp.eq.s32.totalorder %s33, 0
    %p375 = por %p373, %p374
    %s377 = sadd.s32 %s376, 1
    %p380 = scmp.eq.s32.totalorder %s27, 1
    %p381 = scmp.ne.s32.totalorder %s376, %s378
    %p382 = scmp.eq.s32.totalorder %s27, 0
    %p383 = por %p381, %p382
    %p384 = scmp.ne.s32.totalorder %s376, %s378
    %p385 = scmp.eq.s32.totalorder %s32, 1
    %p386 = por %p384, %p385
    %p387 = scmp.ne.s32.totalorder %s378, %s379
    %p388 = scmp.eq.s32.totalorder %s32, 0
    %p389 = por %p387, %p388
    %p390 = scmp.ne.s32.totalorder %s378, %s379
    %p391 = scmp.eq.s32.totalorder %s33, 1
    %p392 = por %p390, %p391
    %p394 = scmp.ne.s32.totalorder %s379, %s393
    %p395 = scmp.eq.s32.totalorder %s33, 0
    %p396 = por %p394, %p395
    %s398 = sadd.s32 %s397, 1
    %p401 = scmp.eq.s32.totalorder %s27, 1
    %p402 = scmp.ne.s32.totalorder %s397, %s399
    %p403 = scmp.eq.s32.totalorder %s27, 0
    %p404 = por %p402, %p403
    %p405 = scmp.ne.s32.totalorder %s397, %s399
    %p406 = scmp.eq.s32.totalorder %s32, 1
    %p407 = por %p405, %p406
    %p408 = scmp.ne.s32.totalorder %s399, %s400
    %p409 = scmp.eq.s32.totalorder %s32, 0
    %p410 = por %p408, %p409
    %p411 = scmp.ne.s32.totalorder %s399, %s400
    %p412 = scmp.eq.s32.totalorder %s33, 1
    %p413 = por %p411, %p412
    %p415 = scmp.ne.s32.totalorder %s400, %s414
    %p416 = scmp.eq.s32.totalorder %s33, 0
    %p417 = por %p415, %p416
    %s419 = sadd.s32 %s418, 1
    %p422 = scmp.eq.s32.totalorder %s27, 1
    %p423 = scmp.ne.s32.totalorder %s418, %s420
    %p424 = scmp.eq.s32.totalorder %s27, 0
    %p425 = por %p423, %p424
    %p426 = scmp.ne.s32.totalorder %s418, %s420
    %p427 = scmp.eq.s32.totalorder %s32, 1
    %p428 = por %p426, %p427
    %p429 = scmp.ne.s32.totalorder %s420, %s421
    %p430 = scmp.eq.s32.totalorder %s32, 0
    %p431 = por %p429, %p430
    %p432 = scmp.ne.s32.totalorder %s420, %s421
    %p433 = scmp.eq.s32.totalorder %s33, 1
    %p434 = por %p432, %p433
    %p436 = scmp.ne.s32.totalorder %s421, %s435
    %p437 = scmp.eq.s32.totalorder %s33, 0
    %p438 = por %p436, %p437
    %s440 = sadd.s32 %s439, 1
    %p443 = scmp.eq.s32.totalorder %s27, 1
    %p444 = scmp.ne.s32.totalorder %s439, %s441
    %p445 = scmp.eq.s32.totalorder %s27, 0
    %p446 = por %p444, %p445
    %p447 = scmp.ne.s32.totalorder %s439, %s441
    %p448 = scmp.eq.s32.totalorder %s32, 1
    %p449 = por %p447, %p448
    %p450 = scmp.ne.s32.totalorder %s441, %s442
    %p451 = scmp.eq.s32.totalorder %s32, 0
    %p452 = por %p450, %p451
    %p453 = scmp.ne.s32.totalorder %s441, %s442
    %p454 = scmp.eq.s32.totalorder %s33, 1
    %p455 = por %p453, %p454
    %p457 = scmp.ne.s32.totalorder %s442, %s456
    %p458 = scmp.eq.s32.totalorder %s33, 0
    %p459 = por %p457, %p458
    %s461 = sadd.s32 %s460, 1
    %p464 = scmp.eq.s32.totalorder %s27, 1
    %p465 = scmp.ne.s32.totalorder %s460, %s462
    %p466 = scmp.eq.s32.totalorder %s27, 0
    %p467 = por %p465, %p466
    %p468 = scmp.ne.s32.totalorder %s460, %s462
    %p469 = scmp.eq.s32.totalorder %s32, 1
    %p470 = por %p468, %p469
    %p471 = scmp.ne.s32.totalorder %s462, %s463
    %p472 = scmp.eq.s32.totalorder %s32, 0
    %p473 = por %p471, %p472
    %p474 = scmp.ne.s32.totalorder %s462, %s463
    %p475 = scmp.eq.s32.totalorder %s33, 1
    %p476 = por %p474, %p475
    %p478 = scmp.ne.s32.totalorder %s463, %s477
    %p479 = scmp.eq.s32.totalorder %s33, 0
    %p480 = por %p478, %p479
    %s481 = ssub.s32 %s27, %s34
    %p482 = scmp.eq.s32.totalorder %s481, 0
    %s484 = sadd.s32 %s483, 1
    %s485 = scalar_select %p482, %s483, %s484
    %p488 = pneg %p482
    %p489 = scmp.eq.s32.totalorder %s27, 1
    %p490 = por %p488, %p489
    %p491 = scmp.ne.s32.totalorder %s483, %s486
    %p492 = scmp.eq.s32.totalorder %s27, 0
    %p493 = por %p491, %p492
    %p494 = scmp.ne.s32.totalorder %s483, %s486
    %p495 = scmp.eq.s32.totalorder %s32, 1
    %p496 = por %p494, %p495
    %p497 = scmp.ne.s32.totalorder %s486, %s487
    %p498 = scmp.eq.s32.totalorder %s32, 0
    %p499 = por %p497, %p498
    %p500 = scmp.ne.s32.totalorder %s486, %s487
    %p501 = scmp.eq.s32.totalorder %s33, 1
    %p502 = por %p500, %p501
    %p504 = scmp.ne.s32.totalorder %s487, %s503
    %p505 = scmp.eq.s32.totalorder %s33, 0
    %p506 = por %p504, %p505
    %p507 = scmp.le.s32.totalorder 1, %s27
    %p508 = scmp.lt.s32.totalorder %s27, 3
    %p509 = pnand %p507, %p508
    %p510 = pneg %p509
    // Predicated region
    $region9: #{unet_forward.1} parent=5 // pred_check
      _
    $region10: #{unet_forward.1} parent=5 // pred_check_branch
      %512 = sbr.rel (%p509) target = $region12
    $region11: #{unet_forward.1} parent=5 // pred_region
      %s513 = ssub.s32 %s27, 1
      // Predicated region
      $region13: #{unet_forward.1} parent=11 // pred_check
        %p514 = pneg %p74
      $region14: #{unet_forward.1} parent=11 // pred_check_branch
        %516 = sbr.rel (%p514) target = $region16
      $region15: #{unet_forward.1} parent=11 // pred_region
        _
      $region16: #{unet_forward.1} parent=11 // pred_fallthru
        _
      // Predicated region
      $region17: #{unet_forward.1} parent=11 // pred_check
        %p517 = pneg %p95
      $region18: #{unet_forward.1} parent=11 // pred_check_branch
        %519 = sbr.rel (%p517) target = $region20
      $region19: #{unet_forward.1} parent=11 // pred_region
        _
      $region20: #{unet_forward.1} parent=11 // pred_fallthru
        _
      // Predicated region
      $region21: #{unet_forward.1} parent=11 // pred_check
        %p520 = pneg %p116
      $region22: #{unet_forward.1} parent=11 // pred_check_branch
        %522 = sbr.rel (%p520) target = $region24
      $region23: #{unet_forward.1} parent=11 // pred_region
        _
      $region24: #{unet_forward.1} parent=11 // pred_fallthru
        _
      // Predicated region
      $region25: #{unet_forward.1} parent=11 // pred_check
        %p523 = pneg %p137
      $region26: #{unet_forward.1} parent=11 // pred_check_branch
        %525 = sbr.rel (%p523) target = $region28
      $region27: #{unet_forward.1} parent=11 // pred_region
        _
      $region28: #{unet_forward.1} parent=11 // pred_fallthru
        _
      // Predicated region
      $region29: #{unet_forward.1} parent=11 // pred_check
        %p526 = pneg %p158
      $region30: #{unet_forward.1} parent=11 // pred_check_branch
        %528 = sbr.rel (%p526) target = $region32
      $region31: #{unet_forward.1} parent=11 // pred_region
        _
      $region32: #{unet_forward.1} parent=11 // pred_fallthru
        _
      // Predicated region
      $region33: #{unet_forward.1} parent=11 // pred_check
        %p529 = pneg %p179
      $region34: #{unet_forward.1} parent=11 // pred_check_branch
        %531 = sbr.rel (%p529) target = $region36
      $region35: #{unet_forward.1} parent=11 // pred_region
        _
      $region36: #{unet_forward.1} parent=11 // pred_fallthru
        _
      // Predicated region
      $region37: #{unet_forward.1} parent=11 // pred_check
        %p532 = pneg %p200
      $region38: #{unet_forward.1} parent=11 // pred_check_branch
        %534 = sbr.rel (%p532) target = $region40
      $region39: #{unet_forward.1} parent=11 // pred_region
        _
      $region40: #{unet_forward.1} parent=11 // pred_fallthru
        _
      // Predicated region
      $region41: #{unet_forward.1} parent=11 // pred_check
        %p535 = pneg %p221
      $region42: #{unet_forward.1} parent=11 // pred_check_branch
        %537 = sbr.rel (%p535) target = $region44
      $region43: #{unet_forward.1} parent=11 // pred_region
        _
      $region44: #{unet_forward.1} parent=11 // pred_fallthru
        _
      // Predicated region
      $region45: #{unet_forward.1} parent=11 // pred_check
        %p538 = pneg %p242
      $region46: #{unet_forward.1} parent=11 // pred_check_branch
        %540 = sbr.rel (%p538) target = $region48
      $region47: #{unet_forward.1} parent=11 // pred_region
        _
      $region48: #{unet_forward.1} parent=11 // pred_fallthru
        _
      // Predicated region
      $region49: #{unet_forward.1} parent=11 // pred_check
        %p541 = pneg %p263
      $region50: #{unet_forward.1} parent=11 // pred_check_branch
        %543 = sbr.rel (%p541) target = $region52
      $region51: #{unet_forward.1} parent=11 // pred_region
        _
      $region52: #{unet_forward.1} parent=11 // pred_fallthru
        _
      // Predicated region
      $region53: #{unet_forward.1} parent=11 // pred_check
        %p544 = pneg %p284
      $region54: #{unet_forward.1} parent=11 // pred_check_branch
        %546 = sbr.rel (%p544) target = $region56
      $region55: #{unet_forward.1} parent=11 // pred_region
        _
      $region56: #{unet_forward.1} parent=11 // pred_fallthru
        _
      // Predicated region
      $region57: #{unet_forward.1} parent=11 // pred_check
        %p547 = pneg %p305
      $region58: #{unet_forward.1} parent=11 // pred_check_branch
        %549 = sbr.rel (%p547) target = $region60
      $region59: #{unet_forward.1} parent=11 // pred_region
        _
      $region60: #{unet_forward.1} parent=11 // pred_fallthru
        _
      // Predicated region
      $region61: #{unet_forward.1} parent=11 // pred_check
        %p550 = pneg %p326
      $region62: #{unet_forward.1} parent=11 // pred_check_branch
        %552 = sbr.rel (%p550) target = $region64
      $region63: #{unet_forward.1} parent=11 // pred_region
        _
      $region64: #{unet_forward.1} parent=11 // pred_fallthru
        _
      // Predicated region
      $region65: #{unet_forward.1} parent=11 // pred_check
        %p553 = pneg %p347
      $region66: #{unet_forward.1} parent=11 // pred_check_branch
        %555 = sbr.rel (%p553) target = $region68
      $region67: #{unet_forward.1} parent=11 // pred_region
        _
      $region68: #{unet_forward.1} parent=11 // pred_fallthru
        _
      // Predicated region
      $region69: #{unet_forward.1} parent=11 // pred_check
        %p556 = pneg %p368
      $region70: #{unet_forward.1} parent=11 // pred_check_branch
        %558 = sbr.rel (%p556) target = $region72
      $region71: #{unet_forward.1} parent=11 // pred_region
        _
      $region72: #{unet_forward.1} parent=11 // pred_fallthru
        _
      // Predicated region
      $region73: #{unet_forward.1} parent=11 // pred_check
        %p559 = pneg %p389
      $region74: #{unet_forward.1} parent=11 // pred_check_branch
        %561 = sbr.rel (%p559) target = $region76
      $region75: #{unet_forward.1} parent=11 // pred_region
        _
      $region76: #{unet_forward.1} parent=11 // pred_fallthru
        _
      // Predicated region
      $region77: #{unet_forward.1} parent=11 // pred_check
        %p562 = pneg %p410
      $region78: #{unet_forward.1} parent=11 // pred_check_branch
        %564 = sbr.rel (%p562) target = $region80
      $region79: #{unet_forward.1} parent=11 // pred_region
        _
      $region80: #{unet_forward.1} parent=11 // pred_fallthru
        _
      // Predicated region
      $region81: #{unet_forward.1} parent=11 // pred_check
        %p565 = pneg %p431
      $region82: #{unet_forward.1} parent=11 // pred_check_branch
        %567 = sbr.rel (%p565) target = $region84
      $region83: #{unet_forward.1} parent=11 // pred_region
        _
      $region84: #{unet_forward.1} parent=11 // pred_fallthru
        _
      // Predicated region
      $region85: #{unet_forward.1} parent=11 // pred_check
        %p568 = pneg %p452
      $region86: #{unet_forward.1} parent=11 // pred_check_branch
        %570 = sbr.rel (%p568) target = $region88
      $region87: #{unet_forward.1} parent=11 // pred_region
        _
      $region88: #{unet_forward.1} parent=11 // pred_fallthru
        _
      // Predicated region
      $region89: #{unet_forward.1} parent=11 // pred_check
        %p571 = pneg %p473
      $region90: #{unet_forward.1} parent=11 // pred_check_branch
        %573 = sbr.rel (%p571) target = $region92
      $region91: #{unet_forward.1} parent=11 // pred_region
        _
      $region92: #{unet_forward.1} parent=11 // pred_fallthru
        _
    $region12: #{unet_forward.1} parent=5 // pred_fallthru
      _
    %p574 = scmp.lt.s32.totalorder %s27, 2
    // Predicated region
    $region93: #{unet_forward.1} parent=5 // pred_check
      %p575 = pneg %p574
    $region94: #{unet_forward.1} parent=5 // pred_check_branch
      %577 = sbr.rel (%p575) target = $region96
    $region95: #{unet_forward.1} parent=5 // pred_region
      // Predicated region
      $region97: #{unet_forward.1} parent=95 // pred_check
        %p578 = pneg %p47
      $region98: #{unet_forward.1} parent=95 // pred_check_branch
        %580 = sbr.rel (%p578) target = $region100
      $region99: #{unet_forward.1} parent=95 // pred_region
        %p581 = scmp.lt.s32.totalorder %s27, 1
        %s582 = scalar_select %p581, %s27, 1
        %s583 = smul.addr %s582, 41
        %s584 = smul.addr %s583, 8
        %s585 = scalar_lea.vmem %s0, %s584
      $region100: #{unet_forward.1} parent=95 // pred_fallthru
        _
    $region96: #{unet_forward.1} parent=5 // pred_fallthru
      _
    %p586 = scmp.le.s32.totalorder 1, %s27
    %p587 = scmp.lt.s32.totalorder %s27, 3
    %p588 = pnand %p586, %p587
    %p589 = pneg %p588
    // Predicated region
    $region101: #{unet_forward.1} parent=5 // pred_check
      _
    $region102: #{unet_forward.1} parent=5 // pred_check_branch
      %591 = sbr.rel (%p588) target = $region104
    $region103: #{unet_forward.1} parent=5 // pred_region
      %s592 = ssub.s32 %s27, 1
      %p593 = scmp.lt.s32.totalorder %s32, 1
      %s594 = scalar_select %p593, %s32, 1
      %s595 = smul.addr %s594, 41
      %s596 = smul.addr %s595, 8
      %s597 = scalar_lea.vmem %s0, %s596
      %p598 = pneg %p53
      %p599 = pneg %p50
      %p600 = pneg %p74
      %p601 = pneg %p71
      %p602 = pneg %p95
      %p603 = pneg %p92
      %p604 = pneg %p116
      %p605 = pneg %p113
      %p606 = pneg %p137
      %p607 = pneg %p134
      %p608 = pneg %p158
      %p609 = pneg %p155
      %p610 = pneg %p179
      %p611 = pneg %p176
      %p612 = pneg %p200
      %p613 = pneg %p197
      %p614 = pneg %p221
      %p615 = pneg %p218
      %p616 = pneg %p242
      %p617 = pneg %p239
      %p618 = pneg %p263
      %p619 = pneg %p260
      %p620 = pneg %p284
      %p621 = pneg %p281
      %p622 = pneg %p305
      %p623 = pneg %p302
      %p624 = pneg %p326
      %p625 = pneg %p323
      %p626 = pneg %p347
      %p627 = pneg %p344
      %p628 = pneg %p368
      %p629 = pneg %p365
      %p630 = pneg %p389
      %p631 = pneg %p386
      %p632 = pneg %p410
      %p633 = pneg %p407
      %p634 = pneg %p431
      %p635 = pneg %p428
      %p636 = pneg %p452
      %p637 = pneg %p449
      %p638 = pneg %p473
      %p639 = pneg %p470
      %p640 = pneg %p499
      %p641 = pneg %p496
      %p642 = scmp.lt.s32.totalorder %s32, 1
      %s643 = scalar_select %p642, %s32, 1
      %s644 = smul.addr %s643, 2
      %s645 = smul.addr %s644, 8
      %s646 = scalar_lea.vmem %s21, %s645
      %p647 = scmp.lt.s32.totalorder %s32, 1
      %s648 = scalar_select %p647, %s32, 1
      %s649 = smul.addr %s648, 41
      %s650 = smul.addr %s649, 8
      %s651 = scalar_lea.vmem %s0, %s650
      %p652 = scmp.lt.s32.totalorder %s32, 1
      %s653 = scalar_select %p652, %s32, 1
      %s654 = smul.addr %s653, 2
      %s655 = smul.addr %s654, 8
      %s656 = scalar_lea.vmem %s21, %s655
      %vm658 = vcmask 261120
      %659 = vst.msk [vmem:[#allocation2] sm:$0xff] %vm658, 0.0
      %660 = vst.msk [vmem:[#allocation2 + $0x8] sm:$0xff] %vm658, 0.0
      %vm661 = vcmask 256000
      %662 = vst.msk [vmem:[#allocation2 + $0x10] sm:$0x7] %vm661, 0.0
      %663 = vst.msk [vmem:[#allocation2 + $0x131] sm:$0xff] %vm658, 0.0
      %664 = vst.msk [vmem:[#allocation2 + $0x139] sm:$0xff] %vm658, 0.0
      %665 = vst.msk [vmem:[#allocation2 + $0x141] sm:$0x7] %vm661, 0.0
      %v666 = vld [vmem:[%s651] sm:$0xff]
      %v667 = vld [vmem:[%s651 + $0x8] sm:$0xff]
      %v668 = vld [vmem:[%s651 + $0x10] sm:$0xff]
      %v669 = vld [vmem:[%s651 + $0x18] sm:$0xff]
      %v670 = vld [vmem:[%s651 + $0x20] sm:$0xff]
      %v671 = vld [vmem:[%s651 + $0x28] sm:$0xff]
      %v672 = vld [vmem:[%s651 + $0x30] sm:$0xff]
      %v673 = vld [vmem:[%s651 + $0x38] sm:$0xff]
      %v674 = vld [vmem:[%s651 + $0x40] sm:$0xff]
      %v675 = vld [vmem:[%s651 + $0x48] sm:$0xff]
      %v676 = vld [vmem:[%s651 + $0x50] sm:$0xff]
      %v677 = vld [vmem:[%s651 + $0x58] sm:$0xff]
      %v678 = vld [vmem:[%s651 + $0x60] sm:$0xff]
      %v679 = vld [vmem:[%s651 + $0x68] sm:$0xff]
      %v680 = vld [vmem:[%s651 + $0x70] sm:$0xff]
      %v681 = vld [vmem:[%s651 + $0x78] sm:$0xff]
      %v682 = vld [vmem:[%s651 + $0x80] sm:$0xff]
      %v683 = vld [vmem:[%s651 + $0x88] sm:$0xff]
      %v684 = vld [vmem:[%s651 + $0x90] sm:$0xff]
      %v685 = vld [vmem:[%s651 + $0x98] sm:$0xff]
      %v686 = vld [vmem:[%s651 + $0xa0] sm:$0xff]
      %v687 = vld [vmem:[%s651 + $0xa8] sm:$0xff]
      %v688 = vld [vmem:[%s651 + $0xb0] sm:$0xff]
      %v689 = vld [vmem:[%s651 + $0xb8] sm:$0xff]
      %v690 = vld [vmem:[%s651 + $0xc0] sm:$0xff]
      %v691 = vld [vmem:[%s651 + $0xc8] sm:$0xff]
      %v692 = vld [vmem:[%s651 + $0xd0] sm:$0xff]
      %v693 = vld [vmem:[%s651 + $0xd8] sm:$0xff]
      %v694 = vld [vmem:[%s651 + $0xe0] sm:$0xff]
      %v695 = vld [vmem:[%s651 + $0xe8] sm:$0xff]
      %v696 = vld [vmem:[%s651 + $0xf0] sm:$0xff]
      %v697 = vld [vmem:[%s651 + $0xf8] sm:$0xff]
      %v698 = vld [vmem:[%s651 + $0x100] sm:$0xff]
      %v699 = vld [vmem:[%s651 + $0x108] sm:$0xff]
      %v700 = vld [vmem:[%s651 + $0x110] sm:$0xff]
      %v701 = vld [vmem:[%s651 + $0x118] sm:$0xff]
      %v702 = vld [vmem:[%s651 + $0x120] sm:$0xff]
      %v703 = vld [vmem:[%s651 + $0x128] sm:$0xff]
      %v704 = vld [vmem:[%s651 + $0x130] sm:$0xff]
      %v705 = vld [vmem:[%s651 + $0x138] sm:$0xff]
      %v706 = vld [vmem:[%s651 + $0x140] sm:$0xf]
      %vm743 = vcmask 1046528
      %v744 = vrot.slane %v666, 1
      %v745 = vrot.slane %v667, 1
      %v746 = vsel %vm743, %v744, %v745
      %v747 = vrot.slane %v668, 1
      %v748 = vsel %vm743, %v745, %v747
      %v749 = vrot.slane %v669, 1
      %v750 = vsel %vm743, %v747, %v749
      %v751 = vrot.slane %v670, 1
      %v752 = vsel %vm743, %v749, %v751
      %v753 = vrot.slane %v671, 1
      %v754 = vsel %vm743, %v751, %v753
      %v755 = vrot.slane %v672, 1
      %v756 = vsel %vm743, %v753, %v755
      %v757 = vrot.slane %v673, 1
      %v758 = vsel %vm743, %v755, %v757
      %v759 = vrot.slane %v674, 1
      %v760 = vsel %vm743, %v757, %v759
      %v761 = vrot.slane %v675, 1
      %v762 = vsel %vm743, %v759, %v761
      %v763 = vrot.slane %v676, 1
      %v764 = vsel %vm743, %v761, %v763
      %v765 = vrot.slane %v677, 1
      %v766 = vsel %vm743, %v763, %v765
      %v767 = vrot.slane %v678, 1
      %v768 = vsel %vm743, %v765, %v767
      %v769 = vrot.slane %v679, 1
      %v770 = vsel %vm743, %v767, %v769
      %v771 = vrot.slane %v680, 1
      %v772 = vsel %vm743, %v769, %v771
      %v773 = vrot.slane %v681, 1
      %v774 = vsel %vm743, %v771, %v773
      %v775 = vrot.slane %v682, 1
      %v776 = vsel %vm743, %v773, %v775
      %v777 = vrot.slane %v683, 1
      %v778 = vsel %vm743, %v775, %v777
      %v779 = vrot.slane %v684, 1
      %v780 = vsel %vm743, %v777, %v779
      %v781 = vrot.slane %v685, 1
      %v782 = vsel %vm743, %v779, %v781
      %v783 = vrot.slane %v686, 1
      %v784 = vsel %vm743, %v781, %v783
      %v785 = vrot.slane %v687, 1
      %v786 = vsel %vm743, %v783, %v785
      %v787 = vrot.slane %v688, 1
      %v788 = vsel %vm743, %v785, %v787
      %v789 = vrot.slane %v689, 1
      %v790 = vsel %vm743, %v787, %v789
      %v791 = vrot.slane %v690, 1
      %v792 = vsel %vm743, %v789, %v791
      %v793 = vrot.slane %v691, 1
      %v794 = vsel %vm743, %v791, %v793
      %v795 = vrot.slane %v692, 1
      %v796 = vsel %vm743, %v793, %v795
      %v797 = vrot.slane %v693, 1
      %v798 = vsel %vm743, %v795, %v797
      %v799 = vrot.slane %v694, 1
      %v800 = vsel %vm743, %v797, %v799
      %v801 = vrot.slane %v695, 1
      %v802 = vsel %vm743, %v799, %v801
      %v803 = vrot.slane %v696, 1
      %v804 = vsel %vm743, %v801, %v803
      %v805 = vrot.slane %v697, 1
      %v806 = vsel %vm743, %v803, %v805
      %v807 = vrot.slane %v698, 1
      %v808 = vsel %vm743, %v805, %v807
      %v809 = vrot.slane %v699, 1
      %v810 = vsel %vm743, %v807, %v809
      %v811 = vrot.slane %v700, 1
      %v812 = vsel %vm743, %v809, %v811
      %v813 = vrot.slane %v701, 1
      %v814 = vsel %vm743, %v811, %v813
      %815 = vrot.lane.b32.xlu0 %v746, 8
      %v816 = vpop.permute.xlu0 %815
      %817 = vrot.lane.b32.xlu0 %v748, 8
      %v818 = vpop.permute.xlu0 %817
      %819 = vrot.lane.b32.xlu0 %v750, 8
      %v820 = vpop.permute.xlu0 %819
      %821 = vrot.lane.b32.xlu0 %v752, 8
      %v822 = vpop.permute.xlu0 %821
      %823 = vrot.lane.b32.xlu0 %v754, 8
      %v824 = vpop.permute.xlu0 %823
      %825 = vrot.lane.b32.xlu0 %v756, 8
      %v826 = vpop.permute.xlu0 %825
      %827 = vrot.lane.b32.xlu0 %v758, 8
      %v828 = vpop.permute.xlu0 %827
      %829 = vrot.lane.b32.xlu0 %v760, 8
      %v830 = vpop.permute.xlu0 %829
      %831 = vrot.lane.b32.xlu0 %v762, 8
      %v832 = vpop.permute.xlu0 %831
      %833 = vrot.lane.b32.xlu0 %v764, 8
      %v834 = vpop.permute.xlu0 %833
      %835 = vrot.lane.b32.xlu0 %v766, 8
      %v836 = vpop.permute.xlu0 %835
      %837 = vrot.lane.b32.xlu0 %v768, 8
      %v838 = vpop.permute.xlu0 %837
      %839 = vrot.lane.b32.xlu0 %v770, 8
      %v840 = vpop.permute.xlu0 %839
      %841 = vrot.lane.b32.xlu0 %v772, 8
      %v842 = vpop.permute.xlu0 %841
      %843 = vrot.lane.b32.xlu0 %v774, 8
      %v844 = vpop.permute.xlu0 %843
      %845 = vrot.lane.b32.xlu0 %v776, 8
      %v846 = vpop.permute.xlu0 %845
      %847 = vrot.lane.b32.xlu0 %v778, 8
      %v848 = vpop.permute.xlu0 %847
      %849 = vrot.lane.b32.xlu0 %v780, 8
      %v850 = vpop.permute.xlu0 %849
      %851 = vrot.lane.b32.xlu0 %v782, 8
      %v852 = vpop.permute.xlu0 %851
      %853 = vrot.lane.b32.xlu0 %v784, 8
      %v854 = vpop.permute.xlu0 %853
      %855 = vrot.lane.b32.xlu0 %v786, 8
      %v856 = vpop.permute.xlu0 %855
      %857 = vrot.lane.b32.xlu0 %v788, 8
      %v858 = vpop.permute.xlu0 %857
      %859 = vrot.lane.b32.xlu0 %v790, 8
      %v860 = vpop.permute.xlu0 %859
      %861 = vrot.lane.b32.xlu0 %v792, 8
      %v862 = vpop.permute.xlu0 %861
      %863 = vrot.lane.b32.xlu0 %v794, 8
      %v864 = vpop.permute.xlu0 %863
      %865 = vrot.lane.b32.xlu0 %v796, 8
      %v866 = vpop.permute.xlu0 %865
      %867 = vrot.lane.b32.xlu0 %v798, 8
      %v868 = vpop.permute.xlu0 %867
      %869 = vrot.lane.b32.xlu0 %v800, 8
      %v870 = vpop.permute.xlu0 %869
      %871 = vrot.lane.b32.xlu0 %v802, 8
      %v872 = vpop.permute.xlu0 %871
      %873 = vrot.lane.b32.xlu0 %v804, 8
      %v874 = vpop.permute.xlu0 %873
      %875 = vrot.lane.b32.xlu0 %v806, 8
      %v876 = vpop.permute.xlu0 %875
      %877 = vrot.lane.b32.xlu0 %v808, 8
      %v878 = vpop.permute.xlu0 %877
      %879 = vrot.lane.b32.xlu0 %v810, 8
      %v880 = vpop.permute.xlu0 %879
      %881 = vrot.lane.b32.xlu0 %v812, 8
      %v882 = vpop.permute.xlu0 %881
      %883 = vrot.lane.b32.xlu0 %v814, 8
      %v884 = vpop.permute.xlu0 %883
      %885 = vrot.lane.b32.xlu0 %v813, 8
      %v886 = vpop.permute.xlu0 %885
      %vm923 = vcmask 1045504
      %v924 = vrot.slane %v666, 2
      %v925 = vrot.slane %v667, 2
      %v926 = vsel %vm923, %v924, %v925
      %v927 = vrot.slane %v668, 2
      %v928 = vsel %vm923, %v925, %v927
      %v929 = vrot.slane %v669, 2
      %v930 = vsel %vm923, %v927, %v929
      %v931 = vrot.slane %v670, 2
      %v932 = vsel %vm923, %v929, %v931
      %v933 = vrot.slane %v671, 2
      %v934 = vsel %vm923, %v931, %v933
      %v935 = vrot.slane %v672, 2
      %v936 = vsel %vm923, %v933, %v935
      %v937 = vrot.slane %v673, 2
      %v938 = vsel %vm923, %v935, %v937
      %v939 = vrot.slane %v674, 2
      %v940 = vsel %vm923, %v937, %v939
      %v941 = vrot.slane %v675, 2
      %v942 = vsel %vm923, %v939, %v941
      %v943 = vrot.slane %v676, 2
      %v944 = vsel %vm923, %v941, %v943
      %v945 = vrot.slane %v677, 2
      %v946 = vsel %vm923, %v943, %v945
      %v947 = vrot.slane %v678, 2
      %v948 = vsel %vm923, %v945, %v947
      %v949 = vrot.slane %v679, 2
      %v950 = vsel %vm923, %v947, %v949
      %v951 = vrot.slane %v680, 2
      %v952 = vsel %vm923, %v949, %v951
      %v953 = vrot.slane %v681, 2
      %v954 = vsel %vm923, %v951, %v953
      %v955 = vrot.slane %v682, 2
      %v956 = vsel %vm923, %v953, %v955
      %v957 = vrot.slane %v683, 2
      %v958 = vsel %vm923, %v955, %v957
      %v959 = vrot.slane %v684, 2
      %v960 = vsel %vm923, %v957, %v959
      %v961 = vrot.slane %v685, 2
      %v962 = vsel %vm923, %v959, %v961
      %v963 = vrot.slane %v686, 2
      %v964 = vsel %vm923, %v961, %v963
      %v965 = vrot.slane %v687, 2
      %v966 = vsel %vm923, %v963, %v965
      %v967 = vrot.slane %v688, 2
      %v968 = vsel %vm923, %v965, %v967
      %v969 = vrot.slane %v689, 2
      %v970 = vsel %vm923, %v967, %v969
      %v971 = vrot.slane %v690, 2
      %v972 = vsel %vm923, %v969, %v971
      %v973 = vrot.slane %v691, 2
      %v974 = vsel %vm923, %v971, %v973
      %v975 = vrot.slane %v692, 2
      %v976 = vsel %vm923, %v973, %v975
      %v977 = vrot.slane %v693, 2
      %v978 = vsel %vm923, %v975, %v977
      %v979 = vrot.slane %v694, 2
      %v980 = vsel %vm923, %v977, %v979
      %v981 = vrot.slane %v695, 2
      %v982 = vsel %vm923, %v979, %v981
      %v983 = vrot.slane %v696, 2
      %v984 = vsel %vm923, %v981, %v983
      %v985 = vrot.slane %v697, 2
      %v986 = vsel %vm923, %v983, %v985
      %v987 = vrot.slane %v698, 2
      %v988 = vsel %vm923, %v985, %v987
      %v989 = vrot.slane %v699, 2
      %v990 = vsel %vm923, %v987, %v989
      %v991 = vrot.slane %v700, 2
      %v992 = vsel %vm923, %v989, %v991
      %v993 = vrot.slane %v701, 2
      %v994 = vsel %vm923, %v991, %v993
      %995 = vrot.lane.b32.xlu0 %v926, 16
      %v996 = vpop.permute.xlu0 %995
      %997 = vrot.lane.b32.xlu0 %v928, 16
      %v998 = vpop.permute.xlu0 %997
      %999 = vrot.lane.b32.xlu0 %v930, 16
      %v1000 = vpop.permute.xlu0 %999
      %1001 = vrot.lane.b32.xlu0 %v932, 16
      %v1002 = vpop.permute.xlu0 %1001
      %1003 = vrot.lane.b32.xlu0 %v934, 16
      %v1004 = vpop.permute.xlu0 %1003
      %1005 = vrot.lane.b32.xlu0 %v936, 16
      %v1006 = vpop.permute.xlu0 %1005
      %1007 = vrot.lane.b32.xlu0 %v938, 16
      %v1008 = vpop.permute.xlu0 %1007
      %1009 = vrot.lane.b32.xlu0 %v940, 16
      %v1010 = vpop.permute.xlu0 %1009
      %1011 = vrot.lane.b32.xlu0 %v942, 16
      %v1012 = vpop.permute.xlu0 %1011
      %1013 = vrot.lane.b32.xlu0 %v944, 16
      %v1014 = vpop.permute.xlu0 %1013
      %1015 = vrot.lane.b32.xlu0 %v946, 16
      %v1016 = vpop.permute.xlu0 %1015
      %1017 = vrot.lane.b32.xlu0 %v948, 16
      %v1018 = vpop.permute.xlu0 %1017
      %1019 = vrot.lane.b32.xlu0 %v950, 16
      %v1020 = vpop.permute.xlu0 %1019
      %1021 = vrot.lane.b32.xlu0 %v952, 16
      %v1022 = vpop.permute.xlu0 %1021
      %1023 = vrot.lane.b32.xlu0 %v954, 16
      %v1024 = vpop.permute.xlu0 %1023
      %1025 = vrot.lane.b32.xlu0 %v956, 16
      %v1026 = vpop.permute.xlu0 %1025
      %1027 = vrot.lane.b32.xlu0 %v958, 16
      %v1028 = vpop.permute.xlu0 %1027
      %1029 = vrot.lane.b32.xlu0 %v960, 16
      %v1030 = vpop.permute.xlu0 %1029
      %1031 = vrot.lane.b32.xlu0 %v962, 16
      %v1032 = vpop.permute.xlu0 %1031
      %1033 = vrot.lane.b32.xlu0 %v964, 16
      %v1034 = vpop.permute.xlu0 %1033
      %1035 = vrot.lane.b32.xlu0 %v966, 16
      %v1036 = vpop.permute.xlu0 %1035
      %1037 = vrot.lane.b32.xlu0 %v968, 16
      %v1038 = vpop.permute.xlu0 %1037
      %1039 = vrot.lane.b32.xlu0 %v970, 16
      %v1040 = vpop.permute.xlu0 %1039
      %1041 = vrot.lane.b32.xlu0 %v972, 16
      %v1042 = vpop.permute.xlu0 %1041
      %1043 = vrot.lane.b32.xlu0 %v974, 16
      %v1044 = vpop.permute.xlu0 %1043
      %1045 = vrot.lane.b32.xlu0 %v976, 16
      %v1046 = vpop.permute.xlu0 %1045
      %1047 = vrot.lane.b32.xlu0 %v978, 16
      %v1048 = vpop.permute.xlu0 %1047
      %1049 = vrot.lane.b32.xlu0 %v980, 16
      %v1050 = vpop.permute.xlu0 %1049
      %1051 = vrot.lane.b32.xlu0 %v982, 16
      %v1052 = vpop.permute.xlu0 %1051
      %1053 = vrot.lane.b32.xlu0 %v984, 16
      %v1054 = vpop.permute.xlu0 %1053
      %1055 = vrot.lane.b32.xlu0 %v986, 16
      %v1056 = vpop.permute.xlu0 %1055
      %1057 = vrot.lane.b32.xlu0 %v988, 16
      %v1058 = vpop.permute.xlu0 %1057
      %1059 = vrot.lane.b32.xlu0 %v990, 16
      %v1060 = vpop.permute.xlu0 %1059
      %1061 = vrot.lane.b32.xlu0 %v992, 16
      %v1062 = vpop.permute.xlu0 %1061
      %1063 = vrot.lane.b32.xlu0 %v994, 16
      %v1064 = vpop.permute.xlu0 %1063
      %1065 = vrot.lane.b32.xlu0 %v993, 16
      %v1066 = vpop.permute.xlu0 %1065
      %v1105 = vrot.slane %v702, 2
      %v1106 = vsel %vm923, %v993, %v1105
      %v1107 = vrot.slane %v703, 2
      %v1108 = vsel %vm923, %v1105, %v1107
      %1109 = vrot.lane.b32.xlu0 %v930, 24
      %v1110 = vpop.permute.xlu0 %1109
      %1111 = vrot.lane.b32.xlu0 %v932, 24
      %v1112 = vpop.permute.xlu0 %1111
      %1113 = vrot.lane.b32.xlu0 %v934, 24
      %v1114 = vpop.permute.xlu0 %1113
      %1115 = vrot.lane.b32.xlu0 %v936, 24
      %v1116 = vpop.permute.xlu0 %1115
      %1117 = vrot.lane.b32.xlu0 %v938, 24
      %v1118 = vpop.permute.xlu0 %1117
      %1119 = vrot.lane.b32.xlu0 %v940, 24
      %v1120 = vpop.permute.xlu0 %1119
      %1121 = vrot.lane.b32.xlu0 %v942, 24
      %v1122 = vpop.permute.xlu0 %1121
      %1123 = vrot.lane.b32.xlu0 %v944, 24
      %v1124 = vpop.permute.xlu0 %1123
      %1125 = vrot.lane.b32.xlu0 %v946, 24
      %v1126 = vpop.permute.xlu0 %1125
      %1127 = vrot.lane.b32.xlu0 %v948, 24
      %v1128 = vpop.permute.xlu0 %1127
      %1129 = vrot.lane.b32.xlu0 %v950, 24
      %v1130 = vpop.permute.xlu0 %1129
      %1131 = vrot.lane.b32.xlu0 %v952, 24
      %v1132 = vpop.permute.xlu0 %1131
      %1133 = vrot.lane.b32.xlu0 %v954, 24
      %v1134 = vpop.permute.xlu0 %1133
      %1135 = vrot.lane.b32.xlu0 %v956, 24
      %v1136 = vpop.permute.xlu0 %1135
      %1137 = vrot.lane.b32.xlu0 %v958, 24
      %v1138 = vpop.permute.xlu0 %1137
      %1139 = vrot.lane.b32.xlu0 %v960, 24
      %v1140 = vpop.permute.xlu0 %1139
      %1141 = vrot.lane.b32.xlu0 %v962, 24
      %v1142 = vpop.permute.xlu0 %1141
      %1143 = vrot.lane.b32.xlu0 %v964, 24
      %v1144 = vpop.permute.xlu0 %1143
      %1145 = vrot.lane.b32.xlu0 %v966, 24
      %v1146 = vpop.permute.xlu0 %1145
      %1147 = vrot.lane.b32.xlu0 %v968, 24
      %v1148 = vpop.permute.xlu0 %1147
      %1149 = vrot.lane.b32.xlu0 %v970, 24
      %v1150 = vpop.permute.xlu0 %1149
      %1151 = vrot.lane.b32.xlu0 %v972, 24
      %v1152 = vpop.permute.xlu0 %1151
      %1153 = vrot.lane.b32.xlu0 %v974, 24
      %v1154 = vpop.permute.xlu0 %1153
      %1155 = vrot.lane.b32.xlu0 %v976, 24
      %v1156 = vpop.permute.xlu0 %1155
      %1157 = vrot.lane.b32.xlu0 %v978, 24
      %v1158 = vpop.permute.xlu0 %1157
      %1159 = vrot.lane.b32.xlu0 %v980, 24
      %v1160 = vpop.permute.xlu0 %1159
      %1161 = vrot.lane.b32.xlu0 %v982, 24
      %v1162 = vpop.permute.xlu0 %1161
      %1163 = vrot.lane.b32.xlu0 %v984, 24
      %v1164 = vpop.permute.xlu0 %1163
      %1165 = vrot.lane.b32.xlu0 %v986, 24
      %v1166 = vpop.permute.xlu0 %1165
      %1167 = vrot.lane.b32.xlu0 %v988, 24
      %v1168 = vpop.permute.xlu0 %1167
      %1169 = vrot.lane.b32.xlu0 %v990, 24
      %v1170 = vpop.permute.xlu0 %1169
      %1171 = vrot.lane.b32.xlu0 %v992, 24
      %v1172 = vpop.permute.xlu0 %1171
      %1173 = vrot.lane.b32.xlu0 %v994, 24
      %v1174 = vpop.permute.xlu0 %1173
      %1175 = vrot.lane.b32.xlu0 %v1106, 24
      %v1176 = vpop.permute.xlu0 %1175
      %1177 = vrot.lane.b32.xlu0 %v1108, 24
      %v1178 = vpop.permute.xlu0 %1177
      %1179 = vrot.lane.b32.xlu0 %v1107, 24
      %v1180 = vpop.permute.xlu0 %1179
      %vm1218 = vcmask 1044480
      %v1219 = vrot.slane %v668, 3
      %v1220 = vrot.slane %v669, 3
      %v1221 = vsel %vm1218, %v1219, %v1220
      %v1222 = vrot.slane %v670, 3
      %v1223 = vsel %vm1218, %v1220, %v1222
      %v1224 = vrot.slane %v671, 3
      %v1225 = vsel %vm1218, %v1222, %v1224
      %v1226 = vrot.slane %v672, 3
      %v1227 = vsel %vm1218, %v1224, %v1226
      %v1228 = vrot.slane %v673, 3
      %v1229 = vsel %vm1218, %v1226, %v1228
      %v1230 = vrot.slane %v674, 3
      %v1231 = vsel %vm1218, %v1228, %v1230
      %v1232 = vrot.slane %v675, 3
      %v1233 = vsel %vm1218, %v1230, %v1232
      %v1234 = vrot.slane %v676, 3
      %v1235 = vsel %vm1218, %v1232, %v1234
      %v1236 = vrot.slane %v677, 3
      %v1237 = vsel %vm1218, %v1234, %v1236
      %v1238 = vrot.slane %v678, 3
      %v1239 = vsel %vm1218, %v1236, %v1238
      %v1240 = vrot.slane %v679, 3
      %v1241 = vsel %vm1218, %v1238, %v1240
      %v1242 = vrot.slane %v680, 3
      %v1243 = vsel %vm1218, %v1240, %v1242
      %v1244 = vrot.slane %v681, 3
      %v1245 = vsel %vm1218, %v1242, %v1244
      %v1246 = vrot.slane %v682, 3
      %v1247 = vsel %vm1218, %v1244, %v1246
      %v1248 = vrot.slane %v683, 3
      %v1249 = vsel %vm1218, %v1246, %v1248
      %v1250 = vrot.slane %v684, 3
      %v1251 = vsel %vm1218, %v1248, %v1250
      %v1252 = vrot.slane %v685, 3
      %v1253 = vsel %vm1218, %v1250, %v1252
      %v1254 = vrot.slane %v686, 3
      %v1255 = vsel %vm1218, %v1252, %v1254
      %v1256 = vrot.slane %v687, 3
      %v1257 = vsel %vm1218, %v1254, %v1256
      %v1258 = vrot.slane %v688, 3
      %v1259 = vsel %vm1218, %v1256, %v1258
      %v1260 = vrot.slane %v689, 3
      %v1261 = vsel %vm1218, %v1258, %v1260
      %v1262 = vrot.slane %v690, 3
      %v1263 = vsel %vm1218, %v1260, %v1262
      %v1264 = vrot.slane %v691, 3
      %v1265 = vsel %vm1218, %v1262, %v1264
      %v1266 = vrot.slane %v692, 3
      %v1267 = vsel %vm1218, %v1264, %v1266
      %v1268 = vrot.slane %v693, 3
      %v1269 = vsel %vm1218, %v1266, %v1268
      %v1270 = vrot.slane %v694, 3
      %v1271 = vsel %vm1218, %v1268, %v1270
      %v1272 = vrot.slane %v695, 3
      %v1273 = vsel %vm1218, %v1270, %v1272
      %v1274 = vrot.slane %v696, 3
      %v1275 = vsel %vm1218, %v1272, %v1274
      %v1276 = vrot.slane %v697, 3
      %v1277 = vsel %vm1218, %v1274, %v1276
      %v1278 = vrot.slane %v698, 3
      %v1279 = vsel %vm1218, %v1276, %v1278
      %v1280 = vrot.slane %v699, 3
      %v1281 = vsel %vm1218, %v1278, %v1280
      %v1282 = vrot.slane %v700, 3
      %v1283 = vsel %vm1218, %v1280, %v1282
      %v1284 = vrot.slane %v701, 3
      %v1285 = vsel %vm1218, %v1282, %v1284
      %v1286 = vrot.slane %v702, 3
      %v1287 = vsel %vm1218, %v1284, %v1286
      %v1288 = vrot.slane %v703, 3
      %v1289 = vsel %vm1218, %v1286, %v1288
      %v1290 = vrot.slane %v704, 3
      %v1291 = vsel %vm1218, %v1288, %v1290
      %1292 = vrot.lane.b32.xlu0 %v1221, 32
      %v1293 = vpop.permute.xlu0 %1292
      %1294 = vrot.lane.b32.xlu0 %v1223, 32
      %v1295 = vpop.permute.xlu0 %1294
      %1296 = vrot.lane.b32.xlu0 %v1225, 32
      %v1297 = vpop.permute.xlu0 %1296
      %1298 = vrot.lane.b32.xlu0 %v1227, 32
      %v1299 = vpop.permute.xlu0 %1298
      %1300 = vrot.lane.b32.xlu0 %v1229, 32
      %v1301 = vpop.permute.xlu0 %1300
      %1302 = vrot.lane.b32.xlu0 %v1231, 32
      %v1303 = vpop.permute.xlu0 %1302
      %1304 = vrot.lane.b32.xlu0 %v1233, 32
      %v1305 = vpop.permute.xlu0 %1304
      %1306 = vrot.lane.b32.xlu0 %v1235, 32
      %v1307 = vpop.permute.xlu0 %1306
      %1308 = vrot.lane.b32.xlu0 %v1237, 32
      %v1309 = vpop.permute.xlu0 %1308
      %1310 = vrot.lane.b32.xlu0 %v1239, 32
      %v1311 = vpop.permute.xlu0 %1310
      %1312 = vrot.lane.b32.xlu0 %v1241, 32
      %v1313 = vpop.permute.xlu0 %1312
      %1314 = vrot.lane.b32.xlu0 %v1243, 32
      %v1315 = vpop.permute.xlu0 %1314
      %1316 = vrot.lane.b32.xlu0 %v1245, 32
      %v1317 = vpop.permute.xlu0 %1316
      %1318 = vrot.lane.b32.xlu0 %v1247, 32
      %v1319 = vpop.permute.xlu0 %1318
      %1320 = vrot.lane.b32.xlu0 %v1249, 32
      %v1321 = vpop.permute.xlu0 %1320
      %1322 = vrot.lane.b32.xlu0 %v1251, 32
      %v1323 = vpop.permute.xlu0 %1322
      %1324 = vrot.lane.b32.xlu0 %v1253, 32
      %v1325 = vpop.permute.xlu0 %1324
      %1326 = vrot.lane.b32.xlu0 %v1255, 32
      %v1327 = vpop.permute.xlu0 %1326
      %1328 = vrot.lane.b32.xlu0 %v1257, 32
      %v1329 = vpop.permute.xlu0 %1328
      %1330 = vrot.lane.b32.xlu0 %v1259, 32
      %v1331 = vpop.permute.xlu0 %1330
      %1332 = vrot.lane.b32.xlu0 %v1261, 32
      %v1333 = vpop.permute.xlu0 %1332
      %1334 = vrot.lane.b32.xlu0 %v1263, 32
      %v1335 = vpop.permute.xlu0 %1334
      %1336 = vrot.lane.b32.xlu0 %v1265, 32
      %v1337 = vpop.permute.xlu0 %1336
      %1338 = vrot.lane.b32.xlu0 %v1267, 32
      %v1339 = vpop.permute.xlu0 %1338
      %1340 = vrot.lane.b32.xlu0 %v1269, 32
      %v1341 = vpop.permute.xlu0 %1340
      %1342 = vrot.lane.b32.xlu0 %v1271, 32
      %v1343 = vpop.permute.xlu0 %1342
      %1344 = vrot.lane.b32.xlu0 %v1273, 32
      %v1345 = vpop.permute.xlu0 %1344
      %1346 = vrot.lane.b32.xlu0 %v1275, 32
      %v1347 = vpop.permute.xlu0 %1346
      %1348 = vrot.lane.b32.xlu0 %v1277, 32
      %v1349 = vpop.permute.xlu0 %1348
      %1350 = vrot.lane.b32.xlu0 %v1279, 32
      %v1351 = vpop.permute.xlu0 %1350
      %1352 = vrot.lane.b32.xlu0 %v1281, 32
      %v1353 = vpop.permute.xlu0 %1352
      %1354 = vrot.lane.b32.xlu0 %v1283, 32
      %v1355 = vpop.permute.xlu0 %1354
      %1356 = vrot.lane.b32.xlu0 %v1285, 32
      %v1357 = vpop.permute.xlu0 %1356
      %1358 = vrot.lane.b32.xlu0 %v1287, 32
      %v1359 = vpop.permute.xlu0 %1358
      %1360 = vrot.lane.b32.xlu0 %v1289, 32
      %v1361 = vpop.permute.xlu0 %1360
      %1362 = vrot.lane.b32.xlu0 %v1291, 32
      %v1363 = vpop.permute.xlu0 %1362
      %vm1400 = vcmask 1043456
      %v1401 = vrot.slane %v668, 4
      %v1402 = vrot.slane %v669, 4
      %v1403 = vsel %vm1400, %v1401, %v1402
      %v1404 = vrot.slane %v670, 4
      %v1405 = vsel %vm1400, %v1402, %v1404
      %v1406 = vrot.slane %v671, 4
      %v1407 = vsel %vm1400, %v1404, %v1406
      %v1408 = vrot.slane %v672, 4
      %v1409 = vsel %vm1400, %v1406, %v1408
      %v1410 = vrot.slane %v673, 4
      %v1411 = vsel %vm1400, %v1408, %v1410
      %v1412 = vrot.slane %v674, 4
      %v1413 = vsel %vm1400, %v1410, %v1412
      %v1414 = vrot.slane %v675, 4
      %v1415 = vsel %vm1400, %v1412, %v1414
      %v1416 = vrot.slane %v676, 4
      %v1417 = vsel %vm1400, %v1414, %v1416
      %v1418 = vrot.slane %v677, 4
      %v1419 = vsel %vm1400, %v1416, %v1418
      %v1420 = vrot.slane %v678, 4
      %v1421 = vsel %vm1400, %v1418, %v1420
      %v1422 = vrot.slane %v679, 4
      %v1423 = vsel %vm1400, %v1420, %v1422
      %v1424 = vrot.slane %v680, 4
      %v1425 = vsel %vm1400, %v1422, %v1424
      %v1426 = vrot.slane %v681, 4
      %v1427 = vsel %vm1400, %v1424, %v1426
      %v1428 = vrot.slane %v682, 4
      %v1429 = vsel %vm1400, %v1426, %v1428
      %v1430 = vrot.slane %v683, 4
      %v1431 = vsel %vm1400, %v1428, %v1430
      %v1432 = vrot.slane %v684, 4
      %v1433 = vsel %vm1400, %v1430, %v1432
      %v1434 = vrot.slane %v685, 4
      %v1435 = vsel %vm1400, %v1432, %v1434
      %v1436 = vrot.slane %v686, 4
      %v1437 = vsel %vm1400, %v1434, %v1436
      %v1438 = vrot.slane %v687, 4
      %v1439 = vsel %vm1400, %v1436, %v1438
      %v1440 = vrot.slane %v688, 4
      %v1441 = vsel %vm1400, %v1438, %v1440
      %v1442 = vrot.slane %v689, 4
      %v1443 = vsel %vm1400, %v1440, %v1442
      %v1444 = vrot.slane %v690, 4
      %v1445 = vsel %vm1400, %v1442, %v1444
      %v1446 = vrot.slane %v691, 4
      %v1447 = vsel %vm1400, %v1444, %v1446
      %v1448 = vrot.slane %v692, 4
      %v1449 = vsel %vm1400, %v1446, %v1448
      %v1450 = vrot.slane %v693, 4
      %v1451 = vsel %vm1400, %v1448, %v1450
      %v1452 = vrot.slane %v694, 4
      %v1453 = vsel %vm1400, %v1450, %v1452
      %v1454 = vrot.slane %v695, 4
      %v1455 = vsel %vm1400, %v1452, %v1454
      %v1456 = vrot.slane %v696, 4
      %v1457 = vsel %vm1400, %v1454, %v1456
      %v1458 = vrot.slane %v697, 4
      %v1459 = vsel %vm1400, %v1456, %v1458
      %v1460 = vrot.slane %v698, 4
      %v1461 = vsel %vm1400, %v1458, %v1460
      %v1462 = vrot.slane %v699, 4
      %v1463 = vsel %vm1400, %v1460, %v1462
      %v1464 = vrot.slane %v700, 4
      %v1465 = vsel %vm1400, %v1462, %v1464
      %v1466 = vrot.slane %v701, 4
      %v1467 = vsel %vm1400, %v1464, %v1466
      %v1468 = vrot.slane %v702, 4
      %v1469 = vsel %vm1400, %v1466, %v1468
      %v1470 = vrot.slane %v703, 4
      %v1471 = vsel %vm1400, %v1468, %v1470
      %v1472 = vrot.slane %v704, 4
      %v1473 = vsel %vm1400, %v1470, %v1472
      %1474 = vrot.lane.b32.xlu0 %v1403, 40
      %v1475 = vpop.permute.xlu0 %1474
      %1476 = vrot.lane.b32.xlu0 %v1405, 40
      %v1477 = vpop.permute.xlu0 %1476
      %1478 = vrot.lane.b32.xlu0 %v1407, 40
      %v1479 = vpop.permute.xlu0 %1478
      %1480 = vrot.lane.b32.xlu0 %v1409, 40
      %v1481 = vpop.permute.xlu0 %1480
      %1482 = vrot.lane.b32.xlu0 %v1411, 40
      %v1483 = vpop.permute.xlu0 %1482
      %1484 = vrot.lane.b32.xlu0 %v1413, 40
      %v1485 = vpop.permute.xlu0 %1484
      %1486 = vrot.lane.b32.xlu0 %v1415, 40
      %v1487 = vpop.permute.xlu0 %1486
      %1488 = vrot.lane.b32.xlu0 %v1417, 40
      %v1489 = vpop.permute.xlu0 %1488
      %1490 = vrot.lane.b32.xlu0 %v1419, 40
      %v1491 = vpop.permute.xlu0 %1490
      %1492 = vrot.lane.b32.xlu0 %v1421, 40
      %v1493 = vpop.permute.xlu0 %1492
      %1494 = vrot.lane.b32.xlu0 %v1423, 40
      %v1495 = vpop.permute.xlu0 %1494
      %1496 = vrot.lane.b32.xlu0 %v1425, 40
      %v1497 = vpop.permute.xlu0 %1496
      %1498 = vrot.lane.b32.xlu0 %v1427, 40
      %v1499 = vpop.permute.xlu0 %1498
      %1500 = vrot.lane.b32.xlu0 %v1429, 40
      %v1501 = vpop.permute.xlu0 %1500
      %1502 = vrot.lane.b32.xlu0 %v1431, 40
      %v1503 = vpop.permute.xlu0 %1502
      %1504 = vrot.lane.b32.xlu0 %v1433, 40
      %v1505 = vpop.permute.xlu0 %1504
      %1506 = vrot.lane.b32.xlu0 %v1435, 40
      %v1507 = vpop.permute.xlu0 %1506
      %1508 = vrot.lane.b32.xlu0 %v1437, 40
      %v1509 = vpop.permute.xlu0 %1508
      %1510 = vrot.lane.b32.xlu0 %v1439, 40
      %v1511 = vpop.permute.xlu0 %1510
      %1512 = vrot.lane.b32.xlu0 %v1441, 40
      %v1513 = vpop.permute.xlu0 %1512
      %1514 = vrot.lane.b32.xlu0 %v1443, 40
      %v1515 = vpop.permute.xlu0 %1514
      %1516 = vrot.lane.b32.xlu0 %v1445, 40
      %v1517 = vpop.permute.xlu0 %1516
      %1518 = vrot.lane.b32.xlu0 %v1447, 40
      %v1519 = vpop.permute.xlu0 %1518
      %1520 = vrot.lane.b32.xlu0 %v1449, 40
      %v1521 = vpop.permute.xlu0 %1520
      %1522 = vrot.lane.b32.xlu0 %v1451, 40
      %v1523 = vpop.permute.xlu0 %1522
      %1524 = vrot.lane.b32.xlu0 %v1453, 40
      %v1525 = vpop.permute.xlu0 %1524
      %1526 = vrot.lane.b32.xlu0 %v1455, 40
      %v1527 = vpop.permute.xlu0 %1526
      %1528 = vrot.lane.b32.xlu0 %v1457, 40
      %v1529 = vpop.permute.xlu0 %1528
      %1530 = vrot.lane.b32.xlu0 %v1459, 40
      %v1531 = vpop.permute.xlu0 %1530
      %1532 = vrot.lane.b32.xlu0 %v1461, 40
      %v1533 = vpop.permute.xlu0 %1532
      %1534 = vrot.lane.b32.xlu0 %v1463, 40
      %v1535 = vpop.permute.xlu0 %1534
      %1536 = vrot.lane.b32.xlu0 %v1465, 40
      %v1537 = vpop.permute.xlu0 %1536
      %1538 = vrot.lane.b32.xlu0 %v1467, 40
      %v1539 = vpop.permute.xlu0 %1538
      %1540 = vrot.lane.b32.xlu0 %v1469, 40
      %v1541 = vpop.permute.xlu0 %1540
      %1542 = vrot.lane.b32.xlu0 %v1471, 40
      %v1543 = vpop.permute.xlu0 %1542
      %1544 = vrot.lane.b32.xlu0 %v1473, 40
      %v1545 = vpop.permute.xlu0 %1544
      %v1584 = vrot.slane %v705, 4
      %v1585 = vsel %vm1400, %v1472, %v1584
      %v1586 = vrot.slane %v706, 4
      %v1587 = vsel %vm1400, %v1584, %v1586
      %1588 = vrot.lane.b32.xlu0 %v1407, 48
      %v1589 = vpop.permute.xlu0 %1588
      %1590 = vrot.lane.b32.xlu0 %v1409, 48
      %v1591 = vpop.permute.xlu0 %1590
      %1592 = vrot.lane.b32.xlu0 %v1411, 48
      %v1593 = vpop.permute.xlu0 %1592
      %1594 = vrot.lane.b32.xlu0 %v1413, 48
      %v1595 = vpop.permute.xlu0 %1594
      %1596 = vrot.lane.b32.xlu0 %v1415, 48
      %v1597 = vpop.permute.xlu0 %1596
      %1598 = vrot.lane.b32.xlu0 %v1417, 48
      %v1599 = vpop.permute.xlu0 %1598
      %1600 = vrot.lane.b32.xlu0 %v1419, 48
      %v1601 = vpop.permute.xlu0 %1600
      %1602 = vrot.lane.b32.xlu0 %v1421, 48
      %v1603 = vpop.permute.xlu0 %1602
      %1604 = vrot.lane.b32.xlu0 %v1423, 48
      %v1605 = vpop.permute.xlu0 %1604
      %1606 = vrot.lane.b32.xlu0 %v1425, 48
      %v1607 = vpop.permute.xlu0 %1606
      %1608 = vrot.lane.b32.xlu0 %v1427, 48
      %v1609 = vpop.permute.xlu0 %1608
      %1610 = vrot.lane.b32.xlu0 %v1429, 48
      %v1611 = vpop.permute.xlu0 %1610
      %1612 = vrot.lane.b32.xlu0 %v1431, 48
      %v1613 = vpop.permute.xlu0 %1612
      %1614 = vrot.lane.b32.xlu0 %v1433, 48
      %v1615 = vpop.permute.xlu0 %1614
      %1616 = vrot.lane.b32.xlu0 %v1435, 48
      %v1617 = vpop.permute.xlu0 %1616
      %1618 = vrot.lane.b32.xlu0 %v1437, 48
      %v1619 = vpop.permute.xlu0 %1618
      %1620 = vrot.lane.b32.xlu0 %v1439, 48
      %v1621 = vpop.permute.xlu0 %1620
      %1622 = vrot.lane.b32.xlu0 %v1441, 48
      %v1623 = vpop.permute.xlu0 %1622
      %1624 = vrot.lane.b32.xlu0 %v1443, 48
      %v1625 = vpop.permute.xlu0 %1624
      %1626 = vrot.lane.b32.xlu0 %v1445, 48
      %v1627 = vpop.permute.xlu0 %1626
      %1628 = vrot.lane.b32.xlu0 %v1447, 48
      %v1629 = vpop.permute.xlu0 %1628
      %1630 = vrot.lane.b32.xlu0 %v1449, 48
      %v1631 = vpop.permute.xlu0 %1630
      %1632 = vrot.lane.b32.xlu0 %v1451, 48
      %v1633 = vpop.permute.xlu0 %1632
      %1634 = vrot.lane.b32.xlu0 %v1453, 48
      %v1635 = vpop.permute.xlu0 %1634
      %1636 = vrot.lane.b32.xlu0 %v1455, 48
      %v1637 = vpop.permute.xlu0 %1636
      %1638 = vrot.lane.b32.xlu0 %v1457, 48
      %v1639 = vpop.permute.xlu0 %1638
      %1640 = vrot.lane.b32.xlu0 %v1459, 48
      %v1641 = vpop.permute.xlu0 %1640
      %1642 = vrot.lane.b32.xlu0 %v1461, 48
      %v1643 = vpop.permute.xlu0 %1642
      %1644 = vrot.lane.b32.xlu0 %v1463, 48
      %v1645 = vpop.permute.xlu0 %1644
      %1646 = vrot.lane.b32.xlu0 %v1465, 48
      %v1647 = vpop.permute.xlu0 %1646
      %1648 = vrot.lane.b32.xlu0 %v1467, 48
      %v1649 = vpop.permute.xlu0 %1648
      %1650 = vrot.lane.b32.xlu0 %v1469, 48
      %v1651 = vpop.permute.xlu0 %1650
      %1652 = vrot.lane.b32.xlu0 %v1471, 48
      %v1653 = vpop.permute.xlu0 %1652
      %1654 = vrot.lane.b32.xlu0 %v1473, 48
      %v1655 = vpop.permute.xlu0 %1654
      %1656 = vrot.lane.b32.xlu0 %v1585, 48
      %v1657 = vpop.permute.xlu0 %1656
      %1658 = vrot.lane.b32.xlu0 %v1587, 48
      %v1659 = vpop.permute.xlu0 %1658
      %vm1696 = vcmask 1042432
      %v1697 = vrot.slane %v670, 5
      %v1698 = vrot.slane %v671, 5
      %v1699 = vsel %vm1696, %v1697, %v1698
      %v1700 = vrot.slane %v672, 5
      %v1701 = vsel %vm1696, %v1698, %v1700
      %v1702 = vrot.slane %v673, 5
      %v1703 = vsel %vm1696, %v1700, %v1702
      %v1704 = vrot.slane %v674, 5
      %v1705 = vsel %vm1696, %v1702, %v1704
      %v1706 = vrot.slane %v675, 5
      %v1707 = vsel %vm1696, %v1704, %v1706
      %v1708 = vrot.slane %v676, 5
      %v1709 = vsel %vm1696, %v1706, %v1708
      %v1710 = vrot.slane %v677, 5
      %v1711 = vsel %vm1696, %v1708, %v1710
      %v1712 = vrot.slane %v678, 5
      %v1713 = vsel %vm1696, %v1710, %v1712
      %v1714 = vrot.slane %v679, 5
      %v1715 = vsel %vm1696, %v1712, %v1714
      %v1716 = vrot.slane %v680, 5
      %v1717 = vsel %vm1696, %v1714, %v1716
      %v1718 = vrot.slane %v681, 5
      %v1719 = vsel %vm1696, %v1716, %v1718
      %v1720 = vrot.slane %v682, 5
      %v1721 = vsel %vm1696, %v1718, %v1720
      %v1722 = vrot.slane %v683, 5
      %v1723 = vsel %vm1696, %v1720, %v1722
      %v1724 = vrot.slane %v684, 5
      %v1725 = vsel %vm1696, %v1722, %v1724
      %v1726 = vrot.slane %v685, 5
      %v1727 = vsel %vm1696, %v1724, %v1726
      %v1728 = vrot.slane %v686, 5
      %v1729 = vsel %vm1696, %v1726, %v1728
      %v1730 = vrot.slane %v687, 5
      %v1731 = vsel %vm1696, %v1728, %v1730
      %v1732 = vrot.slane %v688, 5
      %v1733 = vsel %vm1696, %v1730, %v1732
      %v1734 = vrot.slane %v689, 5
      %v1735 = vsel %vm1696, %v1732, %v1734
      %v1736 = vrot.slane %v690, 5
      %v1737 = vsel %vm1696, %v1734, %v1736
      %v1738 = vrot.slane %v691, 5
      %v1739 = vsel %vm1696, %v1736, %v1738
      %v1740 = vrot.slane %v692, 5
      %v1741 = vsel %vm1696, %v1738, %v1740
      %v1742 = vrot.slane %v693, 5
      %v1743 = vsel %vm1696, %v1740, %v1742
      %v1744 = vrot.slane %v694, 5
      %v1745 = vsel %vm1696, %v1742, %v1744
      %v1746 = vrot.slane %v695, 5
      %v1747 = vsel %vm1696, %v1744, %v1746
      %v1748 = vrot.slane %v696, 5
      %v1749 = vsel %vm1696, %v1746, %v1748
      %v1750 = vrot.slane %v697, 5
      %v1751 = vsel %vm1696, %v1748, %v1750
      %v1752 = vrot.slane %v698, 5
      %v1753 = vsel %vm1696, %v1750, %v1752
      %v1754 = vrot.slane %v699, 5
      %v1755 = vsel %vm1696, %v1752, %v1754
      %v1756 = vrot.slane %v700, 5
      %v1757 = vsel %vm1696, %v1754, %v1756
      %v1758 = vrot.slane %v701, 5
      %v1759 = vsel %vm1696, %v1756, %v1758
      %v1760 = vrot.slane %v702, 5
      %v1761 = vsel %vm1696, %v1758, %v1760
      %v1762 = vrot.slane %v703, 5
      %v1763 = vsel %vm1696, %v1760, %v1762
      %v1764 = vrot.slane %v704, 5
      %v1765 = vsel %vm1696, %v1762, %v1764
      %v1766 = vrot.slane %v705, 5
      %v1767 = vsel %vm1696, %v1764, %v1766
      %v1768 = vrot.slane %v706, 5
      %v1769 = vsel %vm1696, %v1766, %v1768
      %1770 = vrot.lane.b32.xlu0 %v1699, 56
      %v1771 = vpop.permute.xlu0 %1770
      %1772 = vrot.lane.b32.xlu0 %v1701, 56
      %v1773 = vpop.permute.xlu0 %1772
      %1774 = vrot.lane.b32.xlu0 %v1703, 56
      %v1775 = vpop.permute.xlu0 %1774
      %1776 = vrot.lane.b32.xlu0 %v1705, 56
      %v1777 = vpop.permute.xlu0 %1776
      %1778 = vrot.lane.b32.xlu0 %v1707, 56
      %v1779 = vpop.permute.xlu0 %1778
      %1780 = vrot.lane.b32.xlu0 %v1709, 56
      %v1781 = vpop.permute.xlu0 %1780
      %1782 = vrot.lane.b32.xlu0 %v1711, 56
      %v1783 = vpop.permute.xlu0 %1782
      %1784 = vrot.lane.b32.xlu0 %v1713, 56
      %v1785 = vpop.permute.xlu0 %1784
      %1786 = vrot.lane.b32.xlu0 %v1715, 56
      %v1787 = vpop.permute.xlu0 %1786
      %1788 = vrot.lane.b32.xlu0 %v1717, 56
      %v1789 = vpop.permute.xlu0 %1788
      %1790 = vrot.lane.b32.xlu0 %v1719, 56
      %v1791 = vpop.permute.xlu0 %1790
      %1792 = vrot.lane.b32.xlu0 %v1721, 56
      %v1793 = vpop.permute.xlu0 %1792
      %1794 = vrot.lane.b32.xlu0 %v1723, 56
      %v1795 = vpop.permute.xlu0 %1794
      %1796 = vrot.lane.b32.xlu0 %v1725, 56
      %v1797 = vpop.permute.xlu0 %1796
      %1798 = vrot.lane.b32.xlu0 %v1727, 56
      %v1799 = vpop.permute.xlu0 %1798
      %1800 = vrot.lane.b32.xlu0 %v1729, 56
      %v1801 = vpop.permute.xlu0 %1800
      %1802 = vrot.lane.b32.xlu0 %v1731, 56
      %v1803 = vpop.permute.xlu0 %1802
      %1804 = vrot.lane.b32.xlu0 %v1733, 56
      %v1805 = vpop.permute.xlu0 %1804
      %1806 = vrot.lane.b32.xlu0 %v1735, 56
      %v1807 = vpop.permute.xlu0 %1806
      %1808 = vrot.lane.b32.xlu0 %v1737, 56
      %v1809 = vpop.permute.xlu0 %1808
      %1810 = vrot.lane.b32.xlu0 %v1739, 56
      %v1811 = vpop.permute.xlu0 %1810
      %1812 = vrot.lane.b32.xlu0 %v1741, 56
      %v1813 = vpop.permute.xlu0 %1812
      %1814 = vrot.lane.b32.xlu0 %v1743, 56
      %v1815 = vpop.permute.xlu0 %1814
      %1816 = vrot.lane.b32.xlu0 %v1745, 56
      %v1817 = vpop.permute.xlu0 %1816
      %1818 = vrot.lane.b32.xlu0 %v1747, 56
      %v1819 = vpop.permute.xlu0 %1818
      %1820 = vrot.lane.b32.xlu0 %v1749, 56
      %v1821 = vpop.permute.xlu0 %1820
      %1822 = vrot.lane.b32.xlu0 %v1751, 56
      %v1823 = vpop.permute.xlu0 %1822
      %1824 = vrot.lane.b32.xlu0 %v1753, 56
      %v1825 = vpop.permute.xlu0 %1824
      %1826 = vrot.lane.b32.xlu0 %v1755, 56
      %v1827 = vpop.permute.xlu0 %1826
      %1828 = vrot.lane.b32.xlu0 %v1757, 56
      %v1829 = vpop.permute.xlu0 %1828
      %1830 = vrot.lane.b32.xlu0 %v1759, 56
      %v1831 = vpop.permute.xlu0 %1830
      %1832 = vrot.lane.b32.xlu0 %v1761, 56
      %v1833 = vpop.permute.xlu0 %1832
      %1834 = vrot.lane.b32.xlu0 %v1763, 56
      %v1835 = vpop.permute.xlu0 %1834
      %1836 = vrot.lane.b32.xlu0 %v1765, 56
      %v1837 = vpop.permute.xlu0 %1836
      %1838 = vrot.lane.b32.xlu0 %v1767, 56
      %v1839 = vpop.permute.xlu0 %1838
      %1840 = vrot.lane.b32.xlu0 %v1769, 56
      %v1841 = vpop.permute.xlu0 %1840
      %vm1878 = vcmask 1041408
      %v1879 = vrot.slane %v670, 6
      %v1880 = vrot.slane %v671, 6
      %v1881 = vsel %vm1878, %v1879, %v1880
      %v1882 = vrot.slane %v672, 6
      %v1883 = vsel %vm1878, %v1880, %v1882
      %v1884 = vrot.slane %v673, 6
      %v1885 = vsel %vm1878, %v1882, %v1884
      %v1886 = vrot.slane %v674, 6
      %v1887 = vsel %vm1878, %v1884, %v1886
      %v1888 = vrot.slane %v675, 6
      %v1889 = vsel %vm1878, %v1886, %v1888
      %v1890 = vrot.slane %v676, 6
      %v1891 = vsel %vm1878, %v1888, %v1890
      %v1892 = vrot.slane %v677, 6
      %v1893 = vsel %vm1878, %v1890, %v1892
      %v1894 = vrot.slane %v678, 6
      %v1895 = vsel %vm1878, %v1892, %v1894
      %v1896 = vrot.slane %v679, 6
      %v1897 = vsel %vm1878, %v1894, %v1896
      %v1898 = vrot.slane %v680, 6
      %v1899 = vsel %vm1878, %v1896, %v1898
      %v1900 = vrot.slane %v681, 6
      %v1901 = vsel %vm1878, %v1898, %v1900
      %v1902 = vrot.slane %v682, 6
      %v1903 = vsel %vm1878, %v1900, %v1902
      %v1904 = vrot.slane %v683, 6
      %v1905 = vsel %vm1878, %v1902, %v1904
      %v1906 = vrot.slane %v684, 6
      %v1907 = vsel %vm1878, %v1904, %v1906
      %v1908 = vrot.slane %v685, 6
      %v1909 = vsel %vm1878, %v1906, %v1908
      %v1910 = vrot.slane %v686, 6
      %v1911 = vsel %vm1878, %v1908, %v1910
      %v1912 = vrot.slane %v687, 6
      %v1913 = vsel %vm1878, %v1910, %v1912
      %v1914 = vrot.slane %v688, 6
      %v1915 = vsel %vm1878, %v1912, %v1914
      %v1916 = vrot.slane %v689, 6
      %v1917 = vsel %vm1878, %v1914, %v1916
      %v1918 = vrot.slane %v690, 6
      %v1919 = vsel %vm1878, %v1916, %v1918
      %v1920 = vrot.slane %v691, 6
      %v1921 = vsel %vm1878, %v1918, %v1920
      %v1922 = vrot.slane %v692, 6
      %v1923 = vsel %vm1878, %v1920, %v1922
      %v1924 = vrot.slane %v693, 6
      %v1925 = vsel %vm1878, %v1922, %v1924
      %v1926 = vrot.slane %v694, 6
      %v1927 = vsel %vm1878, %v1924, %v1926
      %v1928 = vrot.slane %v695, 6
      %v1929 = vsel %vm1878, %v1926, %v1928
      %v1930 = vrot.slane %v696, 6
      %v1931 = vsel %vm1878, %v1928, %v1930
      %v1932 = vrot.slane %v697, 6
      %v1933 = vsel %vm1878, %v1930, %v1932
      %v1934 = vrot.slane %v698, 6
      %v1935 = vsel %vm1878, %v1932, %v1934
      %v1936 = vrot.slane %v699, 6
      %v1937 = vsel %vm1878, %v1934, %v1936
      %v1938 = vrot.slane %v700, 6
      %v1939 = vsel %vm1878, %v1936, %v1938
      %v1940 = vrot.slane %v701, 6
      %v1941 = vsel %vm1878, %v1938, %v1940
      %v1942 = vrot.slane %v702, 6
      %v1943 = vsel %vm1878, %v1940, %v1942
      %v1944 = vrot.slane %v703, 6
      %v1945 = vsel %vm1878, %v1942, %v1944
      %v1946 = vrot.slane %v704, 6
      %v1947 = vsel %vm1878, %v1944, %v1946
      %v1948 = vrot.slane %v705, 6
      %v1949 = vsel %vm1878, %v1946, %v1948
      %v1950 = vrot.slane %v706, 6
      %v1951 = vsel %vm1878, %v1948, %v1950
      %1952 = vrot.lane.b32.xlu0 %v1881, 64
      %v1953 = vpop.permute.xlu0 %1952
      %1954 = vrot.lane.b32.xlu0 %v1883, 64
      %v1955 = vpop.permute.xlu0 %1954
      %1956 = vrot.lane.b32.xlu0 %v1885, 64
      %v1957 = vpop.permute.xlu0 %1956
      %1958 = vrot.lane.b32.xlu0 %v1887, 64
      %v1959 = vpop.permute.xlu0 %1958
      %1960 = vrot.lane.b32.xlu0 %v1889, 64
      %v1961 = vpop.permute.xlu0 %1960
      %1962 = vrot.lane.b32.xlu0 %v1891, 64
      %v1963 = vpop.permute.xlu0 %1962
      %1964 = vrot.lane.b32.xlu0 %v1893, 64
      %v1965 = vpop.permute.xlu0 %1964
      %1966 = vrot.lane.b32.xlu0 %v1895, 64
      %v1967 = vpop.permute.xlu0 %1966
      %1968 = vrot.lane.b32.xlu0 %v1897, 64
      %v1969 = vpop.permute.xlu0 %1968
      %1970 = vrot.lane.b32.xlu0 %v1899, 64
      %v1971 = vpop.permute.xlu0 %1970
      %1972 = vrot.lane.b32.xlu0 %v1901, 64
      %v1973 = vpop.permute.xlu0 %1972
      %1974 = vrot.lane.b32.xlu0 %v1903, 64
      %v1975 = vpop.permute.xlu0 %1974
      %1976 = vrot.lane.b32.xlu0 %v1905, 64
      %v1977 = vpop.permute.xlu0 %1976
      %1978 = vrot.lane.b32.xlu0 %v1907, 64
      %v1979 = vpop.permute.xlu0 %1978
      %1980 = vrot.lane.b32.xlu0 %v1909, 64
      %v1981 = vpop.permute.xlu0 %1980
      %1982 = vrot.lane.b32.xlu0 %v1911, 64
      %v1983 = vpop.permute.xlu0 %1982
      %1984 = vrot.lane.b32.xlu0 %v1913, 64
      %v1985 = vpop.permute.xlu0 %1984
      %1986 = vrot.lane.b32.xlu0 %v1915, 64
      %v1987 = vpop.permute.xlu0 %1986
      %1988 = vrot.lane.b32.xlu0 %v1917, 64
      %v1989 = vpop.permute.xlu0 %1988
      %1990 = vrot.lane.b32.xlu0 %v1919, 64
      %v1991 = vpop.permute.xlu0 %1990
      %1992 = vrot.lane.b32.xlu0 %v1921, 64
      %v1993 = vpop.permute.xlu0 %1992
      %1994 = vrot.lane.b32.xlu0 %v1923, 64
      %v1995 = vpop.permute.xlu0 %1994
      %1996 = vrot.lane.b32.xlu0 %v1925, 64
      %v1997 = vpop.permute.xlu0 %1996
      %1998 = vrot.lane.b32.xlu0 %v1927, 64
      %v1999 = vpop.permute.xlu0 %1998
      %2000 = vrot.lane.b32.xlu0 %v1929, 64
      %v2001 = vpop.permute.xlu0 %2000
      %2002 = vrot.lane.b32.xlu0 %v1931, 64
      %v2003 = vpop.permute.xlu0 %2002
      %2004 = vrot.lane.b32.xlu0 %v1933, 64
      %v2005 = vpop.permute.xlu0 %2004
      %2006 = vrot.lane.b32.xlu0 %v1935, 64
      %v2007 = vpop.permute.xlu0 %2006
      %2008 = vrot.lane.b32.xlu0 %v1937, 64
      %v2009 = vpop.permute.xlu0 %2008
      %2010 = vrot.lane.b32.xlu0 %v1939, 64
      %v2011 = vpop.permute.xlu0 %2010
      %2012 = vrot.lane.b32.xlu0 %v1941, 64
      %v2013 = vpop.permute.xlu0 %2012
      %2014 = vrot.lane.b32.xlu0 %v1943, 64
      %v2015 = vpop.permute.xlu0 %2014
      %2016 = vrot.lane.b32.xlu0 %v1945, 64
      %v2017 = vpop.permute.xlu0 %2016
      %2018 = vrot.lane.b32.xlu0 %v1947, 64
      %v2019 = vpop.permute.xlu0 %2018
      %2020 = vrot.lane.b32.xlu0 %v1949, 64
      %v2021 = vpop.permute.xlu0 %2020
      %2022 = vrot.lane.b32.xlu0 %v1951, 64
      %v2023 = vpop.permute.xlu0 %2022
      %vm2060 = vcmask 64512
      %v2061 = vsel %vm2060, %v666, %v816
      %v2062 = vsel %vm2060, %v667, %v818
      %v2063 = vsel %vm2060, %v668, %v820
      %v2064 = vsel %vm2060, %v669, %v822
      %v2065 = vsel %vm2060, %v670, %v824
      %v2066 = vsel %vm2060, %v671, %v826
      %v2067 = vsel %vm2060, %v672, %v828
      %v2068 = vsel %vm2060, %v673, %v830
      %v2069 = vsel %vm2060, %v674, %v832
      %v2070 = vsel %vm2060, %v675, %v834
      %v2071 = vsel %vm2060, %v676, %v836
      %v2072 = vsel %vm2060, %v677, %v838
      %v2073 = vsel %vm2060, %v678, %v840
      %v2074 = vsel %vm2060, %v679, %v842
      %v2075 = vsel %vm2060, %v680, %v844
      %v2076 = vsel %vm2060, %v681, %v846
      %v2077 = vsel %vm2060, %v682, %v848
      %v2078 = vsel %vm2060, %v683, %v850
      %v2079 = vsel %vm2060, %v684, %v852
      %v2080 = vsel %vm2060, %v685, %v854
      %v2081 = vsel %vm2060, %v686, %v856
      %v2082 = vsel %vm2060, %v687, %v858
      %v2083 = vsel %vm2060, %v688, %v860
      %v2084 = vsel %vm2060, %v689, %v862
      %v2085 = vsel %vm2060, %v690, %v864
      %v2086 = vsel %vm2060, %v691, %v866
      %v2087 = vsel %vm2060, %v692, %v868
      %v2088 = vsel %vm2060, %v693, %v870
      %v2089 = vsel %vm2060, %v694, %v872
      %v2090 = vsel %vm2060, %v695, %v874
      %v2091 = vsel %vm2060, %v696, %v876
      %v2092 = vsel %vm2060, %v697, %v878
      %v2093 = vsel %vm2060, %v698, %v880
      %v2094 = vsel %vm2060, %v699, %v882
      %v2095 = vsel %vm2060, %v700, %v884
      %v2096 = vsel %vm2060, %v701, %v886
      %vm2097 = vcmask 130048
      %v2098 = vsel %vm2097, %v2061, %v996
      %v2099 = vsel %vm2097, %v2062, %v998
      %v2100 = vsel %vm2097, %v2063, %v1000
      %v2101 = vsel %vm2097, %v2064, %v1002
      %v2102 = vsel %vm2097, %v2065, %v1004
      %v2103 = vsel %vm2097, %v2066, %v1006
      %v2104 = vsel %vm2097, %v2067, %v1008
      %v2105 = vsel %vm2097, %v2068, %v1010
      %v2106 = vsel %vm2097, %v2069, %v1012
      %v2107 = vsel %vm2097, %v2070, %v1014
      %v2108 = vsel %vm2097, %v2071, %v1016
      %v2109 = vsel %vm2097, %v2072, %v1018
      %v2110 = vsel %vm2097, %v2073, %v1020
      %v2111 = vsel %vm2097, %v2074, %v1022
      %v2112 = vsel %vm2097, %v2075, %v1024
      %v2113 = vsel %vm2097, %v2076, %v1026
      %v2114 = vsel %vm2097, %v2077, %v1028
      %v2115 = vsel %vm2097, %v2078, %v1030
      %v2116 = vsel %vm2097, %v2079, %v1032
      %v2117 = vsel %vm2097, %v2080, %v1034
      %v2118 = vsel %vm2097, %v2081, %v1036
      %v2119 = vsel %vm2097, %v2082, %v1038
      %v2120 = vsel %vm2097, %v2083, %v1040
      %v2121 = vsel %vm2097, %v2084, %v1042
      %v2122 = vsel %vm2097, %v2085, %v1044
      %v2123 = vsel %vm2097, %v2086, %v1046
      %v2124 = vsel %vm2097, %v2087, %v1048
      %v2125 = vsel %vm2097, %v2088, %v1050
      %v2126 = vsel %vm2097, %v2089, %v1052
      %v2127 = vsel %vm2097, %v2090, %v1054
      %v2128 = vsel %vm2097, %v2091, %v1056
      %v2129 = vsel %vm2097, %v2092, %v1058
      %v2130 = vsel %vm2097, %v2093, %v1060
      %v2131 = vsel %vm2097, %v2094, %v1062
      %v2132 = vsel %vm2097, %v2095, %v1064
      %v2133 = vsel %vm2097, %v2096, %v1066
      %vm2134 = vcmask 195584
      %v2135 = vsel %vm2134, %v2098, %v1110
      %v2136 = vsel %vm2134, %v2099, %v1112
      %v2137 = vsel %vm2134, %v2100, %v1114
      %v2138 = vsel %vm2134, %v2101, %v1116
      %v2139 = vsel %vm2134, %v2102, %v1118
      %v2140 = vsel %vm2134, %v2103, %v1120
      %v2141 = vsel %vm2134, %v2104, %v1122
      %v2142 = vsel %vm2134, %v2105, %v1124
      %v2143 = vsel %vm2134, %v2106, %v1126
      %v2144 = vsel %vm2134, %v2107, %v1128
      %v2145 = vsel %vm2134, %v2108, %v1130
      %v2146 = vsel %vm2134, %v2109, %v1132
      %v2147 = vsel %vm2134, %v2110, %v1134
      %v2148 = vsel %vm2134, %v2111, %v1136
      %v2149 = vsel %vm2134, %v2112, %v1138
      %v2150 = vsel %vm2134, %v2113, %v1140
      %v2151 = vsel %vm2134, %v2114, %v1142
      %v2152 = vsel %vm2134, %v2115, %v1144
      %v2153 = vsel %vm2134, %v2116, %v1146
      %v2154 = vsel %vm2134, %v2117, %v1148
      %v2155 = vsel %vm2134, %v2118, %v1150
      %v2156 = vsel %vm2134, %v2119, %v1152
      %v2157 = vsel %vm2134, %v2120, %v1154
      %v2158 = vsel %vm2134, %v2121, %v1156
      %v2159 = vsel %vm2134, %v2122, %v1158
      %v2160 = vsel %vm2134, %v2123, %v1160
      %v2161 = vsel %vm2134, %v2124, %v1162
      %v2162 = vsel %vm2134, %v2125, %v1164
      %v2163 = vsel %vm2134, %v2126, %v1166
      %v2164 = vsel %vm2134, %v2127, %v1168
      %v2165 = vsel %vm2134, %v2128, %v1170
      %v2166 = vsel %vm2134, %v2129, %v1172
      %v2167 = vsel %vm2134, %v2130, %v1174
      %v2168 = vsel %vm2134, %v2131, %v1176
      %v2169 = vsel %vm2134, %v2132, %v1178
      %v2170 = vsel %vm2134, %v2133, %v1180
      %v2171 = vsel %vm658, %v2135, %v1293
      %v2172 = vsel %vm658, %v2136, %v1295
      %v2173 = vsel %vm658, %v2137, %v1297
      %v2174 = vsel %vm658, %v2138, %v1299
      %v2175 = vsel %vm658, %v2139, %v1301
      %v2176 = vsel %vm658, %v2140, %v1303
      %v2177 = vsel %vm658, %v2141, %v1305
      %v2178 = vsel %vm658, %v2142, %v1307
      %v2179 = vsel %vm658, %v2143, %v1309
      %v2180 = vsel %vm658, %v2144, %v1311
      %v2181 = vsel %vm658, %v2145, %v1313
      %v2182 = vsel %vm658, %v2146, %v1315
      %v2183 = vsel %vm658, %v2147, %v1317
      %v2184 = vsel %vm658, %v2148, %v1319
      %v2185 = vsel %vm658, %v2149, %v1321
      %v2186 = vsel %vm658, %v2150, %v1323
      %v2187 = vsel %vm658, %v2151, %v1325
      %v2188 = vsel %vm658, %v2152, %v1327
      %v2189 = vsel %vm658, %v2153, %v1329
      %v2190 = vsel %vm658, %v2154, %v1331
      %v2191 = vsel %vm658, %v2155, %v1333
      %v2192 = vsel %vm658, %v2156, %v1335
      %v2193 = vsel %vm658, %v2157, %v1337
      %v2194 = vsel %vm658, %v2158, %v1339
      %v2195 = vsel %vm658, %v2159, %v1341
      %v2196 = vsel %vm658, %v2160, %v1343
      %v2197 = vsel %vm658, %v2161, %v1345
      %v2198 = vsel %vm658, %v2162, %v1347
      %v2199 = vsel %vm658, %v2163, %v1349
      %v2200 = vsel %vm658, %v2164, %v1351
      %v2201 = vsel %vm658, %v2165, %v1353
      %v2202 = vsel %vm658, %v2166, %v1355
      %v2203 = vsel %vm658, %v2167, %v1357
      %v2204 = vsel %vm658, %v2168, %v1359
      %v2205 = vsel %vm658, %v2169, %v1361
      %v2206 = vsel %vm658, %v2170, %v1363
      %vm2207 = vcmask 326656
      %v2208 = vsel %vm2207, %v2171, %v1475
      %v2209 = vsel %vm2207, %v2172, %v1477
      %v2210 = vsel %vm2207, %v2173, %v1479
      %v2211 = vsel %vm2207, %v2174, %v1481
      %v2212 = vsel %vm2207, %v2175, %v1483
      %v2213 = vsel %vm2207, %v2176, %v1485
      %v2214 = vsel %vm2207, %v2177, %v1487
      %v2215 = vsel %vm2207, %v2178, %v1489
      %v2216 = vsel %vm2207, %v2179, %v1491
      %v2217 = vsel %vm2207, %v2180, %v1493
      %v2218 = vsel %vm2207, %v2181, %v1495
      %v2219 = vsel %vm2207, %v2182, %v1497
      %v2220 = vsel %vm2207, %v2183, %v1499
      %v2221 = vsel %vm2207, %v2184, %v1501
      %v2222 = vsel %vm2207, %v2185, %v1503
      %v2223 = vsel %vm2207, %v2186, %v1505
      %v2224 = vsel %vm2207, %v2187, %v1507
      %v2225 = vsel %vm2207, %v2188, %v1509
      %v2226 = vsel %vm2207, %v2189, %v1511
      %v2227 = vsel %vm2207, %v2190, %v1513
      %v2228 = vsel %vm2207, %v2191, %v1515
      %v2229 = vsel %vm2207, %v2192, %v1517
      %v2230 = vsel %vm2207, %v2193, %v1519
      %v2231 = vsel %vm2207, %v2194, %v1521
      %v2232 = vsel %vm2207, %v2195, %v1523
      %v2233 = vsel %vm2207, %v2196, %v1525
      %v2234 = vsel %vm2207, %v2197, %v1527
      %v2235 = vsel %vm2207, %v2198, %v1529
      %v2236 = vsel %vm2207, %v2199, %v1531
      %v2237 = vsel %vm2207, %v2200, %v1533
      %v2238 = vsel %vm2207, %v2201, %v1535
      %v2239 = vsel %vm2207, %v2202, %v1537
      %v2240 = vsel %vm2207, %v2203, %v1539
      %v2241 = vsel %vm2207, %v2204, %v1541
      %v2242 = vsel %vm2207, %v2205, %v1543
      %v2243 = vsel %vm2207, %v2206, %v1545
      %vm2244 = vcmask 392192
      %v2245 = vsel %vm2244, %v2208, %v1589
      %v2246 = vsel %vm2244, %v2209, %v1591
      %v2247 = vsel %vm2244, %v2210, %v1593
      %v2248 = vsel %vm2244, %v2211, %v1595
      %v2249 = vsel %vm2244, %v2212, %v1597
      %v2250 = vsel %vm2244, %v2213, %v1599
      %v2251 = vsel %vm2244, %v2214, %v1601
      %v2252 = vsel %vm2244, %v2215, %v1603
      %v2253 = vsel %vm2244, %v2216, %v1605
      %v2254 = vsel %vm2244, %v2217, %v1607
      %v2255 = vsel %vm2244, %v2218, %v1609
      %v2256 = vsel %vm2244, %v2219, %v1611
      %v2257 = vsel %vm2244, %v2220, %v1613
      %v2258 = vsel %vm2244, %v2221, %v1615
      %v2259 = vsel %vm2244, %v2222, %v1617
      %v2260 = vsel %vm2244, %v2223, %v1619
      %v2261 = vsel %vm2244, %v2224, %v1621
      %v2262 = vsel %vm2244, %v2225, %v1623
      %v2263 = vsel %vm2244, %v2226, %v1625
      %v2264 = vsel %vm2244, %v2227, %v1627
      %v2265 = vsel %vm2244, %v2228, %v1629
      %v2266 = vsel %vm2244, %v2229, %v1631
      %v2267 = vsel %vm2244, %v2230, %v1633
      %v2268 = vsel %vm2244, %v2231, %v1635
      %v2269 = vsel %vm2244, %v2232, %v1637
      %v2270 = vsel %vm2244, %v2233, %v1639
      %v2271 = vsel %vm2244, %v2234, %v1641
      %v2272 = vsel %vm2244, %v2235, %v1643
      %v2273 = vsel %vm2244, %v2236, %v1645
      %v2274 = vsel %vm2244, %v2237, %v1647
      %v2275 = vsel %vm2244, %v2238, %v1649
      %v2276 = vsel %vm2244, %v2239, %v1651
      %v2277 = vsel %vm2244, %v2240, %v1653
      %v2278 = vsel %vm2244, %v2241, %v1655
      %v2279 = vsel %vm2244, %v2242, %v1657
      %v2280 = vsel %vm2244, %v2243, %v1659
      %vm2281 = vcmask 457728
      %v2282 = vsel %vm2281, %v2245, %v1771
      %v2283 = vsel %vm2281, %v2246, %v1773
      %v2284 = vsel %vm2281, %v2247, %v1775
      %v2285 = vsel %vm2281, %v2248, %v1777
      %v2286 = vsel %vm2281, %v2249, %v1779
      %v2287 = vsel %vm2281, %v2250, %v1781
      %v2288 = vsel %vm2281, %v2251, %v1783
      %v2289 = vsel %vm2281, %v2252, %v1785
      %v2290 = vsel %vm2281, %v2253, %v1787
      %v2291 = vsel %vm2281, %v2254, %v1789
      %v2292 = vsel %vm2281, %v2255, %v1791
      %v2293 = vsel %vm2281, %v2256, %v1793
      %v2294 = vsel %vm2281, %v2257, %v1795
      %v2295 = vsel %vm2281, %v2258, %v1797
      %v2296 = vsel %vm2281, %v2259, %v1799
      %v2297 = vsel %vm2281, %v2260, %v1801
      %v2298 = vsel %vm2281, %v2261, %v1803
      %v2299 = vsel %vm2281, %v2262, %v1805
      %v2300 = vsel %vm2281, %v2263, %v1807
      %v2301 = vsel %vm2281, %v2264, %v1809
      %v2302 = vsel %vm2281, %v2265, %v1811
      %v2303 = vsel %vm2281, %v2266, %v1813
      %v2304 = vsel %vm2281, %v2267, %v1815
      %v2305 = vsel %vm2281, %v2268, %v1817
      %v2306 = vsel %vm2281, %v2269, %v1819
      %v2307 = vsel %vm2281, %v2270, %v1821
      %v2308 = vsel %vm2281, %v2271, %v1823
      %v2309 = vsel %vm2281, %v2272, %v1825
      %v2310 = vsel %vm2281, %v2273, %v1827
      %v2311 = vsel %vm2281, %v2274, %v1829
      %v2312 = vsel %vm2281, %v2275, %v1831
      %v2313 = vsel %vm2281, %v2276, %v1833
      %v2314 = vsel %vm2281, %v2277, %v1835
      %v2315 = vsel %vm2281, %v2278, %v1837
      %v2316 = vsel %vm2281, %v2279, %v1839
      %v2317 = vsel %vm2281, %v2280, %v1841
      %vm2318 = vcmask 523264
      %v2319 = vsel %vm2318, %v2282, %v1953
      %v2320 = vsel %vm2318, %v2283, %v1955
      %v2321 = vsel %vm2318, %v2284, %v1957
      %v2322 = vsel %vm2318, %v2285, %v1959
      %v2323 = vsel %vm2318, %v2286, %v1961
      %v2324 = vsel %vm2318, %v2287, %v1963
      %v2325 = vsel %vm2318, %v2288, %v1965
      %v2326 = vsel %vm2318, %v2289, %v1967
      %v2327 = vsel %vm2318, %v2290, %v1969
      %v2328 = vsel %vm2318, %v2291, %v1971
      %v2329 = vsel %vm2318, %v2292, %v1973
      %v2330 = vsel %vm2318, %v2293, %v1975
      %v2331 = vsel %vm2318, %v2294, %v1977
      %v2332 = vsel %vm2318, %v2295, %v1979
      %v2333 = vsel %vm2318, %v2296, %v1981
      %v2334 = vsel %vm2318, %v2297, %v1983
      %v2335 = vsel %vm2318, %v2298, %v1985
      %v2336 = vsel %vm2318, %v2299, %v1987
      %v2337 = vsel %vm2318, %v2300, %v1989
      %v2338 = vsel %vm2318, %v2301, %v1991
      %v2339 = vsel %vm2318, %v2302, %v1993
      %v2340 = vsel %vm2318, %v2303, %v1995
      %v2341 = vsel %vm2318, %v2304, %v1997
      %v2342 = vsel %vm2318, %v2305, %v1999
      %v2343 = vsel %vm2318, %v2306, %v2001
      %v2344 = vsel %vm2318, %v2307, %v2003
      %v2345 = vsel %vm2318, %v2308, %v2005
      %v2346 = vsel %vm2318, %v2309, %v2007
      %v2347 = vsel %vm2318, %v2310, %v2009
      %v2348 = vsel %vm2318, %v2311, %v2011
      %v2349 = vsel %vm2318, %v2312, %v2013
      %v2350 = vsel %vm2318, %v2313, %v2015
      %v2351 = vsel %vm2318, %v2314, %v2017
      %v2352 = vsel %vm2318, %v2315, %v2019
      %v2353 = vsel %vm2318, %v2316, %v2021
      %v2354 = vsel %vm2318, %v2317, %v2023
      %v2355 = vpack.c.bf16 %v2320, %v2319
      %v2356 = vpack.c.bf16 %v2322, %v2321
      %v2357 = vpack.c.bf16 %v2324, %v2323
      %v2358 = vpack.c.bf16 %v2326, %v2325
      %v2359 = vpack.c.bf16 %v2328, %v2327
      %v2360 = vpack.c.bf16 %v2330, %v2329
      %v2361 = vpack.c.bf16 %v2332, %v2331
      %v2362 = vpack.c.bf16 %v2334, %v2333
      %v2363 = vpack.c.bf16 %v2336, %v2335
      %v2364 = vpack.c.bf16 %v2338, %v2337
      %v2365 = vpack.c.bf16 %v2340, %v2339
      %v2366 = vpack.c.bf16 %v2342, %v2341
      %v2367 = vpack.c.bf16 %v2344, %v2343
      %v2368 = vpack.c.bf16 %v2346, %v2345
      %v2369 = vpack.c.bf16 %v2348, %v2347
      %v2370 = vpack.c.bf16 %v2350, %v2349
      %v2371 = vpack.c.bf16 %v2352, %v2351
      %v2372 = vpack.c.bf16 %v2354, %v2353
      %v2373 = vld [vmem:[%s1] sm:$0xf]
      %v2374 = vld [vmem:[%s1 + $0x4] sm:$0xf]
      %v2375 = vld [vmem:[%s1 + $0x8] sm:$0xf]
      %v2376 = vld [vmem:[%s1 + $0xc] sm:$0xf]
      %v2377 = vld [vmem:[%s1 + $0x10] sm:$0xf]
      %v2378 = vld [vmem:[%s1 + $0x14] sm:$0xf]
      %v2379 = vld [vmem:[%s1 + $0x18] sm:$0xf]
      %v2380 = vld [vmem:[%s1 + $0x1c] sm:$0xf]
      %v2381 = vld [vmem:[%s1 + $0x20] sm:$0xf]
      %v2382 = vld [vmem:[%s2] sm:$0x1]
      %v2384 = vlaneseq
      %v2385 = vshrl.u32 %v2384, 7
      %v2386 = vsub.s32 0, %v2385
      %v2387 = vrot.slane %v2382, %v2386
      %v2398 = vunpack.c.l.b16 %v2373
      %v2399 = vunpack.c.l.b16 %v2374
      %v2400 = vunpack.c.l.b16 %v2375
      %v2401 = vunpack.c.l.b16 %v2376
      %v2402 = vunpack.c.l.b16 %v2377
      %v2403 = vunpack.c.l.b16 %v2378
      %v2404 = vunpack.c.l.b16 %v2379
      %v2405 = vunpack.c.l.b16 %v2380
      %v2406 = vunpack.c.l.b16 %v2381
      %v2407 = vpack.c.b16 %v2399, %v2398
      %v2408 = vpack.c.b16 %v2401, %v2400
      %v2409 = vpack.c.b16 %v2403, %v2402
      %v2410 = vpack.c.b16 %v2405, %v2404
      %v2411 = vpack.c.b16 %v2406, %v2406
      %vm2416 = vcmask 588800
      %v2418 = vsel %vm2416, %v2355, 0
      %v2421 = vsel %vm2416, %v2356, 0
      %v2424 = vsel %vm2416, %v2357, 0
      %v2427 = vsel %vm2416, %v2358, 0
      %v2430 = vsel %vm2416, %v2359, 0
      %v2433 = vsel %vm2416, %v2360, 0
      %v2436 = vsel %vm2416, %v2361, 0
      %v2439 = vsel %vm2416, %v2362, 0
      %v2442 = vsel %vm2416, %v2363, 0
      %v2445 = vsel %vm2416, %v2364, 0
      %v2448 = vsel %vm2416, %v2365, 0
      %v2451 = vsel %vm2416, %v2366, 0
      %v2454 = vsel %vm2416, %v2367, 0
      %v2457 = vsel %vm2416, %v2368, 0
      %v2460 = vsel %vm2416, %v2369, 0
      %v2463 = vsel %vm2416, %v2370, 0
      %v2466 = vsel %vm2416, %v2371, 0
      %v2469 = vsel %vm2416, %v2372, 0
      %v2472 = vsel %vm1400, %v2411, 0
      %2474 = vmatprep.subr.bf16.mxu0 0
      %2475 = vmatpush1.bf16.msra.mxu0 %v2407
      %2476 = vmatprep.subr.bf16.mxu0 0
      %2477 = vmatpush1.bf16.msra.mxu0 %v2408
      %2478 = vmatprep.subr.bf16.mxu0 0
      %2479 = vmatpush1.bf16.msra.mxu0 %v2409
      %2480 = vmatprep.subr.bf16.mxu0 0
      %2481 = vmatpush1.bf16.msra.mxu0 %v2410
      %2482 = vmatprep.subr.bf16.mxu0 0
      %2483 = vmatpush1.bf16.msra.mxu0 %v2472
      %2484 = vmatprep.subr.bf16.mxu0 0
      %2485 = vmatpush1.bf16.msra.mxu0 0
      %2486 = vmatprep.subr.bf16.mxu0 0
      %2487 = vmatpush1.bf16.msra.mxu0 0
      %2488 = vmatprep.subr.bf16.mxu0 0
      %2489 = vmatpush1.bf16.msra.mxu0 0
      %2490 = vmatprep.subr.bf16.mxu0 0
      %2491 = vmatpush1.bf16.msra.mxu0 0
      %2492 = vmatprep.subr.bf16.mxu0 0
      %2493 = vmatpush1.bf16.msra.mxu0 0
      %2494 = vmatprep.subr.bf16.mxu0 0
      %2495 = vmatpush1.bf16.msra.mxu0 0
      %2496 = vmatprep.subr.bf16.mxu0 0
      %2497 = vmatpush1.bf16.msra.mxu0 0
      %2498 = vmatprep.subr.bf16.mxu0 0
      %2499 = vmatpush1.bf16.msra.mxu0 0
      %2500 = vmatprep.subr.bf16.mxu0 0
      %2501 = vmatpush1.bf16.msra.mxu0 0
      %2502 = vmatprep.subr.bf16.mxu0 0
      %2503 = vmatpush1.bf16.msra.mxu0 0
      %2504 = vmatprep.subr.bf16.mxu0 0
      %2505 = vmatpush1.bf16.msra.mxu0 0
      %2506 = vmatprep.mubr.bf16.mxu0 0
      %2507 = vmatmul.mubr.bf16.gmra.mrb[0].mxu0 %v2418
      %v2508 = vpop.f32.mrb[0].mxu0
      %v2509 = vadd.f32 %v2387, %v2508
      %v2510 = vpop.f32.mrb[0].mxu0
      %v2511 = vpop.f32.mrb[0].mxu0
      %v2512 = vadd.f32 %v2387, %v2511
      %v2513 = vpop.f32.mrb[0].mxu0
      %2514 = vmatprep.mubr.bf16.mxu0 0
      %2515 = vmatmul.mubr.bf16.gmra.mrb[0].mxu0 %v2421
      %v2516 = vpop.f32.mrb[0].mxu0
      %v2517 = vadd.f32 %v2387, %v2516
      %v2518 = vpop.f32.mrb[0].mxu0
      %v2519 = vpop.f32.mrb[0].mxu0
      %v2520 = vadd.f32 %v2387, %v2519
      %v2521 = vpop.f32.mrb[0].mxu0
      %2522 = vmatprep.mubr.bf16.mxu0 0
      %2523 = vmatmul.mubr.bf16.gmra.mrb[0].mxu0 %v2424
      %v2524 = vpop.f32.mrb[0].mxu0
      %v2525 = vadd.f32 %v2387, %v2524
      %v2526 = vpop.f32.mrb[0].mxu0
      %v2527 = vpop.f32.mrb[0].mxu0
      %v2528 = vadd.f32 %v2387, %v2527
      %v2529 = vpop.f32.mrb[0].mxu0
      %2530 = vmatprep.mubr.bf16.mxu0 0
      %2531 = vmatmul.mubr.bf16.gmra.mrb[0].mxu0 %v2427
      %v2532 = vpop.f32.mrb[0].mxu0
      %v2533 = vadd.f32 %v2387, %v2532
      %v2534 = vpop.f32.mrb[0].mxu0
      %v2535 = vpop.f32.mrb[0].mxu0
      %v2536 = vadd.f32 %v2387, %v2535
      %v2537 = vpop.f32.mrb[0].mxu0
      %2538 = vmatprep.mubr.bf16.mxu0 0
      %2539 = vmatmul.mubr.bf16.gmra.mrb[0].mxu0 %v2430
      %v2540 = vpop.f32.mrb[0].mxu0
      %v2541 = vadd.f32 %v2387, %v2540
      %v2542 = vpop.f32.mrb[0].mxu0
      %v2543 = vpop.f32.mrb[0].mxu0
      %v2544 = vadd.f32 %v2387, %v2543
      %v2545 = vpop.f32.mrb[0].mxu0
      %2546 = vmatprep.mubr.bf16.mxu0 0
      %2547 = vmatmul.mubr.bf16.gmra.mrb[0].mxu0 %v2433
      %v2548 = vpop.f32.mrb[0].mxu0
      %v2549 = vadd.f32 %v2387, %v2548
      %v2550 = vpop.f32.mrb[0].mxu0
      %v2551 = vpop.f32.mrb[0].mxu0
      %v2552 = vadd.f32 %v2387, %v2551
      %v2553 = vpop.f32.mrb[0].mxu0
      %2554 = vmatprep.mubr.bf16.mxu0 0
      %2555 = vmatmul.mubr.bf16.gmra.mrb[0].mxu0 %v2436
      %v2556 = vpop.f32.mrb[0].mxu0
      %v2557 = vadd.f32 %v2387, %v2556
      %v2558 = vpop.f32.mrb[0].mxu0
      %v2559 = vpop.f32.mrb[0].mxu0
      %v2560 = vadd.f32 %v2387, %v2559
      %v2561 = vpop.f32.mrb[0].mxu0
      %2562 = vmatprep.mubr.bf16.mxu0 0
      %2563 = vmatmul.mubr.bf16.gmra.mrb[0].mxu0 %v2439
      %v2564 = vpop.f32.mrb[0].mxu0
      %v2565 = vadd.f32 %v2387, %v2564
      %v2566 = vpop.f32.mrb[0].mxu0
      %v2567 = vpop.f32.mrb[0].mxu0
      %v2568 = vadd.f32 %v2387, %v2567
      %v2569 = vpop.f32.mrb[0].mxu0
      %2570 = vmatprep.mubr.bf16.mxu0 0
      %2571 = vmatmul.mubr.bf16.gmra.mrb[0].mxu0 %v2442
      %v2572 = vpop.f32.mrb[0].mxu0
      %v2573 = vadd.f32 %v2387, %v2572
      %v2574 = vpop.f32.mrb[0].mxu0
      %v2575 = vpop.f32.mrb[0].mxu0
      %v2576 = vadd.f32 %v2387, %v2575
      %v2577 = vpop.f32.mrb[0].mxu0
      %2578 = vmatprep.mubr.bf16.mxu0 0
      %2579 = vmatmul.mubr.bf16.gmra.mrb[0].mxu0 %v2445
      %v2580 = vpop.f32.mrb[0].mxu0
      %v2581 = vadd.f32 %v2387, %v2580
      %v2582 = vpop.f32.mrb[0].mxu0
      %v2583 = vpop.f32.mrb[0].mxu0
      %v2584 = vadd.f32 %v2387, %v2583
      %v2585 = vpop.f32.mrb[0].mxu0
      %2586 = vmatprep.mubr.bf16.mxu0 0
      %2587 = vmatmul.mubr.bf16.gmra.mrb[0].mxu0 %v2448
      %v2588 = vpop.f32.mrb[0].mxu0
      %v2589 = vadd.f32 %v2387, %v2588
      %v2590 = vpop.f32.mrb[0].mxu0
      %v2591 = vpop.f32.mrb[0].mxu0
      %v2592 = vadd.f32 %v2387, %v2591
      %v2593 = vpop.f32.mrb[0].mxu0
      %2594 = vmatprep.mubr.bf16.mxu0 0
      %2595 = vmatmul.mubr.bf16.gmra.mrb[0].mxu0 %v2451
      %v2596 = vpop.f32.mrb[0].mxu0
      %v2597 = vadd.f32 %v2387, %v2596
      %v2598 = vpop.f32.mrb[0].mxu0
      %v2599 = vpop.f32.mrb[0].mxu0
      %v2600 = vadd.f32 %v2387, %v2599
      %v2601 = vpop.f32.mrb[0].mxu0
      %2602 = vmatprep.mubr.bf16.mxu0 0
      %2603 = vmatmul.mubr.bf16.gmra.mrb[0].mxu0 %v2454
      %v2604 = vpop.f32.mrb[0].mxu0
      %v2605 = vadd.f32 %v2387, %v2604
      %v2606 = vpop.f32.mrb[0].mxu0
      %v2607 = vpop.f32.mrb[0].mxu0
      %v2608 = vadd.f32 %v2387, %v2607
      %v2609 = vpop.f32.mrb[0].mxu0
      %2610 = vmatprep.mubr.bf16.mxu0 0
      %2611 = vmatmul.mubr.bf16.gmra.mrb[0].mxu0 %v2457
      %v2612 = vpop.f32.mrb[0].mxu0
      %v2613 = vadd.f32 %v2387, %v2612
      %v2614 = vpop.f32.mrb[0].mxu0
      %v2615 = vpop.f32.mrb[0].mxu0
      %v2616 = vadd.f32 %v2387, %v2615
      %v2617 = vpop.f32.mrb[0].mxu0
      %2618 = vmatprep.mubr.bf16.mxu0 0
      %2619 = vmatmul.mubr.bf16.gmra.mrb[0].mxu0 %v2460
      %v2620 = vpop.f32.mrb[0].mxu0
      %v2621 = vadd.f32 %v2387, %v2620
      %v2622 = vpop.f32.mrb[0].mxu0
      %v2623 = vpop.f32.mrb[0].mxu0
      %v2624 = vadd.f32 %v2387, %v2623
      %v2625 = vpop.f32.mrb[0].mxu0
      %2626 = vmatprep.mubr.bf16.mxu0 0
      %2627 = vmatmul.mubr.bf16.gmra.mrb[0].mxu0 %v2463
      %v2628 = vpop.f32.mrb[0].mxu0
      %v2629 = vadd.f32 %v2387, %v2628
      %v2630 = vpop.f32.mrb[0].mxu0
      %v2631 = vpop.f32.mrb[0].mxu0
      %v2632 = vadd.f32 %v2387, %v2631
      %v2633 = vpop.f32.mrb[0].mxu0
      %2634 = vmatprep.mubr.bf16.mxu0 0
      %2635 = vmatmul.mubr.bf16.gmra.mrb[0].mxu0 %v2466
      %v2636 = vpop.f32.mrb[0].mxu0
      %v2637 = vadd.f32 %v2387, %v2636
      %v2638 = vpop.f32.mrb[0].mxu0
      %v2639 = vpop.f32.mrb[0].mxu0
      %v2640 = vadd.f32 %v2387, %v2639
      %v2641 = vpop.f32.mrb[0].mxu0
      %2642 = vmatprep.mubr.bf16.mxu0 0
      %2643 = vmatmul.mubr.bf16.gmra.mrb[0].mxu0 %v2469
      %v2644 = vpop.f32.mrb[0].mxu0
      %v2645 = vadd.f32 %v2387, %v2644
      %v2646 = vpop.f32.mrb[0].mxu0
      %v2647 = vpop.f32.mrb[0].mxu0
      %v2648 = vadd.f32 %v2387, %v2647
      %v2649 = vpop.f32.mrb[0].mxu0
      %2650 = vdwg.mxu0
      %v2651 = vmax.f32 %v2509, 0.0
      %v2652 = vmax.f32 %v2512, 0.0
      %v2653 = vmax.f32 %v2517, 0.0
      %v2654 = vmax.f32 %v2520, 0.0
      %v2655 = vmax.f32 %v2525, 0.0
      %v2656 = vmax.f32 %v2528, 0.0
      %v2657 = vmax.f32 %v2533, 0.0
      %v2658 = vmax.f32 %v2536, 0.0
      %v2659 = vmax.f32 %v2541, 0.0
      %v2660 = vmax.f32 %v2544, 0.0
      %v2661 = vmax.f32 %v2549, 0.0
      %v2662 = vmax.f32 %v2552, 0.0
      %v2663 = vmax.f32 %v2557, 0.0
      %v2664 = vmax.f32 %v2560, 0.0
      %v2665 = vmax.f32 %v2565, 0.0
      %v2666 = vmax.f32 %v2568, 0.0
      %v2667 = vmax.f32 %v2573, 0.0
      %v2668 = vmax.f32 %v2576, 0.0
      %v2669 = vmax.f32 %v2581, 0.0
      %v2670 = vmax.f32 %v2584, 0.0
      %v2671 = vmax.f32 %v2589, 0.0
      %v2672 = vmax.f32 %v2592, 0.0
      %v2673 = vmax.f32 %v2597, 0.0
      %v2674 = vmax.f32 %v2600, 0.0
      %v2675 = vmax.f32 %v2605, 0.0
      %v2676 = vmax.f32 %v2608, 0.0
      %v2677 = vmax.f32 %v2613, 0.0
      %v2678 = vmax.f32 %v2616, 0.0
      %v2679 = vmax.f32 %v2621, 0.0
      %v2680 = vmax.f32 %v2624, 0.0
      %v2681 = vmax.f32 %v2629, 0.0
      %v2682 = vmax.f32 %v2632, 0.0
      %v2683 = vmax.f32 %v2637, 0.0
      %v2684 = vmax.f32 %v2640, 0.0
      %v2685 = vmax.f32 %v2645, 0.0
      %v2686 = vmax.f32 %v2648, 0.0
      %v2687 = vld [vmem:[%s3] sm:$0xff]
      %v2688 = vld [vmem:[%s3 + $0x8] sm:$0xff]
      %v2689 = vld [vmem:[%s3 + $0x10] sm:$0xff]
      %v2690 = vld [vmem:[%s3 + $0x18] sm:$0xff]
      %v2691 = vld [vmem:[%s3 + $0x20] sm:$0xff]
      %v2692 = vld [vmem:[%s3 + $0x28] sm:$0xff]
      %v2693 = vld [vmem:[%s3 + $0x30] sm:$0xff]
      %v2694 = vld [vmem:[%s3 + $0x38] sm:$0xff]
      %v2695 = vld [vmem:[%s3 + $0x40] sm:$0xff]
      %v2696 = vld [vmem:[%s3 + $0x48] sm:$0xff]
      %v2697 = vld [vmem:[%s3 + $0x50] sm:$0xff]
      %v2698 = vld [vmem:[%s3 + $0x58] sm:$0xff]
      %v2699 = vld [vmem:[%s3 + $0x60] sm:$0xff]
      %v2700 = vld [vmem:[%s3 + $0x68] sm:$0xff]
      %v2701 = vld [vmem:[%s3 + $0x70] sm:$0xff]
      %v2702 = vld [vmem:[%s3 + $0x78] sm:$0xff]
      %v2703 = vld [vmem:[%s3 + $0x80] sm:$0xff]
      %v2704 = vld [vmem:[%s3 + $0x88] sm:$0xff]
      %v2705 = vld [vmem:[%s3 + $0x90] sm:$0xff]
      %v2706 = vld [vmem:[%s3 + $0x98] sm:$0xff]
      %v2707 = vld [vmem:[%s3 + $0xa0] sm:$0xff]
      %v2708 = vld [vmem:[%s3 + $0xa8] sm:$0xff]
      %v2709 = vld [vmem:[%s3 + $0xb0] sm:$0xff]
      %v2710 = vld [vmem:[%s3 + $0xb8] sm:$0xff]
      %v2711 = vld [vmem:[%s3 + $0xc0] sm:$0xff]
      %v2712 = vld [vmem:[%s3 + $0xc8] sm:$0xff]
      %v2713 = vld [vmem:[%s3 + $0xd0] sm:$0xff]
      %v2714 = vld [vmem:[%s3 + $0xd8] sm:$0xff]
      %v2715 = vld [vmem:[%s3 + $0xe0] sm:$0xff]
      %v2716 = vld [vmem:[%s3 + $0xe8] sm:$0xff]
      %v2717 = vld [vmem:[%s3 + $0xf0] sm:$0xff]
      %v2718 = vld [vmem:[%s3 + $0xf8] sm:$0xff]
      %v2719 = vld [vmem:[%s3 + $0x100] sm:$0xff]
      %v2720 = vld [vmem:[%s3 + $0x108] sm:$0xff]
      %v2721 = vld [vmem:[%s3 + $0x110] sm:$0xff]
      %v2722 = vld [vmem:[%s3 + $0x118] sm:$0x3f]
      %2724 = vset.pattern.permute.xlu0 0
      %2725 = vperm.xlu0 %2724, %v2687
      %v2726 = vpop.permute.xlu0 %2725
      %2729 = vset.pattern.permute.xlu0 0
      %2730 = vperm.xlu0 %2729, %v2688
      %v2731 = vpop.permute.xlu0 %2730
      %2734 = vset.pattern.permute.xlu0 0
      %2735 = vperm.xlu0 %2734, %v2689
      %v2736 = vpop.permute.xlu0 %2735
      %2739 = vset.pattern.permute.xlu0 0
      %2740 = vperm.xlu0 %2739, %v2690
      %v2741 = vpop.permute.xlu0 %2740
      %2744 = vset.pattern.permute.xlu0 0
      %2745 = vperm.xlu0 %2744, %v2691
      %v2746 = vpop.permute.xlu0 %2745
      %2749 = vset.pattern.permute.xlu0 0
      %2750 = vperm.xlu0 %2749, %v2692
      %v2751 = vpop.permute.xlu0 %2750
      %2754 = vset.pattern.permute.xlu0 0
      %2755 = vperm.xlu0 %2754, %v2693
      %v2756 = vpop.permute.xlu0 %2755
      %2759 = vset.pattern.permute.xlu0 0
      %2760 = vperm.xlu0 %2759, %v2694
      %v2761 = vpop.permute.xlu0 %2760
      %2764 = vset.pattern.permute.xlu0 0
      %2765 = vperm.xlu0 %2764, %v2695
      %v2766 = vpop.permute.xlu0 %2765
      %2769 = vset.pattern.permute.xlu0 0
      %2770 = vperm.xlu0 %2769, %v2696
      %v2771 = vpop.permute.xlu0 %2770
      %2774 = vset.pattern.permute.xlu0 0
      %2775 = vperm.xlu0 %2774, %v2697
      %v2776 = vpop.permute.xlu0 %2775
      %2779 = vset.pattern.permute.xlu0 0
      %2780 = vperm.xlu0 %2779, %v2698
      %v2781 = vpop.permute.xlu0 %2780
      %2784 = vset.pattern.permute.xlu0 0
      %2785 = vperm.xlu0 %2784, %v2699
      %v2786 = vpop.permute.xlu0 %2785
      %2789 = vset.pattern.permute.xlu0 0
      %2790 = vperm.xlu0 %2789, %v2700
      %v2791 = vpop.permute.xlu0 %2790
      %2794 = vset.pattern.permute.xlu0 0
      %2795 = vperm.xlu0 %2794, %v2701
      %v2796 = vpop.permute.xlu0 %2795
      %2799 = vset.pattern.permute.xlu0 0
      %2800 = vperm.xlu0 %2799, %v2702
      %v2801 = vpop.permute.xlu0 %2800
      %2804 = vset.pattern.permute.xlu0 0
      %2805 = vperm.xlu0 %2804, %v2703
      %v2806 = vpop.permute.xlu0 %2805
      %2809 = vset.pattern.permute.xlu0 0
      %2810 = vperm.xlu0 %2809, %v2704
      %v2811 = vpop.permute.xlu0 %2810
      %2814 = vset.pattern.permute.xlu0 0
      %2815 = vperm.xlu0 %2814, %v2705
      %v2816 = vpop.permute.xlu0 %2815
      %2819 = vset.pattern.permute.xlu0 0
      %2820 = vperm.xlu0 %2819, %v2706
      %v2821 = vpop.permute.xlu0 %2820
      %2824 = vset.pattern.permute.xlu0 0
      %2825 = vperm.xlu0 %2824, %v2707
      %v2826 = vpop.permute.xlu0 %2825
      %2829 = vset.pattern.permute.xlu0 0
      %2830 = vperm.xlu0 %2829, %v2708
      %v2831 = vpop.permute.xlu0 %2830
      %2834 = vset.pattern.permute.xlu0 0
      %2835 = vperm.xlu0 %2834, %v2709
      %v2836 = vpop.permute.xlu0 %2835
      %2839 = vset.pattern.permute.xlu0 0
      %2840 = vperm.xlu0 %2839, %v2710
      %v2841 = vpop.permute.xlu0 %2840
      %2844 = vset.pattern.permute.xlu0 0
      %2845 = vperm.xlu0 %2844, %v2711
      %v2846 = vpop.permute.xlu0 %2845
      %2849 = vset.pattern.permute.xlu0 0
      %2850 = vperm.xlu0 %2849, %v2712
      %v2851 = vpop.permute.xlu0 %2850
      %2854 = vset.pattern.permute.xlu0 0
      %2855 = vperm.xlu0 %2854, %v2713
      %v2856 = vpop.permute.xlu0 %2855
      %2859 = vset.pattern.permute.xlu0 0
      %2860 = vperm.xlu0 %2859, %v2714
      %v2861 = vpop.permute.xlu0 %2860
      %2864 = vset.pattern.permute.xlu0 0
      %2865 = vperm.xlu0 %2864, %v2715
      %v2866 = vpop.permute.xlu0 %2865
      %2869 = vset.pattern.permute.xlu0 0
      %2870 = vperm.xlu0 %2869, %v2716
      %v2871 = vpop.permute.xlu0 %2870
      %2874 = vset.pattern.permute.xlu0 0
      %2875 = vperm.xlu0 %2874, %v2717
      %v2876 = vpop.permute.xlu0 %2875
      %2879 = vset.pattern.permute.xlu0 0
      %2880 = vperm.xlu0 %2879, %v2718
      %v2881 = vpop.permute.xlu0 %2880
      %2884 = vset.pattern.permute.xlu0 0
      %2885 = vperm.xlu0 %2884, %v2719
      %v2886 = vpop.permute.xlu0 %2885
      %2889 = vset.pattern.permute.xlu0 0
      %2890 = vperm.xlu0 %2889, %v2720
      %v2891 = vpop.permute.xlu0 %2890
      %2894 = vset.pattern.permute.xlu0 0
      %2895 = vperm.xlu0 %2894, %v2721
      %v2896 = vpop.permute.xlu0 %2895
      %2899 = vset.pattern.permute.xlu0 0
      %2900 = vperm.xlu0 %2899, %v2722
      %v2901 = vpop.permute.xlu0 %2900
      %v2903 = vmul.f32 %v2651, %v2726
      %v2904 = vmul.f32 %v2652, %v2731
      %v2905 = vmul.f32 %v2653, %v2736
      %v2906 = vmul.f32 %v2654, %v2741
      %v2907 = vmul.f32 %v2655, %v2746
      %v2908 = vmul.f32 %v2656, %v2751
      %v2909 = vmul.f32 %v2657, %v2756
      %v2910 = vmul.f32 %v2658, %v2761
      %v2911 = vmul.f32 %v2659, %v2766
      %v2912 = vmul.f32 %v2660, %v2771
      %v2913 = vmul.f32 %v2661, %v2776
      %v2914 = vmul.f32 %v2662, %v2781
      %v2915 = vmul.f32 %v2663, %v2786
      %v2916 = vmul.f32 %v2664, %v2791
      %v2917 = vmul.f32 %v2665, %v2796
      %v2918 = vmul.f32 %v2666, %v2801
      %v2919 = vmul.f32 %v2667, %v2806
      %v2920 = vmul.f32 %v2668, %v2811
      %v2921 = vmul.f32 %v2669, %v2816
      %v2922 = vmul.f32 %v2670, %v2821
      %v2923 = vmul.f32 %v2671, %v2826
      %v2924 = vmul.f32 %v2672, %v2831
      %v2925 = vmul.f32 %v2673, %v2836
      %v2926 = vmul.f32 %v2674, %v2841
      %v2927 = vmul.f32 %v2675, %v2846
      %v2928 = vmul.f32 %v2676, %v2851
      %v2929 = vmul.f32 %v2677, %v2856
      %v2930 = vmul.f32 %v2678, %v2861
      %v2931 = vmul.f32 %v2679, %v2866
      %v2932 = vmul.f32 %v2680, %v2871
      %v2933 = vmul.f32 %v2681, %v2876
      %v2934 = vmul.f32 %v2682, %v2881
      %v2935 = vmul.f32 %v2683, %v2886
      %v2936 = vmul.f32 %v2684, %v2891
      %v2937 = vmul.f32 %v2685, %v2896
      %v2938 = vmul.f32 %v2686, %v2901
      %2939 = vst.msk [vmem:[#allocation2 + $0x13] sm:$0xff] %vm658, %v2903
      %2940 = vst.msk [vmem:[#allocation2 + $0x1b] sm:$0xff] %vm658, %v2904
      %2941 = vst.msk [vmem:[#allocation2 + $0x23] sm:$0xff] %vm658, %v2905
      %2942 = vst.msk [vmem:[#allocation2 + $0x2b] sm:$0xff] %vm658, %v2906
      %2943 = vst.msk [vmem:[#allocation2 + $0x33] sm:$0xff] %vm658, %v2907
      %2944 = vst.msk [vmem:[#allocation2 + $0x3b] sm:$0xff] %vm658, %v2908
      %2945 = vst.msk [vmem:[#allocation2 + $0x43] sm:$0xff] %vm658, %v2909
      %2946 = vst.msk [vmem:[#allocation2 + $0x4b] sm:$0xff] %vm658, %v2910
      %2947 = vst.msk [vmem:[#allocation2 + $0x53] sm:$0xff] %vm658, %v2911
      %2948 = vst.msk [vmem:[#allocation2 + $0x5b] sm:$0xff] %vm658, %v2912
      %2949 = vst.msk [vmem:[#allocation2 + $0x63] sm:$0xff] %vm658, %v2913
      %2950 = vst.msk [vmem:[#allocation2 + $0x6b] sm:$0xff] %vm658, %v2914
      %2951 = vst.msk [vmem:[#allocation2 + $0x73] sm:$0xff] %vm658, %v2915
      %2952 = vst.msk [vmem:[#allocation2 + $0x7b] sm:$0xff] %vm658, %v2916
      %2953 = vst.msk [vmem:[#allocation2 + $0x83] sm:$0xff] %vm658, %v2917
      %2954 = vst.msk [vmem:[#allocation2 + $0x8b] sm:$0xff] %vm658, %v2918
      %2955 = vst.msk [vmem:[#allocation2 + $0x93] sm:$0xff] %vm658, %v2919
      %2956 = vst.msk [vmem:[#allocation2 + $0x9b] sm:$0xff] %vm658, %v2920
      %2957 = vst.msk [vmem:[#allocation2 + $0xa3] sm:$0xff] %vm658, %v2921
      %2958 = vst.msk [vmem:[#allocation2 + $0xab] sm:$0xff] %vm658, %v2922
      %2959 = vst.msk [vmem:[#allocation2 + $0xb3] sm:$0xff] %vm658, %v2923
      %2960 = vst.msk [vmem:[#allocation2 + $0xbb] sm:$0xff] %vm658, %v2924
      %2961 = vst.msk [vmem:[#allocation2 + $0xc3] sm:$0xff] %vm658, %v2925
      %2962 = vst.msk [vmem:[#allocation2 + $0xcb] sm:$0xff] %vm658, %v2926
      %2963 = vst.msk [vmem:[#allocation2 + $0xd3] sm:$0xff] %vm658, %v2927
      %2964 = vst.msk [vmem:[#allocation2 + $0xdb] sm:$0xff] %vm658, %v2928
      %2965 = vst.msk [vmem:[#allocation2 + $0xe3] sm:$0xff] %vm658, %v2929
      %2966 = vst.msk [vmem:[#allocation2 + $0xeb] sm:$0xff] %vm658, %v2930
      %2967 = vst.msk [vmem:[#allocation2 + $0xf3] sm:$0xff] %vm658, %v2931
      %2968 = vst.msk [vmem:[#allocation2 + $0xfb] sm:$0xff] %vm658, %v2932
      %2969 = vst.msk [vmem:[#allocation2 + $0x103] sm:$0xff] %vm658, %v2933
      %2970 = vst.msk [vmem:[#allocation2 + $0x10b] sm:$0xff] %vm658, %v2934
      %2971 = vst.msk [vmem:[#allocation2 + $0x113] sm:$0xff] %vm658, %v2935
      %2972 = vst.msk [vmem:[#allocation2 + $0x11b] sm:$0xff] %vm658, %v2936
      %2973 = vst.msk [vmem:[#allocation2 + $0x123] sm:$0xff] %vm658, %v2937
      %vm2974 = vcmask 259072
      %2975 = vst.msk [vmem:[#allocation2 + $0x12b] sm:$0x3f] %vm2974, %v2938
      %2976 = vst.msk [vmem:[#allocation3] sm:$0xff] %vm658, %v2903
      %2977 = vst.msk [vmem:[#allocation3 + $0x8] sm:$0xff] %vm658, %v2904
      %vm2978 = vcmask 261122
      %2979 = vst.msk [vmem:[#allocation3 + $0xe] sm:$0xfc] %vm2978, %v2905
      %2980 = vst.msk [vmem:[#allocation3 + $0x16] sm:$0xff] %vm658, %v2906
      %vm2981 = vcmask 254976
      %2982 = vst.msk [vmem:[#allocation3 + $0x1e] sm:$0x3] %vm2981, %v2907
      %vm2983 = vcmask 261124
      %2984 = vst.msk [vmem:[#allocation3 + $0x1c] sm:$0xf0] %vm2983, %v2907
      %2985 = vst.msk [vmem:[#allocation3 + $0x24] sm:$0xff] %vm658, %v2908
      %vm2986 = vcmask 257024
      %2987 = vst.msk [vmem:[#allocation3 + $0x2c] sm:$0xf] %vm2986, %v2909
      %vm2988 = vcmask 261126
      %2989 = vst.msk [vmem:[#allocation3 + $0x2a] sm:$0xc0] %vm2988, %v2909
      %2990 = vst.msk [vmem:[#allocation3 + $0x32] sm:$0xff] %vm658, %v2910
      %2991 = vst.msk [vmem:[#allocation3 + $0x3a] sm:$0x3f] %vm2974, %v2911
      %2992 = vst.msk [vmem:[#allocation3 + $0x40] sm:$0xff] %vm658, %v2912
      %2993 = vst.msk [vmem:[#allocation3 + $0x48] sm:$0xff] %vm658, %v2913
      %2994 = vst.msk [vmem:[#allocation3 + $0x4e] sm:$0xfc] %vm2978, %v2914
      %2995 = vst.msk [vmem:[#allocation3 + $0x56] sm:$0xff] %vm658, %v2915
      %2996 = vst.msk [vmem:[#allocation3 + $0x5e] sm:$0x3] %vm2981, %v2916
      %2997 = vst.msk [vmem:[#allocation3 + $0x5c] sm:$0xf0] %vm2983, %v2916
      %2998 = vst.msk [vmem:[#allocation3 + $0x64] sm:$0xff] %vm658, %v2917
      %2999 = vst.msk [vmem:[#allocation3 + $0x6c] sm:$0xf] %vm2986, %v2918
      %3000 = vst.msk [vmem:[#allocation3 + $0x6a] sm:$0xc0] %vm2988, %v2918
      %3001 = vst.msk [vmem:[#allocation3 + $0x72] sm:$0xff] %vm658, %v2919
      %3002 = vst.msk [vmem:[#allocation3 + $0x7a] sm:$0x3f] %vm2974, %v2920
      %3003 = vst.msk [vmem:[#allocation3 + $0x80] sm:$0xff] %vm658, %v2921
      %3004 = vst.msk [vmem:[#allocation3 + $0x88] sm:$0xff] %vm658, %v2922
      %3005 = vst.msk [vmem:[#allocation3 + $0x8e] sm:$0xfc] %vm2978, %v2923
      %3006 = vst.msk [vmem:[#allocation3 + $0x96] sm:$0xff] %vm658, %v2924
      %3007 = vst.msk [vmem:[#allocation3 + $0x9e] sm:$0x3] %vm2981, %v2925
      %3008 = vst.msk [vmem:[#allocation3 + $0x9c] sm:$0xf0] %vm2983, %v2925
      %3009 = vst.msk [vmem:[#allocation3 + $0xa4] sm:$0xff] %vm658, %v2926
      %3010 = vst.msk [vmem:[#allocation3 + $0xac] sm:$0xf] %vm2986, %v2927
      %3011 = vst.msk [vmem:[#allocation3 + $0xaa] sm:$0xc0] %vm2988, %v2927
      %3012 = vst.msk [vmem:[#allocation3 + $0xb2] sm:$0xff] %vm658, %v2928
      %3013 = vst.msk [vmem:[#allocation3 + $0xba] sm:$0x3f] %vm2974, %v2929
      %3014 = vst.msk [vmem:[#allocation3 + $0xc0] sm:$0xff] %vm658, %v2930
      %3015 = vst.msk [vmem:[#allocation3 + $0xc8] sm:$0xff] %vm658, %v2931
      %3016 = vst.msk [vmem:[#allocation3 + $0xce] sm:$0xfc] %vm2978, %v2932
      %3017 = vst.msk [vmem:[#allocation3 + $0xd6] sm:$0xff] %vm658, %v2933
      %3018 = vst.msk [vmem:[#allocation3 + $0xde] sm:$0x3] %vm2981, %v2934
      %3019 = vst.msk [vmem:[#allocation3 + $0xdc] sm:$0xf0] %vm2983, %v2934
      %3020 = vst.msk [vmem:[#allocation3 + $0xe4] sm:$0xff] %vm658, %v2935
      %3021 = vst.msk [vmem:[#allocation3 + $0xec] sm:$0xf] %vm2986, %v2936
      %3022 = vst.msk [vmem:[#allocation3 + $0xea] sm:$0xc0] %vm2988, %v2936
      %3023 = vst.msk [vmem:[#allocation3 + $0xf2] sm:$0xff] %vm658, %v2937
      %3024 = vst.msk [vmem:[#allocation3 + $0xfa] sm:$0x3f] %vm2974, %v2938
      %v3025 = vld [vmem:[#allocation2] sm:$0xff]
      %v3026 = vld [vmem:[#allocation2 + $0x8] sm:$0xff]
      %v3027 = vld [vmem:[#allocation2 + $0x10] sm:$0xff]
      %v3028 = vld [vmem:[#allocation2 + $0x18] sm:$0xff]
      %v3029 = vld [vmem:[#allocation2 + $0x20] sm:$0xff]
      %v3030 = vld [vmem:[#allocation2 + $0x28] sm:$0xff]
      %v3031 = vld [vmem:[#allocation2 + $0x30] sm:$0xff]
      %v3032 = vld [vmem:[#allocation2 + $0x38] sm:$0xff]
      %v3033 = vld [vmem:[#allocation2 + $0x40] sm:$0xff]
      %v3034 = vld [vmem:[#allocation2 + $0x48] sm:$0xff]
      %v3035 = vld [vmem:[#allocation2 + $0x50] sm:$0xff]
      %v3036 = vld [vmem:[#allocation2 + $0x58] sm:$0xff]
      %v3037 = vld [vmem:[#allocation2 + $0x60] sm:$0xff]
      %v3038 = vld [vmem:[#allocation2 + $0x68] sm:$0xff]
      %v3039 = vld [vmem:[#allocation2 + $0x70] sm:$0xff]
      %v3040 = vld [vmem:[#allocation2 + $0x78] sm:$0xff]
      %v3041 = vld [vmem:[#allocation2 + $0x80] sm:$0xff]
      %v3042 = vld [vmem:[#allocation2 + $0x88] sm:$0xff]
      %v3043 = vld [vmem:[#allocation2 + $0x90] sm:$0xff]
      %v3044 = vld [vmem:[#allocation2 + $0x98] sm:$0xff]
      %v3045 = vld [vmem:[#allocation2 + $0xa0] sm:$0xff]
      %v3046 = vld [vmem:[#allocation2 + $0xa8] sm:$0xff]
      %v3047 = vld [vmem:[#allocation2 + $0xb0] sm:$0xff]
      %v3048 = vld [vmem:[#allocation2 + $0xb8] sm:$0xff]
      %v3049 = vld [vmem:[#allocation2 + $0xc0] sm:$0xff]
      %v3050 = vld [vmem:[#allocation2 + $0xc8] sm:$0xff]
      %v3051 = vld [vmem:[#allocation2 + $0xd0] sm:$0xff]
      %v3052 = vld [vmem:[#allocation2 + $0xd8] sm:$0xff]
      %v3053 = vld [vmem:[#allocation2 + $0xe0] sm:$0xff]
      %v3054 = vld [vmem:[#allocation2 + $0xe8] sm:$0xff]
      %v3055 = vld [vmem:[#allocation2 + $0xf0] sm:$0xff]
      %v3056 = vld [vmem:[#allocation2 + $0xf8] sm:$0xff]
      %v3057 = vld [vmem:[#allocation2 + $0x100] sm:$0xff]
      %v3058 = vld [vmem:[#allocation2 + $0x108] sm:$0xff]
      %v3059 = vld [vmem:[#allocation2 + $0x110] sm:$0xff]
      %v3060 = vld [vmem:[#allocation2 + $0x118] sm:$0x3f]
      %v3061 = vld [vmem:[#allocation2 + $0x1] sm:$0xff]
      %v3062 = vld [vmem:[#allocation2 + $0x9] sm:$0xff]
      %v3063 = vld [vmem:[#allocation2 + $0x11] sm:$0xff]
      %v3064 = vld [vmem:[#allocation2 + $0x19] sm:$0xff]
      %v3065 = vld [vmem:[#allocation2 + $0x21] sm:$0xff]
      %v3066 = vld [vmem:[#allocation2 + $0x29] sm:$0xff]
      %v3067 = vld [vmem:[#allocation2 + $0x31] sm:$0xff]
      %v3068 = vld [vmem:[#allocation2 + $0x39] sm:$0xff]
      %v3069 = vld [vmem:[#allocation2 + $0x41] sm:$0xff]
      %v3070 = vld [vmem:[#allocation2 + $0x49] sm:$0xff]
      %v3071 = vld [vmem:[#allocation2 + $0x51] sm:$0xff]
      %v3072 = vld [vmem:[#allocation2 + $0x59] sm:$0xff]
      %v3073 = vld [vmem:[#allocation2 + $0x61] sm:$0xff]
      %v3074 = vld [vmem:[#allocation2 + $0x69] sm:$0xff]
      %v3075 = vld [vmem:[#allocation2 + $0x71] sm:$0xff]
      %v3076 = vld [vmem:[#allocation2 + $0x79] sm:$0xff]
      %v3077 = vld [vmem:[#allocation2 + $0x81] sm:$0xff]
      %v3078 = vld [vmem:[#allocation2 + $0x89] sm:$0xff]
      %v3079 = vld [vmem:[#allocation2 + $0x91] sm:$0xff]
      %v3080 = vld [vmem:[#allocation2 + $0x99] sm:$0xff]
      %v3081 = vld [vmem:[#allocation2 + $0xa1] sm:$0xff]
      %v3082 = vld [vmem:[#allocation2 + $0xa9] sm:$0xff]
      %v3083 = vld [vmem:[#allocation2 + $0xb1] sm:$0xff]
      %v3084 = vld [vmem:[#allocation2 + $0xb9] sm:$0xff]
      %v3085 = vld [vmem:[#allocation2 + $0xc1] sm:$0xff]
      %v3086 = vld [vmem:[#allocation2 + $0xc9] sm:$0xff]
      %v3087 = vld [vmem:[#allocation2 + $0xd1] sm:$0xff]
      %v3088 = vld [vmem:[#allocation2 + $0xd9] sm:$0xff]
      %v3089 = vld [vmem:[#allocation2 + $0xe1] sm:$0xff]
      %v3090 = vld [vmem:[#allocation2 + $0xe9] sm:$0xff]
      %v3091 = vld [vmem:[#allocation2 + $0xf1] sm:$0xff]
      %v3092 = vld [vmem:[#allocation2 + $0xf9] sm:$0xff]
      %v3093 = vld [vmem:[#allocation2 + $0x101] sm:$0xff]
      %v3094 = vld [vmem:[#allocation2 + $0x109] sm:$0xff]
      %v3095 = vld [vmem:[#allocation2 + $0x111] sm:$0xff]
      %v3096 = vld [vmem:[#allocation2 + $0x119] sm:$0x3f]
      %v3097 = vld [vmem:[#allocation2 + $0x2] sm:$0xff]
      %v3098 = vld [vmem:[#allocation2 + $0xa] sm:$0xff]
      %v3099 = vld [vmem:[#allocation2 + $0x12] sm:$0xff]
      %v3100 = vld [vmem:[#allocation2 + $0x1a] sm:$0xff]
      %v3101 = vld [vmem:[#allocation2 + $0x22] sm:$0xff]
      %v3102 = vld [vmem:[#allocation2 + $0x2a] sm:$0xff]
      %v3103 = vld [vmem:[#allocation2 + $0x32] sm:$0xff]
      %v3104 = vld [vmem:[#allocation2 + $0x3a] sm:$0xff]
      %v3105 = vld [vmem:[#allocation2 + $0x42] sm:$0xff]
      %v3106 = vld [vmem:[#allocation2 + $0x4a] sm:$0xff]
      %v3107 = vld [vmem:[#allocation2 + $0x52] sm:$0xff]
      %v3108 = vld [vmem:[#allocation2 + $0x5a] sm:$0xff]
      %v3109 = vld [vmem:[#allocation2 + $0x62] sm:$0xff]
      %v3110 = vld [vmem:[#allocation2 + $0x6a] sm:$0xff]
      %v3111 = vld [vmem:[#allocation2 + $0x72] sm:$0xff]
      %v3112 = vld [vmem:[#allocation2 + $0x7a] sm:$0xff]
      %v3113 = vld [vmem:[#allocation2 + $0x82] sm:$0xff]
      %v3114 = vld [vmem:[#allocation2 + $0x8a] sm:$0xff]
      %v3115 = vld [vmem:[#allocation2 + $0x92] sm:$0xff]
      %v3116 = vld [vmem:[#allocation2 + $0x9a] sm:$0xff]
      %v3117 = vld [vmem:[#allocation2 + $0xa2] sm:$0xff]
      %v3118 = vld [vmem:[#allocation2 + $0xaa] sm:$0xff]
      %v3119 = vld [vmem:[#allocation2 + $0xb2] sm:$0xff]
      %v3120 = vld [vmem:[#allocation2 + $0xba] sm:$0xff]
      %v3121 = vld [vmem:[#allocation2 + $0xc2] sm:$0xff]
      %v3122 = vld [vmem:[#allocation2 + $0xca] sm:$0xff]
      %v3123 = vld [vmem:[#allocation2 + $0xd2] sm:$0xff]
      %v3124 = vld [vmem:[#allocation2 + $0xda] sm:$0xff]
      %v3125 = vld [vmem:[#allocation2 + $0xe2] sm:$0xff]
      %v3126 = vld [vmem:[#allocation2 + $0xea] sm:$0xff]
      %v3127 = vld [vmem:[#allocation2 + $0xf2] sm:$0xff]
      %v3128 = vld [vmem:[#allocation2 + $0xfa] sm:$0xff]
      %v3129 = vld [vmem:[#allocation2 + $0x102] sm:$0xff]
      %v3130 = vld [vmem:[#allocation2 + $0x10a] sm:$0xff]
      %v3131 = vld [vmem:[#allocation2 + $0x112] sm:$0xff]
      %v3132 = vld [vmem:[#allocation2 + $0x11a] sm:$0x3f]
      %v3133 = vld [vmem:[#allocation2 + $0x11a] sm:$0xff]
      %v3134 = vld [vmem:[#allocation2 + $0x122] sm:$0xff]
      %v3135 = vld [vmem:[#allocation2 + $0x12a] sm:$0x3f]
      %v3136 = vld [vmem:[#allocation2 + $0x13] sm:$0xff]
      %v3137 = vld [vmem:[#allocation2 + $0x1b] sm:$0xff]
      %v3138 = vld [vmem:[#allocation2 + $0x23] sm:$0xff]
      %v3139 = vld [vmem:[#allocation2 + $0x2b] sm:$0xff]
      %v3140 = vld [vmem:[#allocation2 + $0x33] sm:$0xff]
      %v3141 = vld [vmem:[#allocation2 + $0x3b] sm:$0xff]
      %v3142 = vld [vmem:[#allocation2 + $0x43] sm:$0xff]
      %v3143 = vld [vmem:[#allocation2 + $0x4b] sm:$0xff]
      %v3144 = vld [vmem:[#allocation2 + $0x53] sm:$0xff]
      %v3145 = vld [vmem:[#allocation2 + $0x5b] sm:$0xff]
      %v3146 = vld [vmem:[#allocation2 + $0x63] sm:$0xff]
      %v3147 = vld [vmem:[#allocation2 + $0x6b] sm:$0xff]
      %v3148 = vld [vmem:[#allocation2 + $0x73] sm:$0xff]
      %v3149 = vld [vmem:[#allocation2 + $0x7b] sm:$0xff]
      %v3150 = vld [vmem:[#allocation2 + $0x83] sm:$0xff]
      %v3151 = vld [vmem:[#allocation2 + $0x8b] sm:$0xff]
      %v3152 = vld [vmem:[#allocation2 + $0x93] sm:$0xff]
      %v3153 = vld [vmem:[#allocation2 + $0x9b] sm:$0xff]
      %v3154 = vld [vmem:[#allocation2 + $0xa3] sm:$0xff]
      %v3155 = vld [vmem:[#allocation2 + $0xab] sm:$0xff]
      %v3156 = vld [vmem:[#allocation2 + $0xb3] sm:$0xff]
      %v3157 = vld [vmem:[#allocation2 + $0xbb] sm:$0xff]
      %v3158 = vld [vmem:[#allocation2 + $0xc3] sm:$0xff]
      %v3159 = vld [vmem:[#allocation2 + $0xcb] sm:$0xff]
      %v3160 = vld [vmem:[#allocation2 + $0xd3] sm:$0xff]
      %v3161 = vld [vmem:[#allocation2 + $0xdb] sm:$0xff]
      %v3162 = vld [vmem:[#allocation2 + $0xe3] sm:$0xff]
      %v3163 = vld [vmem:[#allocation2 + $0xeb] sm:$0xff]
      %v3164 = vld [vmem:[#allocation2 + $0xf3] sm:$0xff]
      %v3165 = vld [vmem:[#allocation2 + $0xfb] sm:$0xff]
      %v3166 = vld [vmem:[#allocation2 + $0x103] sm:$0xff]
      %v3167 = vld [vmem:[#allocation2 + $0x10b] sm:$0xff]
      %v3168 = vld [vmem:[#allocation2 + $0x113] sm:$0xff]
      %v3169 = vld [vmem:[#allocation2 + $0x11b] sm:$0xff]
      %v3170 = vld [vmem:[#allocation2 + $0x123] sm:$0xff]
      %v3171 = vld [vmem:[#allocation2 + $0x12b] sm:$0x3f]
      %v3172 = vld [vmem:[#allocation2 + $0x14] sm:$0xff]
      %v3173 = vld [vmem:[#allocation2 + $0x1c] sm:$0xff]
      %v3174 = vld [vmem:[#allocation2 + $0x24] sm:$0xff]
      %v3175 = vld [vmem:[#allocation2 + $0x2c] sm:$0xff]
      %v3176 = vld [vmem:[#allocation2 + $0x34] sm:$0xff]
      %v3177 = vld [vmem:[#allocation2 + $0x3c] sm:$0xff]
      %v3178 = vld [vmem:[#allocation2 + $0x44] sm:$0xff]
      %v3179 = vld [vmem:[#allocation2 + $0x4c] sm:$0xff]
      %v3180 = vld [vmem:[#allocation2 + $0x54] sm:$0xff]
      %v3181 = vld [vmem:[#allocation2 + $0x5c] sm:$0xff]
      %v3182 = vld [vmem:[#allocation2 + $0x64] sm:$0xff]
      %v3183 = vld [vmem:[#allocation2 + $0x6c] sm:$0xff]
      %v3184 = vld [vmem:[#allocation2 + $0x74] sm:$0xff]
      %v3185 = vld [vmem:[#allocation2 + $0x7c] sm:$0xff]
      %v3186 = vld [vmem:[#allocation2 + $0x84] sm:$0xff]
      %v3187 = vld [vmem:[#allocation2 + $0x8c] sm:$0xff]
      %v3188 = vld [vmem:[#allocation2 + $0x94] sm:$0xff]
      %v3189 = vld [vmem:[#allocation2 + $0x9c] sm:$0xff]
      %v3190 = vld [vmem:[#allocation2 + $0xa4] sm:$0xff]
      %v3191 = vld [vmem:[#allocation2 + $0xac] sm:$0xff]
      %v3192 = vld [vmem:[#allocation2 + $0xb4] sm:$0xff]
      %v3193 = vld [vmem:[#allocation2 + $0xbc] sm:$0xff]
      %v3194 = vld [vmem:[#allocation2 + $0xc4] sm:$0xff]
      %v3195 = vld [vmem:[#allocation2 + $0xcc] sm:$0xff]
      %v3196 = vld [vmem:[#allocation2 + $0xd4] sm:$0xff]
      %v3197 = vld [vmem:[#allocation2 + $0xdc] sm:$0xff]
      %v3198 = vld [vmem:[#allocation2 + $0xe4] sm:$0xff]
      %v3199 = vld [vmem:[#allocation2 + $0xec] sm:$0xff]
      %v3200 = vld [vmem:[#allocation2 + $0xf4] sm:$0xff]
      %v3201 = vld [vmem:[#allocation2 + $0xfc] sm:$0xff]
      %v3202 = vld [vmem:[#allocation2 + $0x104] sm:$0xff]
      %v3203 = vld [vmem:[#allocation2 + $0x10c] sm:$0xff]
      %v3204 = vld [vmem:[#allocation2 + $0x114] sm:$0xff]
      %v3205 = vld [vmem:[#allocation2 + $0x11c] sm:$0xff]
      %v3206 = vld [vmem:[#allocation2 + $0x124] sm:$0xff]
      %v3207 = vld [vmem:[#allocation2 + $0x12c] sm:$0x3f]
      %v3208 = vld [vmem:[#allocation2 + $0x12c] sm:$0xff]
      %v3209 = vld [vmem:[#allocation2 + $0x134] sm:$0xff]
      %v3210 = vld [vmem:[#allocation2 + $0x13c] sm:$0x3f]
      %v3211 = vld [vmem:[#allocation2 + $0x25] sm:$0xff]
      %v3212 = vld [vmem:[#allocation2 + $0x2d] sm:$0xff]
      %v3213 = vld [vmem:[#allocation2 + $0x35] sm:$0xff]
      %v3214 = vld [vmem:[#allocation2 + $0x3d] sm:$0xff]
      %v3215 = vld [vmem:[#allocation2 + $0x45] sm:$0xff]
      %v3216 = vld [vmem:[#allocation2 + $0x4d] sm:$0xff]
      %v3217 = vld [vmem:[#allocation2 + $0x55] sm:$0xff]
      %v3218 = vld [vmem:[#allocation2 + $0x5d] sm:$0xff]
      %v3219 = vld [vmem:[#allocation2 + $0x65] sm:$0xff]
      %v3220 = vld [vmem:[#allocation2 + $0x6d] sm:$0xff]
      %v3221 = vld [vmem:[#allocation2 + $0x75] sm:$0xff]
      %v3222 = vld [vmem:[#allocation2 + $0x7d] sm:$0xff]
      %v3223 = vld [vmem:[#allocation2 + $0x85] sm:$0xff]
      %v3224 = vld [vmem:[#allocation2 + $0x8d] sm:$0xff]
      %v3225 = vld [vmem:[#allocation2 + $0x95] sm:$0xff]
      %v3226 = vld [vmem:[#allocation2 + $0x9d] sm:$0xff]
      %v3227 = vld [vmem:[#allocation2 + $0xa5] sm:$0xff]
      %v3228 = vld [vmem:[#allocation2 + $0xad] sm:$0xff]
      %v3229 = vld [vmem:[#allocation2 + $0xb5] sm:$0xff]
      %v3230 = vld [vmem:[#allocation2 + $0xbd] sm:$0xff]
      %v3231 = vld [vmem:[#allocation2 + $0xc5] sm:$0xff]
      %v3232 = vld [vmem:[#allocation2 + $0xcd] sm:$0xff]
      %v3233 = vld [vmem:[#allocation2 + $0xd5] sm:$0xff]
      %v3234 = vld [vmem:[#allocation2 + $0xdd] sm:$0xff]
      %v3235 = vld [vmem:[#allocation2 + $0xe5] sm:$0xff]
      %v3236 = vld [vmem:[#allocation2 + $0xed] sm:$0xff]
      %v3237 = vld [vmem:[#allocation2 + $0xf5] sm:$0xff]
      %v3238 = vld [vmem:[#allocation2 + $0xfd] sm:$0xff]
      %v3239 = vld [vmem:[#allocation2 + $0x105] sm:$0xff]
      %v3240 = vld [vmem:[#allocation2 + $0x10d] sm:$0xff]
      %v3241 = vld [vmem:[#allocation2 + $0x115] sm:$0xff]
      %v3242 = vld [vmem:[#allocation2 + $0x11d] sm:$0xff]
      %v3243 = vld [vmem:[#allocation2 + $0x125] sm:$0xff]
      %v3244 = vld [vmem:[#allocation2 + $0x12d] sm:$0xff]
      %v3245 = vld [vmem:[#allocation2 + $0x135] sm:$0xff]
      %v3246 = vld [vmem:[#allocation2 + $0x13d] sm:$0x3f]
      %v3247 = vld [vmem:[#allocation2 + $0x26] sm:$0xff]
      %v3248 = vld [vmem:[#allocation2 + $0x2e] sm:$0xff]
      %v3249 = vld [vmem:[#allocation2 + $0x36] sm:$0xff]
      %v3250 = vld [vmem:[#allocation2 + $0x3e] sm:$0xff]
      %v3251 = vld [vmem:[#allocation2 + $0x46] sm:$0xff]
      %v3252 = vld [vmem:[#allocation2 + $0x4e] sm:$0xff]
      %v3253 = vld [vmem:[#allocation2 + $0x56] sm:$0xff]
      %v3254 = vld [vmem:[#allocation2 + $0x5e] sm:$0xff]
      %v3255 = vld [vmem:[#allocation2 + $0x66] sm:$0xff]
      %v3256 = vld [vmem:[#allocation2 + $0x6e] sm:$0xff]
      %v3257 = vld [vmem:[#allocation2 + $0x76] sm:$0xff]
      %v3258 = vld [vmem:[#allocation2 + $0x7e] sm:$0xff]
      %v3259 = vld [vmem:[#allocation2 + $0x86] sm:$0xff]
      %v3260 = vld [vmem:[#allocation2 + $0x8e] sm:$0xff]
      %v3261 = vld [vmem:[#allocation2 + $0x96] sm:$0xff]
      %v3262 = vld [vmem:[#allocation2 + $0x9e] sm:$0xff]
      %v3263 = vld [vmem:[#allocation2 + $0xa6] sm:$0xff]
      %v3264 = vld [vmem:[#allocation2 + $0xae] sm:$0xff]
      %v3265 = vld [vmem:[#allocation2 + $0xb6] sm:$0xff]
      %v3266 = vld [vmem:[#allocation2 + $0xbe] sm:$0xff]
      %v3267 = vld [vmem:[#allocation2 + $0xc6] sm:$0xff]
      %v3268 = vld [vmem:[#allocation2 + $0xce] sm:$0xff]
      %v3269 = vld [vmem:[#allocation2 + $0xd6] sm:$0xff]
      %v3270 = vld [vmem:[#allocation2 + $0xde] sm:$0xff]
      %v3271 = vld [vmem:[#allocation2 + $0xe6] sm:$0xff]
      %v3272 = vld [vmem:[#allocation2 + $0xee] sm:$0xff]
      %v3273 = vld [vmem:[#allocation2 + $0xf6] sm:$0xff]
      %v3274 = vld [vmem:[#allocation2 + $0xfe] sm:$0xff]
      %v3275 = vld [vmem:[#allocation2 + $0x106] sm:$0xff]
      %v3276 = vld [vmem:[#allocation2 + $0x10e] sm:$0xff]
      %v3277 = vld [vmem:[#allocation2 + $0x116] sm:$0xff]
      %v3278 = vld [vmem:[#allocation2 + $0x11e] sm:$0xff]
      %v3279 = vld [vmem:[#allocation2 + $0x126] sm:$0xff]
      %v3280 = vld [vmem:[#allocation2 + $0x12e] sm:$0xff]
      %v3281 = vld [vmem:[#allocation2 + $0x136] sm:$0xff]
      %v3282 = vld [vmem:[#allocation2 + $0x13e] sm:$0x3f]
      %3319 = vrot.lane.b32.xlu0 %v3061, 32
      %v3320 = vpop.permute.xlu0 %3319
      %3321 = vrot.lane.b32.xlu0 %v3062, 32
      %v3322 = vpop.permute.xlu0 %3321
      %3323 = vrot.lane.b32.xlu0 %v3063, 32
      %v3324 = vpop.permute.xlu0 %3323
      %3325 = vrot.lane.b32.xlu0 %v3064, 32
      %v3326 = vpop.permute.xlu0 %3325
      %3327 = vrot.lane.b32.xlu0 %v3065, 32
      %v3328 = vpop.permute.xlu0 %3327
      %3329 = vrot.lane.b32.xlu0 %v3066, 32
      %v3330 = vpop.permute.xlu0 %3329
      %3331 = vrot.lane.b32.xlu0 %v3067, 32
      %v3332 = vpop.permute.xlu0 %3331
      %3333 = vrot.lane.b32.xlu0 %v3068, 32
      %v3334 = vpop.permute.xlu0 %3333
      %3335 = vrot.lane.b32.xlu0 %v3069, 32
      %v3336 = vpop.permute.xlu0 %3335
      %3337 = vrot.lane.b32.xlu0 %v3070, 32
      %v3338 = vpop.permute.xlu0 %3337
      %3339 = vrot.lane.b32.xlu0 %v3071, 32
      %v3340 = vpop.permute.xlu0 %3339
      %3341 = vrot.lane.b32.xlu0 %v3072, 32
      %v3342 = vpop.permute.xlu0 %3341
      %3343 = vrot.lane.b32.xlu0 %v3073, 32
      %v3344 = vpop.permute.xlu0 %3343
      %3345 = vrot.lane.b32.xlu0 %v3074, 32
      %v3346 = vpop.permute.xlu0 %3345
      %3347 = vrot.lane.b32.xlu0 %v3075, 32
      %v3348 = vpop.permute.xlu0 %3347
      %3349 = vrot.lane.b32.xlu0 %v3076, 32
      %v3350 = vpop.permute.xlu0 %3349
      %3351 = vrot.lane.b32.xlu0 %v3077, 32
      %v3352 = vpop.permute.xlu0 %3351
      %3353 = vrot.lane.b32.xlu0 %v3078, 32
      %v3354 = vpop.permute.xlu0 %3353
      %3355 = vrot.lane.b32.xlu0 %v3079, 32
      %v3356 = vpop.permute.xlu0 %3355
      %3357 = vrot.lane.b32.xlu0 %v3080, 32
      %v3358 = vpop.permute.xlu0 %3357
      %3359 = vrot.lane.b32.xlu0 %v3081, 32
      %v3360 = vpop.permute.xlu0 %3359
      %3361 = vrot.lane.b32.xlu0 %v3082, 32
      %v3362 = vpop.permute.xlu0 %3361
      %3363 = vrot.lane.b32.xlu0 %v3083, 32
      %v3364 = vpop.permute.xlu0 %3363
      %3365 = vrot.lane.b32.xlu0 %v3084, 32
      %v3366 = vpop.permute.xlu0 %3365
      %3367 = vrot.lane.b32.xlu0 %v3085, 32
      %v3368 = vpop.permute.xlu0 %3367
      %3369 = vrot.lane.b32.xlu0 %v3086, 32
      %v3370 = vpop.permute.xlu0 %3369
      %3371 = vrot.lane.b32.xlu0 %v3087, 32
      %v3372 = vpop.permute.xlu0 %3371
      %3373 = vrot.lane.b32.xlu0 %v3088, 32
      %v3374 = vpop.permute.xlu0 %3373
      %3375 = vrot.lane.b32.xlu0 %v3089, 32
      %v3376 = vpop.permute.xlu0 %3375
      %3377 = vrot.lane.b32.xlu0 %v3090, 32
      %v3378 = vpop.permute.xlu0 %3377
      %3379 = vrot.lane.b32.xlu0 %v3091, 32
      %v3380 = vpop.permute.xlu0 %3379
      %3381 = vrot.lane.b32.xlu0 %v3092, 32
      %v3382 = vpop.permute.xlu0 %3381
      %3383 = vrot.lane.b32.xlu0 %v3093, 32
      %v3384 = vpop.permute.xlu0 %3383
      %3385 = vrot.lane.b32.xlu0 %v3094, 32
      %v3386 = vpop.permute.xlu0 %3385
      %3387 = vrot.lane.b32.xlu0 %v3095, 32
      %v3388 = vpop.permute.xlu0 %3387
      %3389 = vrot.lane.b32.xlu0 %v3096, 32
      %v3390 = vpop.permute.xlu0 %3389
      %3463 = vrot.lane.b32.xlu0 %v3097, 64
      %v3464 = vpop.permute.xlu0 %3463
      %3465 = vrot.lane.b32.xlu0 %v3098, 64
      %v3466 = vpop.permute.xlu0 %3465
      %3467 = vrot.lane.b32.xlu0 %v3099, 64
      %v3468 = vpop.permute.xlu0 %3467
      %3469 = vrot.lane.b32.xlu0 %v3100, 64
      %v3470 = vpop.permute.xlu0 %3469
      %3471 = vrot.lane.b32.xlu0 %v3101, 64
      %v3472 = vpop.permute.xlu0 %3471
      %3473 = vrot.lane.b32.xlu0 %v3102, 64
      %v3474 = vpop.permute.xlu0 %3473
      %3475 = vrot.lane.b32.xlu0 %v3103, 64
      %v3476 = vpop.permute.xlu0 %3475
      %3477 = vrot.lane.b32.xlu0 %v3104, 64
      %v3478 = vpop.permute.xlu0 %3477
      %3479 = vrot.lane.b32.xlu0 %v3105, 64
      %v3480 = vpop.permute.xlu0 %3479
      %3481 = vrot.lane.b32.xlu0 %v3106, 64
      %v3482 = vpop.permute.xlu0 %3481
      %3483 = vrot.lane.b32.xlu0 %v3107, 64
      %v3484 = vpop.permute.xlu0 %3483
      %3485 = vrot.lane.b32.xlu0 %v3108, 64
      %v3486 = vpop.permute.xlu0 %3485
      %3487 = vrot.lane.b32.xlu0 %v3109, 64
      %v3488 = vpop.permute.xlu0 %3487
      %3489 = vrot.lane.b32.xlu0 %v3110, 64
      %v3490 = vpop.permute.xlu0 %3489
      %3491 = vrot.lane.b32.xlu0 %v3111, 64
      %v3492 = vpop.permute.xlu0 %3491
      %3493 = vrot.lane.b32.xlu0 %v3112, 64
      %v3494 = vpop.permute.xlu0 %3493
      %3495 = vrot.lane.b32.xlu0 %v3113, 64
      %v3496 = vpop.permute.xlu0 %3495
      %3497 = vrot.lane.b32.xlu0 %v3114, 64
      %v3498 = vpop.permute.xlu0 %3497
      %3499 = vrot.lane.b32.xlu0 %v3115, 64
      %v3500 = vpop.permute.xlu0 %3499
      %3501 = vrot.lane.b32.xlu0 %v3116, 64
      %v3502 = vpop.permute.xlu0 %3501
      %3503 = vrot.lane.b32.xlu0 %v3117, 64
      %v3504 = vpop.permute.xlu0 %3503
      %3505 = vrot.lane.b32.xlu0 %v3118, 64
      %v3506 = vpop.permute.xlu0 %3505
      %3507 = vrot.lane.b32.xlu0 %v3119, 64
      %v3508 = vpop.permute.xlu0 %3507
      %3509 = vrot.lane.b32.xlu0 %v3120, 64
      %v3510 = vpop.permute.xlu0 %3509
      %3511 = vrot.lane.b32.xlu0 %v3121, 64
      %v3512 = vpop.permute.xlu0 %3511
      %3513 = vrot.lane.b32.xlu0 %v3122, 64
      %v3514 = vpop.permute.xlu0 %3513
      %3515 = vrot.lane.b32.xlu0 %v3123, 64
      %v3516 = vpop.permute.xlu0 %3515
      %3517 = vrot.lane.b32.xlu0 %v3124, 64
      %v3518 = vpop.permute.xlu0 %3517
      %3519 = vrot.lane.b32.xlu0 %v3125, 64
      %v3520 = vpop.permute.xlu0 %3519
      %3521 = vrot.lane.b32.xlu0 %v3126, 64
      %v3522 = vpop.permute.xlu0 %3521
      %3523 = vrot.lane.b32.xlu0 %v3127, 64
      %v3524 = vpop.permute.xlu0 %3523
      %3525 = vrot.lane.b32.xlu0 %v3128, 64
      %v3526 = vpop.permute.xlu0 %3525
      %3527 = vrot.lane.b32.xlu0 %v3129, 64
      %v3528 = vpop.permute.xlu0 %3527
      %3529 = vrot.lane.b32.xlu0 %v3130, 64
      %v3530 = vpop.permute.xlu0 %3529
      %3531 = vrot.lane.b32.xlu0 %v3131, 64
      %v3532 = vpop.permute.xlu0 %3531
      %3533 = vrot.lane.b32.xlu0 %v3132, 64
      %v3534 = vpop.permute.xlu0 %3533
      %3574 = vrot.lane.b32.xlu0 %v3099, 96
      %v3575 = vpop.permute.xlu0 %3574
      %3576 = vrot.lane.b32.xlu0 %v3100, 96
      %v3577 = vpop.permute.xlu0 %3576
      %3578 = vrot.lane.b32.xlu0 %v3101, 96
      %v3579 = vpop.permute.xlu0 %3578
      %3580 = vrot.lane.b32.xlu0 %v3102, 96
      %v3581 = vpop.permute.xlu0 %3580
      %3582 = vrot.lane.b32.xlu0 %v3103, 96
      %v3583 = vpop.permute.xlu0 %3582
      %3584 = vrot.lane.b32.xlu0 %v3104, 96
      %v3585 = vpop.permute.xlu0 %3584
      %3586 = vrot.lane.b32.xlu0 %v3105, 96
      %v3587 = vpop.permute.xlu0 %3586
      %3588 = vrot.lane.b32.xlu0 %v3106, 96
      %v3589 = vpop.permute.xlu0 %3588
      %3590 = vrot.lane.b32.xlu0 %v3107, 96
      %v3591 = vpop.permute.xlu0 %3590
      %3592 = vrot.lane.b32.xlu0 %v3108, 96
      %v3593 = vpop.permute.xlu0 %3592
      %3594 = vrot.lane.b32.xlu0 %v3109, 96
      %v3595 = vpop.permute.xlu0 %3594
      %3596 = vrot.lane.b32.xlu0 %v3110, 96
      %v3597 = vpop.permute.xlu0 %3596
      %3598 = vrot.lane.b32.xlu0 %v3111, 96
      %v3599 = vpop.permute.xlu0 %3598
      %3600 = vrot.lane.b32.xlu0 %v3112, 96
      %v3601 = vpop.permute.xlu0 %3600
      %3602 = vrot.lane.b32.xlu0 %v3113, 96
      %v3603 = vpop.permute.xlu0 %3602
      %3604 = vrot.lane.b32.xlu0 %v3114, 96
      %v3605 = vpop.permute.xlu0 %3604
      %3606 = vrot.lane.b32.xlu0 %v3115, 96
      %v3607 = vpop.permute.xlu0 %3606
      %3608 = vrot.lane.b32.xlu0 %v3116, 96
      %v3609 = vpop.permute.xlu0 %3608
      %3610 = vrot.lane.b32.xlu0 %v3117, 96
      %v3611 = vpop.permute.xlu0 %3610
      %3612 = vrot.lane.b32.xlu0 %v3118, 96
      %v3613 = vpop.permute.xlu0 %3612
      %3614 = vrot.lane.b32.xlu0 %v3119, 96
      %v3615 = vpop.permute.xlu0 %3614
      %3616 = vrot.lane.b32.xlu0 %v3120, 96
      %v3617 = vpop.permute.xlu0 %3616
      %3618 = vrot.lane.b32.xlu0 %v3121, 96
      %v3619 = vpop.permute.xlu0 %3618
      %3620 = vrot.lane.b32.xlu0 %v3122, 96
      %v3621 = vpop.permute.xlu0 %3620
      %3622 = vrot.lane.b32.xlu0 %v3123, 96
      %v3623 = vpop.permute.xlu0 %3622
      %3624 = vrot.lane.b32.xlu0 %v3124, 96
      %v3625 = vpop.permute.xlu0 %3624
      %3626 = vrot.lane.b32.xlu0 %v3125, 96
      %v3627 = vpop.permute.xlu0 %3626
      %3628 = vrot.lane.b32.xlu0 %v3126, 96
      %v3629 = vpop.permute.xlu0 %3628
      %3630 = vrot.lane.b32.xlu0 %v3127, 96
      %v3631 = vpop.permute.xlu0 %3630
      %3632 = vrot.lane.b32.xlu0 %v3128, 96
      %v3633 = vpop.permute.xlu0 %3632
      %3634 = vrot.lane.b32.xlu0 %v3129, 96
      %v3635 = vpop.permute.xlu0 %3634
      %3636 = vrot.lane.b32.xlu0 %v3130, 96
      %v3637 = vpop.permute.xlu0 %3636
      %3638 = vrot.lane.b32.xlu0 %v3131, 96
      %v3639 = vpop.permute.xlu0 %3638
      %3640 = vrot.lane.b32.xlu0 %v3133, 96
      %v3641 = vpop.permute.xlu0 %3640
      %3642 = vrot.lane.b32.xlu0 %v3134, 96
      %v3643 = vpop.permute.xlu0 %3642
      %3644 = vrot.lane.b32.xlu0 %v3135, 96
      %v3645 = vpop.permute.xlu0 %3644
      %3718 = vrot.lane.b32.xlu0 %v3172, 32
      %v3719 = vpop.permute.xlu0 %3718
      %3720 = vrot.lane.b32.xlu0 %v3173, 32
      %v3721 = vpop.permute.xlu0 %3720
      %3722 = vrot.lane.b32.xlu0 %v3174, 32
      %v3723 = vpop.permute.xlu0 %3722
      %3724 = vrot.lane.b32.xlu0 %v3175, 32
      %v3725 = vpop.permute.xlu0 %3724
      %3726 = vrot.lane.b32.xlu0 %v3176, 32
      %v3727 = vpop.permute.xlu0 %3726
      %3728 = vrot.lane.b32.xlu0 %v3177, 32
      %v3729 = vpop.permute.xlu0 %3728
      %3730 = vrot.lane.b32.xlu0 %v3178, 32
      %v3731 = vpop.permute.xlu0 %3730
      %3732 = vrot.lane.b32.xlu0 %v3179, 32
      %v3733 = vpop.permute.xlu0 %3732
      %3734 = vrot.lane.b32.xlu0 %v3180, 32
      %v3735 = vpop.permute.xlu0 %3734
      %3736 = vrot.lane.b32.xlu0 %v3181, 32
      %v3737 = vpop.permute.xlu0 %3736
      %3738 = vrot.lane.b32.xlu0 %v3182, 32
      %v3739 = vpop.permute.xlu0 %3738
      %3740 = vrot.lane.b32.xlu0 %v3183, 32
      %v3741 = vpop.permute.xlu0 %3740
      %3742 = vrot.lane.b32.xlu0 %v3184, 32
      %v3743 = vpop.permute.xlu0 %3742
      %3744 = vrot.lane.b32.xlu0 %v3185, 32
      %v3745 = vpop.permute.xlu0 %3744
      %3746 = vrot.lane.b32.xlu0 %v3186, 32
      %v3747 = vpop.permute.xlu0 %3746
      %3748 = vrot.lane.b32.xlu0 %v3187, 32
      %v3749 = vpop.permute.xlu0 %3748
      %3750 = vrot.lane.b32.xlu0 %v3188, 32
      %v3751 = vpop.permute.xlu0 %3750
      %3752 = vrot.lane.b32.xlu0 %v3189, 32
      %v3753 = vpop.permute.xlu0 %3752
      %3754 = vrot.lane.b32.xlu0 %v3190, 32
      %v3755 = vpop.permute.xlu0 %3754
      %3756 = vrot.lane.b32.xlu0 %v3191, 32
      %v3757 = vpop.permute.xlu0 %3756
      %3758 = vrot.lane.b32.xlu0 %v3192, 32
      %v3759 = vpop.permute.xlu0 %3758
      %3760 = vrot.lane.b32.xlu0 %v3193, 32
      %v3761 = vpop.permute.xlu0 %3760
      %3762 = vrot.lane.b32.xlu0 %v3194, 32
      %v3763 = vpop.permute.xlu0 %3762
      %3764 = vrot.lane.b32.xlu0 %v3195, 32
      %v3765 = vpop.permute.xlu0 %3764
      %3766 = vrot.lane.b32.xlu0 %v3196, 32
      %v3767 = vpop.permute.xlu0 %3766
      %3768 = vrot.lane.b32.xlu0 %v3197, 32
      %v3769 = vpop.permute.xlu0 %3768
      %3770 = vrot.lane.b32.xlu0 %v3198, 32
      %v3771 = vpop.permute.xlu0 %3770
      %3772 = vrot.lane.b32.xlu0 %v3199, 32
      %v3773 = vpop.permute.xlu0 %3772
      %3774 = vrot.lane.b32.xlu0 %v3200, 32
      %v3775 = vpop.permute.xlu0 %3774
      %3776 = vrot.lane.b32.xlu0 %v3201, 32
      %v3777 = vpop.permute.xlu0 %3776
      %3778 = vrot.lane.b32.xlu0 %v3202, 32
      %v3779 = vpop.permute.xlu0 %3778
      %3780 = vrot.lane.b32.xlu0 %v3203, 32
      %v3781 = vpop.permute.xlu0 %3780
      %3782 = vrot.lane.b32.xlu0 %v3204, 32
      %v3783 = vpop.permute.xlu0 %3782
      %3784 = vrot.lane.b32.xlu0 %v3205, 32
      %v3785 = vpop.permute.xlu0 %3784
      %3786 = vrot.lane.b32.xlu0 %v3206, 32
      %v3787 = vpop.permute.xlu0 %3786
      %3788 = vrot.lane.b32.xlu0 %v3207, 32
      %v3789 = vpop.permute.xlu0 %3788
      %3829 = vrot.lane.b32.xlu0 %v3174, 64
      %v3830 = vpop.permute.xlu0 %3829
      %3831 = vrot.lane.b32.xlu0 %v3175, 64
      %v3832 = vpop.permute.xlu0 %3831
      %3833 = vrot.lane.b32.xlu0 %v3176, 64
      %v3834 = vpop.permute.xlu0 %3833
      %3835 = vrot.lane.b32.xlu0 %v3177, 64
      %v3836 = vpop.permute.xlu0 %3835
      %3837 = vrot.lane.b32.xlu0 %v3178, 64
      %v3838 = vpop.permute.xlu0 %3837
      %3839 = vrot.lane.b32.xlu0 %v3179, 64
      %v3840 = vpop.permute.xlu0 %3839
      %3841 = vrot.lane.b32.xlu0 %v3180, 64
      %v3842 = vpop.permute.xlu0 %3841
      %3843 = vrot.lane.b32.xlu0 %v3181, 64
      %v3844 = vpop.permute.xlu0 %3843
      %3845 = vrot.lane.b32.xlu0 %v3182, 64
      %v3846 = vpop.permute.xlu0 %3845
      %3847 = vrot.lane.b32.xlu0 %v3183, 64
      %v3848 = vpop.permute.xlu0 %3847
      %3849 = vrot.lane.b32.xlu0 %v3184, 64
      %v3850 = vpop.permute.xlu0 %3849
      %3851 = vrot.lane.b32.xlu0 %v3185, 64
      %v3852 = vpop.permute.xlu0 %3851
      %3853 = vrot.lane.b32.xlu0 %v3186, 64
      %v3854 = vpop.permute.xlu0 %3853
      %3855 = vrot.lane.b32.xlu0 %v3187, 64
      %v3856 = vpop.permute.xlu0 %3855
      %3857 = vrot.lane.b32.xlu0 %v3188, 64
      %v3858 = vpop.permute.xlu0 %3857
      %3859 = vrot.lane.b32.xlu0 %v3189, 64
      %v3860 = vpop.permute.xlu0 %3859
      %3861 = vrot.lane.b32.xlu0 %v3190, 64
      %v3862 = vpop.permute.xlu0 %3861
      %3863 = vrot.lane.b32.xlu0 %v3191, 64
      %v3864 = vpop.permute.xlu0 %3863
      %3865 = vrot.lane.b32.xlu0 %v3192, 64
      %v3866 = vpop.permute.xlu0 %3865
      %3867 = vrot.lane.b32.xlu0 %v3193, 64
      %v3868 = vpop.permute.xlu0 %3867
      %3869 = vrot.lane.b32.xlu0 %v3194, 64
      %v3870 = vpop.permute.xlu0 %3869
      %3871 = vrot.lane.b32.xlu0 %v3195, 64
      %v3872 = vpop.permute.xlu0 %3871
      %3873 = vrot.lane.b32.xlu0 %v3196, 64
      %v3874 = vpop.permute.xlu0 %3873
      %3875 = vrot.lane.b32.xlu0 %v3197, 64
      %v3876 = vpop.permute.xlu0 %3875
      %3877 = vrot.lane.b32.xlu0 %v3198, 64
      %v3878 = vpop.permute.xlu0 %3877
      %3879 = vrot.lane.b32.xlu0 %v3199, 64
      %v3880 = vpop.permute.xlu0 %3879
      %3881 = vrot.lane.b32.xlu0 %v3200, 64
      %v3882 = vpop.permute.xlu0 %3881
      %3883 = vrot.lane.b32.xlu0 %v3201, 64
      %v3884 = vpop.permute.xlu0 %3883
      %3885 = vrot.lane.b32.xlu0 %v3202, 64
      %v3886 = vpop.permute.xlu0 %3885
      %3887 = vrot.lane.b32.xlu0 %v3203, 64
      %v3888 = vpop.permute.xlu0 %3887
      %3889 = vrot.lane.b32.xlu0 %v3204, 64
      %v3890 = vpop.permute.xlu0 %3889
      %3891 = vrot.lane.b32.xlu0 %v3205, 64
      %v3892 = vpop.permute.xlu0 %3891
      %3893 = vrot.lane.b32.xlu0 %v3206, 64
      %v3894 = vpop.permute.xlu0 %3893
      %3895 = vrot.lane.b32.xlu0 %v3208, 64
      %v3896 = vpop.permute.xlu0 %3895
      %3897 = vrot.lane.b32.xlu0 %v3209, 64
      %v3898 = vpop.permute.xlu0 %3897
      %3899 = vrot.lane.b32.xlu0 %v3210, 64
      %v3900 = vpop.permute.xlu0 %3899
      %3973 = vrot.lane.b32.xlu0 %v3211, 96
      %v3974 = vpop.permute.xlu0 %3973
      %3975 = vrot.lane.b32.xlu0 %v3212, 96
      %v3976 = vpop.permute.xlu0 %3975
      %3977 = vrot.lane.b32.xlu0 %v3213, 96
      %v3978 = vpop.permute.xlu0 %3977
      %3979 = vrot.lane.b32.xlu0 %v3214, 96
      %v3980 = vpop.permute.xlu0 %3979
      %3981 = vrot.lane.b32.xlu0 %v3215, 96
      %v3982 = vpop.permute.xlu0 %3981
      %3983 = vrot.lane.b32.xlu0 %v3216, 96
      %v3984 = vpop.permute.xlu0 %3983
      %3985 = vrot.lane.b32.xlu0 %v3217, 96
      %v3986 = vpop.permute.xlu0 %3985
      %3987 = vrot.lane.b32.xlu0 %v3218, 96
      %v3988 = vpop.permute.xlu0 %3987
      %3989 = vrot.lane.b32.xlu0 %v3219, 96
      %v3990 = vpop.permute.xlu0 %3989
      %3991 = vrot.lane.b32.xlu0 %v3220, 96
      %v3992 = vpop.permute.xlu0 %3991
      %3993 = vrot.lane.b32.xlu0 %v3221, 96
      %v3994 = vpop.permute.xlu0 %3993
      %3995 = vrot.lane.b32.xlu0 %v3222, 96
      %v3996 = vpop.permute.xlu0 %3995
      %3997 = vrot.lane.b32.xlu0 %v3223, 96
      %v3998 = vpop.permute.xlu0 %3997
      %3999 = vrot.lane.b32.xlu0 %v3224, 96
      %v4000 = vpop.permute.xlu0 %3999
      %4001 = vrot.lane.b32.xlu0 %v3225, 96
      %v4002 = vpop.permute.xlu0 %4001
      %4003 = vrot.lane.b32.xlu0 %v3226, 96
      %v4004 = vpop.permute.xlu0 %4003
      %4005 = vrot.lane.b32.xlu0 %v3227, 96
      %v4006 = vpop.permute.xlu0 %4005
      %4007 = vrot.lane.b32.xlu0 %v3228, 96
      %v4008 = vpop.permute.xlu0 %4007
      %4009 = vrot.lane.b32.xlu0 %v3229, 96
      %v4010 = vpop.permute.xlu0 %4009
      %4011 = vrot.lane.b32.xlu0 %v3230, 96
      %v4012 = vpop.permute.xlu0 %4011
      %4013 = vrot.lane.b32.xlu0 %v3231, 96
      %v4014 = vpop.permute.xlu0 %4013
      %4015 = vrot.lane.b32.xlu0 %v3232, 96
      %v4016 = vpop.permute.xlu0 %4015
      %4017 = vrot.lane.b32.xlu0 %v3233, 96
      %v4018 = vpop.permute.xlu0 %4017
      %4019 = vrot.lane.b32.xlu0 %v3234, 96
      %v4020 = vpop.permute.xlu0 %4019
      %4021 = vrot.lane.b32.xlu0 %v3235, 96
      %v4022 = vpop.permute.xlu0 %4021
      %4023 = vrot.lane.b32.xlu0 %v3236, 96
      %v4024 = vpop.permute.xlu0 %4023
      %4025 = vrot.lane.b32.xlu0 %v3237, 96
      %v4026 = vpop.permute.xlu0 %4025
      %4027 = vrot.lane.b32.xlu0 %v3238, 96
      %v4028 = vpop.permute.xlu0 %4027
      %4029 = vrot.lane.b32.xlu0 %v3239, 96
      %v4030 = vpop.permute.xlu0 %4029
      %4031 = vrot.lane.b32.xlu0 %v3240, 96
      %v4032 = vpop.permute.xlu0 %4031
      %4033 = vrot.lane.b32.xlu0 %v3241, 96
      %v4034 = vpop.permute.xlu0 %4033
      %4035 = vrot.lane.b32.xlu0 %v3242, 96
      %v4036 = vpop.permute.xlu0 %4035
      %4037 = vrot.lane.b32.xlu0 %v3243, 96
      %v4038 = vpop.permute.xlu0 %4037
      %4039 = vrot.lane.b32.xlu0 %v3244, 96
      %v4040 = vpop.permute.xlu0 %4039
      %4041 = vrot.lane.b32.xlu0 %v3245, 96
      %v4042 = vpop.permute.xlu0 %4041
      %4043 = vrot.lane.b32.xlu0 %v3246, 96
      %v4044 = vpop.permute.xlu0 %4043
      %v4081 = vsel %vm658, %v3025, %v3320
      %v4082 = vsel %vm658, %v3026, %v3322
      %v4083 = vsel %vm658, %v3027, %v3324
      %v4084 = vsel %vm658, %v3028, %v3326
      %v4085 = vsel %vm658, %v3029, %v3328
      %v4086 = vsel %vm658, %v3030, %v3330
      %v4087 = vsel %vm658, %v3031, %v3332
      %v4088 = vsel %vm658, %v3032, %v3334
      %v4089 = vsel %vm658, %v3033, %v3336
      %v4090 = vsel %vm658, %v3034, %v3338
      %v4091 = vsel %vm658, %v3035, %v3340
      %v4092 = vsel %vm658, %v3036, %v3342
      %v4093 = vsel %vm658, %v3037, %v3344
      %v4094 = vsel %vm658, %v3038, %v3346
      %v4095 = vsel %vm658, %v3039, %v3348
      %v4096 = vsel %vm658, %v3040, %v3350
      %v4097 = vsel %vm658, %v3041, %v3352
      %v4098 = vsel %vm658, %v3042, %v3354
      %v4099 = vsel %vm658, %v3043, %v3356
      %v4100 = vsel %vm658, %v3044, %v3358
      %v4101 = vsel %vm658, %v3045, %v3360
      %v4102 = vsel %vm658, %v3046, %v3362
      %v4103 = vsel %vm658, %v3047, %v3364
      %v4104 = vsel %vm658, %v3048, %v3366
      %v4105 = vsel %vm658, %v3049, %v3368
      %v4106 = vsel %vm658, %v3050, %v3370
      %v4107 = vsel %vm658, %v3051, %v3372
      %v4108 = vsel %vm658, %v3052, %v3374
      %v4109 = vsel %vm658, %v3053, %v3376
      %v4110 = vsel %vm658, %v3054, %v3378
      %v4111 = vsel %vm658, %v3055, %v3380
      %v4112 = vsel %vm658, %v3056, %v3382
      %v4113 = vsel %vm658, %v3057, %v3384
      %v4114 = vsel %vm658, %v3058, %v3386
      %v4115 = vsel %vm658, %v3059, %v3388
      %v4116 = vsel %vm658, %v3060, %v3390
      %v4117 = vsel %vm2318, %v4081, %v3464
      %v4118 = vsel %vm2318, %v4082, %v3466
      %v4119 = vsel %vm2318, %v4083, %v3468
      %v4120 = vsel %vm2318, %v4084, %v3470
      %v4121 = vsel %vm2318, %v4085, %v3472
      %v4122 = vsel %vm2318, %v4086, %v3474
      %v4123 = vsel %vm2318, %v4087, %v3476
      %v4124 = vsel %vm2318, %v4088, %v3478
      %v4125 = vsel %vm2318, %v4089, %v3480
      %v4126 = vsel %vm2318, %v4090, %v3482
      %v4127 = vsel %vm2318, %v4091, %v3484
      %v4128 = vsel %vm2318, %v4092, %v3486
      %v4129 = vsel %vm2318, %v4093, %v3488
      %v4130 = vsel %vm2318, %v4094, %v3490
      %v4131 = vsel %vm2318, %v4095, %v3492
      %v4132 = vsel %vm2318, %v4096, %v3494
      %v4133 = vsel %vm2318, %v4097, %v3496
      %v4134 = vsel %vm2318, %v4098, %v3498
      %v4135 = vsel %vm2318, %v4099, %v3500
      %v4136 = vsel %vm2318, %v4100, %v3502
      %v4137 = vsel %vm2318, %v4101, %v3504
      %v4138 = vsel %vm2318, %v4102, %v3506
      %v4139 = vsel %vm2318, %v4103, %v3508
      %v4140 = vsel %vm2318, %v4104, %v3510
      %v4141 = vsel %vm2318, %v4105, %v3512
      %v4142 = vsel %vm2318, %v4106, %v3514
      %v4143 = vsel %vm2318, %v4107, %v3516
      %v4144 = vsel %vm2318, %v4108, %v3518
      %v4145 = vsel %vm2318, %v4109, %v3520
      %v4146 = vsel %vm2318, %v4110, %v3522
      %v4147 = vsel %vm2318, %v4111, %v3524
      %v4148 = vsel %vm2318, %v4112, %v3526
      %v4149 = vsel %vm2318, %v4113, %v3528
      %v4150 = vsel %vm2318, %v4114, %v3530
      %v4151 = vsel %vm2318, %v4115, %v3532
      %v4152 = vsel %vm2318, %v4116, %v3534
      %vm4153 = vcmask 785408
      %v4154 = vsel %vm4153, %v4117, %v3575
      %v4155 = vsel %vm4153, %v4118, %v3577
      %v4156 = vsel %vm4153, %v4119, %v3579
      %v4157 = vsel %vm4153, %v4120, %v3581
      %v4158 = vsel %vm4153, %v4121, %v3583
      %v4159 = vsel %vm4153, %v4122, %v3585
      %v4160 = vsel %vm4153, %v4123, %v3587
      %v4161 = vsel %vm4153, %v4124, %v3589
      %v4162 = vsel %vm4153, %v4125, %v3591
      %v4163 = vsel %vm4153, %v4126, %v3593
      %v4164 = vsel %vm4153, %v4127, %v3595
      %v4165 = vsel %vm4153, %v4128, %v3597
      %v4166 = vsel %vm4153, %v4129, %v3599
      %v4167 = vsel %vm4153, %v4130, %v3601
      %v4168 = vsel %vm4153, %v4131, %v3603
      %v4169 = vsel %vm4153, %v4132, %v3605
      %v4170 = vsel %vm4153, %v4133, %v3607
      %v4171 = vsel %vm4153, %v4134, %v3609
      %v4172 = vsel %vm4153, %v4135, %v3611
      %v4173 = vsel %vm4153, %v4136, %v3613
      %v4174 = vsel %vm4153, %v4137, %v3615
      %v4175 = vsel %vm4153, %v4138, %v3617
      %v4176 = vsel %vm4153, %v4139, %v3619
      %v4177 = vsel %vm4153, %v4140, %v3621
      %v4178 = vsel %vm4153, %v4141, %v3623
      %v4179 = vsel %vm4153, %v4142, %v3625
      %v4180 = vsel %vm4153, %v4143, %v3627
      %v4181 = vsel %vm4153, %v4144, %v3629
      %v4182 = vsel %vm4153, %v4145, %v3631
      %v4183 = vsel %vm4153, %v4146, %v3633
      %v4184 = vsel %vm4153, %v4147, %v3635
      %v4185 = vsel %vm4153, %v4148, %v3637
      %v4186 = vsel %vm4153, %v4149, %v3639
      %v4187 = vsel %vm4153, %v4150, %v3641
      %v4188 = vsel %vm4153, %v4151, %v3643
      %v4189 = vsel %vm4153, %v4152, %v3645
      %v4190 = vsel %vm658, %v3136, %v3719
      %v4191 = vsel %vm658, %v3137, %v3721
      %v4192 = vsel %vm658, %v3138, %v3723
      %v4193 = vsel %vm658, %v3139, %v3725
      %v4194 = vsel %vm658, %v3140, %v3727
      %v4195 = vsel %vm658, %v3141, %v3729
      %v4196 = vsel %vm658, %v3142, %v3731
      %v4197 = vsel %vm658, %v3143, %v3733
      %v4198 = vsel %vm658, %v3144, %v3735
      %v4199 = vsel %vm658, %v3145, %v3737
      %v4200 = vsel %vm658, %v3146, %v3739
      %v4201 = vsel %vm658, %v3147, %v3741
      %v4202 = vsel %vm658, %v3148, %v3743
      %v4203 = vsel %vm658, %v3149, %v3745
      %v4204 = vsel %vm658, %v3150, %v3747
      %v4205 = vsel %vm658, %v3151, %v3749
      %v4206 = vsel %vm658, %v3152, %v3751
      %v4207 = vsel %vm658, %v3153, %v3753
      %v4208 = vsel %vm658, %v3154, %v3755
      %v4209 = vsel %vm658, %v3155, %v3757
      %v4210 = vsel %vm658, %v3156, %v3759
      %v4211 = vsel %vm658, %v3157, %v3761
      %v4212 = vsel %vm658, %v3158, %v3763
      %v4213 = vsel %vm658, %v3159, %v3765
      %v4214 = vsel %vm658, %v3160, %v3767
      %v4215 = vsel %vm658, %v3161, %v3769
      %v4216 = vsel %vm658, %v3162, %v3771
      %v4217 = vsel %vm658, %v3163, %v3773
      %v4218 = vsel %vm658, %v3164, %v3775
      %v4219 = vsel %vm658, %v3165, %v3777
      %v4220 = vsel %vm658, %v3166, %v3779
      %v4221 = vsel %vm658, %v3167, %v3781
      %v4222 = vsel %vm658, %v3168, %v3783
      %v4223 = vsel %vm658, %v3169, %v3785
      %v4224 = vsel %vm658, %v3170, %v3787
      %v4225 = vsel %vm658, %v3171, %v3789
      %v4226 = vsel %vm2318, %v4190, %v3830
      %v4227 = vsel %vm2318, %v4191, %v3832
      %v4228 = vsel %vm2318, %v4192, %v3834
      %v4229 = vsel %vm2318, %v4193, %v3836
      %v4230 = vsel %vm2318, %v4194, %v3838
      %v4231 = vsel %vm2318, %v4195, %v3840
      %v4232 = vsel %vm2318, %v4196, %v3842
      %v4233 = vsel %vm2318, %v4197, %v3844
      %v4234 = vsel %vm2318, %v4198, %v3846
      %v4235 = vsel %vm2318, %v4199, %v3848
      %v4236 = vsel %vm2318, %v4200, %v3850
      %v4237 = vsel %vm2318, %v4201, %v3852
      %v4238 = vsel %vm2318, %v4202, %v3854
      %v4239 = vsel %vm2318, %v4203, %v3856
      %v4240 = vsel %vm2318, %v4204, %v3858
      %v4241 = vsel %vm2318, %v4205, %v3860
      %v4242 = vsel %vm2318, %v4206, %v3862
      %v4243 = vsel %vm2318, %v4207, %v3864
      %v4244 = vsel %vm2318, %v4208, %v3866
      %v4245 = vsel %vm2318, %v4209, %v3868
      %v4246 = vsel %vm2318, %v4210, %v3870
      %v4247 = vsel %vm2318, %v4211, %v3872
      %v4248 = vsel %vm2318, %v4212, %v3874
      %v4249 = vsel %vm2318, %v4213, %v3876
      %v4250 = vsel %vm2318, %v4214, %v3878
      %v4251 = vsel %vm2318, %v4215, %v3880
      %v4252 = vsel %vm2318, %v4216, %v3882
      %v4253 = vsel %vm2318, %v4217, %v3884
      %v4254 = vsel %vm2318, %v4218, %v3886
      %v4255 = vsel %vm2318, %v4219, %v3888
      %v4256 = vsel %vm2318, %v4220, %v3890
      %v4257 = vsel %vm2318, %v4221, %v3892
      %v4258 = vsel %vm2318, %v4222, %v3894
      %v4259 = vsel %vm2318, %v4223, %v3896
      %v4260 = vsel %vm2318, %v4224, %v3898
      %v4261 = vsel %vm2318, %v4225, %v3900
      %v4262 = vsel %vm4153, %v4226, %v3974
      %v4263 = vsel %vm4153, %v4227, %v3976
      %v4264 = vsel %vm4153, %v4228, %v3978
      %v4265 = vsel %vm4153, %v4229, %v3980
      %v4266 = vsel %vm4153, %v4230, %v3982
      %v4267 = vsel %vm4153, %v4231, %v3984
      %v4268 = vsel %vm4153, %v4232, %v3986
      %v4269 = vsel %vm4153, %v4233, %v3988
      %v4270 = vsel %vm4153, %v4234, %v3990
      %v4271 = vsel %vm4153, %v4235, %v3992
      %v4272 = vsel %vm4153, %v4236, %v3994
      %v4273 = vsel %vm4153, %v4237, %v3996
      %v4274 = vsel %vm4153, %v4238, %v3998
      %v4275 = vsel %vm4153, %v4239, %v4000
      %v4276 = vsel %vm4153, %v4240, %v4002
      %v4277 = vsel %vm4153, %v4241, %v4004
      %v4278 = vsel %vm4153, %v4242, %v4006
      %v4279 = vsel %vm4153, %v4243, %v4008
      %v4280 = vsel %vm4153, %v4244, %v4010
      %v4281 = vsel %vm4153, %v4245, %v4012
      %v4282 = vsel %vm4153, %v4246, %v4014
      %v4283 = vsel %vm4153, %v4247, %v4016
      %v4284 = vsel %vm4153, %v4248, %v4018
      %v4285 = vsel %vm4153, %v4249, %v4020
      %v4286 = vsel %vm4153, %v4250, %v4022
      %v4287 = vsel %vm4153, %v4251, %v4024
      %v4288 = vsel %vm4153, %v4252, %v4026
      %v4289 = vsel %vm4153, %v4253, %v4028
      %v4290 = vsel %vm4153, %v4254, %v4030
      %v4291 = vsel %vm4153, %v4255, %v4032
      %v4292 = vsel %vm4153, %v4256, %v4034
      %v4293 = vsel %vm4153, %v4257, %v4036
      %v4294 = vsel %vm4153, %v4258, %v4038
      %v4295 = vsel %vm4153, %v4259, %v4040
      %v4296 = vsel %vm4153, %v4260, %v4042
      %v4297 = vsel %vm4153, %v4261, %v4044
      %v4298 = vpack.c.bf16 %v4155, %v4154
      %v4299 = vpack.c.bf16 %v4263, %v4262
      %v4300 = vpack.c.bf16 %v3248, %v3247
      %v4301 = vpack.c.bf16 %v4157, %v4156
      %v4302 = vpack.c.bf16 %v4265, %v4264
      %v4303 = vpack.c.bf16 %v3250, %v3249
      %v4304 = vpack.c.bf16 %v4159, %v4158
      %v4305 = vpack.c.bf16 %v4267, %v4266
      %v4306 = vpack.c.bf16 %v3252, %v3251
      %v4307 = vpack.c.bf16 %v4161, %v4160
      %v4308 = vpack.c.bf16 %v4269, %v4268
      %v4309 = vpack.c.bf16 %v3254, %v3253
      %v4310 = vpack.c.bf16 %v4163, %v4162
      %v4311 = vpack.c.bf16 %v4271, %v4270
      %v4312 = vpack.c.bf16 %v3256, %v3255
      %v4313 = vpack.c.bf16 %v4165, %v4164
      %v4314 = vpack.c.bf16 %v4273, %v4272
      %v4315 = vpack.c.bf16 %v3258, %v3257
      %v4316 = vpack.c.bf16 %v4167, %v4166
      %v4317 = vpack.c.bf16 %v4275, %v4274
      %v4318 = vpack.c.bf16 %v3260, %v3259
      %v4319 = vpack.c.bf16 %v4169, %v4168
      %v4320 = vpack.c.bf16 %v4277, %v4276
      %v4321 = vpack.c.bf16 %v3262, %v3261
      %v4322 = vpack.c.bf16 %v4171, %v4170
      %v4323 = vpack.c.bf16 %v4279, %v4278
      %v4324 = vpack.c.bf16 %v3264, %v3263
      %v4325 = vpack.c.bf16 %v4173, %v4172
      %v4326 = vpack.c.bf16 %v4281, %v4280
      %v4327 = vpack.c.bf16 %v3266, %v3265
      %v4328 = vpack.c.bf16 %v4175, %v4174
      %v4329 = vpack.c.bf16 %v4283, %v4282
      %v4330 = vpack.c.bf16 %v3268, %v3267
      %v4331 = vpack.c.bf16 %v4177, %v4176
      %v4332 = vpack.c.bf16 %v4285, %v4284
      %v4333 = vpack.c.bf16 %v3270, %v3269
      %v4334 = vpack.c.bf16 %v4179, %v4178
      %v4335 = vpack.c.bf16 %v4287, %v4286
      %v4336 = vpack.c.bf16 %v3272, %v3271
      %v4337 = vpack.c.bf16 %v4181, %v4180
      %v4338 = vpack.c.bf16 %v4289, %v4288
      %v4339 = vpack.c.bf16 %v3274, %v3273
      %v4340 = vpack.c.bf16 %v4183, %v4182
      %v4341 = vpack.c.bf16 %v4291, %v4290
      %v4342 = vpack.c.bf16 %v3276, %v3275
      %v4343 = vpack.c.bf16 %v4185, %v4184
      %v4344 = vpack.c.bf16 %v4293, %v4292
      %v4345 = vpack.c.bf16 %v3278, %v3277
      %v4346 = vpack.c.bf16 %v4187, %v4186
      %v4347 = vpack.c.bf16 %v4295, %v4294
      %v4348 = vpack.c.bf16 %v3280, %v3279
      %v4349 = vpack.c.bf16 %v4189, %v4188
      %v4350 = vpack.c.bf16 %v4297, %v4296
      %v4351 = vpack.c.bf16 %v3282, %v3281
      %v4352 = vld [vmem:[%s4] sm:$0xf]
      %v4353 = vld [vmem:[%s4 + $0x4] sm:$0xf]
      %v4354 = vld [vmem:[%s4 + $0x8] sm:$0xf]
      %v4355 = vld [vmem:[%s4 + $0xc] sm:$0xf]
      %v4356 = vld [vmem:[%s4 + $0x10] sm:$0xf]
      %v4357 = vld [vmem:[%s4 + $0x14] sm:$0xf]
      %v4358 = vld [vmem:[%s4 + $0x18] sm:$0xf]
      %v4359 = vld [vmem:[%s4 + $0x1c] sm:$0xf]
      %v4360 = vld [vmem:[%s4 + $0x20] sm:$0xf]
      %v4361 = vld [vmem:[%s4 + $0x24] sm:$0xf]
      %v4362 = vld [vmem:[%s4 + $0x28] sm:$0xf]
      %v4363 = vld [vmem:[%s4 + $0x2c] sm:$0xf]
      %v4364 = vld [vmem:[%s4 + $0x30] sm:$0xf]
      %v4365 = vld [vmem:[%s4 + $0x34] sm:$0xf]
      %v4366 = vld [vmem:[%s4 + $0x38] sm:$0xf]
      %v4367 = vld [vmem:[%s4 + $0x3c] sm:$0xf]
      %v4368 = vld [vmem:[%s4 + $0x40] sm:$0xf]
      %v4369 = vld [vmem:[%s4 + $0x44] sm:$0xf]
      %v4370 = vld [vmem:[%s4 + $0x48] sm:$0xf]
      %v4371 = vld [vmem:[%s4 + $0x4c] sm:$0xf]
      %v4372 = vld [vmem:[%s4 + $0x50] sm:$0xf]
      %v4373 = vld [vmem:[%s4 + $0x54] sm:$0xf]
      %v4374 = vld [vmem:[%s4 + $0x58] sm:$0xf]
      %v4375 = vld [vmem:[%s4 + $0x5c] sm:$0xf]
      %v4376 = vld [vmem:[%s4 + $0x60] sm:$0xf]
      %v4377 = vld [vmem:[%s4 + $0x64] sm:$0xf]
      %v4378 = vld [vmem:[%s4 + $0x68] sm:$0xf]
      %v4379 = vld [vmem:[%s4 + $0x6c] sm:$0xf]
      %v4380 = vld [vmem:[%s4 + $0x70] sm:$0xf]
      %v4381 = vld [vmem:[%s4 + $0x74] sm:$0xf]
      %v4382 = vld [vmem:[%s4 + $0x78] sm:$0xf]
      %v4383 = vld [vmem:[%s4 + $0x7c] sm:$0xf]
      %v4384 = vld [vmem:[%s4 + $0x80] sm:$0xf]
      %v4385 = vld [vmem:[%s4 + $0x84] sm:$0xf]
      %v4386 = vld [vmem:[%s4 + $0x88] sm:$0xf]
      %v4387 = vld [vmem:[%s4 + $0x8c] sm:$0xf]
      %v4388 = vld [vmem:[%s5] sm:$0x1]
      %v4390 = vlaneseq
      %v4391 = vshrl.u32 %v4390, 7
      %v4392 = vsub.s32 0, %v4391
      %v4393 = vrot.slane %v4388, %v4392
      %v4431 = vunpack.c.l.b16 %v4352
      %v4432 = vunpack.c.l.b16 %v4353
      %v4433 = vunpack.c.l.b16 %v4354
      %v4434 = vunpack.c.l.b16 %v4355
      %v4435 = vunpack.c.l.b16 %v4356
      %v4436 = vunpack.c.l.b16 %v4357
      %v4437 = vunpack.c.l.b16 %v4358
      %v4438 = vunpack.c.l.b16 %v4359
      %v4439 = vunpack.c.l.b16 %v4360
      %v4440 = vunpack.c.l.b16 %v4361
      %v4441 = vunpack.c.l.b16 %v4362
      %v4442 = vunpack.c.l.b16 %v4363
      %v4443 = vunpack.c.l.b16 %v4364
      %v4444 = vunpack.c.l.b16 %v4365
      %v4445 = vunpack.c.l.b16 %v4366
      %v4446 = vunpack.c.l.b16 %v4367
      %v4447 = vunpack.c.l.b16 %v4368
      %v4448 = vunpack.c.l.b16 %v4369
      %v4449 = vunpack.c.l.b16 %v4370
      %v4450 = vunpack.c.l.b16 %v4371
      %v4451 = vunpack.c.l.b16 %v4372
      %v4452 = vunpack.c.l.b16 %v4373
      %v4453 = vunpack.c.l.b16 %v4374
      %v4454 = vunpack.c.l.b16 %v4375
      %v4455 = vunpack.c.l.b16 %v4376
      %v4456 = vunpack.c.l.b16 %v4377
      %v4457 = vunpack.c.l.b16 %v4378
      %v4458 = vunpack.c.l.b16 %v4379
      %v4459 = vunpack.c.l.b16 %v4380
      %v4460 = vunpack.c.l.b16 %v4381
      %v4461 = vunpack.c.l.b16 %v4382
      %v4462 = vunpack.c.l.b16 %v4383
      %v4463 = vunpack.c.l.b16 %v4384
      %v4464 = vunpack.c.l.b16 %v4385
      %v4465 = vunpack.c.l.b16 %v4386
      %v4466 = vunpack.c.l.b16 %v4387
      %v4467 = vpack.c.b16 %v4432, %v4431
      %v4468 = vpack.c.b16 %v4434, %v4433
      %v4469 = vpack.c.b16 %v4436, %v4435
      %v4470 = vpack.c.b16 %v4438, %v4437
      %v4471 = vpack.c.b16 %v4440, %v4439
      %v4472 = vpack.c.b16 %v4442, %v4441
      %v4473 = vpack.c.b16 %v4444, %v4443
      %v4474 = vpack.c.b16 %v4446, %v4445
      %v4475 = vpack.c.b16 %v4448, %v4447
      %v4476 = vpack.c.b16 %v4450, %v4449
      %v4477 = vpack.c.b16 %v4452, %v4451
      %v4478 = vpack.c.b16 %v4454, %v4453
      %v4479 = vpack.c.b16 %v4456, %v4455
      %v4480 = vpack.c.b16 %v4458, %v4457
      %v4481 = vpack.c.b16 %v4460, %v4459
      %v4482 = vpack.c.b16 %v4462, %v4461
      %v4483 = vpack.c.b16 %v4464, %v4463
      %v4484 = vpack.c.b16 %v4466, %v4465
      %v4504 = vsel %vm658, %v4300, 0
      %v4507 = vsel %vm658, %v4303, 0
      %v4510 = vsel %vm658, %v4306, 0
      %v4513 = vsel %vm658, %v4309, 0
      %v4516 = vsel %vm658, %v4312, 0
      %v4519 = vsel %vm658, %v4315, 0
      %v4522 = vsel %vm658, %v4318, 0
      %v4525 = vsel %vm658, %v4321, 0
      %v4528 = vsel %vm658, %v4324, 0
      %v4531 = vsel %vm658, %v4327, 0
      %v4534 = vsel %vm658, %v4330, 0
      %v4537 = vsel %vm658, %v4333, 0
      %v4540 = vsel %vm658, %v4336, 0
      %v4543 = vsel %vm658, %v4339, 0
      %v4546 = vsel %vm658, %v4342, 0
      %v4549 = vsel %vm658, %v4345, 0
      %v4552 = vsel %vm658, %v4348, 0
      %v4555 = vsel %vm658, %v4351, 0
      %4557 = vmatprep.subr.bf16.mxu0 0
      %4558 = vmatpush1.bf16.msra.mxu0 %v4467
      %4559 = vmatprep.subr.bf16.mxu0 0
      %4560 = vmatpush1.bf16.msra.mxu0 %v4468
      %4561 = vmatprep.subr.bf16.mxu0 0
      %4562 = vmatpush1.bf16.msra.mxu0 %v4469
      %4563 = vmatprep.subr.bf16.mxu0 0
      %4564 = vmatpush1.bf16.msra.mxu0 %v4470
      %4565 = vmatprep.subr.bf16.mxu0 0
      %4566 = vmatpush1.bf16.msra.mxu0 %v4471
      %4567 = vmatprep.subr.bf16.mxu0 0
      %4568 = vmatpush1.bf16.msra.mxu0 %v4472
      %4569 = vmatprep.subr.bf16.mxu0 0
      %4570 = vmatpush1.bf16.msra.mxu0 %v4473
      %4571 = vmatprep.subr.bf16.mxu0 0
      %4572 = vmatpush1.bf16.msra.mxu0 %v4474
      %4573 = vmatprep.subr.bf16.mxu0 0
      %4574 = vmatpush1.bf16.msra.mxu0 %v4475
      %4575 = vmatprep.subr.bf16.mxu0 0
      %4576 = vmatpush1.bf16.msra.mxu0 %v4476
      %4577 = vmatprep.subr.bf16.mxu0 0
      %4578 = vmatpush1.bf16.msra.mxu0 %v4477
      %4579 = vmatprep.subr.bf16.mxu0 0
      %4580 = vmatpush1.bf16.msra.mxu0 %v4478
      %4581 = vmatprep.subr.bf16.mxu0 0
      %4582 = vmatpush1.bf16.msra.mxu0 %v4479
      %4583 = vmatprep.subr.bf16.mxu0 0
      %4584 = vmatpush1.bf16.msra.mxu0 %v4480
      %4585 = vmatprep.subr.bf16.mxu0 0
      %4586 = vmatpush1.bf16.msra.mxu0 %v4481
      %4587 = vmatprep.subr.bf16.mxu0 0
      %4588 = vmatpush1.bf16.msra.mxu0 %v4482
      %4589 = vmatprep.mubr.bf16.mxu0 %v4299
      %4590 = vmatmul.mubr.bf16.gmra.mrb[0].mxu0 %v4298
      %v4591 = vpop.f32.mrb[0].mxu0
      %v4592 = vadd.f32 %v4393, %v4591
      %v4593 = vpop.f32.mrb[0].mxu0
      %v4594 = vpop.f32.mrb[0].mxu0
      %v4595 = vadd.f32 %v4393, %v4594
      %v4596 = vpop.f32.mrb[0].mxu0
      %4597 = vmatprep.mubr.bf16.mxu0 %v4302
      %4598 = vmatmul.mubr.bf16.gmra.mrb[0].mxu0 %v4301
      %v4599 = vpop.f32.mrb[0].mxu0
      %v4600 = vadd.f32 %v4393, %v4599
      %v4601 = vpop.f32.mrb[0].mxu0
      %v4602 = vpop.f32.mrb[0].mxu0
      %v4603 = vadd.f32 %v4393, %v4602
      %v4604 = vpop.f32.mrb[0].mxu0
      %4605 = vmatprep.mubr.bf16.mxu0 %v4305
      %4606 = vmatmul.mubr.bf16.gmra.mrb[0].mxu0 %v4304
      %v4607 = vpop.f32.mrb[0].mxu0
      %v4608 = vadd.f32 %v4393, %v4607
      %v4609 = vpop.f32.mrb[0].mxu0
      %v4610 = vpop.f32.mrb[0].mxu0
      %v4611 = vadd.f32 %v4393, %v4610
      %v4612 = vpop.f32.mrb[0].mxu0
      %4613 = vmatprep.mubr.bf16.mxu0 %v4308
      %4614 = vmatmul.mubr.bf16.gmra.mrb[0].mxu0 %v4307
      %v4615 = vpop.f32.mrb[0].mxu0
      %v4616 = vadd.f32 %v4393, %v4615
      %v4617 = vpop.f32.mrb[0].mxu0
      %v4618 = vpop.f32.mrb[0].mxu0
      %v4619 = vadd.f32 %v4393, %v4618
      %v4620 = vpop.f32.mrb[0].mxu0
      %4621 = vmatprep.mubr.bf16.mxu0 %v4311
      %4622 = vmatmul.mubr.bf16.gmra.mrb[0].mxu0 %v4310
      %v4623 = vpop.f32.mrb[0].mxu0
      %v4624 = vadd.f32 %v4393, %v4623
      %v4625 = vpop.f32.mrb[0].mxu0
      %v4626 = vpop.f32.mrb[0].mxu0
      %v4627 = vadd.f32 %v4393, %v4626
      %v4628 = vpop.f32.mrb[0].mxu0
      %4629 = vmatprep.mubr.bf16.mxu0 %v4314
      %4630 = vmatmul.mubr.bf16.gmra.mrb[0].mxu0 %v4313
      %v4631 = vpop.f32.mrb[0].mxu0
      %v4632 = vadd.f32 %v4393, %v4631
      %v4633 = vpop.f32.mrb[0].mxu0
      %v4634 = vpop.f32.mrb[0].mxu0
      %v4635 = vadd.f32 %v4393, %v4634
      %v4636 = vpop.f32.mrb[0].mxu0
      %4637 = vmatprep.mubr.bf16.mxu0 %v4317
      %4638 = vmatmul.mubr.bf16.gmra.mrb[0].mxu0 %v4316
      %v4639 = vpop.f32.mrb[0].mxu0
      %v4640 = vadd.f32 %v4393, %v4639
      %v4641 = vpop.f32.mrb[0].mxu0
      %v4642 = vpop.f32.mrb[0].mxu0
      %v4643 = vadd.f32 %v4393, %v4642
      %v4644 = vpop.f32.mrb[0].mxu0
      %4645 = vmatprep.mubr.bf16.mxu0 %v4320
      %4646 = vmatmul.mubr.bf16.gmra.mrb[0].mxu0 %v4319
      %v4647 = vpop.f32.mrb[0].mxu0
      %v4648 = vadd.f32 %v4393, %v4647
      %v4649 = vpop.f32.mrb[0].mxu0
      %v4650 = vpop.f32.mrb[0].mxu0
      %v4651 = vadd.f32 %v4393, %v4650
      %v4652 = vpop.f32.mrb[0].mxu0
      %4653 = vmatprep.mubr.bf16.mxu0 %v4323
      %4654 = vmatmul.mubr.bf16.gmra.mrb[0].mxu0 %v4322
      %v4655 = vpop.f32.mrb[0].mxu0
      %v4656 = vadd.f32 %v4393, %v4655
      %v4657 = vpop.f32.mrb[0].mxu0
      %v4658 = vpop.f32.mrb[0].mxu0
      %v4659 = vadd.f32 %v4393, %v4658
      %v4660 = vpop.f32.mrb[0].mxu0
      %4661 = vmatprep.mubr.bf16.mxu0 %v4326
      %4662 = vmatmul.mubr.bf16.gmra.mrb[0].mxu0 %v4325
      %v4663 = vpop.f32.mrb[0].mxu0
      %v4664 = vadd.f32 %v4393, %v4663
      %v4665 = vpop.f32.mrb[0].mxu0
      %v4666 = vpop.f32.mrb[0].mxu0
      %v4667 = vadd.f32 %v4393, %v4666
      %v4668 = vpop.f32.mrb[0].mxu0
      %4669 = vmatprep.mubr.bf16.mxu0 %v4329
      %4670 = vmatmul.mubr.bf16.gmra.mrb[0].mxu0 %v4328
      %v4671 = vpop.f32.mrb[0].mxu0
      %v4672 = vadd.f32 %v4393, %v4671
      %v4673 = vpop.f32.mrb[0].mxu0
      %v4674 = vpop.f32.mrb[0].mxu0
      %v4675 = vadd.f32 %v4393, %v4674
      %v4676 = vpop.f32.mrb[0].mxu0
      %4677 = vmatprep.mubr.bf16.mxu0 %v4332
      %4678 = vmatmul.mubr.bf16.gmra.mrb[0].mxu0 %v4331
      %v4679 = vpop.f32.mrb[0].mxu0
      %v4680 = vadd.f32 %v4393, %v4679
      %v4681 = vpop.f32.mrb[0].mxu0
      %v4682 = vpop.f32.mrb[0].mxu0
      %v4683 = vadd.f32 %v4393, %v4682
      %v4684 = vpop.f32.mrb[0].mxu0
      %4685 = vmatprep.mubr.bf16.mxu0 %v4335
      %4686 = vmatmul.mubr.bf16.gmra.mrb[0].mxu0 %v4334
      %v4687 = vpop.f32.mrb[0].mxu0
      %v4688 = vadd.f32 %v4393, %v4687
      %v4689 = vpop.f32.mrb[0].mxu0
      %v4690 = vpop.f32.mrb[0].mxu0
      %v4691 = vadd.f32 %v4393, %v4690
      %v4692 = vpop.f32.mrb[0].mxu0
      %4693 = vmatprep.mubr.bf16.mxu0 %v4338
      %4694 = vmatmul.mubr.bf16.gmra.mrb[0].mxu0 %v4337
      %v4695 = vpop.f32.mrb[0].mxu0
      %v4696 = vadd.f32 %v4393, %v4695
      %v4697 = vpop.f32.mrb[0].mxu0
      %v4698 = vpop.f32.mrb[0].mxu0
      %v4699 = vadd.f32 %v4393, %v4698
      %v4700 = vpop.f32.mrb[0].mxu0
      %4701 = vmatprep.mubr.bf16.mxu0 %v4341
      %4702 = vmatmul.mubr.bf16.gmra.mrb[0].mxu0 %v4340
      %v4703 = vpop.f32.mrb[0].mxu0
      %v4704 = vadd.f32 %v4393, %v4703
      %v4705 = vpop.f32.mrb[0].mxu0
      %v4706 = vpop.f32.mrb[0].mxu0
      %v4707 = vadd.f32 %v4393, %v4706
      %v4708 = vpop.f32.mrb[0].mxu0
      %4709 = vmatprep.mubr.bf16.mxu0 %v4344
      %4710 = vmatmul.mubr.bf16.gmra.mrb[0].mxu0 %v4343
      %v4711 = vpop.f32.mrb[0].mxu0
      %v4712 = vadd.f32 %v4393, %v4711
      %v4713 = vpop.f32.mrb[0].mxu0
      %v4714 = vpop.f32.mrb[0].mxu0
      %v4715 = vadd.f32 %v4393, %v4714
      %v4716 = vpop.f32.mrb[0].mxu0
      %4717 = vmatprep.mubr.bf16.mxu0 %v4347
      %4718 = vmatmul.mubr.bf16.gmra.mrb[0].mxu0 %v4346
      %v4719 = vpop.f32.mrb[0].mxu0
      %v4720 = vadd.f32 %v4393, %v4719
      %v4721 = vpop.f32.mrb[0].mxu0
      %v4722 = vpop.f32.mrb[0].mxu0
      %v4723 = vadd.f32 %v4393, %v4722
      %v4724 = vpop.f32.mrb[0].mxu0
      %4725 = vmatprep.mubr.bf16.mxu0 %v4350
      %4726 = vmatmul.mubr.bf16.gmra.mrb[0].mxu0 %v4349
      %v4727 = vpop.f32.mrb[0].mxu0
      %v4728 = vadd.f32 %v4393, %v4727
      %v4729 = vpop.f32.mrb[0].mxu0
      %v4730 = vpop.f32.mrb[0].mxu0
      %v4731 = vadd.f32 %v4393, %v4730
      %v4732 = vpop.f32.mrb[0].mxu0
      %4733 = vdwg.mxu0
      %4734 = vmatprep.subr.bf16.mxu0 0
      %4735 = vmatpush1.bf16.msra.mxu0 %v4483
      %4736 = vmatprep.subr.bf16.mxu0 0
      %4737 = vmatpush1.bf16.msra.mxu0 %v4484
      %4738 = vmatprep.subr.bf16.mxu0 0
      %4739 = vmatpush1.bf16.msra.mxu0 0
      %4740 = vmatprep.subr.bf16.mxu0 0
      %4741 = vmatpush1.bf16.msra.mxu0 0
      %4742 = vmatprep.subr.bf16.mxu0 0
      %4743 = vmatpush1.bf16.msra.mxu0 0
      %4744 = vmatprep.subr.bf16.mxu0 0
      %4745 = vmatpush1.bf16.msra.mxu0 0
      %4746 = vmatprep.subr.bf16.mxu0 0
      %4747 = vmatpush1.bf16.msra.mxu0 0
      %4748 = vmatprep.subr.bf16.mxu0 0
      %4749 = vmatpush1.bf16.msra.mxu0 0
      %4750 = vmatprep.subr.bf16.mxu0 0
      %4751 = vmatpush1.bf16.msra.mxu0 0
      %4752 = vmatprep.subr.bf16.mxu0 0
      %4753 = vmatpush1.bf16.msra.mxu0 0
      %4754 = vmatprep.subr.bf16.mxu0 0
      %4755 = vmatpush1.bf16.msra.mxu0 0
      %4756 = vmatprep.subr.bf16.mxu0 0
      %4757 = vmatpush1.bf16.msra.mxu0 0
      %4758 = vmatprep.subr.bf16.mxu0 0
      %4759 = vmatpush1.bf16.msra.mxu0 0
      %4760 = vmatprep.subr.bf16.mxu0 0
      %4761 = vmatpush1.bf16.msra.mxu0 0
      %4762 = vmatprep.subr.bf16.mxu0 0
      %4763 = vmatpush1.bf16.msra.mxu0 0
      %4764 = vmatprep.subr.bf16.mxu0 0
      %4765 = vmatpush1.bf16.msra.mxu0 0
      %4766 = vmatprep.mubr.bf16.mxu0 0
      %4767 = vmatmul.mubr.bf16.gmra.mrb[0].mxu0 %v4504
      %v4768 = vpop.f32.mrb[0].mxu0
      %v4769 = vadd.f32 %v4592, %v4768
      %v4770 = vpop.f32.mrb[0].mxu0
      %v4771 = vpop.f32.mrb[0].mxu0
      %v4772 = vadd.f32 %v4595, %v4771
      %v4773 = vpop.f32.mrb[0].mxu0
      %4774 = vmatprep.mubr.bf16.mxu0 0
      %4775 = vmatmul.mubr.bf16.gmra.mrb[0].mxu0 %v4507
      %v4776 = vpop.f32.mrb[0].mxu0
      %v4777 = vadd.f32 %v4600, %v4776
      %v4778 = vpop.f32.mrb[0].mxu0
      %v4779 = vpop.f32.mrb[0].mxu0
      %v4780 = vadd.f32 %v4603, %v4779
      %v4781 = vpop.f32.mrb[0].mxu0
      %4782 = vmatprep.mubr.bf16.mxu0 0
      %4783 = vmatmul.mubr.bf16.gmra.mrb[0].mxu0 %v4510
      %v4784 = vpop.f32.mrb[0].mxu0
      %v4785 = vadd.f32 %v4608, %v4784
      %v4786 = vpop.f32.mrb[0].mxu0
      %v4787 = vpop.f32.mrb[0].mxu0
      %v4788 = vadd.f32 %v4611, %v4787
      %v4789 = vpop.f32.mrb[0].mxu0
      %4790 = vmatprep.mubr.bf16.mxu0 0
      %4791 = vmatmul.mubr.bf16.gmra.mrb[0].mxu0 %v4513
      %v4792 = vpop.f32.mrb[0].mxu0
      %v4793 = vadd.f32 %v4616, %v4792
      %v4794 = vpop.f32.mrb[0].mxu0
      %v4795 = vpop.f32.mrb[0].mxu0
      %v4796 = vadd.f32 %v4619, %v4795
      %v4797 = vpop.f32.mrb[0].mxu0
      %4798 = vmatprep.mubr.bf16.mxu0 0
      %4799 = vmatmul.mubr.bf16.gmra.mrb[0].mxu0 %v4516
      %v4800 = vpop.f32.mrb[0].mxu0
      %v4801 = vadd.f32 %v4624, %v4800
      %v4802 = vpop.f32.mrb[0].mxu0
      %v4803 = vpop.f32.mrb[0].mxu0
      %v4804 = vadd.f32 %v4627, %v4803
      %v4805 = vpop.f32.mrb[0].mxu0
      %4806 = vmatprep.mubr.bf16.mxu0 0
      %4807 = vmatmul.mubr.bf16.gmra.mrb[0].mxu0 %v4519
      %v4808 = vpop.f32.mrb[0].mxu0
      %v4809 = vadd.f32 %v4632, %v4808
      %v4810 = vpop.f32.mrb[0].mxu0
      %v4811 = vpop.f32.mrb[0].mxu0
      %v4812 = vadd.f32 %v4635, %v4811
      %v4813 = vpop.f32.mrb[0].mxu0
      %4814 = vmatprep.mubr.bf16.mxu0 0
      %4815 = vmatmul.mubr.bf16.gmra.mrb[0].mxu0 %v4522
      %v4816 = vpop.f32.mrb[0].mxu0
      %v4817 = vadd.f32 %v4640, %v4816
      %v4818 = vpop.f32.mrb[0].mxu0
      %v4819 = vpop.f32.mrb[0].mxu0
      %v4820 = vadd.f32 %v4643, %v4819
      %v4821 = vpop.f32.mrb[0].mxu0
      %4822 = vmatprep.mubr.bf16.mxu0 0
      %4823 = vmatmul.mubr.bf16.gmra.mrb[0].mxu0 %v4525
      %v4824 = vpop.f32.mrb[0].mxu0
      %v4825 = vadd.f32 %v4648, %v4824
      %v4826 = vpop.f32.mrb[0].mxu0
      %v4827 = vpop.f32.mrb[0].mxu0
      %v4828 = vadd.f32 %v4651, %v4827
      %v4829 = vpop.f32.mrb[0].mxu0
      %4830 = vmatprep.mubr.bf16.mxu0 0
      %4831 = vmatmul.mubr.bf16.gmra.mrb[0].mxu0 %v4528
      %v4832 = vpop.f32.mrb[0].mxu0
      %v4833 = vadd.f32 %v4656, %v4832
      %v4834 = vpop.f32.mrb[0].mxu0
      %v4835 = vpop.f32.mrb[0].mxu0
      %v4836 = vadd.f32 %v4659, %v4835
      %v4837 = vpop.f32.mrb[0].mxu0
      %4838 = vmatprep.mubr.bf16.mxu0 0
      %4839 = vmatmul.mubr.bf16.gmra.mrb[0].mxu0 %v4531
      %v4840 = vpop.f32.mrb[0].mxu0
      %v4841 = vadd.f32 %v4664, %v4840
      %v4842 = vpop.f32.mrb[0].mxu0
      %v4843 = vpop.f32.mrb[0].mxu0
      %v4844 = vadd.f32 %v4667, %v4843
      %v4845 = vpop.f32.mrb[0].mxu0
      %4846 = vmatprep.mubr.bf16.mxu0 0
      %4847 = vmatmul.mubr.bf16.gmra.mrb[0].mxu0 %v4534
      %v4848 = vpop.f32.mrb[0].mxu0
      %v4849 = vadd.f32 %v4672, %v4848
      %v4850 = vpop.f32.mrb[0].mxu0
      %v4851 = vpop.f32.mrb[0].mxu0
      %v4852 = vadd.f32 %v4675, %v4851
      %v4853 = vpop.f32.mrb[0].mxu0
      %4854 = vmatprep.mubr.bf16.mxu0 0
      %4855 = vmatmul.mubr.bf16.gmra.mrb[0].mxu0 %v4537
      %v4856 = vpop.f32.mrb[0].mxu0
      %v4857 = vadd.f32 %v4680, %v4856
      %v4858 = vpop.f32.mrb[0].mxu0
      %v4859 = vpop.f32.mrb[0].mxu0
      %v4860 = vadd.f32 %v4683, %v4859
      %v4861 = vpop.f32.mrb[0].mxu0
      %4862 = vmatprep.mubr.bf16.mxu0 0
      %4863 = vmatmul.mubr.bf16.gmra.mrb[0].mxu0 %v4540
      %v4864 = vpop.f32.mrb[0].mxu0
      %v4865 = vadd.f32 %v4688, %v4864
      %v4866 = vpop.f32.mrb[0].mxu0
      %v4867 = vpop.f32.mrb[0].mxu0
      %v4868 = vadd.f32 %v4691, %v4867
      %v4869 = vpop.f32.mrb[0].mxu0
      %4870 = vmatprep.mubr.bf16.mxu0 0
      %4871 = vmatmul.mubr.bf16.gmra.mrb[0].mxu0 %v4543
      %v4872 = vpop.f32.mrb[0].mxu0
      %v4873 = vadd.f32 %v4696, %v4872
      %v4874 = vpop.f32.mrb[0].mxu0
      %v4875 = vpop.f32.mrb[0].mxu0
      %v4876 = vadd.f32 %v4699, %v4875
      %v4877 = vpop.f32.mrb[0].mxu0
      %4878 = vmatprep.mubr.bf16.mxu0 0
      %4879 = vmatmul.mubr.bf16.gmra.mrb[0].mxu0 %v4546
      %v4880 = vpop.f32.mrb[0].mxu0
      %v4881 = vadd.f32 %v4704, %v4880
      %v4882 = vpop.f32.mrb[0].mxu0
      %v4883 = vpop.f32.mrb[0].mxu0
      %v4884 = vadd.f32 %v4707, %v4883
      %v4885 = vpop.f32.mrb[0].mxu0
      %4886 = vmatprep.mubr.bf16.mxu0 0
      %4887 = vmatmul.mubr.bf16.gmra.mrb[0].mxu0 %v4549
      %v4888 = vpop.f32.mrb[0].mxu0
      %v4889 = vadd.f32 %v4712, %v4888
      %v4890 = vpop.f32.mrb[0].mxu0
      %v4891 = vpop.f32.mrb[0].mxu0
      %v4892 = vadd.f32 %v4715, %v4891
      %v4893 = vpop.f32.mrb[0].mxu0
      %4894 = vmatprep.mubr.bf16.mxu0 0
      %4895 = vmatmul.mubr.bf16.gmra.mrb[0].mxu0 %v4552
      %v4896 = vpop.f32.mrb[0].mxu0
      %v4897 = vadd.f32 %v4720, %v4896
      %v4898 = vpop.f32.mrb[0].mxu0
      %v4899 = vpop.f32.mrb[0].mxu0
      %v4900 = vadd.f32 %v4723, %v4899
      %v4901 = vpop.f32.mrb[0].mxu0
      %4902 = vmatprep.mubr.bf16.mxu0 0
      %4903 = vmatmul.mubr.bf16.gmra.mrb[0].mxu0 %v4555
      %v4904 = vpop.f32.mrb[0].mxu0
      %v4905 = vadd.f32 %v4728, %v4904
      %v4906 = vpop.f32.mrb[0].mxu0
      %v4907 = vpop.f32.mrb[0].mxu0
      %v4908 = vadd.f32 %v4731, %v4907
      %v4909 = vpop.f32.mrb[0].mxu0
      %4910 = vdwg.mxu0
      %v4911 = vmax.f32 %v4769, 0.0
      %v4912 = vmax.f32 %v4772, 0.0
      %v4913 = vmax.f32 %v4777, 0.0
      %v4914 = vmax.f32 %v4780, 0.0
      %v4915 = vmax.f32 %v4785, 0.0
      %v4916 = vmax.f32 %v4788, 0.0
      %v4917 = vmax.f32 %v4793, 0.0
      %v4918 = vmax.f32 %v4796, 0.0
      %v4919 = vmax.f32 %v4801, 0.0
      %v4920 = vmax.f32 %v4804, 0.0
      %v4921 = vmax.f32 %v4809, 0.0
      %v4922 = vmax.f32 %v4812, 0.0
      %v4923 = vmax.f32 %v4817, 0.0
      %v4924 = vmax.f32 %v4820, 0.0
      %v4925 = vmax.f32 %v4825, 0.0
      %v4926 = vmax.f32 %v4828, 0.0
      %v4927 = vmax.f32 %v4833, 0.0
      %v4928 = vmax.f32 %v4836, 0.0
      %v4929 = vmax.f32 %v4841, 0.0
      %v4930 = vmax.f32 %v4844, 0.0
      %v4931 = vmax.f32 %v4849, 0.0
      %v4932 = vmax.f32 %v4852, 0.0
      %v4933 = vmax.f32 %v4857, 0.0
      %v4934 = vmax.f32 %v4860, 0.0
      %v4935 = vmax.f32 %v4865, 0.0
      %v4936 = vmax.f32 %v4868, 0.0
      %v4937 = vmax.f32 %v4873, 0.0
      %v4938 = vmax.f32 %v4876, 0.0
      %v4939 = vmax.f32 %v4881, 0.0
      %v4940 = vmax.f32 %v4884, 0.0
      %v4941 = vmax.f32 %v4889, 0.0
      %v4942 = vmax.f32 %v4892, 0.0
      %v4943 = vmax.f32 %v4897, 0.0
      %v4944 = vmax.f32 %v4900, 0.0
      %v4945 = vmax.f32 %v4905, 0.0
      %v4946 = vmax.f32 %v4908, 0.0
      %v4947 = vld [vmem:[%s6] sm:$0xff]
      %v4948 = vld [vmem:[%s6 + $0x8] sm:$0xf]
      %v4949 = vld [vmem:[%s6 + $0xc] sm:$0xff]
      %v4950 = vld [vmem:[%s6 + $0x14] sm:$0xf]
      %v4951 = vld [vmem:[%s6 + $0x18] sm:$0xff]
      %v4952 = vld [vmem:[%s6 + $0x20] sm:$0xf]
      %v4953 = vld [vmem:[%s6 + $0x24] sm:$0xff]
      %v4954 = vld [vmem:[%s6 + $0x2c] sm:$0xf]
      %v4955 = vld [vmem:[%s6 + $0x30] sm:$0xff]
      %v4956 = vld [vmem:[%s6 + $0x38] sm:$0xf]
      %v4957 = vld [vmem:[%s6 + $0x3c] sm:$0xff]
      %v4958 = vld [vmem:[%s6 + $0x44] sm:$0xf]
      %v4959 = vld [vmem:[%s6 + $0x48] sm:$0xff]
      %v4960 = vld [vmem:[%s6 + $0x50] sm:$0xf]
      %v4961 = vld [vmem:[%s6 + $0x54] sm:$0xff]
      %v4962 = vld [vmem:[%s6 + $0x5c] sm:$0xf]
      %v4963 = vld [vmem:[%s6 + $0x60] sm:$0xff]
      %v4964 = vld [vmem:[%s6 + $0x68] sm:$0xf]
      %v4965 = vld [vmem:[%s6 + $0x6c] sm:$0xff]
      %v4966 = vld [vmem:[%s6 + $0x74] sm:$0xf]
      %v4967 = vld [vmem:[%s6 + $0x78] sm:$0xff]
      %v4968 = vld [vmem:[%s6 + $0x80] sm:$0xf]
      %v4969 = vld [vmem:[%s6 + $0x84] sm:$0xff]
      %v4970 = vld [vmem:[%s6 + $0x8c] sm:$0xf]
      %v4971 = vld [vmem:[%s6 + $0x90] sm:$0x33]
      %v4972 = vld [vmem:[%s6 + $0x98] sm:$0x3]
      %v4973 = vpack.c.bf16 %v4912, %v4911
      %v4974 = vpack.c.bf16 %v4914, %v4913
      %v4975 = vpack.c.bf16 %v4916, %v4915
      %v4976 = vpack.c.bf16 %v4918, %v4917
      %v4977 = vpack.c.bf16 %v4920, %v4919
      %v4978 = vpack.c.bf16 %v4922, %v4921
      %v4979 = vpack.c.bf16 %v4924, %v4923
      %v4980 = vpack.c.bf16 %v4926, %v4925
      %v4981 = vpack.c.bf16 %v4928, %v4927
      %v4982 = vpack.c.bf16 %v4930, %v4929
      %v4983 = vpack.c.bf16 %v4932, %v4931
      %v4984 = vpack.c.bf16 %v4934, %v4933
      %v4985 = vpack.c.bf16 %v4936, %v4935
      %v4986 = vpack.c.bf16 %v4938, %v4937
      %v4987 = vpack.c.bf16 %v4940, %v4939
      %v4988 = vpack.c.bf16 %v4942, %v4941
      %v4989 = vpack.c.bf16 %v4944, %v4943
      %v4990 = vpack.c.bf16 %v4946, %v4945
      %v5017 = vunpack.c.l.b16 %v4947
      %v5018 = vunpack.c.h.b16 %v4947
      %v5019 = vunpack.c.l.b16 %v4948
      %v5020 = vunpack.c.l.b16 %v4949
      %v5021 = vunpack.c.h.b16 %v4949
      %v5022 = vunpack.c.l.b16 %v4950
      %v5023 = vunpack.c.l.b16 %v4951
      %v5024 = vunpack.c.h.b16 %v4951
      %v5025 = vunpack.c.l.b16 %v4952
      %v5026 = vunpack.c.l.b16 %v4953
      %v5027 = vunpack.c.h.b16 %v4953
      %v5028 = vunpack.c.l.b16 %v4954
      %v5029 = vunpack.c.l.b16 %v4955
      %v5030 = vunpack.c.h.b16 %v4955
      %v5031 = vunpack.c.l.b16 %v4956
      %v5032 = vunpack.c.l.b16 %v4957
      %v5033 = vunpack.c.h.b16 %v4957
      %v5034 = vunpack.c.l.b16 %v4958
      %v5035 = vunpack.c.l.b16 %v4959
      %v5036 = vunpack.c.h.b16 %v4959
      %v5037 = vunpack.c.l.b16 %v4960
      %v5038 = vunpack.c.l.b16 %v4961
      %v5039 = vunpack.c.h.b16 %v4961
      %v5040 = vunpack.c.l.b16 %v4962
      %v5041 = vunpack.c.l.b16 %v4963
      %v5042 = vunpack.c.h.b16 %v4963
      %v5043 = vunpack.c.l.b16 %v4964
      %v5044 = vunpack.c.l.b16 %v4965
      %v5045 = vunpack.c.h.b16 %v4965
      %v5046 = vunpack.c.l.b16 %v4966
      %v5047 = vunpack.c.l.b16 %v4967
      %v5048 = vunpack.c.h.b16 %v4967
      %v5049 = vunpack.c.l.b16 %v4968
      %v5050 = vunpack.c.l.b16 %v4969
      %v5051 = vunpack.c.h.b16 %v4969
      %v5052 = vunpack.c.l.b16 %v4970
      %v5053 = vunpack.c.l.b16 %v4971
      %v5054 = vunpack.c.h.b16 %v4971
      %v5055 = vunpack.c.l.b16 %v4972
      %v5056 = vpack.c.b16 %v5020, %v5017
      %v5057 = vpack.c.b16 %v5021, %v5018
      %v5058 = vpack.c.b16 %v5022, %v5019
      %v5059 = vpack.c.b16 %v5026, %v5023
      %v5060 = vpack.c.b16 %v5027, %v5024
      %v5061 = vpack.c.b16 %v5028, %v5025
      %v5062 = vpack.c.b16 %v5032, %v5029
      %v5063 = vpack.c.b16 %v5033, %v5030
      %v5064 = vpack.c.b16 %v5034, %v5031
      %v5065 = vpack.c.b16 %v5038, %v5035
      %v5066 = vpack.c.b16 %v5039, %v5036
      %v5067 = vpack.c.b16 %v5040, %v5037
      %v5068 = vpack.c.b16 %v5044, %v5041
      %v5069 = vpack.c.b16 %v5045, %v5042
      %v5070 = vpack.c.b16 %v5046, %v5043
      %v5071 = vpack.c.b16 %v5050, %v5047
      %v5072 = vpack.c.b16 %v5051, %v5048
      %v5073 = vpack.c.b16 %v5052, %v5049
      %v5074 = vpack.c.b16 %v5053, %v5053
      %v5075 = vpack.c.b16 %v5054, %v5054
      %v5076 = vpack.c.b16 %v5055, %v5055
      %vm5091 = vcmask 244736
      %v5093 = vsel %vm5091, %v5058, 0
      %v5096 = vsel %vm5091, %v5061, 0
      %v5099 = vsel %vm5091, %v5064, 0
      %v5102 = vsel %vm5091, %v5067, 0
      %v5105 = vsel %vm5091, %v5070, 0
      %v5108 = vsel %vm5091, %v5073, 0
      %v5111 = vsel %vm5091, %v5076, 0
      %v5114 = vsel %vm743, %v4990, 0
      %5116 = vmatprep.subr.bf16.mxu0 0
      %5117 = vmatpush1.bf16.msra.mxu0 %v4973
      %5118 = vmatprep.subr.bf16.mxu0 0
      %5119 = vmatpush1.bf16.msra.mxu0 %v4974
      %5120 = vmatprep.subr.bf16.mxu0 0
      %5121 = vmatpush1.bf16.msra.mxu0 %v4975
      %5122 = vmatprep.subr.bf16.mxu0 0
      %5123 = vmatpush1.bf16.msra.mxu0 %v4976
      %5124 = vmatprep.subr.bf16.mxu0 0
      %5125 = vmatpush1.bf16.msra.mxu0 %v4977
      %5126 = vmatprep.subr.bf16.mxu0 0
      %5127 = vmatpush1.bf16.msra.mxu0 %v4978
      %5128 = vmatprep.subr.bf16.mxu0 0
      %5129 = vmatpush1.bf16.msra.mxu0 %v4979
      %5130 = vmatprep.subr.bf16.mxu0 0
      %5131 = vmatpush1.bf16.msra.mxu0 %v4980
      %5132 = vmatprep.subr.bf16.mxu0 0
      %5133 = vmatpush1.bf16.msra.mxu0 %v4981
      %5134 = vmatprep.subr.bf16.mxu0 0
      %5135 = vmatpush1.bf16.msra.mxu0 %v4982
      %5136 = vmatprep.subr.bf16.mxu0 0
      %5137 = vmatpush1.bf16.msra.mxu0 %v4983
      %5138 = vmatprep.subr.bf16.mxu0 0
      %5139 = vmatpush1.bf16.msra.mxu0 %v4984
      %5140 = vmatprep.subr.bf16.mxu0 0
      %5141 = vmatpush1.bf16.msra.mxu0 %v4985
      %5142 = vmatprep.subr.bf16.mxu0 0
      %5143 = vmatpush1.bf16.msra.mxu0 %v4986
      %5144 = vmatprep.subr.bf16.mxu0 0
      %5145 = vmatpush1.bf16.msra.mxu0 %v4987
      %5146 = vmatprep.subr.bf16.mxu0 0
      %5147 = vmatpush1.bf16.msra.mxu0 %v4988
      %5148 = vmatprep.mubr.bf16.mxu0 %v5057
      %5149 = vmatmul.mubr.bf16.gmra.mrb[0].mxu0 %v5056
      %v5150 = vpop.f32.mrb[0].mxu0
      %v5151 = vadd.f32 0.0, %v5150
      %v5152 = vpop.f32.mrb[0].mxu0
      %v5153 = vpop.f32.mrb[0].mxu0
      %v5154 = vadd.f32 0.0, %v5153
      %v5155 = vpop.f32.mrb[0].mxu0
      %5156 = vmatprep.mubr.bf16.mxu0 %v5060
      %5157 = vmatmul.mubr.bf16.gmra.mrb[0].mxu0 %v5059
      %v5158 = vpop.f32.mrb[0].mxu0
      %v5159 = vadd.f32 0.0, %v5158
      %v5160 = vpop.f32.mrb[0].mxu0
      %v5161 = vpop.f32.mrb[0].mxu0
      %v5162 = vadd.f32 0.0, %v5161
      %v5163 = vpop.f32.mrb[0].mxu0
      %5164 = vmatprep.mubr.bf16.mxu0 %v5063
      %5165 = vmatmul.mubr.bf16.gmra.mrb[0].mxu0 %v5062
      %v5166 = vpop.f32.mrb[0].mxu0
      %v5167 = vadd.f32 0.0, %v5166
      %v5168 = vpop.f32.mrb[0].mxu0
      %v5169 = vpop.f32.mrb[0].mxu0
      %v5170 = vadd.f32 0.0, %v5169
      %v5171 = vpop.f32.mrb[0].mxu0
      %5172 = vmatprep.mubr.bf16.mxu0 %v5066
      %5173 = vmatmul.mubr.bf16.gmra.mrb[0].mxu0 %v5065
      %v5174 = vpop.f32.mrb[0].mxu0
      %v5175 = vadd.f32 0.0, %v5174
      %v5176 = vpop.f32.mrb[0].mxu0
      %v5177 = vpop.f32.mrb[0].mxu0
      %v5178 = vadd.f32 0.0, %v5177
      %v5179 = vpop.f32.mrb[0].mxu0
      %5180 = vmatprep.mubr.bf16.mxu0 %v5069
      %5181 = vmatmul.mubr.bf16.gmra.mrb[0].mxu0 %v5068
      %v5182 = vpop.f32.mrb[0].mxu0
      %v5183 = vadd.f32 0.0, %v5182
      %v5184 = vpop.f32.mrb[0].mxu0
      %v5185 = vpop.f32.mrb[0].mxu0
      %v5186 = vadd.f32 0.0, %v5185
      %v5187 = vpop.f32.mrb[0].mxu0
      %5188 = vmatprep.mubr.bf16.mxu0 %v5072
      %5189 = vmatmul.mubr.bf16.gmra.mrb[0].mxu0 %v5071
      %v5190 = vpop.f32.mrb[0].mxu0
      %v5191 = vadd.f32 0.0, %v5190
      %v5192 = vpop.f32.mrb[0].mxu0
      %v5193 = vpop.f32.mrb[0].mxu0
      %v5194 = vadd.f32 0.0, %v5193
      %v5195 = vpop.f32.mrb[0].mxu0
      %5196 = vmatprep.mubr.bf16.mxu0 %v5075
      %5197 = vmatmul.mubr.bf16.gmra.mrb[0].mxu0 %v5074
      %v5198 = vpop.f32.mrb[0].mxu0
      %v5199 = vadd.f32 0.0, %v5198
      %v5200 = vpop.f32.mrb[0].mxu0
      %v5201 = vpop.f32.mrb[0].mxu0
      %v5202 = vpop.f32.mrb[0].mxu0
      %5203 = vdwg.mxu0
      %5204 = vmatprep.subr.bf16.mxu0 0
      %5205 = vmatpush1.bf16.msra.mxu0 %v4989
      %5206 = vmatprep.subr.bf16.mxu0 0
      %5207 = vmatpush1.bf16.msra.mxu0 %v5114
      %5208 = vmatprep.subr.bf16.mxu0 0
      %5209 = vmatpush1.bf16.msra.mxu0 0
      %5210 = vmatprep.subr.bf16.mxu0 0
      %5211 = vmatpush1.bf16.msra.mxu0 0
      %5212 = vmatprep.subr.bf16.mxu0 0
      %5213 = vmatpush1.bf16.msra.mxu0 0
      %5214 = vmatprep.subr.bf16.mxu0 0
      %5215 = vmatpush1.bf16.msra.mxu0 0
      %5216 = vmatprep.subr.bf16.mxu0 0
      %5217 = vmatpush1.bf16.msra.mxu0 0
      %5218 = vmatprep.subr.bf16.mxu0 0
      %5219 = vmatpush1.bf16.msra.mxu0 0
      %5220 = vmatprep.subr.bf16.mxu0 0
      %5221 = vmatpush1.bf16.msra.mxu0 0
      %5222 = vmatprep.subr.bf16.mxu0 0
      %5223 = vmatpush1.bf16.msra.mxu0 0
      %5224 = vmatprep.subr.bf16.mxu0 0
      %5225 = vmatpush1.bf16.msra.mxu0 0
      %5226 = vmatprep.subr.bf16.mxu0 0
      %5227 = vmatpush1.bf16.msra.mxu0 0
      %5228 = vmatprep.subr.bf16.mxu0 0
      %5229 = vmatpush1.bf16.msra.mxu0 0
      %5230 = vmatprep.subr.bf16.mxu0 0
      %5231 = vmatpush1.bf16.msra.mxu0 0
      %5232 = vmatprep.subr.bf16.mxu0 0
      %5233 = vmatpush1.bf16.msra.mxu0 0
      %5234 = vmatprep.subr.bf16.mxu0 0
      %5235 = vmatpush1.bf16.msra.mxu0 0
      %5236 = vmatprep.mubr.bf16.mxu0 0
      %5237 = vmatmul.mubr.bf16.gmra.mrb[0].mxu0 %v5093
      %v5238 = vpop.f32.mrb[0].mxu0
      %v5239 = vadd.f32 %v5151, %v5238
      %v5240 = vpop.f32.mrb[0].mxu0
      %v5241 = vpop.f32.mrb[0].mxu0
      %v5242 = vadd.f32 %v5154, %v5241
      %v5243 = vpop.f32.mrb[0].mxu0
      %5244 = vmatprep.mubr.bf16.mxu0 0
      %5245 = vmatmul.mubr.bf16.gmra.mrb[0].mxu0 %v5096
      %v5246 = vpop.f32.mrb[0].mxu0
      %v5247 = vadd.f32 %v5159, %v5246
      %v5248 = vpop.f32.mrb[0].mxu0
      %v5249 = vpop.f32.mrb[0].mxu0
      %v5250 = vadd.f32 %v5162, %v5249
      %v5251 = vpop.f32.mrb[0].mxu0
      %5252 = vmatprep.mubr.bf16.mxu0 0
      %5253 = vmatmul.mubr.bf16.gmra.mrb[0].mxu0 %v5099
      %v5254 = vpop.f32.mrb[0].mxu0
      %v5255 = vadd.f32 %v5167, %v5254
      %v5256 = vpop.f32.mrb[0].mxu0
      %v5257 = vpop.f32.mrb[0].mxu0
      %v5258 = vadd.f32 %v5170, %v5257
      %v5259 = vpop.f32.mrb[0].mxu0
      %5260 = vmatprep.mubr.bf16.mxu0 0
      %5261 = vmatmul.mubr.bf16.gmra.mrb[0].mxu0 %v5102
      %v5262 = vpop.f32.mrb[0].mxu0
      %v5263 = vadd.f32 %v5175, %v5262
      %v5264 = vpop.f32.mrb[0].mxu0
      %v5265 = vpop.f32.mrb[0].mxu0
      %v5266 = vadd.f32 %v5178, %v5265
      %v5267 = vpop.f32.mrb[0].mxu0
      %5268 = vmatprep.mubr.bf16.mxu0 0
      %5269 = vmatmul.mubr.bf16.gmra.mrb[0].mxu0 %v5105
      %v5270 = vpop.f32.mrb[0].mxu0
      %v5271 = vadd.f32 %v5183, %v5270
      %v5272 = vpop.f32.mrb[0].mxu0
      %v5273 = vpop.f32.mrb[0].mxu0
      %v5274 = vadd.f32 %v5186, %v5273
      %v5275 = vpop.f32.mrb[0].mxu0
      %5276 = vmatprep.mubr.bf16.mxu0 0
      %5277 = vmatmul.mubr.bf16.gmra.mrb[0].mxu0 %v5108
      %v5278 = vpop.f32.mrb[0].mxu0
      %v5279 = vadd.f32 %v5191, %v5278
      %v5280 = vpop.f32.mrb[0].mxu0
      %v5281 = vpop.f32.mrb[0].mxu0
      %v5282 = vadd.f32 %v5194, %v5281
      %v5283 = vpop.f32.mrb[0].mxu0
      %5284 = vmatprep.mubr.bf16.mxu0 0
      %5285 = vmatmul.mubr.bf16.gmra.mrb[0].mxu0 %v5111
      %v5286 = vpop.f32.mrb[0].mxu0
      %v5287 = vadd.f32 %v5199, %v5286
      %v5288 = vpop.f32.mrb[0].mxu0
      %v5289 = vpop.f32.mrb[0].mxu0
      %v5290 = vpop.f32.mrb[0].mxu0
      %5291 = vdwg.mxu0
      %5292 = vst.msk [vmem:[#allocation4] sm:$0xff] %vm2318, %v5239
      %5293 = vst.msk [vmem:[#allocation4 + $0x8] sm:$0xff] %vm2318, %v5242
      %5294 = vst.msk [vmem:[#allocation4 + $0x10] sm:$0xff] %vm2318, %v5247
      %5295 = vst.msk [vmem:[#allocation4 + $0x18] sm:$0xff] %vm2318, %v5250
      %5296 = vst.msk [vmem:[#allocation4 + $0x20] sm:$0xff] %vm2318, %v5255
      %5297 = vst.msk [vmem:[#allocation4 + $0x28] sm:$0xff] %vm2318, %v5258
      %5298 = vst.msk [vmem:[#allocation4 + $0x30] sm:$0xff] %vm2318, %v5263
      %5299 = vst.msk [vmem:[#allocation4 + $0x38] sm:$0xff] %vm2318, %v5266
      %5300 = vst.msk [vmem:[#allocation4 + $0x40] sm:$0xff] %vm2318, %v5271
      %5301 = vst.msk [vmem:[#allocation4 + $0x48] sm:$0xff] %vm2318, %v5274
      %5302 = vst.msk [vmem:[#allocation4 + $0x50] sm:$0xff] %vm2318, %v5279
      %5303 = vst.msk [vmem:[#allocation4 + $0x58] sm:$0xff] %vm2318, %v5282
      %vm5304 = vcmask 519168
      %5305 = vst.msk [vmem:[#allocation4 + $0x60] sm:$0xf] %vm5304, %v5287
      %v5306 = vld [vmem:[#allocation4] sm:$0xff]
      %v5307 = vld [vmem:[#allocation4 + $0x8] sm:$0xff]
      %v5308 = vld [vmem:[#allocation4 + $0x10] sm:$0xff]
      %v5309 = vld [vmem:[#allocation4 + $0x18] sm:$0xff]
      %v5310 = vld [vmem:[#allocation4 + $0x20] sm:$0xff]
      %v5311 = vld [vmem:[#allocation4 + $0x28] sm:$0xff]
      %v5312 = vld [vmem:[#allocation4 + $0x30] sm:$0xff]
      %v5313 = vld [vmem:[#allocation4 + $0x38] sm:$0xff]
      %v5314 = vld [vmem:[#allocation4 + $0x40] sm:$0xff]
      %v5315 = vld [vmem:[#allocation4 + $0x48] sm:$0x3f]
      %v5316 = vld [vmem:[#allocation4 + $0x1] sm:$0xff]
      %v5317 = vld [vmem:[#allocation4 + $0x9] sm:$0xff]
      %v5318 = vld [vmem:[#allocation4 + $0x11] sm:$0xff]
      %v5319 = vld [vmem:[#allocation4 + $0x19] sm:$0xff]
      %v5320 = vld [vmem:[#allocation4 + $0x21] sm:$0xff]
      %v5321 = vld [vmem:[#allocation4 + $0x29] sm:$0xff]
      %v5322 = vld [vmem:[#allocation4 + $0x31] sm:$0xff]
      %v5323 = vld [vmem:[#allocation4 + $0x39] sm:$0xff]
      %v5324 = vld [vmem:[#allocation4 + $0x41] sm:$0xff]
      %v5325 = vld [vmem:[#allocation4 + $0x49] sm:$0x3f]
      %v5326 = vld [vmem:[#allocation4 + $0x2] sm:$0xff]
      %v5327 = vld [vmem:[#allocation4 + $0xa] sm:$0xff]
      %v5328 = vld [vmem:[#allocation4 + $0x12] sm:$0xff]
      %v5329 = vld [vmem:[#allocation4 + $0x1a] sm:$0xff]
      %v5330 = vld [vmem:[#allocation4 + $0x22] sm:$0xff]
      %v5331 = vld [vmem:[#allocation4 + $0x2a] sm:$0xff]
      %v5332 = vld [vmem:[#allocation4 + $0x32] sm:$0xff]
      %v5333 = vld [vmem:[#allocation4 + $0x3a] sm:$0xff]
      %v5334 = vld [vmem:[#allocation4 + $0x42] sm:$0xff]
      %v5335 = vld [vmem:[#allocation4 + $0x4a] sm:$0x3f]
      %v5336 = vld [vmem:[#allocation4 + $0x4a] sm:$0xff]
      %v5337 = vld [vmem:[#allocation4 + $0x52] sm:$0x3f]
      %v5338 = vld [vmem:[#allocation4 + $0xb] sm:$0xff]
      %v5339 = vld [vmem:[#allocation4 + $0x13] sm:$0xff]
      %v5340 = vld [vmem:[#allocation4 + $0x1b] sm:$0xff]
      %v5341 = vld [vmem:[#allocation4 + $0x23] sm:$0xff]
      %v5342 = vld [vmem:[#allocation4 + $0x2b] sm:$0xff]
      %v5343 = vld [vmem:[#allocation4 + $0x33] sm:$0xff]
      %v5344 = vld [vmem:[#allocation4 + $0x3b] sm:$0xff]
      %v5345 = vld [vmem:[#allocation4 + $0x43] sm:$0xff]
      %v5346 = vld [vmem:[#allocation4 + $0x4b] sm:$0xff]
      %v5347 = vld [vmem:[#allocation4 + $0x53] sm:$0x3f]
      %v5348 = vld [vmem:[#allocation4 + $0xc] sm:$0xff]
      %v5349 = vld [vmem:[#allocation4 + $0x14] sm:$0xff]
      %v5350 = vld [vmem:[#allocation4 + $0x1c] sm:$0xff]
      %v5351 = vld [vmem:[#allocation4 + $0x24] sm:$0xff]
      %v5352 = vld [vmem:[#allocation4 + $0x2c] sm:$0xff]
      %v5353 = vld [vmem:[#allocation4 + $0x34] sm:$0xff]
      %v5354 = vld [vmem:[#allocation4 + $0x3c] sm:$0xff]
      %v5355 = vld [vmem:[#allocation4 + $0x44] sm:$0xff]
      %v5356 = vld [vmem:[#allocation4 + $0x4c] sm:$0xff]
      %v5357 = vld [vmem:[#allocation4 + $0x54] sm:$0x3f]
      %v5358 = vld [vmem:[#allocation4 + $0x54] sm:$0xff]
      %v5359 = vld [vmem:[#allocation4 + $0x5c] sm:$0x3f]
      %v5360 = vld [vmem:[#allocation4 + $0x15] sm:$0xff]
      %v5361 = vld [vmem:[#allocation4 + $0x1d] sm:$0xff]
      %v5362 = vld [vmem:[#allocation4 + $0x25] sm:$0xff]
      %v5363 = vld [vmem:[#allocation4 + $0x2d] sm:$0xff]
      %v5364 = vld [vmem:[#allocation4 + $0x35] sm:$0xff]
      %v5365 = vld [vmem:[#allocation4 + $0x3d] sm:$0xff]
      %v5366 = vld [vmem:[#allocation4 + $0x45] sm:$0xff]
      %v5367 = vld [vmem:[#allocation4 + $0x4d] sm:$0xff]
      %v5368 = vld [vmem:[#allocation4 + $0x55] sm:$0xff]
      %v5369 = vld [vmem:[#allocation4 + $0x5d] sm:$0x3f]
      %v5370 = vld [vmem:[#allocation4 + $0x16] sm:$0xff]
      %v5371 = vld [vmem:[#allocation4 + $0x1e] sm:$0xff]
      %v5372 = vld [vmem:[#allocation4 + $0x26] sm:$0xff]
      %v5373 = vld [vmem:[#allocation4 + $0x2e] sm:$0xff]
      %v5374 = vld [vmem:[#allocation4 + $0x36] sm:$0xff]
      %v5375 = vld [vmem:[#allocation4 + $0x3e] sm:$0xff]
      %v5376 = vld [vmem:[#allocation4 + $0x46] sm:$0xff]
      %v5377 = vld [vmem:[#allocation4 + $0x4e] sm:$0xff]
      %v5378 = vld [vmem:[#allocation4 + $0x56] sm:$0xff]
      %v5379 = vld [vmem:[#allocation4 + $0x5e] sm:$0x3f]
      %5390 = vrot.lane.b32.xlu0 %v5316, 64
      %v5391 = vpop.permute.xlu0 %5390
      %5392 = vrot.lane.b32.xlu0 %v5317, 64
      %v5393 = vpop.permute.xlu0 %5392
      %5394 = vrot.lane.b32.xlu0 %v5318, 64
      %v5395 = vpop.permute.xlu0 %5394
      %5396 = vrot.lane.b32.xlu0 %v5319, 64
      %v5397 = vpop.permute.xlu0 %5396
      %5398 = vrot.lane.b32.xlu0 %v5320, 64
      %v5399 = vpop.permute.xlu0 %5398
      %5400 = vrot.lane.b32.xlu0 %v5321, 64
      %v5401 = vpop.permute.xlu0 %5400
      %5402 = vrot.lane.b32.xlu0 %v5322, 64
      %v5403 = vpop.permute.xlu0 %5402
      %5404 = vrot.lane.b32.xlu0 %v5323, 64
      %v5405 = vpop.permute.xlu0 %5404
      %5406 = vrot.lane.b32.xlu0 %v5324, 64
      %v5407 = vpop.permute.xlu0 %5406
      %5408 = vrot.lane.b32.xlu0 %v5325, 64
      %v5409 = vpop.permute.xlu0 %5408
      %5430 = vrot.lane.b32.xlu0 %v5327, 64
      %v5431 = vpop.permute.xlu0 %5430
      %5432 = vrot.lane.b32.xlu0 %v5328, 64
      %v5433 = vpop.permute.xlu0 %5432
      %5434 = vrot.lane.b32.xlu0 %v5329, 64
      %v5435 = vpop.permute.xlu0 %5434
      %5436 = vrot.lane.b32.xlu0 %v5330, 64
      %v5437 = vpop.permute.xlu0 %5436
      %5438 = vrot.lane.b32.xlu0 %v5331, 64
      %v5439 = vpop.permute.xlu0 %5438
      %5440 = vrot.lane.b32.xlu0 %v5332, 64
      %v5441 = vpop.permute.xlu0 %5440
      %5442 = vrot.lane.b32.xlu0 %v5333, 64
      %v5443 = vpop.permute.xlu0 %5442
      %5444 = vrot.lane.b32.xlu0 %v5334, 64
      %v5445 = vpop.permute.xlu0 %5444
      %5446 = vrot.lane.b32.xlu0 %v5336, 64
      %v5447 = vpop.permute.xlu0 %5446
      %5448 = vrot.lane.b32.xlu0 %v5337, 64
      %v5449 = vpop.permute.xlu0 %5448
      %5470 = vrot.lane.b32.xlu0 %v5348, 64
      %v5471 = vpop.permute.xlu0 %5470
      %5472 = vrot.lane.b32.xlu0 %v5349, 64
      %v5473 = vpop.permute.xlu0 %5472
      %5474 = vrot.lane.b32.xlu0 %v5350, 64
      %v5475 = vpop.permute.xlu0 %5474
      %5476 = vrot.lane.b32.xlu0 %v5351, 64
      %v5477 = vpop.permute.xlu0 %5476
      %5478 = vrot.lane.b32.xlu0 %v5352, 64
      %v5479 = vpop.permute.xlu0 %5478
      %5480 = vrot.lane.b32.xlu0 %v5353, 64
      %v5481 = vpop.permute.xlu0 %5480
      %5482 = vrot.lane.b32.xlu0 %v5354, 64
      %v5483 = vpop.permute.xlu0 %5482
      %5484 = vrot.lane.b32.xlu0 %v5355, 64
      %v5485 = vpop.permute.xlu0 %5484
      %5486 = vrot.lane.b32.xlu0 %v5356, 64
      %v5487 = vpop.permute.xlu0 %5486
      %5488 = vrot.lane.b32.xlu0 %v5357, 64
      %v5489 = vpop.permute.xlu0 %5488
      %5510 = vrot.lane.b32.xlu0 %v5360, 64
      %v5511 = vpop.permute.xlu0 %5510
      %5512 = vrot.lane.b32.xlu0 %v5361, 64
      %v5513 = vpop.permute.xlu0 %5512
      %5514 = vrot.lane.b32.xlu0 %v5362, 64
      %v5515 = vpop.permute.xlu0 %5514
      %5516 = vrot.lane.b32.xlu0 %v5363, 64
      %v5517 = vpop.permute.xlu0 %5516
      %5518 = vrot.lane.b32.xlu0 %v5364, 64
      %v5519 = vpop.permute.xlu0 %5518
      %5520 = vrot.lane.b32.xlu0 %v5365, 64
      %v5521 = vpop.permute.xlu0 %5520
      %5522 = vrot.lane.b32.xlu0 %v5366, 64
      %v5523 = vpop.permute.xlu0 %5522
      %5524 = vrot.lane.b32.xlu0 %v5367, 64
      %v5525 = vpop.permute.xlu0 %5524
      %5526 = vrot.lane.b32.xlu0 %v5368, 64
      %v5527 = vpop.permute.xlu0 %5526
      %5528 = vrot.lane.b32.xlu0 %v5369, 64
      %v5529 = vpop.permute.xlu0 %5528
      %v5540 = vsel %vm2318, %v5306, %v5391
      %v5541 = vsel %vm2318, %v5307, %v5393
      %v5542 = vsel %vm2318, %v5308, %v5395
      %v5543 = vsel %vm2318, %v5309, %v5397
      %v5544 = vsel %vm2318, %v5310, %v5399
      %v5545 = vsel %vm2318, %v5311, %v5401
      %v5546 = vsel %vm2318, %v5312, %v5403
      %v5547 = vsel %vm2318, %v5313, %v5405
      %v5548 = vsel %vm2318, %v5314, %v5407
      %v5549 = vsel %vm2318, %v5315, %v5409
      %v5550 = vsel %vm2318, %v5326, %v5431
      %v5551 = vsel %vm2318, %v5327, %v5433
      %v5552 = vsel %vm2318, %v5328, %v5435
      %v5553 = vsel %vm2318, %v5329, %v5437
      %v5554 = vsel %vm2318, %v5330, %v5439
      %v5555 = vsel %vm2318, %v5331, %v5441
      %v5556 = vsel %vm2318, %v5332, %v5443
      %v5557 = vsel %vm2318, %v5333, %v5445
      %v5558 = vsel %vm2318, %v5334, %v5447
      %v5559 = vsel %vm2318, %v5335, %v5449
      %v5560 = vsel %vm2318, %v5338, %v5471
      %v5561 = vsel %vm2318, %v5339, %v5473
      %v5562 = vsel %vm2318, %v5340, %v5475
      %v5563 = vsel %vm2318, %v5341, %v5477
      %v5564 = vsel %vm2318, %v5342, %v5479
      %v5565 = vsel %vm2318, %v5343, %v5481
      %v5566 = vsel %vm2318, %v5344, %v5483
      %v5567 = vsel %vm2318, %v5345, %v5485
      %v5568 = vsel %vm2318, %v5346, %v5487
      %v5569 = vsel %vm2318, %v5347, %v5489
      %v5570 = vsel %vm2318, %v5349, %v5511
      %v5571 = vsel %vm2318, %v5350, %v5513
      %v5572 = vsel %vm2318, %v5351, %v5515
      %v5573 = vsel %vm2318, %v5352, %v5517
      %v5574 = vsel %vm2318, %v5353, %v5519
      %v5575 = vsel %vm2318, %v5354, %v5521
      %v5576 = vsel %vm2318, %v5355, %v5523
      %v5577 = vsel %vm2318, %v5356, %v5525
      %v5578 = vsel %vm2318, %v5358, %v5527
      %v5579 = vsel %vm2318, %v5359, %v5529
      %v5580 = vpack.c.bf16 %v5541, %v5540
      %v5581 = vpack.c.bf16 %v5551, %v5550
      %v5582 = vpack.c.bf16 %v5561, %v5560
      %v5583 = vpack.c.bf16 %v5571, %v5570
      %v5584 = vpack.c.bf16 %v5371, %v5370
      %v5585 = vpack.c.bf16 %v5543, %v5542
      %v5586 = vpack.c.bf16 %v5553, %v5552
      %v5587 = vpack.c.bf16 %v5563, %v5562
      %v5588 = vpack.c.bf16 %v5573, %v5572
      %v5589 = vpack.c.bf16 %v5373, %v5372
      %v5590 = vpack.c.bf16 %v5545, %v5544
      %v5591 = vpack.c.bf16 %v5555, %v5554
      %v5592 = vpack.c.bf16 %v5565, %v5564
      %v5593 = vpack.c.bf16 %v5575, %v5574
      %v5594 = vpack.c.bf16 %v5375, %v5374
      %v5595 = vpack.c.bf16 %v5547, %v5546
      %v5596 = vpack.c.bf16 %v5557, %v5556
      %v5597 = vpack.c.bf16 %v5567, %v5566
      %v5598 = vpack.c.bf16 %v5577, %v5576
      %v5599 = vpack.c.bf16 %v5377, %v5376
      %v5600 = vpack.c.bf16 %v5549, %v5548
      %v5601 = vpack.c.bf16 %v5559, %v5558
      %v5602 = vpack.c.bf16 %v5569, %v5568
      %v5603 = vpack.c.bf16 %v5579, %v5578
      %v5604 = vpack.c.bf16 %v5379, %v5378
      %v5605 = vld [vmem:[%s7] sm:$0xf]
      %v5606 = vld [vmem:[%s7 + $0x4] sm:$0xf]
      %v5607 = vld [vmem:[%s7 + $0x8] sm:$0xf]
      %v5608 = vld [vmem:[%s7 + $0xc] sm:$0xf]
      %v5609 = vld [vmem:[%s7 + $0x10] sm:$0xf]
      %v5610 = vld [vmem:[%s7 + $0x14] sm:$0xf]
      %v5611 = vld [vmem:[%s7 + $0x18] sm:$0xf]
      %v5612 = vld [vmem:[%s7 + $0x1c] sm:$0xf]
      %v5613 = vld [vmem:[%s7 + $0x20] sm:$0xf]
      %v5614 = vld [vmem:[%s7 + $0x24] sm:$0xf]
      %v5615 = vld [vmem:[%s7 + $0x28] sm:$0xf]
      %v5616 = vld [vmem:[%s7 + $0x2c] sm:$0xf]
      %v5617 = vld [vmem:[%s7 + $0x30] sm:$0xf]
      %v5618 = vld [vmem:[%s7 + $0x34] sm:$0xf]
      %v5619 = vld [vmem:[%s7 + $0x38] sm:$0xf]
      %v5620 = vld [vmem:[%s7 + $0x3c] sm:$0xf]
      %v5621 = vld [vmem:[%s7 + $0x40] sm:$0xf]
      %v5622 = vld [vmem:[%s7 + $0x44] sm:$0xf]
      %v5623 = vld [vmem:[%s7 + $0x48] sm:$0xf]
      %v5624 = vld [vmem:[%s7 + $0x4c] sm:$0xf]
      %v5625 = vld [vmem:[%s7 + $0x50] sm:$0xf]
      %v5626 = vld [vmem:[%s7 + $0x54] sm:$0xf]
      %v5627 = vld [vmem:[%s7 + $0x58] sm:$0xf]
      %v5628 = vld [vmem:[%s7 + $0x5c] sm:$0xf]
      %v5629 = vld [vmem:[%s7 + $0x60] sm:$0xf]
      %v5630 = vld [vmem:[%s7 + $0x64] sm:$0xf]
      %v5631 = vld [vmem:[%s7 + $0x68] sm:$0xf]
      %v5632 = vld [vmem:[%s7 + $0x6c] sm:$0xf]
      %v5633 = vld [vmem:[%s7 + $0x70] sm:$0xf]
      %v5634 = vld [vmem:[%s7 + $0x74] sm:$0xf]
      %v5635 = vld [vmem:[%s7 + $0x78] sm:$0xf]
      %v5636 = vld [vmem:[%s7 + $0x7c] sm:$0xf]
      %v5637 = vld [vmem:[%s7 + $0x80] sm:$0xf]
      %v5638 = vld [vmem:[%s7 + $0x84] sm:$0xf]
      %v5639 = vld [vmem:[%s7 + $0x88] sm:$0xf]
      %v5640 = vld [vmem:[%s7 + $0x8c] sm:$0xf]
      %v5641 = vld [vmem:[%s7 + $0x90] sm:$0xf]
      %v5642 = vld [vmem:[%s7 + $0x94] sm:$0xf]
      %v5643 = vld [vmem:[%s7 + $0x98] sm:$0xf]
      %v5644 = vld [vmem:[%s7 + $0x9c] sm:$0xf]
      %v5645 = vld [vmem:[%s7 + $0xa0] sm:$0xf]
      %v5646 = vld [vmem:[%s7 + $0xa4] sm:$0xf]
      %v5647 = vld [vmem:[%s7 + $0xa8] sm:$0xf]
      %v5648 = vld [vmem:[%s7 + $0xac] sm:$0xf]
      %v5649 = vld [vmem:[%s7 + $0xb0] sm:$0xf]
      %v5650 = vld [vmem:[%s7 + $0xb4] sm:$0xf]
      %v5651 = vld [vmem:[%s7 + $0xb8] sm:$0xf]
      %v5652 = vld [vmem:[%s7 + $0xbc] sm:$0xf]
      %v5653 = vld [vmem:[%s7 + $0xc0] sm:$0xf]
      %v5654 = vld [vmem:[%s7 + $0xc4] sm:$0xf]
      %v5655 = vld [vmem:[%s7 + $0xc8] sm:$0xf]
      %v5656 = vld [vmem:[%s7 + $0xcc] sm:$0xf]
      %v5657 = vld [vmem:[%s7 + $0xd0] sm:$0xf]
      %v5658 = vld [vmem:[%s7 + $0xd4] sm:$0xf]
      %v5659 = vld [vmem:[%s7 + $0xd8] sm:$0xf]
      %v5660 = vld [vmem:[%s7 + $0xdc] sm:$0xf]
      %v5661 = vld [vmem:[%s7 + $0xe0] sm:$0xf]
      %v5662 = vld [vmem:[%s7 + $0xe4] sm:$0xf]
      %v5663 = vld [vmem:[%s7 + $0xe8] sm:$0xf]
      %v5664 = vld [vmem:[%s7 + $0xec] sm:$0xf]
      %v5665 = vld [vmem:[%s7 + $0xf0] sm:$0xf]
      %v5666 = vld [vmem:[%s7 + $0xf4] sm:$0xf]
      %v5667 = vld [vmem:[%s7 + $0xf8] sm:$0xf]
      %v5668 = vld [vmem:[%s7 + $0xfc] sm:$0xf]
      %v5669 = vld [vmem:[%s7 + $0x100] sm:$0xf]
      %v5670 = vld [vmem:[%s7 + $0x104] sm:$0xf]
      %v5671 = vld [vmem:[%s7 + $0x108] sm:$0xf]
      %v5672 = vld [vmem:[%s7 + $0x10c] sm:$0xf]
      %v5673 = vld [vmem:[%s7 + $0x110] sm:$0xf]
      %v5674 = vld [vmem:[%s7 + $0x114] sm:$0xf]
      %v5675 = vld [vmem:[%s7 + $0x118] sm:$0xf]
      %v5676 = vld [vmem:[%s7 + $0x11c] sm:$0xf]
      %v5677 = vld [vmem:[%s8] sm:$0x1]
      %v5679 = vlaneseq
      %v5680 = vshrl.u32 %v5679, 7
      %v5681 = vsub.s32 0, %v5680
      %v5682 = vrot.slane %v5677, %v5681
      %v5756 = vunpack.c.l.b16 %v5605
      %v5757 = vunpack.c.l.b16 %v5606
      %v5758 = vunpack.c.l.b16 %v5607
      %v5759 = vunpack.c.l.b16 %v5608
      %v5760 = vunpack.c.l.b16 %v5609
      %v5761 = vunpack.c.l.b16 %v5610
      %v5762 = vunpack.c.l.b16 %v5611
      %v5763 = vunpack.c.l.b16 %v5612
      %v5764 = vunpack.c.l.b16 %v5613
      %v5765 = vunpack.c.l.b16 %v5614
      %v5766 = vunpack.c.l.b16 %v5615
      %v5767 = vunpack.c.l.b16 %v5616
      %v5768 = vunpack.c.l.b16 %v5617
      %v5769 = vunpack.c.l.b16 %v5618
      %v5770 = vunpack.c.l.b16 %v5619
      %v5771 = vunpack.c.l.b16 %v5620
      %v5772 = vunpack.c.l.b16 %v5621
      %v5773 = vunpack.c.l.b16 %v5622
      %v5774 = vunpack.c.l.b16 %v5623
      %v5775 = vunpack.c.l.b16 %v5624
      %v5776 = vunpack.c.l.b16 %v5625
      %v5777 = vunpack.c.l.b16 %v5626
      %v5778 = vunpack.c.l.b16 %v5627
      %v5779 = vunpack.c.l.b16 %v5628
      %v5780 = vunpack.c.l.b16 %v5629
      %v5781 = vunpack.c.l.b16 %v5630
      %v5782 = vunpack.c.l.b16 %v5631
      %v5783 = vunpack.c.l.b16 %v5632
      %v5784 = vunpack.c.l.b16 %v5633
      %v5785 = vunpack.c.l.b16 %v5634
      %v5786 = vunpack.c.l.b16 %v5635
      %v5787 = vunpack.c.l.b16 %v5636
      %v5788 = vunpack.c.l.b16 %v5637
      %v5789 = vunpack.c.l.b16 %v5638
      %v5790 = vunpack.c.l.b16 %v5639
      %v5791 = vunpack.c.l.b16 %v5640
      %v5792 = vunpack.c.l.b16 %v5641
      %v5793 = vunpack.c.l.b16 %v5642
      %v5794 = vunpack.c.l.b16 %v5643
      %v5795 = vunpack.c.l.b16 %v5644
      %v5796 = vunpack.c.l.b16 %v5645
      %v5797 = vunpack.c.l.b16 %v5646
      %v5798 = vunpack.c.l.b16 %v5647
      %v5799 = vunpack.c.l.b16 %v5648
      %v5800 = vunpack.c.l.b16 %v5649
      %v5801 = vunpack.c.l.b16 %v5650
      %v5802 = vunpack.c.l.b16 %v5651
      %v5803 = vunpack.c.l.b16 %v5652
      %v5804 = vunpack.c.l.b16 %v5653
      %v5805 = vunpack.c.l.b16 %v5654
      %v5806 = vunpack.c.l.b16 %v5655
      %v5807 = vunpack.c.l.b16 %v5656
      %v5808 = vunpack.c.l.b16 %v5657
      %v5809 = vunpack.c.l.b16 %v5658
      %v5810 = vunpack.c.l.b16 %v5659
      %v5811 = vunpack.c.l.b16 %v5660
      %v5812 = vunpack.c.l.b16 %v5661
      %v5813 = vunpack.c.l.b16 %v5662
      %v5814 = vunpack.c.l.b16 %v5663
      %v5815 = vunpack.c.l.b16 %v5664
      %v5816 = vunpack.c.l.b16 %v5665
      %v5817 = vunpack.c.l.b16 %v5666
      %v5818 = vunpack.c.l.b16 %v5667
      %v5819 = vunpack.c.l.b16 %v5668
      %v5820 = vunpack.c.l.b16 %v5669
      %v5821 = vunpack.c.l.b16 %v5670
      %v5822 = vunpack.c.l.b16 %v5671
      %v5823 = vunpack.c.l.b16 %v5672
      %v5824 = vunpack.c.l.b16 %v5673
      %v5825 = vunpack.c.l.b16 %v5674
      %v5826 = vunpack.c.l.b16 %v5675
      %v5827 = vunpack.c.l.b16 %v5676
      %v5828 = vpack.c.b16 %v5757, %v5756
      %v5829 = vpack.c.b16 %v5759, %v5758
      %v5830 = vpack.c.b16 %v5761, %v5760
      %v5831 = vpack.c.b16 %v5763, %v5762
      %v5832 = vpack.c.b16 %v5765, %v5764
      %v5833 = vpack.c.b16 %v5767, %v5766
      %v5834 = vpack.c.b16 %v5769, %v5768
      %v5835 = vpack.c.b16 %v5771, %v5770
      %v5836 = vpack.c.b16 %v5773, %v5772
      %v5837 = vpack.c.b16 %v5775, %v5774
      %v5838 = vpack.c.b16 %v5777, %v5776
      %v5839 = vpack.c.b16 %v5779, %v5778
      %v5840 = vpack.c.b16 %v5781, %v5780
      %v5841 = vpack.c.b16 %v5783, %v5782
      %v5842 = vpack.c.b16 %v5785, %v5784
      %v5843 = vpack.c.b16 %v5787, %v5786
      %v5844 = vpack.c.b16 %v5789, %v5788
      %v5845 = vpack.c.b16 %v5791, %v5790
      %v5846 = vpack.c.b16 %v5793, %v5792
      %v5847 = vpack.c.b16 %v5795, %v5794
      %v5848 = vpack.c.b16 %v5797, %v5796
      %v5849 = vpack.c.b16 %v5799, %v5798
      %v5850 = vpack.c.b16 %v5801, %v5800
      %v5851 = vpack.c.b16 %v5803, %v5802
      %v5852 = vpack.c.b16 %v5805, %v5804
      %v5853 = vpack.c.b16 %v5807, %v5806
      %v5854 = vpack.c.b16 %v5809, %v5808
      %v5855 = vpack.c.b16 %v5811, %v5810
      %v5856 = vpack.c.b16 %v5813, %v5812
      %v5857 = vpack.c.b16 %v5815, %v5814
      %v5858 = vpack.c.b16 %v5817, %v5816
      %v5859 = vpack.c.b16 %v5819, %v5818
      %v5860 = vpack.c.b16 %v5821, %v5820
      %v5861 = vpack.c.b16 %v5823, %v5822
      %v5862 = vpack.c.b16 %v5825, %v5824
      %v5863 = vpack.c.b16 %v5827, %v5826
      %v5901 = vsel %vm2318, %v5584, 0
      %v5904 = vsel %vm2318, %v5589, 0
      %v5907 = vsel %vm2318, %v5594, 0
      %v5910 = vsel %vm2318, %v5599, 0
      %v5913 = vsel %vm2318, %v5604, 0
      %5915 = vmatprep.subr.bf16.mxu0 0
      %5916 = vmatpush1.bf16.msra.mxu0 %v5828
      %5917 = vmatprep.subr.bf16.mxu0 0
      %5918 = vmatpush1.bf16.msra.mxu0 %v5829
      %5919 = vmatprep.subr.bf16.mxu0 0
      %5920 = vmatpush1.bf16.msra.mxu0 %v5830
      %5921 = vmatprep.subr.bf16.mxu0 0
      %5922 = vmatpush1.bf16.msra.mxu0 %v5831
      %5923 = vmatprep.subr.bf16.mxu0 0
      %5924 = vmatpush1.bf16.msra.mxu0 %v5832
      %5925 = vmatprep.subr.bf16.mxu0 0
      %5926 = vmatpush1.bf16.msra.mxu0 %v5833
      %5927 = vmatprep.subr.bf16.mxu0 0
      %5928 = vmatpush1.bf16.msra.mxu0 %v5834
      %5929 = vmatprep.subr.bf16.mxu0 0
      %5930 = vmatpush1.bf16.msra.mxu0 %v5835
      %5931 = vmatprep.subr.bf16.mxu0 0
      %5932 = vmatpush1.bf16.msra.mxu0 %v5836
      %5933 = vmatprep.subr.bf16.mxu0 0
      %5934 = vmatpush1.bf16.msra.mxu0 %v5837
      %5935 = vmatprep.subr.bf16.mxu0 0
      %5936 = vmatpush1.bf16.msra.mxu0 %v5838
      %5937 = vmatprep.subr.bf16.mxu0 0
      %5938 = vmatpush1.bf16.msra.mxu0 %v5839
      %5939 = vmatprep.subr.bf16.mxu0 0
      %5940 = vmatpush1.bf16.msra.mxu0 %v5840
      %5941 = vmatprep.subr.bf16.mxu0 0
      %5942 = vmatpush1.bf16.msra.mxu0 %v5841
      %5943 = vmatprep.subr.bf16.mxu0 0
      %5944 = vmatpush1.bf16.msra.mxu0 %v5842
      %5945 = vmatprep.subr.bf16.mxu0 0
      %5946 = vmatpush1.bf16.msra.mxu0 %v5843
      %5947 = vmatprep.mubr.bf16.mxu0 %v5581
      %5948 = vmatmul.mubr.bf16.gmra.mrb[0].mxu0 %v5580
      %v5949 = vpop.f32.mrb[0].mxu0
      %v5950 = vadd.f32 %v5682, %v5949
      %v5951 = vpop.f32.mrb[0].mxu0
      %v5952 = vpop.f32.mrb[0].mxu0
      %v5953 = vadd.f32 %v5682, %v5952
      %v5954 = vpop.f32.mrb[0].mxu0
      %5955 = vmatprep.mubr.bf16.mxu0 %v5586
      %5956 = vmatmul.mubr.bf16.gmra.mrb[0].mxu0 %v5585
      %v5957 = vpop.f32.mrb[0].mxu0
      %v5958 = vadd.f32 %v5682, %v5957
      %v5959 = vpop.f32.mrb[0].mxu0
      %v5960 = vpop.f32.mrb[0].mxu0
      %v5961 = vadd.f32 %v5682, %v5960
      %v5962 = vpop.f32.mrb[0].mxu0
      %5963 = vmatprep.mubr.bf16.mxu0 %v5591
      %5964 = vmatmul.mubr.bf16.gmra.mrb[0].mxu0 %v5590
      %v5965 = vpop.f32.mrb[0].mxu0
      %v5966 = vadd.f32 %v5682, %v5965
      %v5967 = vpop.f32.mrb[0].mxu0
      %v5968 = vpop.f32.mrb[0].mxu0
      %v5969 = vadd.f32 %v5682, %v5968
      %v5970 = vpop.f32.mrb[0].mxu0
      %5971 = vmatprep.mubr.bf16.mxu0 %v5596
      %5972 = vmatmul.mubr.bf16.gmra.mrb[0].mxu0 %v5595
      %v5973 = vpop.f32.mrb[0].mxu0
      %v5974 = vadd.f32 %v5682, %v5973
      %v5975 = vpop.f32.mrb[0].mxu0
      %v5976 = vpop.f32.mrb[0].mxu0
      %v5977 = vadd.f32 %v5682, %v5976
      %v5978 = vpop.f32.mrb[0].mxu0
      %5979 = vmatprep.mubr.bf16.mxu0 %v5601
      %5980 = vmatmul.mubr.bf16.gmra.mrb[0].mxu0 %v5600
      %v5981 = vpop.f32.mrb[0].mxu0
      %v5982 = vadd.f32 %v5682, %v5981
      %v5983 = vpop.f32.mrb[0].mxu0
      %v5984 = vpop.f32.mrb[0].mxu0
      %v5985 = vadd.f32 %v5682, %v5984
      %v5986 = vpop.f32.mrb[0].mxu0
      %5987 = vdwg.mxu0
      %5988 = vmatprep.subr.bf16.mxu0 0
      %5989 = vmatpush1.bf16.msra.mxu0 %v5844
      %5990 = vmatprep.subr.bf16.mxu0 0
      %5991 = vmatpush1.bf16.msra.mxu0 %v5845
      %5992 = vmatprep.subr.bf16.mxu0 0
      %5993 = vmatpush1.bf16.msra.mxu0 %v5846
      %5994 = vmatprep.subr.bf16.mxu0 0
      %5995 = vmatpush1.bf16.msra.mxu0 %v5847
      %5996 = vmatprep.subr.bf16.mxu0 0
      %5997 = vmatpush1.bf16.msra.mxu0 %v5848
      %5998 = vmatprep.subr.bf16.mxu0 0
      %5999 = vmatpush1.bf16.msra.mxu0 %v5849
      %6000 = vmatprep.subr.bf16.mxu0 0
      %6001 = vmatpush1.bf16.msra.mxu0 %v5850
      %6002 = vmatprep.subr.bf16.mxu0 0
      %6003 = vmatpush1.bf16.msra.mxu0 %v5851
      %6004 = vmatprep.subr.bf16.mxu0 0
      %6005 = vmatpush1.bf16.msra.mxu0 %v5852
      %6006 = vmatprep.subr.bf16.mxu0 0
      %6007 = vmatpush1.bf16.msra.mxu0 %v5853
      %6008 = vmatprep.subr.bf16.mxu0 0
      %6009 = vmatpush1.bf16.msra.mxu0 %v5854
      %6010 = vmatprep.subr.bf16.mxu0 0
      %6011 = vmatpush1.bf16.msra.mxu0 %v5855
      %6012 = vmatprep.subr.bf16.mxu0 0
      %6013 = vmatpush1.bf16.msra.mxu0 %v5856
      %6014 = vmatprep.subr.bf16.mxu0 0
      %6015 = vmatpush1.bf16.msra.mxu0 %v5857
      %6016 = vmatprep.subr.bf16.mxu0 0
      %6017 = vmatpush1.bf16.msra.mxu0 %v5858
      %6018 = vmatprep.subr.bf16.mxu0 0
      %6019 = vmatpush1.bf16.msra.mxu0 %v5859
      %6020 = vmatprep.mubr.bf16.mxu0 %v5583
      %6021 = vmatmul.mubr.bf16.gmra.mrb[0].mxu0 %v5582
      %v6022 = vpop.f32.mrb[0].mxu0
      %v6023 = vadd.f32 %v5950, %v6022
      %v6024 = vpop.f32.mrb[0].mxu0
      %v6025 = vpop.f32.mrb[0].mxu0
      %v6026 = vadd.f32 %v5953, %v6025
      %v6027 = vpop.f32.mrb[0].mxu0
      %6028 = vmatprep.mubr.bf16.mxu0 %v5588
      %6029 = vmatmul.mubr.bf16.gmra.mrb[0].mxu0 %v5587
      %v6030 = vpop.f32.mrb[0].mxu0
      %v6031 = vadd.f32 %v5958, %v6030
      %v6032 = vpop.f32.mrb[0].mxu0
      %v6033 = vpop.f32.mrb[0].mxu0
      %v6034 = vadd.f32 %v5961, %v6033
      %v6035 = vpop.f32.mrb[0].mxu0
      %6036 = vmatprep.mubr.bf16.mxu0 %v5593
      %6037 = vmatmul.mubr.bf16.gmra.mrb[0].mxu0 %v5592
      %v6038 = vpop.f32.mrb[0].mxu0
      %v6039 = vadd.f32 %v5966, %v6038
      %v6040 = vpop.f32.mrb[0].mxu0
      %v6041 = vpop.f32.mrb[0].mxu0
      %v6042 = vadd.f32 %v5969, %v6041
      %v6043 = vpop.f32.mrb[0].mxu0
      %6044 = vmatprep.mubr.bf16.mxu0 %v5598
      %6045 = vmatmul.mubr.bf16.gmra.mrb[0].mxu0 %v5597
      %v6046 = vpop.f32.mrb[0].mxu0
      %v6047 = vadd.f32 %v5974, %v6046
      %v6048 = vpop.f32.mrb[0].mxu0
      %v6049 = vpop.f32.mrb[0].mxu0
      %v6050 = vadd.f32 %v5977, %v6049
      %v6051 = vpop.f32.mrb[0].mxu0
      %6052 = vmatprep.mubr.bf16.mxu0 %v5603
      %6053 = vmatmul.mubr.bf16.gmra.mrb[0].mxu0 %v5602
      %v6054 = vpop.f32.mrb[0].mxu0
      %v6055 = vadd.f32 %v5982, %v6054
      %v6056 = vpop.f32.mrb[0].mxu0
      %v6057 = vpop.f32.mrb[0].mxu0
      %v6058 = vadd.f32 %v5985, %v6057
      %v6059 = vpop.f32.mrb[0].mxu0
      %6060 = vdwg.mxu0
      %6061 = vmatprep.subr.bf16.mxu0 0
      %6062 = vmatpush1.bf16.msra.mxu0 %v5860
      %6063 = vmatprep.subr.bf16.mxu0 0
      %6064 = vmatpush1.bf16.msra.mxu0 %v5861
      %6065 = vmatprep.subr.bf16.mxu0 0
      %6066 = vmatpush1.bf16.msra.mxu0 %v5862
      %6067 = vmatprep.subr.bf16.mxu0 0
      %6068 = vmatpush1.bf16.msra.mxu0 %v5863
      %6069 = vmatprep.subr.bf16.mxu0 0
      %6070 = vmatpush1.bf16.msra.mxu0 0
      %6071 = vmatprep.subr.bf16.mxu0 0
      %6072 = vmatpush1.bf16.msra.mxu0 0
      %6073 = vmatprep.subr.bf16.mxu0 0
      %6074 = vmatpush1.bf16.msra.mxu0 0
      %6075 = vmatprep.subr.bf16.mxu0 0
      %6076 = vmatpush1.bf16.msra.mxu0 0
      %6077 = vmatprep.subr.bf16.mxu0 0
      %6078 = vmatpush1.bf16.msra.mxu0 0
      %6079 = vmatprep.subr.bf16.mxu0 0
      %6080 = vmatpush1.bf16.msra.mxu0 0
      %6081 = vmatprep.subr.bf16.mxu0 0
      %6082 = vmatpush1.bf16.msra.mxu0 0
      %6083 = vmatprep.subr.bf16.mxu0 0
      %6084 = vmatpush1.bf16.msra.mxu0 0
      %6085 = vmatprep.subr.bf16.mxu0 0
      %6086 = vmatpush1.bf16.msra.mxu0 0
      %6087 = vmatprep.subr.bf16.mxu0 0
      %6088 = vmatpush1.bf16.msra.mxu0 0
      %6089 = vmatprep.subr.bf16.mxu0 0
      %6090 = vmatpush1.bf16.msra.mxu0 0
      %6091 = vmatprep.subr.bf16.mxu0 0
      %6092 = vmatpush1.bf16.msra.mxu0 0
      %6093 = vmatprep.mubr.bf16.mxu0 0
      %6094 = vmatmul.mubr.bf16.gmra.mrb[0].mxu0 %v5901
      %v6095 = vpop.f32.mrb[0].mxu0
      %v6096 = vadd.f32 %v6023, %v6095
      %v6097 = vpop.f32.mrb[0].mxu0
      %v6098 = vpop.f32.mrb[0].mxu0
      %v6099 = vadd.f32 %v6026, %v6098
      %v6100 = vpop.f32.mrb[0].mxu0
      %6101 = vmatprep.mubr.bf16.mxu0 0
      %6102 = vmatmul.mubr.bf16.gmra.mrb[0].mxu0 %v5904
      %v6103 = vpop.f32.mrb[0].mxu0
      %v6104 = vadd.f32 %v6031, %v6103
      %v6105 = vpop.f32.mrb[0].mxu0
      %v6106 = vpop.f32.mrb[0].mxu0
      %v6107 = vadd.f32 %v6034, %v6106
      %v6108 = vpop.f32.mrb[0].mxu0
      %6109 = vmatprep.mubr.bf16.mxu0 0
      %6110 = vmatmul.mubr.bf16.gmra.mrb[0].mxu0 %v5907
      %v6111 = vpop.f32.mrb[0].mxu0
      %v6112 = vadd.f32 %v6039, %v6111
      %v6113 = vpop.f32.mrb[0].mxu0
      %v6114 = vpop.f32.mrb[0].mxu0
      %v6115 = vadd.f32 %v6042, %v6114
      %v6116 = vpop.f32.mrb[0].mxu0
      %6117 = vmatprep.mubr.bf16.mxu0 0
      %6118 = vmatmul.mubr.bf16.gmra.mrb[0].mxu0 %v5910
      %v6119 = vpop.f32.mrb[0].mxu0
      %v6120 = vadd.f32 %v6047, %v6119
      %v6121 = vpop.f32.mrb[0].mxu0
      %v6122 = vpop.f32.mrb[0].mxu0
      %v6123 = vadd.f32 %v6050, %v6122
      %v6124 = vpop.f32.mrb[0].mxu0
      %6125 = vmatprep.mubr.bf16.mxu0 0
      %6126 = vmatmul.mubr.bf16.gmra.mrb[0].mxu0 %v5913
      %v6127 = vpop.f32.mrb[0].mxu0
      %v6128 = vadd.f32 %v6055, %v6127
      %v6129 = vpop.f32.mrb[0].mxu0
      %v6130 = vpop.f32.mrb[0].mxu0
      %v6131 = vadd.f32 %v6058, %v6130
      %v6132 = vpop.f32.mrb[0].mxu0
      %6133 = vdwg.mxu0
      %v6134 = vmax.f32 %v6096, 0.0
      %v6135 = vmax.f32 %v6099, 0.0
      %v6136 = vmax.f32 %v6104, 0.0
      %v6137 = vmax.f32 %v6107, 0.0
      %v6138 = vmax.f32 %v6112, 0.0
      %v6139 = vmax.f32 %v6115, 0.0
      %v6140 = vmax.f32 %v6120, 0.0
      %v6141 = vmax.f32 %v6123, 0.0
      %v6142 = vmax.f32 %v6128, 0.0
      %v6143 = vmax.f32 %v6131, 0.0
      %v6144 = vld [vmem:[%s9] sm:$0xf]
      %v6145 = vld [vmem:[%s9 + $0x4] sm:$0xf]
      %v6146 = vld [vmem:[%s9 + $0x8] sm:$0xf]
      %v6147 = vld [vmem:[%s9 + $0xc] sm:$0xf]
      %v6148 = vld [vmem:[%s9 + $0x10] sm:$0x3]
      %v6149 = vpack.c.bf16 %v6135, %v6134
      %v6150 = vpack.c.bf16 %v6137, %v6136
      %v6151 = vpack.c.bf16 %v6139, %v6138
      %v6152 = vpack.c.bf16 %v6141, %v6140
      %v6153 = vpack.c.bf16 %v6143, %v6142
      %v6159 = vunpack.c.l.b16 %v6144
      %v6160 = vunpack.c.l.b16 %v6145
      %v6161 = vunpack.c.l.b16 %v6146
      %v6162 = vunpack.c.l.b16 %v6147
      %v6163 = vunpack.c.l.b16 %v6148
      %v6164 = vpack.c.b16 %v6160, %v6159
      %v6165 = vpack.c.b16 %v6162, %v6161
      %v6166 = vpack.c.b16 %v6163, %v6163
      %vm6167 = vcmask 637952
      %v6169 = vsel %vm6167, %v6164, 0
      %v6172 = vsel %vm6167, %v6165, 0
      %v6175 = vsel %vm6167, %v6166, 0
      %v6178 = vsel %vm743, %v6153, 0
      %6180 = vmatprep.subr.bf16.mxu0 0
      %6181 = vmatpush1.bf16.msra.mxu0 %v6149
      %6182 = vmatprep.subr.bf16.mxu0 0
      %6183 = vmatpush1.bf16.msra.mxu0 %v6150
      %6184 = vmatprep.subr.bf16.mxu0 0
      %6185 = vmatpush1.bf16.msra.mxu0 %v6151
      %6186 = vmatprep.subr.bf16.mxu0 0
      %6187 = vmatpush1.bf16.msra.mxu0 %v6152
      %6188 = vmatprep.subr.bf16.mxu0 0
      %6189 = vmatpush1.bf16.msra.mxu0 %v6178
      %6190 = vmatprep.subr.bf16.mxu0 0
      %6191 = vmatpush1.bf16.msra.mxu0 0
      %6192 = vmatprep.subr.bf16.mxu0 0
      %6193 = vmatpush1.bf16.msra.mxu0 0
      %6194 = vmatprep.subr.bf16.mxu0 0
      %6195 = vmatpush1.bf16.msra.mxu0 0
      %6196 = vmatprep.subr.bf16.mxu0 0
      %6197 = vmatpush1.bf16.msra.mxu0 0
      %6198 = vmatprep.subr.bf16.mxu0 0
      %6199 = vmatpush1.bf16.msra.mxu0 0
      %6200 = vmatprep.subr.bf16.mxu0 0
      %6201 = vmatpush1.bf16.msra.mxu0 0
      %6202 = vmatprep.subr.bf16.mxu0 0
      %6203 = vmatpush1.bf16.msra.mxu0 0
      %6204 = vmatprep.subr.bf16.mxu0 0
      %6205 = vmatpush1.bf16.msra.mxu0 0
      %6206 = vmatprep.subr.bf16.mxu0 0
      %6207 = vmatpush1.bf16.msra.mxu0 0
      %6208 = vmatprep.subr.bf16.mxu0 0
      %6209 = vmatpush1.bf16.msra.mxu0 0
      %6210 = vmatprep.subr.bf16.mxu0 0
      %6211 = vmatpush1.bf16.msra.mxu0 0
      %6212 = vmatprep.mubr.bf16.mxu0 0
      %6213 = vmatmul.mubr.bf16.gmra.mrb[0].mxu0 %v6169
      %v6214 = vpop.f32.mrb[0].mxu0
      %v6215 = vadd.f32 0.0, %v6214
      %v6216 = vpop.f32.mrb[0].mxu0
      %v6217 = vpop.f32.mrb[0].mxu0
      %v6218 = vadd.f32 0.0, %v6217
      %v6219 = vpop.f32.mrb[0].mxu0
      %6220 = vmatprep.mubr.bf16.mxu0 0
      %6221 = vmatmul.mubr.bf16.gmra.mrb[0].mxu0 %v6172
      %v6222 = vpop.f32.mrb[0].mxu0
      %v6223 = vadd.f32 0.0, %v6222
      %v6224 = vpop.f32.mrb[0].mxu0
      %v6225 = vpop.f32.mrb[0].mxu0
      %v6226 = vadd.f32 0.0, %v6225
      %v6227 = vpop.f32.mrb[0].mxu0
      %6228 = vmatprep.mubr.bf16.mxu0 0
      %6229 = vmatmul.mubr.bf16.gmra.mrb[0].mxu0 %v6175
      %v6230 = vpop.f32.mrb[0].mxu0
      %v6231 = vadd.f32 0.0, %v6230
      %v6232 = vpop.f32.mrb[0].mxu0
      %v6233 = vpop.f32.mrb[0].mxu0
      %v6234 = vpop.f32.mrb[0].mxu0
      %6235 = vdwg.mxu0
      %v6239 = vrot.slane %v6215, 1
      %v6240 = vrot.slane %v6218, 1
      %v6241 = vsel %vm743, %v6239, %v6240
      %v6242 = vrot.slane %v6223, 1
      %v6243 = vsel %vm743, %v6240, %v6242
      %v6247 = vrot.slane %v6215, 2
      %v6248 = vrot.slane %v6218, 2
      %v6249 = vsel %vm923, %v6247, %v6248
      %v6250 = vrot.slane %v6223, 2
      %v6251 = vsel %vm923, %v6248, %v6250
      %v6256 = vrot.slane %v6215, 6
      %v6257 = vrot.slane %v6218, 6
      %v6258 = vsel %vm1878, %v6256, %v6257
      %v6259 = vrot.slane %v6223, 6
      %v6260 = vsel %vm1878, %v6257, %v6259
      %v6261 = vrot.slane %v6226, 6
      %v6262 = vsel %vm1878, %v6259, %v6261
      %vm6266 = vcmask 1040384
      %v6267 = vrot.slane %v6215, 7
      %v6268 = vrot.slane %v6218, 7
      %v6269 = vsel %vm6266, %v6267, %v6268
      %v6270 = vrot.slane %v6223, 7
      %v6271 = vsel %vm6266, %v6268, %v6270
      %v6272 = vrot.slane %v6226, 7
      %v6273 = vsel %vm6266, %v6270, %v6272
      %v6278 = vrot.slane %v6218, 4
      %v6279 = vrot.slane %v6223, 4
      %v6280 = vsel %vm1400, %v6278, %v6279
      %v6281 = vrot.slane %v6226, 4
      %v6282 = vsel %vm1400, %v6279, %v6281
      %v6283 = vrot.slane %v6231, 4
      %v6284 = vsel %vm1400, %v6281, %v6283
      %v6288 = vrot.slane %v6218, 5
      %v6289 = vrot.slane %v6223, 5
      %v6290 = vsel %vm1696, %v6288, %v6289
      %v6291 = vrot.slane %v6226, 5
      %v6292 = vsel %vm1696, %v6289, %v6291
      %v6293 = vrot.slane %v6231, 5
      %v6294 = vsel %vm1696, %v6291, %v6293
      %v6298 = vrot.slane %v6231, 6
      %v6299 = vsel %vm1878, %v6261, %v6298
      %v6301 = vpack.c.bf16 %v6218, %v6215
      %v6302 = vpack.c.bf16 %v6243, %v6241
      %v6303 = vpack.c.bf16 %v6251, %v6249
      %v6304 = vpack.c.bf16 %v6260, %v6258
      %v6305 = vpack.c.bf16 %v6271, %v6269
      %v6306 = vpack.c.bf16 %v6223, %v6218
      %v6307 = vpack.c.bf16 %v6282, %v6280
      %v6308 = vpack.c.bf16 %v6292, %v6290
      %v6309 = vpack.c.bf16 %v6262, %v6260
      %v6310 = vpack.c.bf16 %v6223, %v6223
      %v6311 = vpack.c.bf16 %v6242, %v6242
      %v6312 = vpack.c.bf16 %v6250, %v6250
      %v6313 = vpack.c.bf16 %v6262, %v6262
      %v6314 = vpack.c.bf16 %v6273, %v6273
      %v6315 = vpack.c.bf16 %v6226, %v6226
      %v6316 = vpack.c.bf16 %v6284, %v6284
      %v6317 = vpack.c.bf16 %v6294, %v6294
      %v6318 = vpack.c.bf16 %v6299, %v6299
      %v6319 = vld [vmem:[%s10] sm:$0xf]
      %v6320 = vld [vmem:[%s10 + $0x4] sm:$0xf]
      %v6321 = vld [vmem:[%s10 + $0x8] sm:$0xf]
      %v6322 = vld [vmem:[%s10 + $0xc] sm:$0xf]
      %v6323 = vld [vmem:[%s10 + $0x10] sm:$0xf]
      %v6324 = vld [vmem:[%s10 + $0x14] sm:$0xf]
      %v6325 = vld [vmem:[%s10 + $0x18] sm:$0xf]
      %v6326 = vld [vmem:[%s10 + $0x1c] sm:$0xf]
      %v6327 = vld [vmem:[%s10 + $0x20] sm:$0xf]
      %v6328 = vld [vmem:[%s10 + $0x24] sm:$0xf]
      %v6329 = vld [vmem:[%s10 + $0x28] sm:$0xf]
      %v6330 = vld [vmem:[%s10 + $0x2c] sm:$0xf]
      %v6331 = vld [vmem:[%s10 + $0x30] sm:$0xf]
      %v6332 = vld [vmem:[%s10 + $0x34] sm:$0xf]
      %v6333 = vld [vmem:[%s10 + $0x38] sm:$0xf]
      %v6334 = vld [vmem:[%s10 + $0x3c] sm:$0xf]
      %v6335 = vld [vmem:[%s10 + $0x40] sm:$0xf]
      %v6336 = vld [vmem:[%s10 + $0x44] sm:$0xf]
      %v6337 = vld [vmem:[%s10 + $0x48] sm:$0xf]
      %v6338 = vld [vmem:[%s10 + $0x4c] sm:$0xf]
      %v6339 = vld [vmem:[%s10 + $0x50] sm:$0xf]
      %v6340 = vld [vmem:[%s10 + $0x54] sm:$0xf]
      %v6341 = vld [vmem:[%s10 + $0x58] sm:$0xf]
      %v6342 = vld [vmem:[%s10 + $0x5c] sm:$0xf]
      %v6343 = vld [vmem:[%s10 + $0x60] sm:$0xf]
      %v6344 = vld [vmem:[%s10 + $0x64] sm:$0xf]
      %v6345 = vld [vmem:[%s10 + $0x68] sm:$0xf]
      %v6346 = vld [vmem:[%s10 + $0x6c] sm:$0xf]
      %v6347 = vld [vmem:[%s10 + $0x70] sm:$0xf]
      %v6348 = vld [vmem:[%s10 + $0x74] sm:$0xf]
      %v6349 = vld [vmem:[%s10 + $0x78] sm:$0xf]
      %v6350 = vld [vmem:[%s10 + $0x7c] sm:$0xf]
      %v6351 = vld [vmem:[%s10 + $0x80] sm:$0xf]
      %v6352 = vld [vmem:[%s10 + $0x84] sm:$0xf]
      %v6353 = vld [vmem:[%s10 + $0x88] sm:$0xf]
      %v6354 = vld [vmem:[%s10 + $0x8c] sm:$0xf]
      %v6355 = vld [vmem:[%s10 + $0x90] sm:$0xf]
      %v6356 = vld [vmem:[%s10 + $0x94] sm:$0xf]
      %v6357 = vld [vmem:[%s10 + $0x98] sm:$0xf]
      %v6358 = vld [vmem:[%s10 + $0x9c] sm:$0xf]
      %v6359 = vld [vmem:[%s10 + $0xa0] sm:$0xf]
      %v6360 = vld [vmem:[%s10 + $0xa4] sm:$0xf]
      %v6361 = vld [vmem:[%s10 + $0xa8] sm:$0xf]
      %v6362 = vld [vmem:[%s10 + $0xac] sm:$0xf]
      %v6363 = vld [vmem:[%s10 + $0xb0] sm:$0xf]
      %v6364 = vld [vmem:[%s10 + $0xb4] sm:$0xf]
      %v6365 = vld [vmem:[%s10 + $0xb8] sm:$0xf]
      %v6366 = vld [vmem:[%s10 + $0xbc] sm:$0xf]
      %v6367 = vld [vmem:[%s10 + $0xc0] sm:$0xf]
      %v6368 = vld [vmem:[%s10 + $0xc4] sm:$0xf]
      %v6369 = vld [vmem:[%s10 + $0xc8] sm:$0xf]
      %v6370 = vld [vmem:[%s10 + $0xcc] sm:$0xf]
      %v6371 = vld [vmem:[%s10 + $0xd0] sm:$0xf]
      %v6372 = vld [vmem:[%s10 + $0xd4] sm:$0xf]
      %v6373 = vld [vmem:[%s10 + $0xd8] sm:$0xf]
      %v6374 = vld [vmem:[%s10 + $0xdc] sm:$0xf]
      %v6375 = vld [vmem:[%s10 + $0xe0] sm:$0xf]
      %v6376 = vld [vmem:[%s10 + $0xe4] sm:$0xf]
      %v6377 = vld [vmem:[%s10 + $0xe8] sm:$0xf]
      %v6378 = vld [vmem:[%s10 + $0xec] sm:$0xf]
      %v6379 = vld [vmem:[%s10 + $0xf0] sm:$0xf]
      %v6380 = vld [vmem:[%s10 + $0xf4] sm:$0xf]
      %v6381 = vld [vmem:[%s10 + $0xf8] sm:$0xf]
      %v6382 = vld [vmem:[%s10 + $0xfc] sm:$0xf]
      %v6383 = vld [vmem:[%s10 + $0x100] sm:$0xf]
      %v6384 = vld [vmem:[%s10 + $0x104] sm:$0xf]
      %v6385 = vld [vmem:[%s10 + $0x108] sm:$0xf]
      %v6386 = vld [vmem:[%s10 + $0x10c] sm:$0xf]
      %v6387 = vld [vmem:[%s10 + $0x110] sm:$0xf]
      %v6388 = vld [vmem:[%s10 + $0x114] sm:$0xf]
      %v6389 = vld [vmem:[%s10 + $0x118] sm:$0xf]
      %v6390 = vld [vmem:[%s10 + $0x11c] sm:$0xf]
      %v6391 = vld [vmem:[%s10 + $0x120] sm:$0xf]
      %v6392 = vld [vmem:[%s10 + $0x124] sm:$0xf]
      %v6393 = vld [vmem:[%s10 + $0x128] sm:$0xf]
      %v6394 = vld [vmem:[%s10 + $0x12c] sm:$0xf]
      %v6395 = vld [vmem:[%s10 + $0x130] sm:$0xf]
      %v6396 = vld [vmem:[%s10 + $0x134] sm:$0xf]
      %v6397 = vld [vmem:[%s10 + $0x138] sm:$0xf]
      %v6398 = vld [vmem:[%s10 + $0x13c] sm:$0xf]
      %v6399 = vld [vmem:[%s10 + $0x140] sm:$0xf]
      %v6400 = vld [vmem:[%s10 + $0x144] sm:$0xf]
      %v6401 = vld [vmem:[%s10 + $0x148] sm:$0xf]
      %v6402 = vld [vmem:[%s10 + $0x14c] sm:$0xf]
      %v6403 = vld [vmem:[%s10 + $0x150] sm:$0xf]
      %v6404 = vld [vmem:[%s10 + $0x154] sm:$0xf]
      %v6405 = vld [vmem:[%s10 + $0x158] sm:$0xf]
      %v6406 = vld [vmem:[%s10 + $0x15c] sm:$0xf]
      %v6407 = vld [vmem:[%s10 + $0x160] sm:$0xf]
      %v6408 = vld [vmem:[%s10 + $0x164] sm:$0xf]
      %v6409 = vld [vmem:[%s10 + $0x168] sm:$0xf]
      %v6410 = vld [vmem:[%s10 + $0x16c] sm:$0xf]
      %v6411 = vld [vmem:[%s10 + $0x170] sm:$0xf]
      %v6412 = vld [vmem:[%s10 + $0x174] sm:$0xf]
      %v6413 = vld [vmem:[%s10 + $0x178] sm:$0xf]
      %v6414 = vld [vmem:[%s10 + $0x17c] sm:$0xf]
      %v6415 = vld [vmem:[%s10 + $0x180] sm:$0xf]
      %v6416 = vld [vmem:[%s10 + $0x184] sm:$0xf]
      %v6417 = vld [vmem:[%s10 + $0x188] sm:$0xf]
      %v6418 = vld [vmem:[%s10 + $0x18c] sm:$0xf]
      %v6419 = vld [vmem:[%s10 + $0x190] sm:$0xf]
      %v6420 = vld [vmem:[%s10 + $0x194] sm:$0xf]
      %v6421 = vld [vmem:[%s10 + $0x198] sm:$0xf]
      %v6422 = vld [vmem:[%s10 + $0x19c] sm:$0xf]
      %v6423 = vld [vmem:[%s10 + $0x1a0] sm:$0xf]
      %v6424 = vld [vmem:[%s10 + $0x1a4] sm:$0xf]
      %v6425 = vld [vmem:[%s10 + $0x1a8] sm:$0xf]
      %v6426 = vld [vmem:[%s10 + $0x1ac] sm:$0xf]
      %v6427 = vld [vmem:[%s10 + $0x1b0] sm:$0xf]
      %v6428 = vld [vmem:[%s10 + $0x1b4] sm:$0xf]
      %v6429 = vld [vmem:[%s10 + $0x1b8] sm:$0xf]
      %v6430 = vld [vmem:[%s10 + $0x1bc] sm:$0xf]
      %v6431 = vld [vmem:[%s10 + $0x1c0] sm:$0xf]
      %v6432 = vld [vmem:[%s10 + $0x1c4] sm:$0xf]
      %v6433 = vld [vmem:[%s10 + $0x1c8] sm:$0xf]
      %v6434 = vld [vmem:[%s10 + $0x1cc] sm:$0xf]
      %v6435 = vld [vmem:[%s10 + $0x1d0] sm:$0xf]
      %v6436 = vld [vmem:[%s10 + $0x1d4] sm:$0xf]
      %v6437 = vld [vmem:[%s10 + $0x1d8] sm:$0xf]
      %v6438 = vld [vmem:[%s10 + $0x1dc] sm:$0xf]
      %v6439 = vld [vmem:[%s10 + $0x1e0] sm:$0xf]
      %v6440 = vld [vmem:[%s10 + $0x1e4] sm:$0xf]
      %v6441 = vld [vmem:[%s10 + $0x1e8] sm:$0xf]
      %v6442 = vld [vmem:[%s10 + $0x1ec] sm:$0xf]
      %v6443 = vld [vmem:[%s10 + $0x1f0] sm:$0xf]
      %v6444 = vld [vmem:[%s10 + $0x1f4] sm:$0xf]
      %v6445 = vld [vmem:[%s10 + $0x1f8] sm:$0xf]
      %v6446 = vld [vmem:[%s10 + $0x1fc] sm:$0xf]
      %v6447 = vld [vmem:[%s10 + $0x200] sm:$0xf]
      %v6448 = vld [vmem:[%s10 + $0x204] sm:$0xf]
      %v6449 = vld [vmem:[%s10 + $0x208] sm:$0xf]
      %v6450 = vld [vmem:[%s10 + $0x20c] sm:$0xf]
      %v6451 = vld [vmem:[%s10 + $0x210] sm:$0xf]
      %v6452 = vld [vmem:[%s10 + $0x214] sm:$0xf]
      %v6453 = vld [vmem:[%s10 + $0x218] sm:$0xf]
      %v6454 = vld [vmem:[%s10 + $0x21c] sm:$0xf]
      %v6455 = vld [vmem:[%s10 + $0x220] sm:$0xf]
      %v6456 = vld [vmem:[%s10 + $0x224] sm:$0xf]
      %v6457 = vld [vmem:[%s10 + $0x228] sm:$0xf]
      %v6458 = vld [vmem:[%s10 + $0x22c] sm:$0xf]
      %v6459 = vld [vmem:[%s10 + $0x230] sm:$0xf]
      %v6460 = vld [vmem:[%s10 + $0x234] sm:$0xf]
      %v6461 = vld [vmem:[%s10 + $0x238] sm:$0xf]
      %v6462 = vld [vmem:[%s10 + $0x23c] sm:$0xf]
      %v6463 = vld [vmem:[%s11] sm:$0x1]
      %v6465 = vlaneseq
      %v6466 = vshrl.u32 %v6465, 7
      %v6467 = vsub.s32 0, %v6466
      %v6468 = vrot.slane %v6463, %v6467
      %v6614 = vunpack.c.l.b16 %v6319
      %v6615 = vunpack.c.l.b16 %v6320
      %v6616 = vunpack.c.l.b16 %v6321
      %v6617 = vunpack.c.l.b16 %v6322
      %v6618 = vunpack.c.l.b16 %v6323
      %v6619 = vunpack.c.l.b16 %v6324
      %v6620 = vunpack.c.l.b16 %v6325
      %v6621 = vunpack.c.l.b16 %v6326
      %v6622 = vunpack.c.l.b16 %v6327
      %v6623 = vunpack.c.l.b16 %v6328
      %v6624 = vunpack.c.l.b16 %v6329
      %v6625 = vunpack.c.l.b16 %v6330
      %v6626 = vunpack.c.l.b16 %v6331
      %v6627 = vunpack.c.l.b16 %v6332
      %v6628 = vunpack.c.l.b16 %v6333
      %v6629 = vunpack.c.l.b16 %v6334
      %v6630 = vunpack.c.l.b16 %v6335
      %v6631 = vunpack.c.l.b16 %v6336
      %v6632 = vunpack.c.l.b16 %v6337
      %v6633 = vunpack.c.l.b16 %v6338
      %v6634 = vunpack.c.l.b16 %v6339
      %v6635 = vunpack.c.l.b16 %v6340
      %v6636 = vunpack.c.l.b16 %v6341
      %v6637 = vunpack.c.l.b16 %v6342
      %v6638 = vunpack.c.l.b16 %v6343
      %v6639 = vunpack.c.l.b16 %v6344
      %v6640 = vunpack.c.l.b16 %v6345
      %v6641 = vunpack.c.l.b16 %v6346
      %v6642 = vunpack.c.l.b16 %v6347
      %v6643 = vunpack.c.l.b16 %v6348
      %v6644 = vunpack.c.l.b16 %v6349
      %v6645 = vunpack.c.l.b16 %v6350
      %v6646 = vunpack.c.l.b16 %v6351
      %v6647 = vunpack.c.l.b16 %v6352
      %v6648 = vunpack.c.l.b16 %v6353
      %v6649 = vunpack.c.l.b16 %v6354
      %v6650 = vunpack.c.l.b16 %v6355
      %v6651 = vunpack.c.l.b16 %v6356
      %v6652 = vunpack.c.l.b16 %v6357
      %v6653 = vunpack.c.l.b16 %v6358
      %v6654 = vunpack.c.l.b16 %v6359
      %v6655 = vunpack.c.l.b16 %v6360
      %v6656 = vunpack.c.l.b16 %v6361
      %v6657 = vunpack.c.l.b16 %v6362
      %v6658 = vunpack.c.l.b16 %v6363
      %v6659 = vunpack.c.l.b16 %v6364
      %v6660 = vunpack.c.l.b16 %v6365
      %v6661 = vunpack.c.l.b16 %v6366
      %v6662 = vunpack.c.l.b16 %v6367
      %v6663 = vunpack.c.l.b16 %v6368
      %v6664 = vunpack.c.l.b16 %v6369
      %v6665 = vunpack.c.l.b16 %v6370
      %v6666 = vunpack.c.l.b16 %v6371
      %v6667 = vunpack.c.l.b16 %v6372
      %v6668 = vunpack.c.l.b16 %v6373
      %v6669 = vunpack.c.l.b16 %v6374
      %v6670 = vunpack.c.l.b16 %v6375
      %v6671 = vunpack.c.l.b16 %v6376
      %v6672 = vunpack.c.l.b16 %v6377
      %v6673 = vunpack.c.l.b16 %v6378
      %v6674 = vunpack.c.l.b16 %v6379
      %v6675 = vunpack.c.l.b16 %v6380
      %v6676 = vunpack.c.l.b16 %v6381
      %v6677 = vunpack.c.l.b16 %v6382
      %v6678 = vunpack.c.l.b16 %v6383
      %v6679 = vunpack.c.l.b16 %v6384
      %v6680 = vunpack.c.l.b16 %v6385
      %v6681 = vunpack.c.l.b16 %v6386
      %v6682 = vunpack.c.l.b16 %v6387
      %v6683 = vunpack.c.l.b16 %v6388
      %v6684 = vunpack.c.l.b16 %v6389
      %v6685 = vunpack.c.l.b16 %v6390
      %v6686 = vunpack.c.l.b16 %v6391
      %v6687 = vunpack.c.l.b16 %v6392
      %v6688 = vunpack.c.l.b16 %v6393
      %v6689 = vunpack.c.l.b16 %v6394
      %v6690 = vunpack.c.l.b16 %v6395
      %v6691 = vunpack.c.l.b16 %v6396
      %v6692 = vunpack.c.l.b16 %v6397
      %v6693 = vunpack.c.l.b16 %v6398
      %v6694 = vunpack.c.l.b16 %v6399
      %v6695 = vunpack.c.l.b16 %v6400
      %v6696 = vunpack.c.l.b16 %v6401
      %v6697 = vunpack.c.l.b16 %v6402
      %v6698 = vunpack.c.l.b16 %v6403
      %v6699 = vunpack.c.l.b16 %v6404
      %v6700 = vunpack.c.l.b16 %v6405
      %v6701 = vunpack.c.l.b16 %v6406
      %v6702 = vunpack.c.l.b16 %v6407
      %v6703 = vunpack.c.l.b16 %v6408
      %v6704 = vunpack.c.l.b16 %v6409
      %v6705 = vunpack.c.l.b16 %v6410
      %v6706 = vunpack.c.l.b16 %v6411
      %v6707 = vunpack.c.l.b16 %v6412
      %v6708 = vunpack.c.l.b16 %v6413
      %v6709 = vunpack.c.l.b16 %v6414
      %v6710 = vunpack.c.l.b16 %v6415
      %v6711 = vunpack.c.l.b16 %v6416
      %v6712 = vunpack.c.l.b16 %v6417
      %v6713 = vunpack.c.l.b16 %v6418
      %v6714 = vunpack.c.l.b16 %v6419
      %v6715 = vunpack.c.l.b16 %v6420
      %v6716 = vunpack.c.l.b16 %v6421
      %v6717 = vunpack.c.l.b16 %v6422
      %v6718 = vunpack.c.l.b16 %v6423
      %v6719 = vunpack.c.l.b16 %v6424
      %v6720 = vunpack.c.l.b16 %v6425
      %v6721 = vunpack.c.l.b16 %v6426
      %v6722 = vunpack.c.l.b16 %v6427
      %v6723 = vunpack.c.l.b16 %v6428
      %v6724 = vunpack.c.l.b16 %v6429
      %v6725 = vunpack.c.l.b16 %v6430
      %v6726 = vunpack.c.l.b16 %v6431
      %v6727 = vunpack.c.l.b16 %v6432
      %v6728 = vunpack.c.l.b16 %v6433
      %v6729 = vunpack.c.l.b16 %v6434
      %v6730 = vunpack.c.l.b16 %v6435
      %v6731 = vunpack.c.l.b16 %v6436
      %v6732 = vunpack.c.l.b16 %v6437
      %v6733 = vunpack.c.l.b16 %v6438
      %v6734 = vunpack.c.l.b16 %v6439
      %v6735 = vunpack.c.l.b16 %v6440
      %v6736 = vunpack.c.l.b16 %v6441
      %v6737 = vunpack.c.l.b16 %v6442
      %v6738 = vunpack.c.l.b16 %v6443
      %v6739 = vunpack.c.l.b16 %v6444
      %v6740 = vunpack.c.l.b16 %v6445
      %v6741 = vunpack.c.l.b16 %v6446
      %v6742 = vunpack.c.l.b16 %v6447
      %v6743 = vunpack.c.l.b16 %v6448
      %v6744 = vunpack.c.l.b16 %v6449
      %v6745 = vunpack.c.l.b16 %v6450
      %v6746 = vunpack.c.l.b16 %v6451
      %v6747 = vunpack.c.l.b16 %v6452
      %v6748 = vunpack.c.l.b16 %v6453
      %v6749 = vunpack.c.l.b16 %v6454
      %v6750 = vunpack.c.l.b16 %v6455
      %v6751 = vunpack.c.l.b16 %v6456
      %v6752 = vunpack.c.l.b16 %v6457
      %v6753 = vunpack.c.l.b16 %v6458
      %v6754 = vunpack.c.l.b16 %v6459
      %v6755 = vunpack.c.l.b16 %v6460
      %v6756 = vunpack.c.l.b16 %v6461
      %v6757 = vunpack.c.l.b16 %v6462
      %v6758 = vpack.c.b16 %v6615, %v6614
      %v6759 = vpack.c.b16 %v6617, %v6616
      %v6760 = vpack.c.b16 %v6619, %v6618
      %v6761 = vpack.c.b16 %v6621, %v6620
      %v6762 = vpack.c.b16 %v6623, %v6622
      %v6763 = vpack.c.b16 %v6625, %v6624
      %v6764 = vpack.c.b16 %v6627, %v6626
      %v6765 = vpack.c.b16 %v6629, %v6628
      %v6766 = vpack.c.b16 %v6631, %v6630
      %v6767 = vpack.c.b16 %v6633, %v6632
      %v6768 = vpack.c.b16 %v6635, %v6634
      %v6769 = vpack.c.b16 %v6637, %v6636
      %v6770 = vpack.c.b16 %v6639, %v6638
      %v6771 = vpack.c.b16 %v6641, %v6640
      %v6772 = vpack.c.b16 %v6643, %v6642
      %v6773 = vpack.c.b16 %v6645, %v6644
      %v6774 = vpack.c.b16 %v6647, %v6646
      %v6775 = vpack.c.b16 %v6649, %v6648
      %v6776 = vpack.c.b16 %v6651, %v6650
      %v6777 = vpack.c.b16 %v6653, %v6652
      %v6778 = vpack.c.b16 %v6655, %v6654
      %v6779 = vpack.c.b16 %v6657, %v6656
      %v6780 = vpack.c.b16 %v6659, %v6658
      %v6781 = vpack.c.b16 %v6661, %v6660
      %v6782 = vpack.c.b16 %v6663, %v6662
      %v6783 = vpack.c.b16 %v6665, %v6664
      %v6784 = vpack.c.b16 %v6667, %v6666
      %v6785 = vpack.c.b16 %v6669, %v6668
      %v6786 = vpack.c.b16 %v6671, %v6670
      %v6787 = vpack.c.b16 %v6673, %v6672
      %v6788 = vpack.c.b16 %v6675, %v6674
      %v6789 = vpack.c.b16 %v6677, %v6676
      %v6790 = vpack.c.b16 %v6679, %v6678
      %v6791 = vpack.c.b16 %v6681, %v6680
      %v6792 = vpack.c.b16 %v6683, %v6682
      %v6793 = vpack.c.b16 %v6685, %v6684
      %v6794 = vpack.c.b16 %v6687, %v6686
      %v6795 = vpack.c.b16 %v6689, %v6688
      %v6796 = vpack.c.b16 %v6691, %v6690
      %v6797 = vpack.c.b16 %v6693, %v6692
      %v6798 = vpack.c.b16 %v6695, %v6694
      %v6799 = vpack.c.b16 %v6697, %v6696
      %v6800 = vpack.c.b16 %v6699, %v6698
      %v6801 = vpack.c.b16 %v6701, %v6700
      %v6802 = vpack.c.b16 %v6703, %v6702
      %v6803 = vpack.c.b16 %v6705, %v6704
      %v6804 = vpack.c.b16 %v6707, %v6706
      %v6805 = vpack.c.b16 %v6709, %v6708
      %v6806 = vpack.c.b16 %v6711, %v6710
      %v6807 = vpack.c.b16 %v6713, %v6712
      %v6808 = vpack.c.b16 %v6715, %v6714
      %v6809 = vpack.c.b16 %v6717, %v6716
      %v6810 = vpack.c.b16 %v6719, %v6718
      %v6811 = vpack.c.b16 %v6721, %v6720
      %v6812 = vpack.c.b16 %v6723, %v6722
      %v6813 = vpack.c.b16 %v6725, %v6724
      %v6814 = vpack.c.b16 %v6727, %v6726
      %v6815 = vpack.c.b16 %v6729, %v6728
      %v6816 = vpack.c.b16 %v6731, %v6730
      %v6817 = vpack.c.b16 %v6733, %v6732
      %v6818 = vpack.c.b16 %v6735, %v6734
      %v6819 = vpack.c.b16 %v6737, %v6736
      %v6820 = vpack.c.b16 %v6739, %v6738
      %v6821 = vpack.c.b16 %v6741, %v6740
      %v6822 = vpack.c.b16 %v6743, %v6742
      %v6823 = vpack.c.b16 %v6745, %v6744
      %v6824 = vpack.c.b16 %v6747, %v6746
      %v6825 = vpack.c.b16 %v6749, %v6748
      %v6826 = vpack.c.b16 %v6751, %v6750
      %v6827 = vpack.c.b16 %v6753, %v6752
      %v6828 = vpack.c.b16 %v6755, %v6754
      %v6829 = vpack.c.b16 %v6757, %v6756
      %6902 = vmatprep.subr.bf16.mxu0 0
      %6903 = vmatpush1.bf16.msra.mxu0 %v6758
      %6904 = vmatprep.subr.bf16.mxu0 0
      %6905 = vmatpush1.bf16.msra.mxu0 %v6759
      %6906 = vmatprep.subr.bf16.mxu0 0
      %6907 = vmatpush1.bf16.msra.mxu0 %v6760
      %6908 = vmatprep.subr.bf16.mxu0 0
      %6909 = vmatpush1.bf16.msra.mxu0 %v6761
      %6910 = vmatprep.subr.bf16.mxu0 0
      %6911 = vmatpush1.bf16.msra.mxu0 %v6762
      %6912 = vmatprep.subr.bf16.mxu0 0
      %6913 = vmatpush1.bf16.msra.mxu0 %v6763
      %6914 = vmatprep.subr.bf16.mxu0 0
      %6915 = vmatpush1.bf16.msra.mxu0 %v6764
      %6916 = vmatprep.subr.bf16.mxu0 0
      %6917 = vmatpush1.bf16.msra.mxu0 %v6765
      %6918 = vmatprep.subr.bf16.mxu0 0
      %6919 = vmatpush1.bf16.msra.mxu0 %v6766
      %6920 = vmatprep.subr.bf16.mxu0 0
      %6921 = vmatpush1.bf16.msra.mxu0 %v6767
      %6922 = vmatprep.subr.bf16.mxu0 0
      %6923 = vmatpush1.bf16.msra.mxu0 %v6768
      %6924 = vmatprep.subr.bf16.mxu0 0
      %6925 = vmatpush1.bf16.msra.mxu0 %v6769
      %6926 = vmatprep.subr.bf16.mxu0 0
      %6927 = vmatpush1.bf16.msra.mxu0 %v6770
      %6928 = vmatprep.subr.bf16.mxu0 0
      %6929 = vmatpush1.bf16.msra.mxu0 %v6771
      %6930 = vmatprep.subr.bf16.mxu0 0
      %6931 = vmatpush1.bf16.msra.mxu0 %v6772
      %6932 = vmatprep.subr.bf16.mxu0 0
      %6933 = vmatpush1.bf16.msra.mxu0 %v6773
      %6934 = vmatprep.mubr.bf16.mxu0 %v6302
      %6935 = vmatmul.mubr.bf16.gmra.mrb[0].mxu0 %v6301
      %v6936 = vpop.f32.mrb[0].mxu0
      %v6937 = vadd.f32 %v6468, %v6936
      %v6938 = vpop.f32.mrb[0].mxu0
      %v6939 = vpop.f32.mrb[0].mxu0
      %v6940 = vadd.f32 %v6468, %v6939
      %v6941 = vpop.f32.mrb[0].mxu0
      %6942 = vmatprep.mubr.bf16.mxu0 %v6311
      %6943 = vmatmul.mubr.bf16.gmra.mrb[0].mxu0 %v6310
      %v6944 = vpop.f32.mrb[0].mxu0
      %v6945 = vadd.f32 %v6468, %v6944
      %v6946 = vpop.f32.mrb[0].mxu0
      %v6947 = vpop.f32.mrb[0].mxu0
      %v6948 = vpop.f32.mrb[0].mxu0
      %6949 = vdwg.mxu0
      %6950 = vmatprep.subr.bf16.mxu0 0
      %6951 = vmatpush1.bf16.msra.mxu0 %v6774
      %6952 = vmatprep.subr.bf16.mxu0 0
      %6953 = vmatpush1.bf16.msra.mxu0 %v6775
      %6954 = vmatprep.subr.bf16.mxu0 0
      %6955 = vmatpush1.bf16.msra.mxu0 %v6776
      %6956 = vmatprep.subr.bf16.mxu0 0
      %6957 = vmatpush1.bf16.msra.mxu0 %v6777
      %6958 = vmatprep.subr.bf16.mxu0 0
      %6959 = vmatpush1.bf16.msra.mxu0 %v6778
      %6960 = vmatprep.subr.bf16.mxu0 0
      %6961 = vmatpush1.bf16.msra.mxu0 %v6779
      %6962 = vmatprep.subr.bf16.mxu0 0
      %6963 = vmatpush1.bf16.msra.mxu0 %v6780
      %6964 = vmatprep.subr.bf16.mxu0 0
      %6965 = vmatpush1.bf16.msra.mxu0 %v6781
      %6966 = vmatprep.subr.bf16.mxu0 0
      %6967 = vmatpush1.bf16.msra.mxu0 %v6782
      %6968 = vmatprep.subr.bf16.mxu0 0
      %6969 = vmatpush1.bf16.msra.mxu0 %v6783
      %6970 = vmatprep.subr.bf16.mxu0 0
      %6971 = vmatpush1.bf16.msra.mxu0 %v6784
      %6972 = vmatprep.subr.bf16.mxu0 0
      %6973 = vmatpush1.bf16.msra.mxu0 %v6785
      %6974 = vmatprep.subr.bf16.mxu0 0
      %6975 = vmatpush1.bf16.msra.mxu0 %v6786
      %6976 = vmatprep.subr.bf16.mxu0 0
      %6977 = vmatpush1.bf16.msra.mxu0 %v6787
      %6978 = vmatprep.subr.bf16.mxu0 0
      %6979 = vmatpush1.bf16.msra.mxu0 %v6788
      %6980 = vmatprep.subr.bf16.mxu0 0
      %6981 = vmatpush1.bf16.msra.mxu0 %v6789
      %6982 = vmatprep.mubr.bf16.mxu0 %v6304
      %6983 = vmatmul.mubr.bf16.gmra.mrb[0].mxu0 %v6303
      %v6984 = vpop.f32.mrb[0].mxu0
      %v6985 = vadd.f32 %v6937, %v6984
      %v6986 = vpop.f32.mrb[0].mxu0
      %v6987 = vpop.f32.mrb[0].mxu0
      %v6988 = vadd.f32 %v6940, %v6987
      %v6989 = vpop.f32.mrb[0].mxu0
      %6990 = vmatprep.mubr.bf16.mxu0 %v6313
      %6991 = vmatmul.mubr.bf16.gmra.mrb[0].mxu0 %v6312
      %v6992 = vpop.f32.mrb[0].mxu0
      %v6993 = vadd.f32 %v6945, %v6992
      %v6994 = vpop.f32.mrb[0].mxu0
      %v6995 = vpop.f32.mrb[0].mxu0
      %v6996 = vpop.f32.mrb[0].mxu0
      %6997 = vdwg.mxu0
      %6998 = vmatprep.subr.bf16.mxu0 0
      %6999 = vmatpush1.bf16.msra.mxu0 %v6790
      %7000 = vmatprep.subr.bf16.mxu0 0
      %7001 = vmatpush1.bf16.msra.mxu0 %v6791
      %7002 = vmatprep.subr.bf16.mxu0 0
      %7003 = vmatpush1.bf16.msra.mxu0 %v6792
      %7004 = vmatprep.subr.bf16.mxu0 0
      %7005 = vmatpush1.bf16.msra.mxu0 %v6793
      %7006 = vmatprep.subr.bf16.mxu0 0
      %7007 = vmatpush1.bf16.msra.mxu0 %v6794
      %7008 = vmatprep.subr.bf16.mxu0 0
      %7009 = vmatpush1.bf16.msra.mxu0 %v6795
      %7010 = vmatprep.subr.bf16.mxu0 0
      %7011 = vmatpush1.bf16.msra.mxu0 %v6796
      %7012 = vmatprep.subr.bf16.mxu0 0
      %7013 = vmatpush1.bf16.msra.mxu0 %v6797
      %7014 = vmatprep.subr.bf16.mxu0 0
      %7015 = vmatpush1.bf16.msra.mxu0 %v6798
      %7016 = vmatprep.subr.bf16.mxu0 0
      %7017 = vmatpush1.bf16.msra.mxu0 %v6799
      %7018 = vmatprep.subr.bf16.mxu0 0
      %7019 = vmatpush1.bf16.msra.mxu0 %v6800
      %7020 = vmatprep.subr.bf16.mxu0 0
      %7021 = vmatpush1.bf16.msra.mxu0 %v6801
      %7022 = vmatprep.subr.bf16.mxu0 0
      %7023 = vmatpush1.bf16.msra.mxu0 %v6802
      %7024 = vmatprep.subr.bf16.mxu0 0
      %7025 = vmatpush1.bf16.msra.mxu0 %v6803
      %7026 = vmatprep.subr.bf16.mxu0 0
      %7027 = vmatpush1.bf16.msra.mxu0 %v6804
      %7028 = vmatprep.subr.bf16.mxu0 0
      %7029 = vmatpush1.bf16.msra.mxu0 %v6805
      %7030 = vmatprep.mubr.bf16.mxu0 %v6306
      %7031 = vmatmul.mubr.bf16.gmra.mrb[0].mxu0 %v6305
      %v7032 = vpop.f32.mrb[0].mxu0
      %v7033 = vadd.f32 %v6985, %v7032
      %v7034 = vpop.f32.mrb[0].mxu0
      %v7035 = vpop.f32.mrb[0].mxu0
      %v7036 = vadd.f32 %v6988, %v7035
      %v7037 = vpop.f32.mrb[0].mxu0
      %7038 = vmatprep.mubr.bf16.mxu0 %v6315
      %7039 = vmatmul.mubr.bf16.gmra.mrb[0].mxu0 %v6314
      %v7040 = vpop.f32.mrb[0].mxu0
      %v7041 = vadd.f32 %v6993, %v7040
      %v7042 = vpop.f32.mrb[0].mxu0
      %v7043 = vpop.f32.mrb[0].mxu0
      %v7044 = vpop.f32.mrb[0].mxu0
      %7045 = vdwg.mxu0
      %7046 = vmatprep.subr.bf16.mxu0 0
      %7047 = vmatpush1.bf16.msra.mxu0 %v6806
      %7048 = vmatprep.subr.bf16.mxu0 0
      %7049 = vmatpush1.bf16.msra.mxu0 %v6807
      %7050 = vmatprep.subr.bf16.mxu0 0
      %7051 = vmatpush1.bf16.msra.mxu0 %v6808
      %7052 = vmatprep.subr.bf16.mxu0 0
      %7053 = vmatpush1.bf16.msra.mxu0 %v6809
      %7054 = vmatprep.subr.bf16.mxu0 0
      %7055 = vmatpush1.bf16.msra.mxu0 %v6810
      %7056 = vmatprep.subr.bf16.mxu0 0
      %7057 = vmatpush1.bf16.msra.mxu0 %v6811
      %7058 = vmatprep.subr.bf16.mxu0 0
      %7059 = vmatpush1.bf16.msra.mxu0 %v6812
      %7060 = vmatprep.subr.bf16.mxu0 0
      %7061 = vmatpush1.bf16.msra.mxu0 %v6813
      %7062 = vmatprep.subr.bf16.mxu0 0
      %7063 = vmatpush1.bf16.msra.mxu0 %v6814
      %7064 = vmatprep.subr.bf16.mxu0 0
      %7065 = vmatpush1.bf16.msra.mxu0 %v6815
      %7066 = vmatprep.subr.bf16.mxu0 0
      %7067 = vmatpush1.bf16.msra.mxu0 %v6816
      %7068 = vmatprep.subr.bf16.mxu0 0
      %7069 = vmatpush1.bf16.msra.mxu0 %v6817
      %7070 = vmatprep.subr.bf16.mxu0 0
      %7071 = vmatpush1.bf16.msra.mxu0 %v6818
      %7072 = vmatprep.subr.bf16.mxu0 0
      %7073 = vmatpush1.bf16.msra.mxu0 %v6819
      %7074 = vmatprep.subr.bf16.mxu0 0
      %7075 = vmatpush1.bf16.msra.mxu0 %v6820
      %7076 = vmatprep.subr.bf16.mxu0 0
      %7077 = vmatpush1.bf16.msra.mxu0 %v6821
      %7078 = vmatprep.mubr.bf16.mxu0 %v6308
      %7079 = vmatmul.mubr.bf16.gmra.mrb[0].mxu0 %v6307
      %v7080 = vpop.f32.mrb[0].mxu0
      %v7081 = vadd.f32 %v7033, %v7080
      %v7082 = vpop.f32.mrb[0].mxu0
      %v7083 = vpop.f32.mrb[0].mxu0
      %v7084 = vadd.f32 %v7036, %v7083
      %v7085 = vpop.f32.mrb[0].mxu0
      %7086 = vmatprep.mubr.bf16.mxu0 %v6317
      %7087 = vmatmul.mubr.bf16.gmra.mrb[0].mxu0 %v6316
      %v7088 = vpop.f32.mrb[0].mxu0
      %v7089 = vadd.f32 %v7041, %v7088
      %v7090 = vpop.f32.mrb[0].mxu0
      %v7091 = vpop.f32.mrb[0].mxu0
      %v7092 = vpop.f32.mrb[0].mxu0
      %7093 = vdwg.mxu0
      %7094 = vmatprep.subr.bf16.mxu0 0
      %7095 = vmatpush1.bf16.msra.mxu0 %v6822
      %7096 = vmatprep.subr.bf16.mxu0 0
      %7097 = vmatpush1.bf16.msra.mxu0 %v6823
      %7098 = vmatprep.subr.bf16.mxu0 0
      %7099 = vmatpush1.bf16.msra.mxu0 %v6824
      %7100 = vmatprep.subr.bf16.mxu0 0
      %7101 = vmatpush1.bf16.msra.mxu0 %v6825
      %7102 = vmatprep.subr.bf16.mxu0 0
      %7103 = vmatpush1.bf16.msra.mxu0 %v6826
      %7104 = vmatprep.subr.bf16.mxu0 0
      %7105 = vmatpush1.bf16.msra.mxu0 %v6827
      %7106 = vmatprep.subr.bf16.mxu0 0
      %7107 = vmatpush1.bf16.msra.mxu0 %v6828
      %7108 = vmatprep.subr.bf16.mxu0 0
      %7109 = vmatpush1.bf16.msra.mxu0 %v6829
      %7110 = vmatprep.subr.bf16.mxu0 0
      %7111 = vmatpush1.bf16.msra.mxu0 0
      %7112 = vmatprep.subr.bf16.mxu0 0
      %7113 = vmatpush1.bf16.msra.mxu0 0
      %7114 = vmatprep.subr.bf16.mxu0 0
      %7115 = vmatpush1.bf16.msra.mxu0 0
      %7116 = vmatprep.subr.bf16.mxu0 0
      %7117 = vmatpush1.bf16.msra.mxu0 0
      %7118 = vmatprep.subr.bf16.mxu0 0
      %7119 = vmatpush1.bf16.msra.mxu0 0
      %7120 = vmatprep.subr.bf16.mxu0 0
      %7121 = vmatpush1.bf16.msra.mxu0 0
      %7122 = vmatprep.subr.bf16.mxu0 0
      %7123 = vmatpush1.bf16.msra.mxu0 0
      %7124 = vmatprep.subr.bf16.mxu0 0
      %7125 = vmatpush1.bf16.msra.mxu0 0
      %7126 = vmatprep.mubr.bf16.mxu0 0
      %7127 = vmatmul.mubr.bf16.gmra.mrb[0].mxu0 %v6309
      %v7128 = vpop.f32.mrb[0].mxu0
      %v7129 = vadd.f32 %v7081, %v7128
      %v7130 = vpop.f32.mrb[0].mxu0
      %v7131 = vpop.f32.mrb[0].mxu0
      %v7132 = vadd.f32 %v7084, %v7131
      %v7133 = vpop.f32.mrb[0].mxu0
      %7134 = vmatprep.mubr.bf16.mxu0 0
      %7135 = vmatmul.mubr.bf16.gmra.mrb[0].mxu0 %v6318
      %v7136 = vpop.f32.mrb[0].mxu0
      %v7137 = vadd.f32 %v7089, %v7136
      %v7138 = vpop.f32.mrb[0].mxu0
      %v7139 = vpop.f32.mrb[0].mxu0
      %v7140 = vpop.f32.mrb[0].mxu0
      %7141 = vdwg.mxu0
      %v7142 = vmax.f32 %v7129, 0.0
      %v7143 = vmax.f32 %v7132, 0.0
      %v7144 = vmax.f32 %v7137, 0.0
      %v7145 = vpack.c.bf16 %v7143, %v7142
      %v7146 = vpack.c.bf16 %v7144, %v7144
      %v7147 = vld [vmem:[%s12] sm:$0xff]
      %v7148 = vld [vmem:[%s12 + $0x8] sm:$0xff]
      %v7149 = vld [vmem:[%s12 + $0x10] sm:$0xff]
      %v7150 = vld [vmem:[%s12 + $0x18] sm:$0xff]
      %v7151 = vld [vmem:[%s12 + $0x20] sm:$0xff]
      %v7152 = vld [vmem:[%s12 + $0x28] sm:$0xff]
      %v7153 = vld [vmem:[%s12 + $0x30] sm:$0xff]
      %v7154 = vld [vmem:[%s12 + $0x38] sm:$0xff]
      %v7155 = vld [vmem:[%s12 + $0x40] sm:$0xff]
      %v7156 = vld [vmem:[%s12 + $0x48] sm:$0xff]
      %v7157 = vld [vmem:[%s12 + $0x50] sm:$0xff]
      %v7158 = vld [vmem:[%s12 + $0x58] sm:$0xff]
      %v7159 = vld [vmem:[%s12 + $0x60] sm:$0xff]
      %v7160 = vld [vmem:[%s12 + $0x68] sm:$0xff]
      %v7161 = vld [vmem:[%s12 + $0x70] sm:$0xff]
      %v7162 = vld [vmem:[%s12 + $0x78] sm:$0xff]
      %v7179 = vunpack.c.l.b16 %v7147
      %v7180 = vunpack.c.h.b16 %v7147
      %v7181 = vunpack.c.l.b16 %v7148
      %v7182 = vunpack.c.h.b16 %v7148
      %v7183 = vunpack.c.l.b16 %v7149
      %v7184 = vunpack.c.h.b16 %v7149
      %v7185 = vunpack.c.l.b16 %v7150
      %v7186 = vunpack.c.h.b16 %v7150
      %v7187 = vunpack.c.l.b16 %v7151
      %v7188 = vunpack.c.h.b16 %v7151
      %v7189 = vunpack.c.l.b16 %v7152
      %v7190 = vunpack.c.h.b16 %v7152
      %v7191 = vunpack.c.l.b16 %v7153
      %v7192 = vunpack.c.h.b16 %v7153
      %v7193 = vunpack.c.l.b16 %v7154
      %v7194 = vunpack.c.h.b16 %v7154
      %v7195 = vunpack.c.l.b16 %v7155
      %v7196 = vunpack.c.h.b16 %v7155
      %v7197 = vunpack.c.l.b16 %v7156
      %v7198 = vunpack.c.h.b16 %v7156
      %v7199 = vunpack.c.l.b16 %v7157
      %v7200 = vunpack.c.h.b16 %v7157
      %v7201 = vunpack.c.l.b16 %v7158
      %v7202 = vunpack.c.h.b16 %v7158
      %v7203 = vunpack.c.l.b16 %v7159
      %v7204 = vunpack.c.h.b16 %v7159
      %v7205 = vunpack.c.l.b16 %v7160
      %v7206 = vunpack.c.h.b16 %v7160
      %v7207 = vunpack.c.l.b16 %v7161
      %v7208 = vunpack.c.h.b16 %v7161
      %v7209 = vunpack.c.l.b16 %v7162
      %v7210 = vunpack.c.h.b16 %v7162
      %v7211 = vpack.c.b16 %v7181, %v7179
      %v7212 = vpack.c.b16 %v7182, %v7180
      %v7213 = vpack.c.b16 %v7185, %v7183
      %v7214 = vpack.c.b16 %v7186, %v7184
      %v7215 = vpack.c.b16 %v7189, %v7187
      %v7216 = vpack.c.b16 %v7190, %v7188
      %v7217 = vpack.c.b16 %v7193, %v7191
      %v7218 = vpack.c.b16 %v7194, %v7192
      %v7219 = vpack.c.b16 %v7197, %v7195
      %v7220 = vpack.c.b16 %v7198, %v7196
      %v7221 = vpack.c.b16 %v7201, %v7199
      %v7222 = vpack.c.b16 %v7202, %v7200
      %v7223 = vpack.c.b16 %v7205, %v7203
      %v7224 = vpack.c.b16 %v7206, %v7204
      %v7225 = vpack.c.b16 %v7209, %v7207
      %v7226 = vpack.c.b16 %v7210, %v7208
      %7243 = vmatprep.subr.bf16.mxu0 %v7212
      %7244 = vmatpush1.bf16.msra.mxu0 %v7211
      %7245 = vmatprep.subr.bf16.mxu0 %v7214
      %7246 = vmatpush1.bf16.msra.mxu0 %v7213
      %7247 = vmatprep.subr.bf16.mxu0 %v7216
      %7248 = vmatpush1.bf16.msra.mxu0 %v7215
      %7249 = vmatprep.subr.bf16.mxu0 %v7218
      %7250 = vmatpush1.bf16.msra.mxu0 %v7217
      %7251 = vmatprep.subr.bf16.mxu0 %v7220
      %7252 = vmatpush1.bf16.msra.mxu0 %v7219
      %7253 = vmatprep.subr.bf16.mxu0 %v7222
      %7254 = vmatpush1.bf16.msra.mxu0 %v7221
      %7255 = vmatprep.subr.bf16.mxu0 %v7224
      %7256 = vmatpush1.bf16.msra.mxu0 %v7223
      %7257 = vmatprep.subr.bf16.mxu0 %v7226
      %7258 = vmatpush1.bf16.msra.mxu0 %v7225
      %7259 = vmatprep.subr.bf16.mxu0 0
      %7260 = vmatpush1.bf16.msra.mxu0 0
      %7261 = vmatprep.subr.bf16.mxu0 0
      %7262 = vmatpush1.bf16.msra.mxu0 0
      %7263 = vmatprep.subr.bf16.mxu0 0
      %7264 = vmatpush1.bf16.msra.mxu0 0
      %7265 = vmatprep.subr.bf16.mxu0 0
      %7266 = vmatpush1.bf16.msra.mxu0 0
      %7267 = vmatprep.subr.bf16.mxu0 0
      %7268 = vmatpush1.bf16.msra.mxu0 0
      %7269 = vmatprep.subr.bf16.mxu0 0
      %7270 = vmatpush1.bf16.msra.mxu0 0
      %7271 = vmatprep.subr.bf16.mxu0 0
      %7272 = vmatpush1.bf16.msra.mxu0 0
      %7273 = vmatprep.subr.bf16.mxu0 0
      %7274 = vmatpush1.bf16.msra.mxu0 0
      %7275 = vmatprep.mubr.bf16.mxu0 0
      %7276 = vmatmul.mubr.bf16.gmra.mrb[0].mxu0 %v7145
      %v7277 = vpop.f32.mrb[0].mxu0
      %v7278 = vadd.f32 0.0, %v7277
      %v7279 = vpop.f32.mrb[0].mxu0
      %v7280 = vadd.f32 0.0, %v7279
      %v7281 = vpop.f32.mrb[0].mxu0
      %v7282 = vadd.f32 0.0, %v7281
      %v7283 = vpop.f32.mrb[0].mxu0
      %v7284 = vadd.f32 0.0, %v7283
      %7285 = vmatprep.mubr.bf16.mxu0 0
      %7286 = vmatmul.mubr.bf16.gmra.mrb[0].mxu0 %v7146
      %v7287 = vpop.f32.mrb[0].mxu0
      %v7288 = vadd.f32 0.0, %v7287
      %v7289 = vpop.f32.mrb[0].mxu0
      %v7290 = vadd.f32 0.0, %v7289
      %v7291 = vpop.f32.mrb[0].mxu0
      %v7292 = vpop.f32.mrb[0].mxu0
      %7293 = vdwg.mxu0
      %v7294 = vpack.c.bf16 %v7282, %v7278
      %v7295 = vpack.c.bf16 %v7284, %v7280
      %v7296 = vpack.c.bf16 %v7288, %v7288
      %v7297 = vpack.c.bf16 %v7290, %v7290
      %v7298 = vld [vmem:[%s14] sm:$0xf]
      %v7299 = vld [vmem:[%s14 + $0x4] sm:$0xf]
      %v7300 = vld [vmem:[%s14 + $0x8] sm:$0xf]
      %v7301 = vld [vmem:[%s14 + $0xc] sm:$0xf]
      %v7302 = vld [vmem:[%s14 + $0x10] sm:$0xf]
      %v7303 = vld [vmem:[%s14 + $0x14] sm:$0xf]
      %v7304 = vld [vmem:[%s14 + $0x18] sm:$0xf]
      %v7305 = vld [vmem:[%s14 + $0x1c] sm:$0xf]
      %v7306 = vld [vmem:[%s14 + $0x20] sm:$0xf]
      %v7307 = vld [vmem:[%s14 + $0x24] sm:$0x7]
      %s7308 = scalar_lea.vmem %s14, 40
      %v7309 = vld [vmem:[%s7308] sm:$0xf]
      %v7310 = vld [vmem:[%s7308 + $0x4] sm:$0xf]
      %v7311 = vld [vmem:[%s7308 + $0x8] sm:$0xf]
      %v7312 = vld [vmem:[%s7308 + $0xc] sm:$0xf]
      %v7313 = vld [vmem:[%s7308 + $0x10] sm:$0xf]
      %v7314 = vld [vmem:[%s7308 + $0x14] sm:$0xf]
      %v7315 = vld [vmem:[%s7308 + $0x18] sm:$0xf]
      %v7316 = vld [vmem:[%s7308 + $0x1c] sm:$0xf]
      %v7317 = vld [vmem:[%s7308 + $0x20] sm:$0xf]
      %v7318 = vld [vmem:[%s7308 + $0x24] sm:$0x7]
      %v7329 = vunpack.c.l.b16 %v7309
      %v7330 = vunpack.c.l.b16 %v7310
      %v7331 = vunpack.c.l.b16 %v7311
      %v7332 = vunpack.c.l.b16 %v7312
      %v7333 = vunpack.c.l.b16 %v7313
      %v7334 = vunpack.c.l.b16 %v7314
      %v7335 = vunpack.c.l.b16 %v7315
      %v7336 = vunpack.c.l.b16 %v7316
      %v7337 = vunpack.c.l.b16 %v7317
      %v7338 = vunpack.c.l.b16 %v7318
      %v7339 = vpack.c.b16 %v7330, %v7329
      %v7340 = vpack.c.b16 %v7332, %v7331
      %v7341 = vpack.c.b16 %v7334, %v7333
      %v7342 = vpack.c.b16 %v7336, %v7335
      %v7343 = vpack.c.b16 %v7338, %v7337
      %7346 = vrot.lane.b32.xlu0 %v7294, 64
      %v7347 = vpop.permute.xlu0 %7346
      %7348 = vrot.lane.b32.xlu0 %v7296, 64
      %v7349 = vpop.permute.xlu0 %7348
      %vm7351 = vcmask 179200
      %v7353 = vsel %vm7351, %v7339, 0
      %v7356 = vsel %vm7351, %v7340, 0
      %v7359 = vsel %vm7351, %v7341, 0
      %v7362 = vsel %vm7351, %v7342, 0
      %v7365 = vsel %vm7351, %v7343, 0
      %v7368 = vsel %vm1696, %v7349, 0
      %7370 = vmatprep.subr.bf16.mxu0 0
      %7371 = vmatpush1.bf16.msra.mxu0 %v7347
      %7372 = vmatprep.subr.bf16.mxu0 0
      %7373 = vmatpush1.bf16.msra.mxu0 %v7368
      %7374 = vmatprep.subr.bf16.mxu0 0
      %7375 = vmatpush1.bf16.msra.mxu0 0
      %7376 = vmatprep.subr.bf16.mxu0 0
      %7377 = vmatpush1.bf16.msra.mxu0 0
      %7378 = vmatprep.subr.bf16.mxu0 0
      %7379 = vmatpush1.bf16.msra.mxu0 0
      %7380 = vmatprep.subr.bf16.mxu0 0
      %7381 = vmatpush1.bf16.msra.mxu0 0
      %7382 = vmatprep.subr.bf16.mxu0 0
      %7383 = vmatpush1.bf16.msra.mxu0 0
      %7384 = vmatprep.subr.bf16.mxu0 0
      %7385 = vmatpush1.bf16.msra.mxu0 0
      %7386 = vmatprep.subr.bf16.mxu0 0
      %7387 = vmatpush1.bf16.msra.mxu0 0
      %7388 = vmatprep.subr.bf16.mxu0 0
      %7389 = vmatpush1.bf16.msra.mxu0 0
      %7390 = vmatprep.subr.bf16.mxu0 0
      %7391 = vmatpush1.bf16.msra.mxu0 0
      %7392 = vmatprep.subr.bf16.mxu0 0
      %7393 = vmatpush1.bf16.msra.mxu0 0
      %7394 = vmatprep.subr.bf16.mxu0 0
      %7395 = vmatpush1.bf16.msra.mxu0 0
      %7396 = vmatprep.subr.bf16.mxu0 0
      %7397 = vmatpush1.bf16.msra.mxu0 0
      %7398 = vmatprep.subr.bf16.mxu0 0
      %7399 = vmatpush1.bf16.msra.mxu0 0
      %7400 = vmatprep.subr.bf16.mxu0 0
      %7401 = vmatpush1.bf16.msra.mxu0 0
      %7402 = vmatprep.mubr.bf16.mxu0 0
      %7403 = vmatmul.mubr.bf16.gmra.mrb[0].mxu0 %v7353
      %v7404 = vpop.f32.mrb[0].mxu0
      %v7405 = vadd.f32 0.0, %v7404
      %v7406 = vpop.f32.mrb[0].mxu0
      %v7407 = vpop.f32.mrb[0].mxu0
      %v7408 = vadd.f32 0.0, %v7407
      %v7409 = vpop.f32.mrb[0].mxu0
      %7410 = vmatprep.mubr.bf16.mxu0 0
      %7411 = vmatmul.mubr.bf16.gmra.mrb[0].mxu0 %v7356
      %v7412 = vpop.f32.mrb[0].mxu0
      %v7413 = vadd.f32 0.0, %v7412
      %v7414 = vpop.f32.mrb[0].mxu0
      %v7415 = vpop.f32.mrb[0].mxu0
      %v7416 = vadd.f32 0.0, %v7415
      %v7417 = vpop.f32.mrb[0].mxu0
      %7418 = vmatprep.mubr.bf16.mxu0 0
      %7419 = vmatmul.mubr.bf16.gmra.mrb[0].mxu0 %v7359
      %v7420 = vpop.f32.mrb[0].mxu0
      %v7421 = vadd.f32 0.0, %v7420
      %v7422 = vpop.f32.mrb[0].mxu0
      %v7423 = vpop.f32.mrb[0].mxu0
      %v7424 = vadd.f32 0.0, %v7423
      %v7425 = vpop.f32.mrb[0].mxu0
      %7426 = vmatprep.mubr.bf16.mxu0 0
      %7427 = vmatmul.mubr.bf16.gmra.mrb[0].mxu0 %v7362
      %v7428 = vpop.f32.mrb[0].mxu0
      %v7429 = vadd.f32 0.0, %v7428
      %v7430 = vpop.f32.mrb[0].mxu0
      %v7431 = vpop.f32.mrb[0].mxu0
      %v7432 = vadd.f32 0.0, %v7431
      %v7433 = vpop.f32.mrb[0].mxu0
      %7434 = vmatprep.mubr.bf16.mxu0 0
      %7435 = vmatmul.mubr.bf16.gmra.mrb[0].mxu0 %v7365
      %v7436 = vpop.f32.mrb[0].mxu0
      %v7437 = vadd.f32 0.0, %v7436
      %v7438 = vpop.f32.mrb[0].mxu0
      %v7439 = vpop.f32.mrb[0].mxu0
      %v7440 = vadd.f32 0.0, %v7439
      %v7441 = vpop.f32.mrb[0].mxu0
      %7442 = vdwg.mxu0
      %v7453 = vunpack.c.l.b16 %v7298
      %v7454 = vunpack.c.l.b16 %v7299
      %v7455 = vunpack.c.l.b16 %v7300
      %v7456 = vunpack.c.l.b16 %v7301
      %v7457 = vunpack.c.l.b16 %v7302
      %v7458 = vunpack.c.l.b16 %v7303
      %v7459 = vunpack.c.l.b16 %v7304
      %v7460 = vunpack.c.l.b16 %v7305
      %v7461 = vunpack.c.l.b16 %v7306
      %v7462 = vunpack.c.l.b16 %v7307
      %v7463 = vpack.c.b16 %v7454, %v7453
      %v7464 = vpack.c.b16 %v7456, %v7455
      %v7465 = vpack.c.b16 %v7458, %v7457
      %v7466 = vpack.c.b16 %v7460, %v7459
      %v7467 = vpack.c.b16 %v7462, %v7461
      %v7469 = vsel %vm7351, %v7463, 0
      %v7472 = vsel %vm7351, %v7464, 0
      %v7475 = vsel %vm7351, %v7465, 0
      %v7478 = vsel %vm7351, %v7466, 0
      %v7481 = vsel %vm7351, %v7467, 0
      %v7484 = vsel %vm1696, %v7296, 0
      %7486 = vmatprep.subr.bf16.mxu0 0
      %7487 = vmatpush1.bf16.msra.mxu0 %v7294
      %7488 = vmatprep.subr.bf16.mxu0 0
      %7489 = vmatpush1.bf16.msra.mxu0 %v7484
      %7490 = vmatprep.subr.bf16.mxu0 0
      %7491 = vmatpush1.bf16.msra.mxu0 0
      %7492 = vmatprep.subr.bf16.mxu0 0
      %7493 = vmatpush1.bf16.msra.mxu0 0
      %7494 = vmatprep.subr.bf16.mxu0 0
      %7495 = vmatpush1.bf16.msra.mxu0 0
      %7496 = vmatprep.subr.bf16.mxu0 0
      %7497 = vmatpush1.bf16.msra.mxu0 0
      %7498 = vmatprep.subr.bf16.mxu0 0
      %7499 = vmatpush1.bf16.msra.mxu0 0
      %7500 = vmatprep.subr.bf16.mxu0 0
      %7501 = vmatpush1.bf16.msra.mxu0 0
      %7502 = vmatprep.subr.bf16.mxu0 0
      %7503 = vmatpush1.bf16.msra.mxu0 0
      %7504 = vmatprep.subr.bf16.mxu0 0
      %7505 = vmatpush1.bf16.msra.mxu0 0
      %7506 = vmatprep.subr.bf16.mxu0 0
      %7507 = vmatpush1.bf16.msra.mxu0 0
      %7508 = vmatprep.subr.bf16.mxu0 0
      %7509 = vmatpush1.bf16.msra.mxu0 0
      %7510 = vmatprep.subr.bf16.mxu0 0
      %7511 = vmatpush1.bf16.msra.mxu0 0
      %7512 = vmatprep.subr.bf16.mxu0 0
      %7513 = vmatpush1.bf16.msra.mxu0 0
      %7514 = vmatprep.subr.bf16.mxu0 0
      %7515 = vmatpush1.bf16.msra.mxu0 0
      %7516 = vmatprep.subr.bf16.mxu0 0
      %7517 = vmatpush1.bf16.msra.mxu0 0
      %7518 = vmatprep.mubr.bf16.mxu0 0
      %7519 = vmatmul.mubr.bf16.gmra.mrb[0].mxu0 %v7469
      %v7520 = vpop.f32.mrb[0].mxu0
      %v7521 = vadd.f32 %v7405, %v7520
      %v7522 = vpop.f32.mrb[0].mxu0
      %v7523 = vpop.f32.mrb[0].mxu0
      %v7524 = vadd.f32 %v7408, %v7523
      %v7525 = vpop.f32.mrb[0].mxu0
      %7526 = vmatprep.mubr.bf16.mxu0 0
      %7527 = vmatmul.mubr.bf16.gmra.mrb[0].mxu0 %v7472
      %v7528 = vpop.f32.mrb[0].mxu0
      %v7529 = vadd.f32 %v7413, %v7528
      %v7530 = vpop.f32.mrb[0].mxu0
      %v7531 = vpop.f32.mrb[0].mxu0
      %v7532 = vadd.f32 %v7416, %v7531
      %v7533 = vpop.f32.mrb[0].mxu0
      %7534 = vmatprep.mubr.bf16.mxu0 0
      %7535 = vmatmul.mubr.bf16.gmra.mrb[0].mxu0 %v7475
      %v7536 = vpop.f32.mrb[0].mxu0
      %v7537 = vadd.f32 %v7421, %v7536
      %v7538 = vpop.f32.mrb[0].mxu0
      %v7539 = vpop.f32.mrb[0].mxu0
      %v7540 = vadd.f32 %v7424, %v7539
      %v7541 = vpop.f32.mrb[0].mxu0
      %7542 = vmatprep.mubr.bf16.mxu0 0
      %7543 = vmatmul.mubr.bf16.gmra.mrb[0].mxu0 %v7478
      %v7544 = vpop.f32.mrb[0].mxu0
      %v7545 = vadd.f32 %v7429, %v7544
      %v7546 = vpop.f32.mrb[0].mxu0
      %v7547 = vpop.f32.mrb[0].mxu0
      %v7548 = vadd.f32 %v7432, %v7547
      %v7549 = vpop.f32.mrb[0].mxu0
      %7550 = vmatprep.mubr.bf16.mxu0 0
      %7551 = vmatmul.mubr.bf16.gmra.mrb[0].mxu0 %v7481
      %v7552 = vpop.f32.mrb[0].mxu0
      %v7553 = vadd.f32 %v7437, %v7552
      %v7554 = vpop.f32.mrb[0].mxu0
      %v7555 = vpop.f32.mrb[0].mxu0
      %v7556 = vadd.f32 %v7440, %v7555
      %v7557 = vpop.f32.mrb[0].mxu0
      %7558 = vdwg.mxu0
      %s7559 = scalar_lea.vmem %s14, 80
      %v7560 = vld [vmem:[%s7559] sm:$0xf]
      %v7561 = vld [vmem:[%s7559 + $0x4] sm:$0xf]
      %v7562 = vld [vmem:[%s7559 + $0x8] sm:$0xf]
      %v7563 = vld [vmem:[%s7559 + $0xc] sm:$0xf]
      %v7564 = vld [vmem:[%s7559 + $0x10] sm:$0xf]
      %v7565 = vld [vmem:[%s7559 + $0x14] sm:$0xf]
      %v7566 = vld [vmem:[%s7559 + $0x18] sm:$0xf]
      %v7567 = vld [vmem:[%s7559 + $0x1c] sm:$0xf]
      %v7568 = vld [vmem:[%s7559 + $0x20] sm:$0xf]
      %v7569 = vld [vmem:[%s7559 + $0x24] sm:$0x7]
      %v7580 = vunpack.c.l.b16 %v7560
      %v7581 = vunpack.c.l.b16 %v7561
      %v7582 = vunpack.c.l.b16 %v7562
      %v7583 = vunpack.c.l.b16 %v7563
      %v7584 = vunpack.c.l.b16 %v7564
      %v7585 = vunpack.c.l.b16 %v7565
      %v7586 = vunpack.c.l.b16 %v7566
      %v7587 = vunpack.c.l.b16 %v7567
      %v7588 = vunpack.c.l.b16 %v7568
      %v7589 = vunpack.c.l.b16 %v7569
      %v7590 = vpack.c.b16 %v7581, %v7580
      %v7591 = vpack.c.b16 %v7583, %v7582
      %v7592 = vpack.c.b16 %v7585, %v7584
      %v7593 = vpack.c.b16 %v7587, %v7586
      %v7594 = vpack.c.b16 %v7589, %v7588
      %v7596 = vsel %vm7351, %v7590, 0
      %v7599 = vsel %vm7351, %v7591, 0
      %v7602 = vsel %vm7351, %v7592, 0
      %v7605 = vsel %vm7351, %v7593, 0
      %v7608 = vsel %vm7351, %v7594, 0
      %v7611 = vsel %vm1696, %v7297, 0
      %7613 = vmatprep.subr.bf16.mxu0 0
      %7614 = vmatpush1.bf16.msra.mxu0 %v7295
      %7615 = vmatprep.subr.bf16.mxu0 0
      %7616 = vmatpush1.bf16.msra.mxu0 %v7611
      %7617 = vmatprep.subr.bf16.mxu0 0
      %7618 = vmatpush1.bf16.msra.mxu0 0
      %7619 = vmatprep.subr.bf16.mxu0 0
      %7620 = vmatpush1.bf16.msra.mxu0 0
      %7621 = vmatprep.subr.bf16.mxu0 0
      %7622 = vmatpush1.bf16.msra.mxu0 0
      %7623 = vmatprep.subr.bf16.mxu0 0
      %7624 = vmatpush1.bf16.msra.mxu0 0
      %7625 = vmatprep.subr.bf16.mxu0 0
      %7626 = vmatpush1.bf16.msra.mxu0 0
      %7627 = vmatprep.subr.bf16.mxu0 0
      %7628 = vmatpush1.bf16.msra.mxu0 0
      %7629 = vmatprep.subr.bf16.mxu0 0
      %7630 = vmatpush1.bf16.msra.mxu0 0
      %7631 = vmatprep.subr.bf16.mxu0 0
      %7632 = vmatpush1.bf16.msra.mxu0 0
      %7633 = vmatprep.subr.bf16.mxu0 0
      %7634 = vmatpush1.bf16.msra.mxu0 0
      %7635 = vmatprep.subr.bf16.mxu0 0
      %7636 = vmatpush1.bf16.msra.mxu0 0
      %7637 = vmatprep.subr.bf16.mxu0 0
      %7638 = vmatpush1.bf16.msra.mxu0 0
      %7639 = vmatprep.subr.bf16.mxu0 0
      %7640 = vmatpush1.bf16.msra.mxu0 0
      %7641 = vmatprep.subr.bf16.mxu0 0
      %7642 = vmatpush1.bf16.msra.mxu0 0
      %7643 = vmatprep.subr.bf16.mxu0 0
      %7644 = vmatpush1.bf16.msra.mxu0 0
      %7645 = vmatprep.mubr.bf16.mxu0 0
      %7646 = vmatmul.mubr.bf16.gmra.mrb[0].mxu0 %v7596
      %v7647 = vpop.f32.mrb[0].mxu0
      %v7648 = vadd.f32 0.0, %v7647
      %v7649 = vpop.f32.mrb[0].mxu0
      %v7650 = vpop.f32.mrb[0].mxu0
      %v7651 = vadd.f32 0.0, %v7650
      %v7652 = vpop.f32.mrb[0].mxu0
      %7653 = vmatprep.mubr.bf16.mxu0 0
      %7654 = vmatmul.mubr.bf16.gmra.mrb[0].mxu0 %v7599
      %v7655 = vpop.f32.mrb[0].mxu0
      %v7656 = vadd.f32 0.0, %v7655
      %v7657 = vpop.f32.mrb[0].mxu0
      %v7658 = vpop.f32.mrb[0].mxu0
      %v7659 = vadd.f32 0.0, %v7658
      %v7660 = vpop.f32.mrb[0].mxu0
      %7661 = vmatprep.mubr.bf16.mxu0 0
      %7662 = vmatmul.mubr.bf16.gmra.mrb[0].mxu0 %v7602
      %v7663 = vpop.f32.mrb[0].mxu0
      %v7664 = vadd.f32 0.0, %v7663
      %v7665 = vpop.f32.mrb[0].mxu0
      %v7666 = vpop.f32.mrb[0].mxu0
      %v7667 = vadd.f32 0.0, %v7666
      %v7668 = vpop.f32.mrb[0].mxu0
      %7669 = vmatprep.mubr.bf16.mxu0 0
      %7670 = vmatmul.mubr.bf16.gmra.mrb[0].mxu0 %v7605
      %v7671 = vpop.f32.mrb[0].mxu0
      %v7672 = vadd.f32 0.0, %v7671
      %v7673 = vpop.f32.mrb[0].mxu0
      %v7674 = vpop.f32.mrb[0].mxu0
      %v7675 = vadd.f32 0.0, %v7674
      %v7676 = vpop.f32.mrb[0].mxu0
      %7677 = vmatprep.mubr.bf16.mxu0 0
      %7678 = vmatmul.mubr.bf16.gmra.mrb[0].mxu0 %v7608
      %v7679 = vpop.f32.mrb[0].mxu0
      %v7680 = vadd.f32 0.0, %v7679
      %v7681 = vpop.f32.mrb[0].mxu0
      %v7682 = vpop.f32.mrb[0].mxu0
      %v7683 = vadd.f32 0.0, %v7682
      %v7684 = vpop.f32.mrb[0].mxu0
      %7685 = vdwg.mxu0
      %v7686 = vadd.f32 %v7521, %v7648
      %v7687 = vadd.f32 %v7524, %v7651
      %v7688 = vadd.f32 %v7529, %v7656
      %v7689 = vadd.f32 %v7532, %v7659
      %v7690 = vadd.f32 %v7537, %v7664
      %v7691 = vadd.f32 %v7540, %v7667
      %v7692 = vadd.f32 %v7545, %v7672
      %v7693 = vadd.f32 %v7548, %v7675
      %v7694 = vadd.f32 %v7553, %v7680
      %v7695 = vadd.f32 %v7556, %v7683
      %s7696 = scalar_lea.vmem %s14, 120
      %v7697 = vld [vmem:[%s7696] sm:$0xf]
      %v7698 = vld [vmem:[%s7696 + $0x4] sm:$0xf]
      %v7699 = vld [vmem:[%s7696 + $0x8] sm:$0xf]
      %v7700 = vld [vmem:[%s7696 + $0xc] sm:$0xf]
      %v7701 = vld [vmem:[%s7696 + $0x10] sm:$0xf]
      %v7702 = vld [vmem:[%s7696 + $0x14] sm:$0xf]
      %v7703 = vld [vmem:[%s7696 + $0x18] sm:$0xf]
      %v7704 = vld [vmem:[%s7696 + $0x1c] sm:$0xf]
      %v7705 = vld [vmem:[%s7696 + $0x20] sm:$0xf]
      %v7706 = vld [vmem:[%s7696 + $0x24] sm:$0x7]
      %v7717 = vunpack.c.l.b16 %v7697
      %v7718 = vunpack.c.l.b16 %v7698
      %v7719 = vunpack.c.l.b16 %v7699
      %v7720 = vunpack.c.l.b16 %v7700
      %v7721 = vunpack.c.l.b16 %v7701
      %v7722 = vunpack.c.l.b16 %v7702
      %v7723 = vunpack.c.l.b16 %v7703
      %v7724 = vunpack.c.l.b16 %v7704
      %v7725 = vunpack.c.l.b16 %v7705
      %v7726 = vunpack.c.l.b16 %v7706
      %v7727 = vpack.c.b16 %v7718, %v7717
      %v7728 = vpack.c.b16 %v7720, %v7719
      %v7729 = vpack.c.b16 %v7722, %v7721
      %v7730 = vpack.c.b16 %v7724, %v7723
      %v7731 = vpack.c.b16 %v7726, %v7725
      %7734 = vrot.lane.b32.xlu0 %v7295, 64
      %v7735 = vpop.permute.xlu0 %7734
      %7736 = vrot.lane.b32.xlu0 %v7297, 64
      %v7737 = vpop.permute.xlu0 %7736
      %v7740 = vsel %vm7351, %v7727, 0
      %v7743 = vsel %vm7351, %v7728, 0
      %v7746 = vsel %vm7351, %v7729, 0
      %v7749 = vsel %vm7351, %v7730, 0
      %v7752 = vsel %vm7351, %v7731, 0
      %v7755 = vsel %vm1696, %v7737, 0
      %7757 = vmatprep.subr.bf16.mxu0 0
      %7758 = vmatpush1.bf16.msra.mxu0 %v7735
      %7759 = vmatprep.subr.bf16.mxu0 0
      %7760 = vmatpush1.bf16.msra.mxu0 %v7755
      %7761 = vmatprep.subr.bf16.mxu0 0
      %7762 = vmatpush1.bf16.msra.mxu0 0
      %7763 = vmatprep.subr.bf16.mxu0 0
      %7764 = vmatpush1.bf16.msra.mxu0 0
      %7765 = vmatprep.subr.bf16.mxu0 0
      %7766 = vmatpush1.bf16.msra.mxu0 0
      %7767 = vmatprep.subr.bf16.mxu0 0
      %7768 = vmatpush1.bf16.msra.mxu0 0
      %7769 = vmatprep.subr.bf16.mxu0 0
      %7770 = vmatpush1.bf16.msra.mxu0 0
      %7771 = vmatprep.subr.bf16.mxu0 0
      %7772 = vmatpush1.bf16.msra.mxu0 0
      %7773 = vmatprep.subr.bf16.mxu0 0
      %7774 = vmatpush1.bf16.msra.mxu0 0
      %7775 = vmatprep.subr.bf16.mxu0 0
      %7776 = vmatpush1.bf16.msra.mxu0 0
      %7777 = vmatprep.subr.bf16.mxu0 0
      %7778 = vmatpush1.bf16.msra.mxu0 0
      %7779 = vmatprep.subr.bf16.mxu0 0
      %7780 = vmatpush1.bf16.msra.mxu0 0
      %7781 = vmatprep.subr.bf16.mxu0 0
      %7782 = vmatpush1.bf16.msra.mxu0 0
      %7783 = vmatprep.subr.bf16.mxu0 0
      %7784 = vmatpush1.bf16.msra.mxu0 0
      %7785 = vmatprep.subr.bf16.mxu0 0
      %7786 = vmatpush1.bf16.msra.mxu0 0
      %7787 = vmatprep.subr.bf16.mxu0 0
      %7788 = vmatpush1.bf16.msra.mxu0 0
      %7789 = vmatprep.mubr.bf16.mxu0 0
      %7790 = vmatmul.mubr.bf16.gmra.mrb[0].mxu0 %v7740
      %v7791 = vpop.f32.mrb[0].mxu0
      %v7792 = vadd.f32 0.0, %v7791
      %v7793 = vpop.f32.mrb[0].mxu0
      %v7794 = vpop.f32.mrb[0].mxu0
      %v7795 = vadd.f32 0.0, %v7794
      %v7796 = vpop.f32.mrb[0].mxu0
      %7797 = vmatprep.mubr.bf16.mxu0 0
      %7798 = vmatmul.mubr.bf16.gmra.mrb[0].mxu0 %v7743
      %v7799 = vpop.f32.mrb[0].mxu0
      %v7800 = vadd.f32 0.0, %v7799
      %v7801 = vpop.f32.mrb[0].mxu0
      %v7802 = vpop.f32.mrb[0].mxu0
      %v7803 = vadd.f32 0.0, %v7802
      %v7804 = vpop.f32.mrb[0].mxu0
      %7805 = vmatprep.mubr.bf16.mxu0 0
      %7806 = vmatmul.mubr.bf16.gmra.mrb[0].mxu0 %v7746
      %v7807 = vpop.f32.mrb[0].mxu0
      %v7808 = vadd.f32 0.0, %v7807
      %v7809 = vpop.f32.mrb[0].mxu0
      %v7810 = vpop.f32.mrb[0].mxu0
      %v7811 = vadd.f32 0.0, %v7810
      %v7812 = vpop.f32.mrb[0].mxu0
      %7813 = vmatprep.mubr.bf16.mxu0 0
      %7814 = vmatmul.mubr.bf16.gmra.mrb[0].mxu0 %v7749
      %v7815 = vpop.f32.mrb[0].mxu0
      %v7816 = vadd.f32 0.0, %v7815
      %v7817 = vpop.f32.mrb[0].mxu0
      %v7818 = vpop.f32.mrb[0].mxu0
      %v7819 = vadd.f32 0.0, %v7818
      %v7820 = vpop.f32.mrb[0].mxu0
      %7821 = vmatprep.mubr.bf16.mxu0 0
      %7822 = vmatmul.mubr.bf16.gmra.mrb[0].mxu0 %v7752
      %v7823 = vpop.f32.mrb[0].mxu0
      %v7824 = vadd.f32 0.0, %v7823
      %v7825 = vpop.f32.mrb[0].mxu0
      %v7826 = vpop.f32.mrb[0].mxu0
      %v7827 = vadd.f32 0.0, %v7826
      %v7828 = vpop.f32.mrb[0].mxu0
      %7829 = vdwg.mxu0
      %v7830 = vadd.f32 %v7686, %v7792
      %v7831 = vadd.f32 %v7687, %v7795
      %v7832 = vadd.f32 %v7688, %v7800
      %v7833 = vadd.f32 %v7689, %v7803
      %v7834 = vadd.f32 %v7690, %v7808
      %v7835 = vadd.f32 %v7691, %v7811
      %v7836 = vadd.f32 %v7692, %v7816
      %v7837 = vadd.f32 %v7693, %v7819
      %v7838 = vadd.f32 %v7694, %v7824
      %v7839 = vadd.f32 %v7695, %v7827
      %v7840 = vld [vmem:[%s13] sm:$0x1]
      %v7842 = vlaneseq
      %v7843 = vshrl.u32 %v7842, 7
      %v7844 = vsub.s32 0, %v7843
      %v7845 = vrot.slane %v7840, %v7844
      %v7847 = vadd.f32 %v7830, %v7845
      %v7848 = vadd.f32 %v7831, %v7845
      %v7849 = vadd.f32 %v7832, %v7845
      %v7850 = vadd.f32 %v7833, %v7845
      %v7851 = vadd.f32 %v7834, %v7845
      %v7852 = vadd.f32 %v7835, %v7845
      %v7853 = vadd.f32 %v7836, %v7845
      %v7854 = vadd.f32 %v7837, %v7845
      %v7855 = vadd.f32 %v7838, %v7845
      %v7856 = vadd.f32 %v7839, %v7845
      %v7857 = vmax.f32 %v7847, 0.0
      %v7858 = vmax.f32 %v7848, 0.0
      %v7859 = vmax.f32 %v7849, 0.0
      %v7860 = vmax.f32 %v7850, 0.0
      %v7861 = vmax.f32 %v7851, 0.0
      %v7862 = vmax.f32 %v7852, 0.0
      %v7863 = vmax.f32 %v7853, 0.0
      %v7864 = vmax.f32 %v7854, 0.0
      %v7865 = vmax.f32 %v7855, 0.0
      %v7866 = vmax.f32 %v7856, 0.0
      %7877 = vrot.lane.b32.xlu0 %v5338, 64
      %v7878 = vpop.permute.xlu0 %7877
      %7879 = vrot.lane.b32.xlu0 %v5339, 64
      %v7880 = vpop.permute.xlu0 %7879
      %7881 = vrot.lane.b32.xlu0 %v5340, 64
      %v7882 = vpop.permute.xlu0 %7881
      %7883 = vrot.lane.b32.xlu0 %v5341, 64
      %v7884 = vpop.permute.xlu0 %7883
      %7885 = vrot.lane.b32.xlu0 %v5342, 64
      %v7886 = vpop.permute.xlu0 %7885
      %7887 = vrot.lane.b32.xlu0 %v5343, 64
      %v7888 = vpop.permute.xlu0 %7887
      %7889 = vrot.lane.b32.xlu0 %v5344, 64
      %v7890 = vpop.permute.xlu0 %7889
      %7891 = vrot.lane.b32.xlu0 %v5345, 64
      %v7892 = vpop.permute.xlu0 %7891
      %7893 = vrot.lane.b32.xlu0 %v5346, 64
      %v7894 = vpop.permute.xlu0 %7893
      %7895 = vrot.lane.b32.xlu0 %v5347, 64
      %v7896 = vpop.permute.xlu0 %7895
      %v7907 = vsel %vm2318, %v7857, %v7878
      %v7908 = vsel %vm2318, %v7858, %v7880
      %v7909 = vsel %vm2318, %v7859, %v7882
      %v7910 = vsel %vm2318, %v7860, %v7884
      %v7911 = vsel %vm2318, %v7861, %v7886
      %v7912 = vsel %vm2318, %v7862, %v7888
      %v7913 = vsel %vm2318, %v7863, %v7890
      %v7914 = vsel %vm2318, %v7864, %v7892
      %v7915 = vsel %vm2318, %v7865, %v7894
      %v7916 = vsel %vm2318, %v7866, %v7896
      %v7917 = vpack.c.bf16 %v7908, %v7907
      %v7918 = vpack.c.bf16 %v7910, %v7909
      %v7919 = vpack.c.bf16 %v7912, %v7911
      %v7920 = vpack.c.bf16 %v7914, %v7913
      %v7921 = vpack.c.bf16 %v7916, %v7915
      %v7922 = vld [vmem:[%s15] sm:$0xf]
      %v7923 = vld [vmem:[%s15 + $0x4] sm:$0xf]
      %v7924 = vld [vmem:[%s15 + $0x8] sm:$0xf]
      %v7925 = vld [vmem:[%s15 + $0xc] sm:$0xf]
      %v7926 = vld [vmem:[%s15 + $0x10] sm:$0xf]
      %v7927 = vld [vmem:[%s15 + $0x14] sm:$0xf]
      %v7928 = vld [vmem:[%s15 + $0x18] sm:$0xf]
      %v7929 = vld [vmem:[%s15 + $0x1c] sm:$0xf]
      %v7930 = vld [vmem:[%s15 + $0x20] sm:$0xf]
      %v7931 = vld [vmem:[%s15 + $0x24] sm:$0xf]
      %v7932 = vld [vmem:[%s15 + $0x28] sm:$0xf]
      %v7933 = vld [vmem:[%s15 + $0x2c] sm:$0xf]
      %v7934 = vld [vmem:[%s15 + $0x30] sm:$0xf]
      %v7935 = vld [vmem:[%s15 + $0x34] sm:$0xf]
      %v7936 = vld [vmem:[%s15 + $0x38] sm:$0xf]
      %v7937 = vld [vmem:[%s15 + $0x3c] sm:$0xf]
      %v7954 = vunpack.c.l.b16 %v7922
      %v7955 = vunpack.c.l.b16 %v7923
      %v7956 = vunpack.c.l.b16 %v7924
      %v7957 = vunpack.c.l.b16 %v7925
      %v7958 = vunpack.c.l.b16 %v7926
      %v7959 = vunpack.c.l.b16 %v7927
      %v7960 = vunpack.c.l.b16 %v7928
      %v7961 = vunpack.c.l.b16 %v7929
      %v7962 = vunpack.c.l.b16 %v7930
      %v7963 = vunpack.c.l.b16 %v7931
      %v7964 = vunpack.c.l.b16 %v7932
      %v7965 = vunpack.c.l.b16 %v7933
      %v7966 = vunpack.c.l.b16 %v7934
      %v7967 = vunpack.c.l.b16 %v7935
      %v7968 = vunpack.c.l.b16 %v7936
      %v7969 = vunpack.c.l.b16 %v7937
      %v7970 = vpack.c.b16 %v7955, %v7954
      %v7971 = vpack.c.b16 %v7957, %v7956
      %v7972 = vpack.c.b16 %v7959, %v7958
      %v7973 = vpack.c.b16 %v7961, %v7960
      %v7974 = vpack.c.b16 %v7963, %v7962
      %v7975 = vpack.c.b16 %v7965, %v7964
      %v7976 = vpack.c.b16 %v7967, %v7966
      %v7977 = vpack.c.b16 %v7969, %v7968
      %7986 = vmatprep.subr.bf16.mxu0 0
      %7987 = vmatpush1.bf16.msra.mxu0 %v7970
      %7988 = vmatprep.subr.bf16.mxu0 0
      %7989 = vmatpush1.bf16.msra.mxu0 %v7971
      %7990 = vmatprep.subr.bf16.mxu0 0
      %7991 = vmatpush1.bf16.msra.mxu0 %v7972
      %7992 = vmatprep.subr.bf16.mxu0 0
      %7993 = vmatpush1.bf16.msra.mxu0 %v7973
      %7994 = vmatprep.subr.bf16.mxu0 0
      %7995 = vmatpush1.bf16.msra.mxu0 %v7974
      %7996 = vmatprep.subr.bf16.mxu0 0
      %7997 = vmatpush1.bf16.msra.mxu0 %v7975
      %7998 = vmatprep.subr.bf16.mxu0 0
      %7999 = vmatpush1.bf16.msra.mxu0 %v7976
      %8000 = vmatprep.subr.bf16.mxu0 0
      %8001 = vmatpush1.bf16.msra.mxu0 %v7977
      %8002 = vmatprep.subr.bf16.mxu0 0
      %8003 = vmatpush1.bf16.msra.mxu0 0
      %8004 = vmatprep.subr.bf16.mxu0 0
      %8005 = vmatpush1.bf16.msra.mxu0 0
      %8006 = vmatprep.subr.bf16.mxu0 0
      %8007 = vmatpush1.bf16.msra.mxu0 0
      %8008 = vmatprep.subr.bf16.mxu0 0
      %8009 = vmatpush1.bf16.msra.mxu0 0
      %8010 = vmatprep.subr.bf16.mxu0 0
      %8011 = vmatpush1.bf16.msra.mxu0 0
      %8012 = vmatprep.subr.bf16.mxu0 0
      %8013 = vmatpush1.bf16.msra.mxu0 0
      %8014 = vmatprep.subr.bf16.mxu0 0
      %8015 = vmatpush1.bf16.msra.mxu0 0
      %8016 = vmatprep.subr.bf16.mxu0 0
      %8017 = vmatpush1.bf16.msra.mxu0 0
      %8018 = vmatprep.mubr.bf16.mxu0 0
      %8019 = vmatmul.mubr.bf16.gmra.mrb[0].mxu0 %v7917
      %v8020 = vpop.f32.mrb[0].mxu0
      %v8021 = vadd.f32 0.0, %v8020
      %v8022 = vpop.f32.mrb[0].mxu0
      %v8023 = vpop.f32.mrb[0].mxu0
      %v8024 = vadd.f32 0.0, %v8023
      %v8025 = vpop.f32.mrb[0].mxu0
      %8026 = vmatprep.mubr.bf16.mxu0 0
      %8027 = vmatmul.mubr.bf16.gmra.mrb[0].mxu0 %v7918
      %v8028 = vpop.f32.mrb[0].mxu0
      %v8029 = vadd.f32 0.0, %v8028
      %v8030 = vpop.f32.mrb[0].mxu0
      %v8031 = vpop.f32.mrb[0].mxu0
      %v8032 = vadd.f32 0.0, %v8031
      %v8033 = vpop.f32.mrb[0].mxu0
      %8034 = vmatprep.mubr.bf16.mxu0 0
      %8035 = vmatmul.mubr.bf16.gmra.mrb[0].mxu0 %v7919
      %v8036 = vpop.f32.mrb[0].mxu0
      %v8037 = vadd.f32 0.0, %v8036
      %v8038 = vpop.f32.mrb[0].mxu0
      %v8039 = vpop.f32.mrb[0].mxu0
      %v8040 = vadd.f32 0.0, %v8039
      %v8041 = vpop.f32.mrb[0].mxu0
      %8042 = vmatprep.mubr.bf16.mxu0 0
      %8043 = vmatmul.mubr.bf16.gmra.mrb[0].mxu0 %v7920
      %v8044 = vpop.f32.mrb[0].mxu0
      %v8045 = vadd.f32 0.0, %v8044
      %v8046 = vpop.f32.mrb[0].mxu0
      %v8047 = vpop.f32.mrb[0].mxu0
      %v8048 = vadd.f32 0.0, %v8047
      %v8049 = vpop.f32.mrb[0].mxu0
      %8050 = vmatprep.mubr.bf16.mxu0 0
      %8051 = vmatmul.mubr.bf16.gmra.mrb[0].mxu0 %v7921
      %v8052 = vpop.f32.mrb[0].mxu0
      %v8053 = vadd.f32 0.0, %v8052
      %v8054 = vpop.f32.mrb[0].mxu0
      %v8055 = vpop.f32.mrb[0].mxu0
      %v8056 = vadd.f32 0.0, %v8055
      %v8057 = vpop.f32.mrb[0].mxu0
      %8058 = vdwg.mxu0
      %v8059 = vpack.c.bf16 %v8024, %v8021
      %v8060 = vpack.c.bf16 %v8032, %v8029
      %v8061 = vpack.c.bf16 %v8040, %v8037
      %v8062 = vpack.c.bf16 %v8048, %v8045
      %v8063 = vpack.c.bf16 %v8056, %v8053
      %v8064 = vld [vmem:[%s17] sm:$0xf]
      %v8065 = vld [vmem:[%s17 + $0x4] sm:$0xf]
      %v8066 = vld [vmem:[%s17 + $0x8] sm:$0xf]
      %v8067 = vld [vmem:[%s17 + $0xc] sm:$0xf]
      %v8068 = vld [vmem:[%s17 + $0x10] sm:$0xf]
      %v8069 = vld [vmem:[%s17 + $0x14] sm:$0xf]
      %v8070 = vld [vmem:[%s17 + $0x18] sm:$0xf]
      %v8071 = vld [vmem:[%s17 + $0x1c] sm:$0xf]
      %v8072 = vld [vmem:[%s17 + $0x20] sm:$0xf]
      %v8073 = vld [vmem:[%s17 + $0x24] sm:$0xf]
      %v8074 = vld [vmem:[%s17 + $0x28] sm:$0xf]
      %v8075 = vld [vmem:[%s17 + $0x2c] sm:$0xf]
      %v8076 = vld [vmem:[%s17 + $0x30] sm:$0xf]
      %v8077 = vld [vmem:[%s17 + $0x34] sm:$0xf]
      %v8078 = vld [vmem:[%s17 + $0x38] sm:$0xf]
      %v8079 = vld [vmem:[%s17 + $0x3c] sm:$0xf]
      %v8080 = vld [vmem:[%s17 + $0x40] sm:$0xf]
      %v8081 = vld [vmem:[%s17 + $0x44] sm:$0xf]
      %v8082 = vld [vmem:[%s17 + $0x48] sm:$0xf]
      %v8083 = vld [vmem:[%s17 + $0x4c] sm:$0xf]
      %v8084 = vld [vmem:[%s17 + $0x50] sm:$0xf]
      %v8085 = vld [vmem:[%s17 + $0x54] sm:$0xf]
      %v8086 = vld [vmem:[%s17 + $0x58] sm:$0xf]
      %v8087 = vld [vmem:[%s17 + $0x5c] sm:$0xf]
      %v8088 = vld [vmem:[%s17 + $0x60] sm:$0xf]
      %v8089 = vld [vmem:[%s17 + $0x64] sm:$0xf]
      %v8090 = vld [vmem:[%s17 + $0x68] sm:$0xf]
      %v8091 = vld [vmem:[%s17 + $0x6c] sm:$0xf]
      %v8092 = vld [vmem:[%s17 + $0x70] sm:$0xf]
      %v8093 = vld [vmem:[%s17 + $0x74] sm:$0xf]
      %v8094 = vld [vmem:[%s17 + $0x78] sm:$0xf]
      %v8095 = vld [vmem:[%s17 + $0x7c] sm:$0xf]
      %s8096 = scalar_lea.vmem %s17, 128
      %v8097 = vld [vmem:[%s8096] sm:$0xf]
      %v8098 = vld [vmem:[%s8096 + $0x4] sm:$0xf]
      %v8099 = vld [vmem:[%s8096 + $0x8] sm:$0xf]
      %v8100 = vld [vmem:[%s8096 + $0xc] sm:$0xf]
      %v8101 = vld [vmem:[%s8096 + $0x10] sm:$0xf]
      %v8102 = vld [vmem:[%s8096 + $0x14] sm:$0xf]
      %v8103 = vld [vmem:[%s8096 + $0x18] sm:$0xf]
      %v8104 = vld [vmem:[%s8096 + $0x1c] sm:$0xf]
      %v8105 = vld [vmem:[%s8096 + $0x20] sm:$0xf]
      %v8106 = vld [vmem:[%s8096 + $0x24] sm:$0xf]
      %v8107 = vld [vmem:[%s8096 + $0x28] sm:$0xf]
      %v8108 = vld [vmem:[%s8096 + $0x2c] sm:$0xf]
      %v8109 = vld [vmem:[%s8096 + $0x30] sm:$0xf]
      %v8110 = vld [vmem:[%s8096 + $0x34] sm:$0xf]
      %v8111 = vld [vmem:[%s8096 + $0x38] sm:$0xf]
      %v8112 = vld [vmem:[%s8096 + $0x3c] sm:$0xf]
      %v8113 = vld [vmem:[%s8096 + $0x40] sm:$0xf]
      %v8114 = vld [vmem:[%s8096 + $0x44] sm:$0xf]
      %v8115 = vld [vmem:[%s8096 + $0x48] sm:$0xf]
      %v8116 = vld [vmem:[%s8096 + $0x4c] sm:$0xf]
      %v8117 = vld [vmem:[%s8096 + $0x50] sm:$0xf]
      %v8118 = vld [vmem:[%s8096 + $0x54] sm:$0xf]
      %v8119 = vld [vmem:[%s8096 + $0x58] sm:$0xf]
      %v8120 = vld [vmem:[%s8096 + $0x5c] sm:$0xf]
      %v8121 = vld [vmem:[%s8096 + $0x60] sm:$0xf]
      %v8122 = vld [vmem:[%s8096 + $0x64] sm:$0xf]
      %v8123 = vld [vmem:[%s8096 + $0x68] sm:$0xf]
      %v8124 = vld [vmem:[%s8096 + $0x6c] sm:$0xf]
      %v8125 = vld [vmem:[%s8096 + $0x70] sm:$0xf]
      %v8126 = vld [vmem:[%s8096 + $0x74] sm:$0xf]
      %v8127 = vld [vmem:[%s8096 + $0x78] sm:$0xf]
      %v8128 = vld [vmem:[%s8096 + $0x7c] sm:$0xf]
      %v8161 = vunpack.c.l.b16 %v8097
      %v8162 = vunpack.c.l.b16 %v8098
      %v8163 = vunpack.c.l.b16 %v8099
      %v8164 = vunpack.c.l.b16 %v8100
      %v8165 = vunpack.c.l.b16 %v8101
      %v8166 = vunpack.c.l.b16 %v8102
      %v8167 = vunpack.c.l.b16 %v8103
      %v8168 = vunpack.c.l.b16 %v8104
      %v8169 = vunpack.c.l.b16 %v8105
      %v8170 = vunpack.c.l.b16 %v8106
      %v8171 = vunpack.c.l.b16 %v8107
      %v8172 = vunpack.c.l.b16 %v8108
      %v8173 = vunpack.c.l.b16 %v8109
      %v8174 = vunpack.c.l.b16 %v8110
      %v8175 = vunpack.c.l.b16 %v8111
      %v8176 = vunpack.c.l.b16 %v8112
      %v8177 = vunpack.c.l.b16 %v8113
      %v8178 = vunpack.c.l.b16 %v8114
      %v8179 = vunpack.c.l.b16 %v8115
      %v8180 = vunpack.c.l.b16 %v8116
      %v8181 = vunpack.c.l.b16 %v8117
      %v8182 = vunpack.c.l.b16 %v8118
      %v8183 = vunpack.c.l.b16 %v8119
      %v8184 = vunpack.c.l.b16 %v8120
      %v8185 = vunpack.c.l.b16 %v8121
      %v8186 = vunpack.c.l.b16 %v8122
      %v8187 = vunpack.c.l.b16 %v8123
      %v8188 = vunpack.c.l.b16 %v8124
      %v8189 = vunpack.c.l.b16 %v8125
      %v8190 = vunpack.c.l.b16 %v8126
      %v8191 = vunpack.c.l.b16 %v8127
      %v8192 = vunpack.c.l.b16 %v8128
      %v8193 = vpack.c.b16 %v8162, %v8161
      %v8194 = vpack.c.b16 %v8164, %v8163
      %v8195 = vpack.c.b16 %v8166, %v8165
      %v8196 = vpack.c.b16 %v8168, %v8167
      %v8197 = vpack.c.b16 %v8170, %v8169
      %v8198 = vpack.c.b16 %v8172, %v8171
      %v8199 = vpack.c.b16 %v8174, %v8173
      %v8200 = vpack.c.b16 %v8176, %v8175
      %v8201 = vpack.c.b16 %v8178, %v8177
      %v8202 = vpack.c.b16 %v8180, %v8179
      %v8203 = vpack.c.b16 %v8182, %v8181
      %v8204 = vpack.c.b16 %v8184, %v8183
      %v8205 = vpack.c.b16 %v8186, %v8185
      %v8206 = vpack.c.b16 %v8188, %v8187
      %v8207 = vpack.c.b16 %v8190, %v8189
      %v8208 = vpack.c.b16 %v8192, %v8191
      %8214 = vrot.lane.b32.xlu0 %v8059, 96
      %v8215 = vpop.permute.xlu0 %8214
      %8216 = vrot.lane.b32.xlu0 %v8060, 96
      %v8217 = vpop.permute.xlu0 %8216
      %8218 = vrot.lane.b32.xlu0 %v8061, 96
      %v8219 = vpop.permute.xlu0 %8218
      %8220 = vrot.lane.b32.xlu0 %v8062, 96
      %v8221 = vpop.permute.xlu0 %8220
      %8222 = vrot.lane.b32.xlu0 %v8063, 96
      %v8223 = vpop.permute.xlu0 %8222
      %v8229 = vsel %vm6167, %v8193, 0
      %v8232 = vsel %vm6167, %v8194, 0
      %v8235 = vsel %vm6167, %v8195, 0
      %v8238 = vsel %vm6167, %v8196, 0
      %v8241 = vsel %vm6167, %v8197, 0
      %v8244 = vsel %vm6167, %v8198, 0
      %v8247 = vsel %vm6167, %v8199, 0
      %v8250 = vsel %vm6167, %v8200, 0
      %v8253 = vsel %vm6167, %v8201, 0
      %v8256 = vsel %vm6167, %v8202, 0
      %v8259 = vsel %vm6167, %v8203, 0
      %v8262 = vsel %vm6167, %v8204, 0
      %v8265 = vsel %vm6167, %v8205, 0
      %v8268 = vsel %vm6167, %v8206, 0
      %v8271 = vsel %vm6167, %v8207, 0
      %v8274 = vsel %vm6167, %v8208, 0
      %v8277 = vsel %vm743, %v8223, 0
      %8279 = vmatprep.subr.bf16.mxu0 0
      %8280 = vmatpush1.bf16.msra.mxu0 %v8215
      %8281 = vmatprep.subr.bf16.mxu0 0
      %8282 = vmatpush1.bf16.msra.mxu0 %v8217
      %8283 = vmatprep.subr.bf16.mxu0 0
      %8284 = vmatpush1.bf16.msra.mxu0 %v8219
      %8285 = vmatprep.subr.bf16.mxu0 0
      %8286 = vmatpush1.bf16.msra.mxu0 %v8221
      %8287 = vmatprep.subr.bf16.mxu0 0
      %8288 = vmatpush1.bf16.msra.mxu0 %v8277
      %8289 = vmatprep.subr.bf16.mxu0 0
      %8290 = vmatpush1.bf16.msra.mxu0 0
      %8291 = vmatprep.subr.bf16.mxu0 0
      %8292 = vmatpush1.bf16.msra.mxu0 0
      %8293 = vmatprep.subr.bf16.mxu0 0
      %8294 = vmatpush1.bf16.msra.mxu0 0
      %8295 = vmatprep.subr.bf16.mxu0 0
      %8296 = vmatpush1.bf16.msra.mxu0 0
      %8297 = vmatprep.subr.bf16.mxu0 0
      %8298 = vmatpush1.bf16.msra.mxu0 0
      %8299 = vmatprep.subr.bf16.mxu0 0
      %8300 = vmatpush1.bf16.msra.mxu0 0
      %8301 = vmatprep.subr.bf16.mxu0 0
      %8302 = vmatpush1.bf16.msra.mxu0 0
      %8303 = vmatprep.subr.bf16.mxu0 0
      %8304 = vmatpush1.bf16.msra.mxu0 0
      %8305 = vmatprep.subr.bf16.mxu0 0
      %8306 = vmatpush1.bf16.msra.mxu0 0
      %8307 = vmatprep.subr.bf16.mxu0 0
      %8308 = vmatpush1.bf16.msra.mxu0 0
      %8309 = vmatprep.subr.bf16.mxu0 0
      %8310 = vmatpush1.bf16.msra.mxu0 0
      %8311 = vmatprep.mubr.bf16.mxu0 0
      %8312 = vmatmul.mubr.bf16.gmra.mrb[0].mxu0 %v8229
      %v8313 = vpop.f32.mrb[0].mxu0
      %v8314 = vadd.f32 0.0, %v8313
      %v8315 = vpop.f32.mrb[0].mxu0
      %v8316 = vpop.f32.mrb[0].mxu0
      %v8317 = vadd.f32 0.0, %v8316
      %v8318 = vpop.f32.mrb[0].mxu0
      %8319 = vmatprep.mubr.bf16.mxu0 0
      %8320 = vmatmul.mubr.bf16.gmra.mrb[0].mxu0 %v8232
      %v8321 = vpop.f32.mrb[0].mxu0
      %v8322 = vadd.f32 0.0, %v8321
      %v8323 = vpop.f32.mrb[0].mxu0
      %v8324 = vpop.f32.mrb[0].mxu0
      %v8325 = vadd.f32 0.0, %v8324
      %v8326 = vpop.f32.mrb[0].mxu0
      %8327 = vmatprep.mubr.bf16.mxu0 0
      %8328 = vmatmul.mubr.bf16.gmra.mrb[0].mxu0 %v8235
      %v8329 = vpop.f32.mrb[0].mxu0
      %v8330 = vadd.f32 0.0, %v8329
      %v8331 = vpop.f32.mrb[0].mxu0
      %v8332 = vpop.f32.mrb[0].mxu0
      %v8333 = vadd.f32 0.0, %v8332
      %v8334 = vpop.f32.mrb[0].mxu0
      %8335 = vmatprep.mubr.bf16.mxu0 0
      %8336 = vmatmul.mubr.bf16.gmra.mrb[0].mxu0 %v8238
      %v8337 = vpop.f32.mrb[0].mxu0
      %v8338 = vadd.f32 0.0, %v8337
      %v8339 = vpop.f32.mrb[0].mxu0
      %v8340 = vpop.f32.mrb[0].mxu0
      %v8341 = vadd.f32 0.0, %v8340
      %v8342 = vpop.f32.mrb[0].mxu0
      %8343 = vmatprep.mubr.bf16.mxu0 0
      %8344 = vmatmul.mubr.bf16.gmra.mrb[0].mxu0 %v8241
      %v8345 = vpop.f32.mrb[0].mxu0
      %v8346 = vadd.f32 0.0, %v8345
      %v8347 = vpop.f32.mrb[0].mxu0
      %v8348 = vpop.f32.mrb[0].mxu0
      %v8349 = vadd.f32 0.0, %v8348
      %v8350 = vpop.f32.mrb[0].mxu0
      %8351 = vmatprep.mubr.bf16.mxu0 0
      %8352 = vmatmul.mubr.bf16.gmra.mrb[0].mxu0 %v8244
      %v8353 = vpop.f32.mrb[0].mxu0
      %v8354 = vadd.f32 0.0, %v8353
      %v8355 = vpop.f32.mrb[0].mxu0
      %v8356 = vpop.f32.mrb[0].mxu0
      %v8357 = vadd.f32 0.0, %v8356
      %v8358 = vpop.f32.mrb[0].mxu0
      %8359 = vmatprep.mubr.bf16.mxu0 0
      %8360 = vmatmul.mubr.bf16.gmra.mrb[0].mxu0 %v8247
      %v8361 = vpop.f32.mrb[0].mxu0
      %v8362 = vadd.f32 0.0, %v8361
      %v8363 = vpop.f32.mrb[0].mxu0
      %v8364 = vpop.f32.mrb[0].mxu0
      %v8365 = vadd.f32 0.0, %v8364
      %v8366 = vpop.f32.mrb[0].mxu0
      %8367 = vmatprep.mubr.bf16.mxu0 0
      %8368 = vmatmul.mubr.bf16.gmra.mrb[0].mxu0 %v8250
      %v8369 = vpop.f32.mrb[0].mxu0
      %v8370 = vadd.f32 0.0, %v8369
      %v8371 = vpop.f32.mrb[0].mxu0
      %v8372 = vpop.f32.mrb[0].mxu0
      %v8373 = vadd.f32 0.0, %v8372
      %v8374 = vpop.f32.mrb[0].mxu0
      %8375 = vmatprep.mubr.bf16.mxu0 0
      %8376 = vmatmul.mubr.bf16.gmra.mrb[0].mxu0 %v8253
      %v8377 = vpop.f32.mrb[0].mxu0
      %v8378 = vadd.f32 0.0, %v8377
      %v8379 = vpop.f32.mrb[0].mxu0
      %v8380 = vpop.f32.mrb[0].mxu0
      %v8381 = vadd.f32 0.0, %v8380
      %v8382 = vpop.f32.mrb[0].mxu0
      %8383 = vmatprep.mubr.bf16.mxu0 0
      %8384 = vmatmul.mubr.bf16.gmra.mrb[0].mxu0 %v8256
      %v8385 = vpop.f32.mrb[0].mxu0
      %v8386 = vadd.f32 0.0, %v8385
      %v8387 = vpop.f32.mrb[0].mxu0
      %v8388 = vpop.f32.mrb[0].mxu0
      %v8389 = vadd.f32 0.0, %v8388
      %v8390 = vpop.f32.mrb[0].mxu0
      %8391 = vmatprep.mubr.bf16.mxu0 0
      %8392 = vmatmul.mubr.bf16.gmra.mrb[0].mxu0 %v8259
      %v8393 = vpop.f32.mrb[0].mxu0
      %v8394 = vadd.f32 0.0, %v8393
      %v8395 = vpop.f32.mrb[0].mxu0
      %v8396 = vpop.f32.mrb[0].mxu0
      %v8397 = vadd.f32 0.0, %v8396
      %v8398 = vpop.f32.mrb[0].mxu0
      %8399 = vmatprep.mubr.bf16.mxu0 0
      %8400 = vmatmul.mubr.bf16.gmra.mrb[0].mxu0 %v8262
      %v8401 = vpop.f32.mrb[0].mxu0
      %v8402 = vadd.f32 0.0, %v8401
      %v8403 = vpop.f32.mrb[0].mxu0
      %v8404 = vpop.f32.mrb[0].mxu0
      %v8405 = vadd.f32 0.0, %v8404
      %v8406 = vpop.f32.mrb[0].mxu0
      %8407 = vmatprep.mubr.bf16.mxu0 0
      %8408 = vmatmul.mubr.bf16.gmra.mrb[0].mxu0 %v8265
      %v8409 = vpop.f32.mrb[0].mxu0
      %v8410 = vadd.f32 0.0, %v8409
      %v8411 = vpop.f32.mrb[0].mxu0
      %v8412 = vpop.f32.mrb[0].mxu0
      %v8413 = vadd.f32 0.0, %v8412
      %v8414 = vpop.f32.mrb[0].mxu0
      %8415 = vmatprep.mubr.bf16.mxu0 0
      %8416 = vmatmul.mubr.bf16.gmra.mrb[0].mxu0 %v8268
      %v8417 = vpop.f32.mrb[0].mxu0
      %v8418 = vadd.f32 0.0, %v8417
      %v8419 = vpop.f32.mrb[0].mxu0
      %v8420 = vpop.f32.mrb[0].mxu0
      %v8421 = vadd.f32 0.0, %v8420
      %v8422 = vpop.f32.mrb[0].mxu0
      %8423 = vmatprep.mubr.bf16.mxu0 0
      %8424 = vmatmul.mubr.bf16.gmra.mrb[0].mxu0 %v8271
      %v8425 = vpop.f32.mrb[0].mxu0
      %v8426 = vadd.f32 0.0, %v8425
      %v8427 = vpop.f32.mrb[0].mxu0
      %v8428 = vpop.f32.mrb[0].mxu0
      %v8429 = vadd.f32 0.0, %v8428
      %v8430 = vpop.f32.mrb[0].mxu0
      %8431 = vmatprep.mubr.bf16.mxu0 0
      %8432 = vmatmul.mubr.bf16.gmra.mrb[0].mxu0 %v8274
      %v8433 = vpop.f32.mrb[0].mxu0
      %v8434 = vadd.f32 0.0, %v8433
      %v8435 = vpop.f32.mrb[0].mxu0
      %v8436 = vpop.f32.mrb[0].mxu0
      %v8437 = vadd.f32 0.0, %v8436
      %v8438 = vpop.f32.mrb[0].mxu0
      %8439 = vdwg.mxu0
      %v8472 = vunpack.c.l.b16 %v8064
      %v8473 = vunpack.c.l.b16 %v8065
      %v8474 = vunpack.c.l.b16 %v8066
      %v8475 = vunpack.c.l.b16 %v8067
      %v8476 = vunpack.c.l.b16 %v8068
      %v8477 = vunpack.c.l.b16 %v8069
      %v8478 = vunpack.c.l.b16 %v8070
      %v8479 = vunpack.c.l.b16 %v8071
      %v8480 = vunpack.c.l.b16 %v8072
      %v8481 = vunpack.c.l.b16 %v8073
      %v8482 = vunpack.c.l.b16 %v8074
      %v8483 = vunpack.c.l.b16 %v8075
      %v8484 = vunpack.c.l.b16 %v8076
      %v8485 = vunpack.c.l.b16 %v8077
      %v8486 = vunpack.c.l.b16 %v8078
      %v8487 = vunpack.c.l.b16 %v8079
      %v8488 = vunpack.c.l.b16 %v8080
      %v8489 = vunpack.c.l.b16 %v8081
      %v8490 = vunpack.c.l.b16 %v8082
      %v8491 = vunpack.c.l.b16 %v8083
      %v8492 = vunpack.c.l.b16 %v8084
      %v8493 = vunpack.c.l.b16 %v8085
      %v8494 = vunpack.c.l.b16 %v8086
      %v8495 = vunpack.c.l.b16 %v8087
      %v8496 = vunpack.c.l.b16 %v8088
      %v8497 = vunpack.c.l.b16 %v8089
      %v8498 = vunpack.c.l.b16 %v8090
      %v8499 = vunpack.c.l.b16 %v8091
      %v8500 = vunpack.c.l.b16 %v8092
      %v8501 = vunpack.c.l.b16 %v8093
      %v8502 = vunpack.c.l.b16 %v8094
      %v8503 = vunpack.c.l.b16 %v8095
      %v8504 = vpack.c.b16 %v8473, %v8472
      %v8505 = vpack.c.b16 %v8475, %v8474
      %v8506 = vpack.c.b16 %v8477, %v8476
      %v8507 = vpack.c.b16 %v8479, %v8478
      %v8508 = vpack.c.b16 %v8481, %v8480
      %v8509 = vpack.c.b16 %v8483, %v8482
      %v8510 = vpack.c.b16 %v8485, %v8484
      %v8511 = vpack.c.b16 %v8487, %v8486
      %v8512 = vpack.c.b16 %v8489, %v8488
      %v8513 = vpack.c.b16 %v8491, %v8490
      %v8514 = vpack.c.b16 %v8493, %v8492
      %v8515 = vpack.c.b16 %v8495, %v8494
      %v8516 = vpack.c.b16 %v8497, %v8496
      %v8517 = vpack.c.b16 %v8499, %v8498
      %v8518 = vpack.c.b16 %v8501, %v8500
      %v8519 = vpack.c.b16 %v8503, %v8502
      %v8521 = vsel %vm6167, %v8504, 0
      %v8524 = vsel %vm6167, %v8505, 0
      %v8527 = vsel %vm6167, %v8506, 0
      %v8530 = vsel %vm6167, %v8507, 0
      %v8533 = vsel %vm6167, %v8508, 0
      %v8536 = vsel %vm6167, %v8509, 0
      %v8539 = vsel %vm6167, %v8510, 0
      %v8542 = vsel %vm6167, %v8511, 0
      %v8545 = vsel %vm6167, %v8512, 0
      %v8548 = vsel %vm6167, %v8513, 0
      %v8551 = vsel %vm6167, %v8514, 0
      %v8554 = vsel %vm6167, %v8515, 0
      %v8557 = vsel %vm6167, %v8516, 0
      %v8560 = vsel %vm6167, %v8517, 0
      %v8563 = vsel %vm6167, %v8518, 0
      %v8566 = vsel %vm6167, %v8519, 0
      %v8569 = vsel %vm743, %v8063, 0
      %8571 = vmatprep.subr.bf16.mxu0 0
      %8572 = vmatpush1.bf16.msra.mxu0 %v8059
      %8573 = vmatprep.subr.bf16.mxu0 0
      %8574 = vmatpush1.bf16.msra.mxu0 %v8060
      %8575 = vmatprep.subr.bf16.mxu0 0
      %8576 = vmatpush1.bf16.msra.mxu0 %v8061
      %8577 = vmatprep.subr.bf16.mxu0 0
      %8578 = vmatpush1.bf16.msra.mxu0 %v8062
      %8579 = vmatprep.subr.bf16.mxu0 0
      %8580 = vmatpush1.bf16.msra.mxu0 %v8569
      %8581 = vmatprep.subr.bf16.mxu0 0
      %8582 = vmatpush1.bf16.msra.mxu0 0
      %8583 = vmatprep.subr.bf16.mxu0 0
      %8584 = vmatpush1.bf16.msra.mxu0 0
      %8585 = vmatprep.subr.bf16.mxu0 0
      %8586 = vmatpush1.bf16.msra.mxu0 0
      %8587 = vmatprep.subr.bf16.mxu0 0
      %8588 = vmatpush1.bf16.msra.mxu0 0
      %8589 = vmatprep.subr.bf16.mxu0 0
      %8590 = vmatpush1.bf16.msra.mxu0 0
      %8591 = vmatprep.subr.bf16.mxu0 0
      %8592 = vmatpush1.bf16.msra.mxu0 0
      %8593 = vmatprep.subr.bf16.mxu0 0
      %8594 = vmatpush1.bf16.msra.mxu0 0
      %8595 = vmatprep.subr.bf16.mxu0 0
      %8596 = vmatpush1.bf16.msra.mxu0 0
      %8597 = vmatprep.subr.bf16.mxu0 0
      %8598 = vmatpush1.bf16.msra.mxu0 0
      %8599 = vmatprep.subr.bf16.mxu0 0
      %8600 = vmatpush1.bf16.msra.mxu0 0
      %8601 = vmatprep.subr.bf16.mxu0 0
      %8602 = vmatpush1.bf16.msra.mxu0 0
      %8603 = vmatprep.mubr.bf16.mxu0 0
      %8604 = vmatmul.mubr.bf16.gmra.mrb[0].mxu0 %v8521
      %v8605 = vpop.f32.mrb[0].mxu0
      %v8606 = vadd.f32 %v8314, %v8605
      %v8607 = vpop.f32.mrb[0].mxu0
      %v8608 = vpop.f32.mrb[0].mxu0
      %v8609 = vadd.f32 %v8317, %v8608
      %v8610 = vpop.f32.mrb[0].mxu0
      %8611 = vmatprep.mubr.bf16.mxu0 0
      %8612 = vmatmul.mubr.bf16.gmra.mrb[0].mxu0 %v8524
      %v8613 = vpop.f32.mrb[0].mxu0
      %v8614 = vadd.f32 %v8322, %v8613
      %v8615 = vpop.f32.mrb[0].mxu0
      %v8616 = vpop.f32.mrb[0].mxu0
      %v8617 = vadd.f32 %v8325, %v8616
      %v8618 = vpop.f32.mrb[0].mxu0
      %8619 = vmatprep.mubr.bf16.mxu0 0
      %8620 = vmatmul.mubr.bf16.gmra.mrb[0].mxu0 %v8527
      %v8621 = vpop.f32.mrb[0].mxu0
      %v8622 = vadd.f32 %v8330, %v8621
      %v8623 = vpop.f32.mrb[0].mxu0
      %v8624 = vpop.f32.mrb[0].mxu0
      %v8625 = vadd.f32 %v8333, %v8624
      %v8626 = vpop.f32.mrb[0].mxu0
      %8627 = vmatprep.mubr.bf16.mxu0 0
      %8628 = vmatmul.mubr.bf16.gmra.mrb[0].mxu0 %v8530
      %v8629 = vpop.f32.mrb[0].mxu0
      %v8630 = vadd.f32 %v8338, %v8629
      %v8631 = vpop.f32.mrb[0].mxu0
      %v8632 = vpop.f32.mrb[0].mxu0
      %v8633 = vadd.f32 %v8341, %v8632
      %v8634 = vpop.f32.mrb[0].mxu0
      %8635 = vmatprep.mubr.bf16.mxu0 0
      %8636 = vmatmul.mubr.bf16.gmra.mrb[0].mxu0 %v8533
      %v8637 = vpop.f32.mrb[0].mxu0
      %v8638 = vadd.f32 %v8346, %v8637
      %v8639 = vpop.f32.mrb[0].mxu0
      %v8640 = vpop.f32.mrb[0].mxu0
      %v8641 = vadd.f32 %v8349, %v8640
      %v8642 = vpop.f32.mrb[0].mxu0
      %8643 = vmatprep.mubr.bf16.mxu0 0
      %8644 = vmatmul.mubr.bf16.gmra.mrb[0].mxu0 %v8536
      %v8645 = vpop.f32.mrb[0].mxu0
      %v8646 = vadd.f32 %v8354, %v8645
      %v8647 = vpop.f32.mrb[0].mxu0
      %v8648 = vpop.f32.mrb[0].mxu0
      %v8649 = vadd.f32 %v8357, %v8648
      %v8650 = vpop.f32.mrb[0].mxu0
      %8651 = vmatprep.mubr.bf16.mxu0 0
      %8652 = vmatmul.mubr.bf16.gmra.mrb[0].mxu0 %v8539
      %v8653 = vpop.f32.mrb[0].mxu0
      %v8654 = vadd.f32 %v8362, %v8653
      %v8655 = vpop.f32.mrb[0].mxu0
      %v8656 = vpop.f32.mrb[0].mxu0
      %v8657 = vadd.f32 %v8365, %v8656
      %v8658 = vpop.f32.mrb[0].mxu0
      %8659 = vmatprep.mubr.bf16.mxu0 0
      %8660 = vmatmul.mubr.bf16.gmra.mrb[0].mxu0 %v8542
      %v8661 = vpop.f32.mrb[0].mxu0
      %v8662 = vadd.f32 %v8370, %v8661
      %v8663 = vpop.f32.mrb[0].mxu0
      %v8664 = vpop.f32.mrb[0].mxu0
      %v8665 = vadd.f32 %v8373, %v8664
      %v8666 = vpop.f32.mrb[0].mxu0
      %8667 = vmatprep.mubr.bf16.mxu0 0
      %8668 = vmatmul.mubr.bf16.gmra.mrb[0].mxu0 %v8545
      %v8669 = vpop.f32.mrb[0].mxu0
      %v8670 = vadd.f32 %v8378, %v8669
      %v8671 = vpop.f32.mrb[0].mxu0
      %v8672 = vpop.f32.mrb[0].mxu0
      %v8673 = vadd.f32 %v8381, %v8672
      %v8674 = vpop.f32.mrb[0].mxu0
      %8675 = vmatprep.mubr.bf16.mxu0 0
      %8676 = vmatmul.mubr.bf16.gmra.mrb[0].mxu0 %v8548
      %v8677 = vpop.f32.mrb[0].mxu0
      %v8678 = vadd.f32 %v8386, %v8677
      %v8679 = vpop.f32.mrb[0].mxu0
      %v8680 = vpop.f32.mrb[0].mxu0
      %v8681 = vadd.f32 %v8389, %v8680
      %v8682 = vpop.f32.mrb[0].mxu0
      %8683 = vmatprep.mubr.bf16.mxu0 0
      %8684 = vmatmul.mubr.bf16.gmra.mrb[0].mxu0 %v8551
      %v8685 = vpop.f32.mrb[0].mxu0
      %v8686 = vadd.f32 %v8394, %v8685
      %v8687 = vpop.f32.mrb[0].mxu0
      %v8688 = vpop.f32.mrb[0].mxu0
      %v8689 = vadd.f32 %v8397, %v8688
      %v8690 = vpop.f32.mrb[0].mxu0
      %8691 = vmatprep.mubr.bf16.mxu0 0
      %8692 = vmatmul.mubr.bf16.gmra.mrb[0].mxu0 %v8554
      %v8693 = vpop.f32.mrb[0].mxu0
      %v8694 = vadd.f32 %v8402, %v8693
      %v8695 = vpop.f32.mrb[0].mxu0
      %v8696 = vpop.f32.mrb[0].mxu0
      %v8697 = vadd.f32 %v8405, %v8696
      %v8698 = vpop.f32.mrb[0].mxu0
      %8699 = vmatprep.mubr.bf16.mxu0 0
      %8700 = vmatmul.mubr.bf16.gmra.mrb[0].mxu0 %v8557
      %v8701 = vpop.f32.mrb[0].mxu0
      %v8702 = vadd.f32 %v8410, %v8701
      %v8703 = vpop.f32.mrb[0].mxu0
      %v8704 = vpop.f32.mrb[0].mxu0
      %v8705 = vadd.f32 %v8413, %v8704
      %v8706 = vpop.f32.mrb[0].mxu0
      %8707 = vmatprep.mubr.bf16.mxu0 0
      %8708 = vmatmul.mubr.bf16.gmra.mrb[0].mxu0 %v8560
      %v8709 = vpop.f32.mrb[0].mxu0
      %v8710 = vadd.f32 %v8418, %v8709
      %v8711 = vpop.f32.mrb[0].mxu0
      %v8712 = vpop.f32.mrb[0].mxu0
      %v8713 = vadd.f32 %v8421, %v8712
      %v8714 = vpop.f32.mrb[0].mxu0
      %8715 = vmatprep.mubr.bf16.mxu0 0
      %8716 = vmatmul.mubr.bf16.gmra.mrb[0].mxu0 %v8563
      %v8717 = vpop.f32.mrb[0].mxu0
      %v8718 = vadd.f32 %v8426, %v8717
      %v8719 = vpop.f32.mrb[0].mxu0
      %v8720 = vpop.f32.mrb[0].mxu0
      %v8721 = vadd.f32 %v8429, %v8720
      %v8722 = vpop.f32.mrb[0].mxu0
      %8723 = vmatprep.mubr.bf16.mxu0 0
      %8724 = vmatmul.mubr.bf16.gmra.mrb[0].mxu0 %v8566
      %v8725 = vpop.f32.mrb[0].mxu0
      %v8726 = vadd.f32 %v8434, %v8725
      %v8727 = vpop.f32.mrb[0].mxu0
      %v8728 = vpop.f32.mrb[0].mxu0
      %v8729 = vadd.f32 %v8437, %v8728
      %v8730 = vpop.f32.mrb[0].mxu0
      %8731 = vdwg.mxu0
      %s8732 = scalar_lea.vmem %s17, 256
      %v8733 = vld [vmem:[%s8732] sm:$0xf]
      %v8734 = vld [vmem:[%s8732 + $0x4] sm:$0xf]
      %v8735 = vld [vmem:[%s8732 + $0x8] sm:$0xf]
      %v8736 = vld [vmem:[%s8732 + $0xc] sm:$0xf]
      %v8737 = vld [vmem:[%s8732 + $0x10] sm:$0xf]
      %v8738 = vld [vmem:[%s8732 + $0x14] sm:$0xf]
      %v8739 = vld [vmem:[%s8732 + $0x18] sm:$0xf]
      %v8740 = vld [vmem:[%s8732 + $0x1c] sm:$0xf]
      %v8741 = vld [vmem:[%s8732 + $0x20] sm:$0xf]
      %v8742 = vld [vmem:[%s8732 + $0x24] sm:$0xf]
      %v8743 = vld [vmem:[%s8732 + $0x28] sm:$0xf]
      %v8744 = vld [vmem:[%s8732 + $0x2c] sm:$0xf]
      %v8745 = vld [vmem:[%s8732 + $0x30] sm:$0xf]
      %v8746 = vld [vmem:[%s8732 + $0x34] sm:$0xf]
      %v8747 = vld [vmem:[%s8732 + $0x38] sm:$0xf]
      %v8748 = vld [vmem:[%s8732 + $0x3c] sm:$0xf]
      %v8749 = vld [vmem:[%s8732 + $0x40] sm:$0xf]
      %v8750 = vld [vmem:[%s8732 + $0x44] sm:$0xf]
      %v8751 = vld [vmem:[%s8732 + $0x48] sm:$0xf]
      %v8752 = vld [vmem:[%s8732 + $0x4c] sm:$0xf]
      %v8753 = vld [vmem:[%s8732 + $0x50] sm:$0xf]
      %v8754 = vld [vmem:[%s8732 + $0x54] sm:$0xf]
      %v8755 = vld [vmem:[%s8732 + $0x58] sm:$0xf]
      %v8756 = vld [vmem:[%s8732 + $0x5c] sm:$0xf]
      %v8757 = vld [vmem:[%s8732 + $0x60] sm:$0xf]
      %v8758 = vld [vmem:[%s8732 + $0x64] sm:$0xf]
      %v8759 = vld [vmem:[%s8732 + $0x68] sm:$0xf]
      %v8760 = vld [vmem:[%s8732 + $0x6c] sm:$0xf]
      %v8761 = vld [vmem:[%s8732 + $0x70] sm:$0xf]
      %v8762 = vld [vmem:[%s8732 + $0x74] sm:$0xf]
      %v8763 = vld [vmem:[%s8732 + $0x78] sm:$0xf]
      %v8764 = vld [vmem:[%s8732 + $0x7c] sm:$0xf]
      %v8797 = vunpack.c.l.b16 %v8733
      %v8798 = vunpack.c.l.b16 %v8734
      %v8799 = vunpack.c.l.b16 %v8735
      %v8800 = vunpack.c.l.b16 %v8736
      %v8801 = vunpack.c.l.b16 %v8737
      %v8802 = vunpack.c.l.b16 %v8738
      %v8803 = vunpack.c.l.b16 %v8739
      %v8804 = vunpack.c.l.b16 %v8740
      %v8805 = vunpack.c.l.b16 %v8741
      %v8806 = vunpack.c.l.b16 %v8742
      %v8807 = vunpack.c.l.b16 %v8743
      %v8808 = vunpack.c.l.b16 %v8744
      %v8809 = vunpack.c.l.b16 %v8745
      %v8810 = vunpack.c.l.b16 %v8746
      %v8811 = vunpack.c.l.b16 %v8747
      %v8812 = vunpack.c.l.b16 %v8748
      %v8813 = vunpack.c.l.b16 %v8749
      %v8814 = vunpack.c.l.b16 %v8750
      %v8815 = vunpack.c.l.b16 %v8751
      %v8816 = vunpack.c.l.b16 %v8752
      %v8817 = vunpack.c.l.b16 %v8753
      %v8818 = vunpack.c.l.b16 %v8754
      %v8819 = vunpack.c.l.b16 %v8755
      %v8820 = vunpack.c.l.b16 %v8756
      %v8821 = vunpack.c.l.b16 %v8757
      %v8822 = vunpack.c.l.b16 %v8758
      %v8823 = vunpack.c.l.b16 %v8759
      %v8824 = vunpack.c.l.b16 %v8760
      %v8825 = vunpack.c.l.b16 %v8761
      %v8826 = vunpack.c.l.b16 %v8762
      %v8827 = vunpack.c.l.b16 %v8763
      %v8828 = vunpack.c.l.b16 %v8764
      %v8829 = vpack.c.b16 %v8798, %v8797
      %v8830 = vpack.c.b16 %v8800, %v8799
      %v8831 = vpack.c.b16 %v8802, %v8801
      %v8832 = vpack.c.b16 %v8804, %v8803
      %v8833 = vpack.c.b16 %v8806, %v8805
      %v8834 = vpack.c.b16 %v8808, %v8807
      %v8835 = vpack.c.b16 %v8810, %v8809
      %v8836 = vpack.c.b16 %v8812, %v8811
      %v8837 = vpack.c.b16 %v8814, %v8813
      %v8838 = vpack.c.b16 %v8816, %v8815
      %v8839 = vpack.c.b16 %v8818, %v8817
      %v8840 = vpack.c.b16 %v8820, %v8819
      %v8841 = vpack.c.b16 %v8822, %v8821
      %v8842 = vpack.c.b16 %v8824, %v8823
      %v8843 = vpack.c.b16 %v8826, %v8825
      %v8844 = vpack.c.b16 %v8828, %v8827
      %8845 = vrot.lane.b32.xlu0 %v8059, 64
      %v8846 = vpop.permute.xlu0 %8845
      %8847 = vrot.lane.b32.xlu0 %v8060, 64
      %v8848 = vpop.permute.xlu0 %8847
      %8849 = vrot.lane.b32.xlu0 %v8061, 64
      %v8850 = vpop.permute.xlu0 %8849
      %8851 = vrot.lane.b32.xlu0 %v8062, 64
      %v8852 = vpop.permute.xlu0 %8851
      %8853 = vrot.lane.b32.xlu0 %v8063, 64
      %v8854 = vpop.permute.xlu0 %8853
      %v8860 = vsel %vm6167, %v8829, 0
      %v8863 = vsel %vm6167, %v8830, 0
      %v8866 = vsel %vm6167, %v8831, 0
      %v8869 = vsel %vm6167, %v8832, 0
      %v8872 = vsel %vm6167, %v8833, 0
      %v8875 = vsel %vm6167, %v8834, 0
      %v8878 = vsel %vm6167, %v8835, 0
      %v8881 = vsel %vm6167, %v8836, 0
      %v8884 = vsel %vm6167, %v8837, 0
      %v8887 = vsel %vm6167, %v8838, 0
      %v8890 = vsel %vm6167, %v8839, 0
      %v8893 = vsel %vm6167, %v8840, 0
      %v8896 = vsel %vm6167, %v8841, 0
      %v8899 = vsel %vm6167, %v8842, 0
      %v8902 = vsel %vm6167, %v8843, 0
      %v8905 = vsel %vm6167, %v8844, 0
      %v8908 = vsel %vm743, %v8854, 0
      %8910 = vmatprep.subr.bf16.mxu0 0
      %8911 = vmatpush1.bf16.msra.mxu0 %v8846
      %8912 = vmatprep.subr.bf16.mxu0 0
      %8913 = vmatpush1.bf16.msra.mxu0 %v8848
      %8914 = vmatprep.subr.bf16.mxu0 0
      %8915 = vmatpush1.bf16.msra.mxu0 %v8850
      %8916 = vmatprep.subr.bf16.mxu0 0
      %8917 = vmatpush1.bf16.msra.mxu0 %v8852
      %8918 = vmatprep.subr.bf16.mxu0 0
      %8919 = vmatpush1.bf16.msra.mxu0 %v8908
      %8920 = vmatprep.subr.bf16.mxu0 0
      %8921 = vmatpush1.bf16.msra.mxu0 0
      %8922 = vmatprep.subr.bf16.mxu0 0
      %8923 = vmatpush1.bf16.msra.mxu0 0
      %8924 = vmatprep.subr.bf16.mxu0 0
      %8925 = vmatpush1.bf16.msra.mxu0 0
      %8926 = vmatprep.subr.bf16.mxu0 0
      %8927 = vmatpush1.bf16.msra.mxu0 0
      %8928 = vmatprep.subr.bf16.mxu0 0
      %8929 = vmatpush1.bf16.msra.mxu0 0
      %8930 = vmatprep.subr.bf16.mxu0 0
      %8931 = vmatpush1.bf16.msra.mxu0 0
      %8932 = vmatprep.subr.bf16.mxu0 0
      %8933 = vmatpush1.bf16.msra.mxu0 0
      %8934 = vmatprep.subr.bf16.mxu0 0
      %8935 = vmatpush1.bf16.msra.mxu0 0
      %8936 = vmatprep.subr.bf16.mxu0 0
      %8937 = vmatpush1.bf16.msra.mxu0 0
      %8938 = vmatprep.subr.bf16.mxu0 0
      %8939 = vmatpush1.bf16.msra.mxu0 0
      %8940 = vmatprep.subr.bf16.mxu0 0
      %8941 = vmatpush1.bf16.msra.mxu0 0
      %8942 = vmatprep.mubr.bf16.mxu0 0
      %8943 = vmatmul.mubr.bf16.gmra.mrb[0].mxu0 %v8860
      %v8944 = vpop.f32.mrb[0].mxu0
      %v8945 = vadd.f32 0.0, %v8944
      %v8946 = vpop.f32.mrb[0].mxu0
      %v8947 = vpop.f32.mrb[0].mxu0
      %v8948 = vadd.f32 0.0, %v8947
      %v8949 = vpop.f32.mrb[0].mxu0
      %8950 = vmatprep.mubr.bf16.mxu0 0
      %8951 = vmatmul.mubr.bf16.gmra.mrb[0].mxu0 %v8863
      %v8952 = vpop.f32.mrb[0].mxu0
      %v8953 = vadd.f32 0.0, %v8952
      %v8954 = vpop.f32.mrb[0].mxu0
      %v8955 = vpop.f32.mrb[0].mxu0
      %v8956 = vadd.f32 0.0, %v8955
      %v8957 = vpop.f32.mrb[0].mxu0
      %8958 = vmatprep.mubr.bf16.mxu0 0
      %8959 = vmatmul.mubr.bf16.gmra.mrb[0].mxu0 %v8866
      %v8960 = vpop.f32.mrb[0].mxu0
      %v8961 = vadd.f32 0.0, %v8960
      %v8962 = vpop.f32.mrb[0].mxu0
      %v8963 = vpop.f32.mrb[0].mxu0
      %v8964 = vadd.f32 0.0, %v8963
      %v8965 = vpop.f32.mrb[0].mxu0
      %8966 = vmatprep.mubr.bf16.mxu0 0
      %8967 = vmatmul.mubr.bf16.gmra.mrb[0].mxu0 %v8869
      %v8968 = vpop.f32.mrb[0].mxu0
      %v8969 = vadd.f32 0.0, %v8968
      %v8970 = vpop.f32.mrb[0].mxu0
      %v8971 = vpop.f32.mrb[0].mxu0
      %v8972 = vadd.f32 0.0, %v8971
      %v8973 = vpop.f32.mrb[0].mxu0
      %8974 = vmatprep.mubr.bf16.mxu0 0
      %8975 = vmatmul.mubr.bf16.gmra.mrb[0].mxu0 %v8872
      %v8976 = vpop.f32.mrb[0].mxu0
      %v8977 = vadd.f32 0.0, %v8976
      %v8978 = vpop.f32.mrb[0].mxu0
      %v8979 = vpop.f32.mrb[0].mxu0
      %v8980 = vadd.f32 0.0, %v8979
      %v8981 = vpop.f32.mrb[0].mxu0
      %8982 = vmatprep.mubr.bf16.mxu0 0
      %8983 = vmatmul.mubr.bf16.gmra.mrb[0].mxu0 %v8875
      %v8984 = vpop.f32.mrb[0].mxu0
      %v8985 = vadd.f32 0.0, %v8984
      %v8986 = vpop.f32.mrb[0].mxu0
      %v8987 = vpop.f32.mrb[0].mxu0
      %v8988 = vadd.f32 0.0, %v8987
      %v8989 = vpop.f32.mrb[0].mxu0
      %8990 = vmatprep.mubr.bf16.mxu0 0
      %8991 = vmatmul.mubr.bf16.gmra.mrb[0].mxu0 %v8878
      %v8992 = vpop.f32.mrb[0].mxu0
      %v8993 = vadd.f32 0.0, %v8992
      %v8994 = vpop.f32.mrb[0].mxu0
      %v8995 = vpop.f32.mrb[0].mxu0
      %v8996 = vadd.f32 0.0, %v8995
      %v8997 = vpop.f32.mrb[0].mxu0
      %8998 = vmatprep.mubr.bf16.mxu0 0
      %8999 = vmatmul.mubr.bf16.gmra.mrb[0].mxu0 %v8881
      %v9000 = vpop.f32.mrb[0].mxu0
      %v9001 = vadd.f32 0.0, %v9000
      %v9002 = vpop.f32.mrb[0].mxu0
      %v9003 = vpop.f32.mrb[0].mxu0
      %v9004 = vadd.f32 0.0, %v9003
      %v9005 = vpop.f32.mrb[0].mxu0
      %9006 = vmatprep.mubr.bf16.mxu0 0
      %9007 = vmatmul.mubr.bf16.gmra.mrb[0].mxu0 %v8884
      %v9008 = vpop.f32.mrb[0].mxu0
      %v9009 = vadd.f32 0.0, %v9008
      %v9010 = vpop.f32.mrb[0].mxu0
      %v9011 = vpop.f32.mrb[0].mxu0
      %v9012 = vadd.f32 0.0, %v9011
      %v9013 = vpop.f32.mrb[0].mxu0
      %9014 = vmatprep.mubr.bf16.mxu0 0
      %9015 = vmatmul.mubr.bf16.gmra.mrb[0].mxu0 %v8887
      %v9016 = vpop.f32.mrb[0].mxu0
      %v9017 = vadd.f32 0.0, %v9016
      %v9018 = vpop.f32.mrb[0].mxu0
      %v9019 = vpop.f32.mrb[0].mxu0
      %v9020 = vadd.f32 0.0, %v9019
      %v9021 = vpop.f32.mrb[0].mxu0
      %9022 = vmatprep.mubr.bf16.mxu0 0
      %9023 = vmatmul.mubr.bf16.gmra.mrb[0].mxu0 %v8890
      %v9024 = vpop.f32.mrb[0].mxu0
      %v9025 = vadd.f32 0.0, %v9024
      %v9026 = vpop.f32.mrb[0].mxu0
      %v9027 = vpop.f32.mrb[0].mxu0
      %v9028 = vadd.f32 0.0, %v9027
      %v9029 = vpop.f32.mrb[0].mxu0
      %9030 = vmatprep.mubr.bf16.mxu0 0
      %9031 = vmatmul.mubr.bf16.gmra.mrb[0].mxu0 %v8893
      %v9032 = vpop.f32.mrb[0].mxu0
      %v9033 = vadd.f32 0.0, %v9032
      %v9034 = vpop.f32.mrb[0].mxu0
      %v9035 = vpop.f32.mrb[0].mxu0
      %v9036 = vadd.f32 0.0, %v9035
      %v9037 = vpop.f32.mrb[0].mxu0
      %9038 = vmatprep.mubr.bf16.mxu0 0
      %9039 = vmatmul.mubr.bf16.gmra.mrb[0].mxu0 %v8896
      %v9040 = vpop.f32.mrb[0].mxu0
      %v9041 = vadd.f32 0.0, %v9040
      %v9042 = vpop.f32.mrb[0].mxu0
      %v9043 = vpop.f32.mrb[0].mxu0
      %v9044 = vadd.f32 0.0, %v9043
      %v9045 = vpop.f32.mrb[0].mxu0
      %9046 = vmatprep.mubr.bf16.mxu0 0
      %9047 = vmatmul.mubr.bf16.gmra.mrb[0].mxu0 %v8899
      %v9048 = vpop.f32.mrb[0].mxu0
      %v9049 = vadd.f32 0.0, %v9048
      %v9050 = vpop.f32.mrb[0].mxu0
      %v9051 = vpop.f32.mrb[0].mxu0
      %v9052 = vadd.f32 0.0, %v9051
      %v9053 = vpop.f32.mrb[0].mxu0
      %9054 = vmatprep.mubr.bf16.mxu0 0
      %9055 = vmatmul.mubr.bf16.gmra.mrb[0].mxu0 %v8902
      %v9056 = vpop.f32.mrb[0].mxu0
      %v9057 = vadd.f32 0.0, %v9056
      %v9058 = vpop.f32.mrb[0].mxu0
      %v9059 = vpop.f32.mrb[0].mxu0
      %v9060 = vadd.f32 0.0, %v9059
      %v9061 = vpop.f32.mrb[0].mxu0
      %9062 = vmatprep.mubr.bf16.mxu0 0
      %9063 = vmatmul.mubr.bf16.gmra.mrb[0].mxu0 %v8905
      %v9064 = vpop.f32.mrb[0].mxu0
      %v9065 = vadd.f32 0.0, %v9064
      %v9066 = vpop.f32.mrb[0].mxu0
      %v9067 = vpop.f32.mrb[0].mxu0
      %v9068 = vadd.f32 0.0, %v9067
      %v9069 = vpop.f32.mrb[0].mxu0
      %9070 = vdwg.mxu0
      %v9071 = vadd.f32 %v8606, %v8945
      %v9072 = vadd.f32 %v8609, %v8948
      %v9073 = vadd.f32 %v8614, %v8953
      %v9074 = vadd.f32 %v8617, %v8956
      %v9075 = vadd.f32 %v8622, %v8961
      %v9076 = vadd.f32 %v8625, %v8964
      %v9077 = vadd.f32 %v8630, %v8969
      %v9078 = vadd.f32 %v8633, %v8972
      %v9079 = vadd.f32 %v8638, %v8977
      %v9080 = vadd.f32 %v8641, %v8980
      %v9081 = vadd.f32 %v8646, %v8985
      %v9082 = vadd.f32 %v8649, %v8988
      %v9083 = vadd.f32 %v8654, %v8993
      %v9084 = vadd.f32 %v8657, %v8996
      %v9085 = vadd.f32 %v8662, %v9001
      %v9086 = vadd.f32 %v8665, %v9004
      %v9087 = vadd.f32 %v8670, %v9009
      %v9088 = vadd.f32 %v8673, %v9012
      %v9089 = vadd.f32 %v8678, %v9017
      %v9090 = vadd.f32 %v8681, %v9020
      %v9091 = vadd.f32 %v8686, %v9025
      %v9092 = vadd.f32 %v8689, %v9028
      %v9093 = vadd.f32 %v8694, %v9033
      %v9094 = vadd.f32 %v8697, %v9036
      %v9095 = vadd.f32 %v8702, %v9041
      %v9096 = vadd.f32 %v8705, %v9044
      %v9097 = vadd.f32 %v8710, %v9049
      %v9098 = vadd.f32 %v8713, %v9052
      %v9099 = vadd.f32 %v8718, %v9057
      %v9100 = vadd.f32 %v8721, %v9060
      %v9101 = vadd.f32 %v8726, %v9065
      %v9102 = vadd.f32 %v8729, %v9068
      %s9103 = scalar_lea.vmem %s17, 384
      %v9104 = vld [vmem:[%s9103] sm:$0xf]
      %v9105 = vld [vmem:[%s9103 + $0x4] sm:$0xf]
      %v9106 = vld [vmem:[%s9103 + $0x8] sm:$0xf]
      %v9107 = vld [vmem:[%s9103 + $0xc] sm:$0xf]
      %v9108 = vld [vmem:[%s9103 + $0x10] sm:$0xf]
      %v9109 = vld [vmem:[%s9103 + $0x14] sm:$0xf]
      %v9110 = vld [vmem:[%s9103 + $0x18] sm:$0xf]
      %v9111 = vld [vmem:[%s9103 + $0x1c] sm:$0xf]
      %v9112 = vld [vmem:[%s9103 + $0x20] sm:$0xf]
      %v9113 = vld [vmem:[%s9103 + $0x24] sm:$0xf]
      %v9114 = vld [vmem:[%s9103 + $0x28] sm:$0xf]
      %v9115 = vld [vmem:[%s9103 + $0x2c] sm:$0xf]
      %v9116 = vld [vmem:[%s9103 + $0x30] sm:$0xf]
      %v9117 = vld [vmem:[%s9103 + $0x34] sm:$0xf]
      %v9118 = vld [vmem:[%s9103 + $0x38] sm:$0xf]
      %v9119 = vld [vmem:[%s9103 + $0x3c] sm:$0xf]
      %v9120 = vld [vmem:[%s9103 + $0x40] sm:$0xf]
      %v9121 = vld [vmem:[%s9103 + $0x44] sm:$0xf]
      %v9122 = vld [vmem:[%s9103 + $0x48] sm:$0xf]
      %v9123 = vld [vmem:[%s9103 + $0x4c] sm:$0xf]
      %v9124 = vld [vmem:[%s9103 + $0x50] sm:$0xf]
      %v9125 = vld [vmem:[%s9103 + $0x54] sm:$0xf]
      %v9126 = vld [vmem:[%s9103 + $0x58] sm:$0xf]
      %v9127 = vld [vmem:[%s9103 + $0x5c] sm:$0xf]
      %v9128 = vld [vmem:[%s9103 + $0x60] sm:$0xf]
      %v9129 = vld [vmem:[%s9103 + $0x64] sm:$0xf]
      %v9130 = vld [vmem:[%s9103 + $0x68] sm:$0xf]
      %v9131 = vld [vmem:[%s9103 + $0x6c] sm:$0xf]
      %v9132 = vld [vmem:[%s9103 + $0x70] sm:$0xf]
      %v9133 = vld [vmem:[%s9103 + $0x74] sm:$0xf]
      %v9134 = vld [vmem:[%s9103 + $0x78] sm:$0xf]
      %v9135 = vld [vmem:[%s9103 + $0x7c] sm:$0xf]
      %v9168 = vunpack.c.l.b16 %v9104
      %v9169 = vunpack.c.l.b16 %v9105
      %v9170 = vunpack.c.l.b16 %v9106
      %v9171 = vunpack.c.l.b16 %v9107
      %v9172 = vunpack.c.l.b16 %v9108
      %v9173 = vunpack.c.l.b16 %v9109
      %v9174 = vunpack.c.l.b16 %v9110
      %v9175 = vunpack.c.l.b16 %v9111
      %v9176 = vunpack.c.l.b16 %v9112
      %v9177 = vunpack.c.l.b16 %v9113
      %v9178 = vunpack.c.l.b16 %v9114
      %v9179 = vunpack.c.l.b16 %v9115
      %v9180 = vunpack.c.l.b16 %v9116
      %v9181 = vunpack.c.l.b16 %v9117
      %v9182 = vunpack.c.l.b16 %v9118
      %v9183 = vunpack.c.l.b16 %v9119
      %v9184 = vunpack.c.l.b16 %v9120
      %v9185 = vunpack.c.l.b16 %v9121
      %v9186 = vunpack.c.l.b16 %v9122
      %v9187 = vunpack.c.l.b16 %v9123
      %v9188 = vunpack.c.l.b16 %v9124
      %v9189 = vunpack.c.l.b16 %v9125
      %v9190 = vunpack.c.l.b16 %v9126
      %v9191 = vunpack.c.l.b16 %v9127
      %v9192 = vunpack.c.l.b16 %v9128
      %v9193 = vunpack.c.l.b16 %v9129
      %v9194 = vunpack.c.l.b16 %v9130
      %v9195 = vunpack.c.l.b16 %v9131
      %v9196 = vunpack.c.l.b16 %v9132
      %v9197 = vunpack.c.l.b16 %v9133
      %v9198 = vunpack.c.l.b16 %v9134
      %v9199 = vunpack.c.l.b16 %v9135
      %v9200 = vpack.c.b16 %v9169, %v9168
      %v9201 = vpack.c.b16 %v9171, %v9170
      %v9202 = vpack.c.b16 %v9173, %v9172
      %v9203 = vpack.c.b16 %v9175, %v9174
      %v9204 = vpack.c.b16 %v9177, %v9176
      %v9205 = vpack.c.b16 %v9179, %v9178
      %v9206 = vpack.c.b16 %v9181, %v9180
      %v9207 = vpack.c.b16 %v9183, %v9182
      %v9208 = vpack.c.b16 %v9185, %v9184
      %v9209 = vpack.c.b16 %v9187, %v9186
      %v9210 = vpack.c.b16 %v9189, %v9188
      %v9211 = vpack.c.b16 %v9191, %v9190
      %v9212 = vpack.c.b16 %v9193, %v9192
      %v9213 = vpack.c.b16 %v9195, %v9194
      %v9214 = vpack.c.b16 %v9197, %v9196
      %v9215 = vpack.c.b16 %v9199, %v9198
      %9216 = vrot.lane.b32.xlu0 %v8059, 32
      %v9217 = vpop.permute.xlu0 %9216
      %9218 = vrot.lane.b32.xlu0 %v8060, 32
      %v9219 = vpop.permute.xlu0 %9218
      %9220 = vrot.lane.b32.xlu0 %v8061, 32
      %v9221 = vpop.permute.xlu0 %9220
      %9222 = vrot.lane.b32.xlu0 %v8062, 32
      %v9223 = vpop.permute.xlu0 %9222
      %9224 = vrot.lane.b32.xlu0 %v8063, 32
      %v9225 = vpop.permute.xlu0 %9224
      %v9231 = vsel %vm6167, %v9200, 0
      %v9234 = vsel %vm6167, %v9201, 0
      %v9237 = vsel %vm6167, %v9202, 0
      %v9240 = vsel %vm6167, %v9203, 0
      %v9243 = vsel %vm6167, %v9204, 0
      %v9246 = vsel %vm6167, %v9205, 0
      %v9249 = vsel %vm6167, %v9206, 0
      %v9252 = vsel %vm6167, %v9207, 0
      %v9255 = vsel %vm6167, %v9208, 0
      %v9258 = vsel %vm6167, %v9209, 0
      %v9261 = vsel %vm6167, %v9210, 0
      %v9264 = vsel %vm6167, %v9211, 0
      %v9267 = vsel %vm6167, %v9212, 0
      %v9270 = vsel %vm6167, %v9213, 0
      %v9273 = vsel %vm6167, %v9214, 0
      %v9276 = vsel %vm6167, %v9215, 0
      %v9279 = vsel %vm743, %v9225, 0
      %9281 = vmatprep.subr.bf16.mxu0 0
      %9282 = vmatpush1.bf16.msra.mxu0 %v9217
      %9283 = vmatprep.subr.bf16.mxu0 0
      %9284 = vmatpush1.bf16.msra.mxu0 %v9219
      %9285 = vmatprep.subr.bf16.mxu0 0
      %9286 = vmatpush1.bf16.msra.mxu0 %v9221
      %9287 = vmatprep.subr.bf16.mxu0 0
      %9288 = vmatpush1.bf16.msra.mxu0 %v9223
      %9289 = vmatprep.subr.bf16.mxu0 0
      %9290 = vmatpush1.bf16.msra.mxu0 %v9279
      %9291 = vmatprep.subr.bf16.mxu0 0
      %9292 = vmatpush1.bf16.msra.mxu0 0
      %9293 = vmatprep.subr.bf16.mxu0 0
      %9294 = vmatpush1.bf16.msra.mxu0 0
      %9295 = vmatprep.subr.bf16.mxu0 0
      %9296 = vmatpush1.bf16.msra.mxu0 0
      %9297 = vmatprep.subr.bf16.mxu0 0
      %9298 = vmatpush1.bf16.msra.mxu0 0
      %9299 = vmatprep.subr.bf16.mxu0 0
      %9300 = vmatpush1.bf16.msra.mxu0 0
      %9301 = vmatprep.subr.bf16.mxu0 0
      %9302 = vmatpush1.bf16.msra.mxu0 0
      %9303 = vmatprep.subr.bf16.mxu0 0
      %9304 = vmatpush1.bf16.msra.mxu0 0
      %9305 = vmatprep.subr.bf16.mxu0 0
      %9306 = vmatpush1.bf16.msra.mxu0 0
      %9307 = vmatprep.subr.bf16.mxu0 0
      %9308 = vmatpush1.bf16.msra.mxu0 0
      %9309 = vmatprep.subr.bf16.mxu0 0
      %9310 = vmatpush1.bf16.msra.mxu0 0
      %9311 = vmatprep.subr.bf16.mxu0 0
      %9312 = vmatpush1.bf16.msra.mxu0 0
      %9313 = vmatprep.mubr.bf16.mxu0 0
      %9314 = vmatmul.mubr.bf16.gmra.mrb[0].mxu0 %v9231
      %v9315 = vpop.f32.mrb[0].mxu0
      %v9316 = vadd.f32 0.0, %v9315
      %v9317 = vpop.f32.mrb[0].mxu0
      %v9318 = vpop.f32.mrb[0].mxu0
      %v9319 = vadd.f32 0.0, %v9318
      %v9320 = vpop.f32.mrb[0].mxu0
      %9321 = vmatprep.mubr.bf16.mxu0 0
      %9322 = vmatmul.mubr.bf16.gmra.mrb[0].mxu0 %v9234
      %v9323 = vpop.f32.mrb[0].mxu0
      %v9324 = vadd.f32 0.0, %v9323
      %v9325 = vpop.f32.mrb[0].mxu0
      %v9326 = vpop.f32.mrb[0].mxu0
      %v9327 = vadd.f32 0.0, %v9326
      %v9328 = vpop.f32.mrb[0].mxu0
      %9329 = vmatprep.mubr.bf16.mxu0 0
      %9330 = vmatmul.mubr.bf16.gmra.mrb[0].mxu0 %v9237
      %v9331 = vpop.f32.mrb[0].mxu0
      %v9332 = vadd.f32 0.0, %v9331
      %v9333 = vpop.f32.mrb[0].mxu0
      %v9334 = vpop.f32.mrb[0].mxu0
      %v9335 = vadd.f32 0.0, %v9334
      %v9336 = vpop.f32.mrb[0].mxu0
      %9337 = vmatprep.mubr.bf16.mxu0 0
      %9338 = vmatmul.mubr.bf16.gmra.mrb[0].mxu0 %v9240
      %v9339 = vpop.f32.mrb[0].mxu0
      %v9340 = vadd.f32 0.0, %v9339
      %v9341 = vpop.f32.mrb[0].mxu0
      %v9342 = vpop.f32.mrb[0].mxu0
      %v9343 = vadd.f32 0.0, %v9342
      %v9344 = vpop.f32.mrb[0].mxu0
      %9345 = vmatprep.mubr.bf16.mxu0 0
      %9346 = vmatmul.mubr.bf16.gmra.mrb[0].mxu0 %v9243
      %v9347 = vpop.f32.mrb[0].mxu0
      %v9348 = vadd.f32 0.0, %v9347
      %v9349 = vpop.f32.mrb[0].mxu0
      %v9350 = vpop.f32.mrb[0].mxu0
      %v9351 = vadd.f32 0.0, %v9350
      %v9352 = vpop.f32.mrb[0].mxu0
      %9353 = vmatprep.mubr.bf16.mxu0 0
      %9354 = vmatmul.mubr.bf16.gmra.mrb[0].mxu0 %v9246
      %v9355 = vpop.f32.mrb[0].mxu0
      %v9356 = vadd.f32 0.0, %v9355
      %v9357 = vpop.f32.mrb[0].mxu0
      %v9358 = vpop.f32.mrb[0].mxu0
      %v9359 = vadd.f32 0.0, %v9358
      %v9360 = vpop.f32.mrb[0].mxu0
      %9361 = vmatprep.mubr.bf16.mxu0 0
      %9362 = vmatmul.mubr.bf16.gmra.mrb[0].mxu0 %v9249
      %v9363 = vpop.f32.mrb[0].mxu0
      %v9364 = vadd.f32 0.0, %v9363
      %v9365 = vpop.f32.mrb[0].mxu0
      %v9366 = vpop.f32.mrb[0].mxu0
      %v9367 = vadd.f32 0.0, %v9366
      %v9368 = vpop.f32.mrb[0].mxu0
      %9369 = vmatprep.mubr.bf16.mxu0 0
      %9370 = vmatmul.mubr.bf16.gmra.mrb[0].mxu0 %v9252
      %v9371 = vpop.f32.mrb[0].mxu0
      %v9372 = vadd.f32 0.0, %v9371
      %v9373 = vpop.f32.mrb[0].mxu0
      %v9374 = vpop.f32.mrb[0].mxu0
      %v9375 = vadd.f32 0.0, %v9374
      %v9376 = vpop.f32.mrb[0].mxu0
      %9377 = vmatprep.mubr.bf16.mxu0 0
      %9378 = vmatmul.mubr.bf16.gmra.mrb[0].mxu0 %v9255
      %v9379 = vpop.f32.mrb[0].mxu0
      %v9380 = vadd.f32 0.0, %v9379
      %v9381 = vpop.f32.mrb[0].mxu0
      %v9382 = vpop.f32.mrb[0].mxu0
      %v9383 = vadd.f32 0.0, %v9382
      %v9384 = vpop.f32.mrb[0].mxu0
      %9385 = vmatprep.mubr.bf16.mxu0 0
      %9386 = vmatmul.mubr.bf16.gmra.mrb[0].mxu0 %v9258
      %v9387 = vpop.f32.mrb[0].mxu0
      %v9388 = vadd.f32 0.0, %v9387
      %v9389 = vpop.f32.mrb[0].mxu0
      %v9390 = vpop.f32.mrb[0].mxu0
      %v9391 = vadd.f32 0.0, %v9390
      %v9392 = vpop.f32.mrb[0].mxu0
      %9393 = vmatprep.mubr.bf16.mxu0 0
      %9394 = vmatmul.mubr.bf16.gmra.mrb[0].mxu0 %v9261
      %v9395 = vpop.f32.mrb[0].mxu0
      %v9396 = vadd.f32 0.0, %v9395
      %v9397 = vpop.f32.mrb[0].mxu0
      %v9398 = vpop.f32.mrb[0].mxu0
      %v9399 = vadd.f32 0.0, %v9398
      %v9400 = vpop.f32.mrb[0].mxu0
      %9401 = vmatprep.mubr.bf16.mxu0 0
      %9402 = vmatmul.mubr.bf16.gmra.mrb[0].mxu0 %v9264
      %v9403 = vpop.f32.mrb[0].mxu0
      %v9404 = vadd.f32 0.0, %v9403
      %v9405 = vpop.f32.mrb[0].mxu0
      %v9406 = vpop.f32.mrb[0].mxu0
      %v9407 = vadd.f32 0.0, %v9406
      %v9408 = vpop.f32.mrb[0].mxu0
      %9409 = vmatprep.mubr.bf16.mxu0 0
      %9410 = vmatmul.mubr.bf16.gmra.mrb[0].mxu0 %v9267
      %v9411 = vpop.f32.mrb[0].mxu0
      %v9412 = vadd.f32 0.0, %v9411
      %v9413 = vpop.f32.mrb[0].mxu0
      %v9414 = vpop.f32.mrb[0].mxu0
      %v9415 = vadd.f32 0.0, %v9414
      %v9416 = vpop.f32.mrb[0].mxu0
      %9417 = vmatprep.mubr.bf16.mxu0 0
      %9418 = vmatmul.mubr.bf16.gmra.mrb[0].mxu0 %v9270
      %v9419 = vpop.f32.mrb[0].mxu0
      %v9420 = vadd.f32 0.0, %v9419
      %v9421 = vpop.f32.mrb[0].mxu0
      %v9422 = vpop.f32.mrb[0].mxu0
      %v9423 = vadd.f32 0.0, %v9422
      %v9424 = vpop.f32.mrb[0].mxu0
      %9425 = vmatprep.mubr.bf16.mxu0 0
      %9426 = vmatmul.mubr.bf16.gmra.mrb[0].mxu0 %v9273
      %v9427 = vpop.f32.mrb[0].mxu0
      %v9428 = vadd.f32 0.0, %v9427
      %v9429 = vpop.f32.mrb[0].mxu0
      %v9430 = vpop.f32.mrb[0].mxu0
      %v9431 = vadd.f32 0.0, %v9430
      %v9432 = vpop.f32.mrb[0].mxu0
      %9433 = vmatprep.mubr.bf16.mxu0 0
      %9434 = vmatmul.mubr.bf16.gmra.mrb[0].mxu0 %v9276
      %v9435 = vpop.f32.mrb[0].mxu0
      %v9436 = vadd.f32 0.0, %v9435
      %v9437 = vpop.f32.mrb[0].mxu0
      %v9438 = vpop.f32.mrb[0].mxu0
      %v9439 = vadd.f32 0.0, %v9438
      %v9440 = vpop.f32.mrb[0].mxu0
      %9441 = vdwg.mxu0
      %v9442 = vadd.f32 %v9071, %v9316
      %v9443 = vadd.f32 %v9072, %v9319
      %v9444 = vadd.f32 %v9073, %v9324
      %v9445 = vadd.f32 %v9074, %v9327
      %v9446 = vadd.f32 %v9075, %v9332
      %v9447 = vadd.f32 %v9076, %v9335
      %v9448 = vadd.f32 %v9077, %v9340
      %v9449 = vadd.f32 %v9078, %v9343
      %v9450 = vadd.f32 %v9079, %v9348
      %v9451 = vadd.f32 %v9080, %v9351
      %v9452 = vadd.f32 %v9081, %v9356
      %v9453 = vadd.f32 %v9082, %v9359
      %v9454 = vadd.f32 %v9083, %v9364
      %v9455 = vadd.f32 %v9084, %v9367
      %v9456 = vadd.f32 %v9085, %v9372
      %v9457 = vadd.f32 %v9086, %v9375
      %v9458 = vadd.f32 %v9087, %v9380
      %v9459 = vadd.f32 %v9088, %v9383
      %v9460 = vadd.f32 %v9089, %v9388
      %v9461 = vadd.f32 %v9090, %v9391
      %v9462 = vadd.f32 %v9091, %v9396
      %v9463 = vadd.f32 %v9092, %v9399
      %v9464 = vadd.f32 %v9093, %v9404
      %v9465 = vadd.f32 %v9094, %v9407
      %v9466 = vadd.f32 %v9095, %v9412
      %v9467 = vadd.f32 %v9096, %v9415
      %v9468 = vadd.f32 %v9097, %v9420
      %v9469 = vadd.f32 %v9098, %v9423
      %v9470 = vadd.f32 %v9099, %v9428
      %v9471 = vadd.f32 %v9100, %v9431
      %v9472 = vadd.f32 %v9101, %v9436
      %v9473 = vadd.f32 %v9102, %v9439
      %v9474 = vld [vmem:[%s16] sm:$0x1]
      %v9476 = vlaneseq
      %v9477 = vshrl.u32 %v9476, 7
      %v9478 = vsub.s32 0, %v9477
      %v9479 = vrot.slane %v9474, %v9478
      %v9481 = vadd.f32 %v9442, %v9479
      %v9482 = vadd.f32 %v9443, %v9479
      %v9483 = vadd.f32 %v9444, %v9479
      %v9484 = vadd.f32 %v9445, %v9479
      %v9485 = vadd.f32 %v9446, %v9479
      %v9486 = vadd.f32 %v9447, %v9479
      %v9487 = vadd.f32 %v9448, %v9479
      %v9488 = vadd.f32 %v9449, %v9479
      %v9489 = vadd.f32 %v9450, %v9479
      %v9490 = vadd.f32 %v9451, %v9479
      %v9491 = vadd.f32 %v9452, %v9479
      %v9492 = vadd.f32 %v9453, %v9479
      %v9493 = vadd.f32 %v9454, %v9479
      %v9494 = vadd.f32 %v9455, %v9479
      %v9495 = vadd.f32 %v9456, %v9479
      %v9496 = vadd.f32 %v9457, %v9479
      %v9497 = vadd.f32 %v9458, %v9479
      %v9498 = vadd.f32 %v9459, %v9479
      %v9499 = vadd.f32 %v9460, %v9479
      %v9500 = vadd.f32 %v9461, %v9479
      %v9501 = vadd.f32 %v9462, %v9479
      %v9502 = vadd.f32 %v9463, %v9479
      %v9503 = vadd.f32 %v9464, %v9479
      %v9504 = vadd.f32 %v9465, %v9479
      %v9505 = vadd.f32 %v9466, %v9479
      %v9506 = vadd.f32 %v9467, %v9479
      %v9507 = vadd.f32 %v9468, %v9479
      %v9508 = vadd.f32 %v9469, %v9479
      %v9509 = vadd.f32 %v9470, %v9479
      %v9510 = vadd.f32 %v9471, %v9479
      %v9511 = vadd.f32 %v9472, %v9479
      %v9512 = vadd.f32 %v9473, %v9479
      %v9513 = vmax.f32 %v9481, 0.0
      %v9514 = vmax.f32 %v9482, 0.0
      %v9515 = vmax.f32 %v9483, 0.0
      %v9516 = vmax.f32 %v9484, 0.0
      %v9517 = vmax.f32 %v9485, 0.0
      %v9518 = vmax.f32 %v9486, 0.0
      %v9519 = vmax.f32 %v9487, 0.0
      %v9520 = vmax.f32 %v9488, 0.0
      %v9521 = vmax.f32 %v9489, 0.0
      %v9522 = vmax.f32 %v9490, 0.0
      %v9523 = vmax.f32 %v9491, 0.0
      %v9524 = vmax.f32 %v9492, 0.0
      %v9525 = vmax.f32 %v9493, 0.0
      %v9526 = vmax.f32 %v9494, 0.0
      %v9527 = vmax.f32 %v9495, 0.0
      %v9528 = vmax.f32 %v9496, 0.0
      %v9529 = vmax.f32 %v9497, 0.0
      %v9530 = vmax.f32 %v9498, 0.0
      %v9531 = vmax.f32 %v9499, 0.0
      %v9532 = vmax.f32 %v9500, 0.0
      %v9533 = vmax.f32 %v9501, 0.0
      %v9534 = vmax.f32 %v9502, 0.0
      %v9535 = vmax.f32 %v9503, 0.0
      %v9536 = vmax.f32 %v9504, 0.0
      %v9537 = vmax.f32 %v9505, 0.0
      %v9538 = vmax.f32 %v9506, 0.0
      %v9539 = vmax.f32 %v9507, 0.0
      %v9540 = vmax.f32 %v9508, 0.0
      %v9541 = vmax.f32 %v9509, 0.0
      %v9542 = vmax.f32 %v9510, 0.0
      %v9543 = vmax.f32 %v9511, 0.0
      %v9544 = vmax.f32 %v9512, 0.0
      %v9545 = vpack.c.bf16 %v9514, %v9513
      %v9546 = vpack.c.bf16 %v9516, %v9515
      %v9547 = vpack.c.bf16 %v9518, %v9517
      %v9548 = vpack.c.bf16 %v9520, %v9519
      %v9549 = vpack.c.bf16 %v9522, %v9521
      %v9550 = vpack.c.bf16 %v9524, %v9523
      %v9551 = vpack.c.bf16 %v9526, %v9525
      %v9552 = vpack.c.bf16 %v9528, %v9527
      %v9553 = vpack.c.bf16 %v9530, %v9529
      %v9554 = vpack.c.bf16 %v9532, %v9531
      %v9555 = vpack.c.bf16 %v9534, %v9533
      %v9556 = vpack.c.bf16 %v9536, %v9535
      %v9557 = vpack.c.bf16 %v9538, %v9537
      %v9558 = vpack.c.bf16 %v9540, %v9539
      %v9559 = vpack.c.bf16 %v9542, %v9541
      %v9560 = vpack.c.bf16 %v9544, %v9543
      %v9561 = vld [vmem:[%s18] sm:$0xf]
      %v9562 = vld [vmem:[%s19] sm:$0xf]
      %v9563 = vld [vmem:[#allocation3] sm:$0xff]
      %v9564 = vld [vmem:[#allocation3 + $0x8] sm:$0xff]
      %v9565 = vld [vmem:[#allocation3 + $0x10] sm:$0xff]
      %v9566 = vld [vmem:[#allocation3 + $0x18] sm:$0xff]
      %v9567 = vld [vmem:[#allocation3 + $0x20] sm:$0xff]
      %v9568 = vld [vmem:[#allocation3 + $0x28] sm:$0xff]
      %v9569 = vld [vmem:[#allocation3 + $0x30] sm:$0xff]
      %v9570 = vld [vmem:[#allocation3 + $0x38] sm:$0xff]
      %v9571 = vld [vmem:[#allocation3 + $0x40] sm:$0xff]
      %v9572 = vld [vmem:[#allocation3 + $0x48] sm:$0xff]
      %v9573 = vld [vmem:[#allocation3 + $0x50] sm:$0xff]
      %v9574 = vld [vmem:[#allocation3 + $0x58] sm:$0xff]
      %v9575 = vld [vmem:[#allocation3 + $0x60] sm:$0xff]
      %v9576 = vld [vmem:[#allocation3 + $0x68] sm:$0xff]
      %v9577 = vld [vmem:[#allocation3 + $0x70] sm:$0xff]
      %v9578 = vld [vmem:[#allocation3 + $0x78] sm:$0xff]
      %v9579 = vld [vmem:[#allocation3 + $0x80] sm:$0xff]
      %v9580 = vld [vmem:[#allocation3 + $0x88] sm:$0xff]
      %v9581 = vld [vmem:[#allocation3 + $0x90] sm:$0xff]
      %v9582 = vld [vmem:[#allocation3 + $0x98] sm:$0xff]
      %v9583 = vld [vmem:[#allocation3 + $0xa0] sm:$0xff]
      %v9584 = vld [vmem:[#allocation3 + $0xa8] sm:$0xff]
      %v9585 = vld [vmem:[#allocation3 + $0xb0] sm:$0xff]
      %v9586 = vld [vmem:[#allocation3 + $0xb8] sm:$0xff]
      %v9587 = vld [vmem:[#allocation3 + $0xc0] sm:$0xff]
      %v9588 = vld [vmem:[#allocation3 + $0xc8] sm:$0xff]
      %v9589 = vld [vmem:[#allocation3 + $0xd0] sm:$0xff]
      %v9590 = vld [vmem:[#allocation3 + $0xd8] sm:$0xff]
      %v9591 = vld [vmem:[#allocation3 + $0xe0] sm:$0xff]
      %v9592 = vld [vmem:[#allocation3 + $0xe8] sm:$0xff]
      %v9593 = vld [vmem:[#allocation3 + $0xf0] sm:$0xff]
      %v9594 = vld [vmem:[#allocation3 + $0xf8] sm:$0xff]
      %v9595 = vpack.c.bf16 %v9564, %v9563
      %v9596 = vpack.c.bf16 %v9566, %v9565
      %v9597 = vpack.c.bf16 %v9568, %v9567
      %v9598 = vpack.c.bf16 %v9570, %v9569
      %v9599 = vpack.c.bf16 %v9572, %v9571
      %v9600 = vpack.c.bf16 %v9574, %v9573
      %v9601 = vpack.c.bf16 %v9576, %v9575
      %v9602 = vpack.c.bf16 %v9578, %v9577
      %v9603 = vpack.c.bf16 %v9580, %v9579
      %v9604 = vpack.c.bf16 %v9582, %v9581
      %v9605 = vpack.c.bf16 %v9584, %v9583
      %v9606 = vpack.c.bf16 %v9586, %v9585
      %v9607 = vpack.c.bf16 %v9588, %v9587
      %v9608 = vpack.c.bf16 %v9590, %v9589
      %v9609 = vpack.c.bf16 %v9592, %v9591
      %v9610 = vpack.c.bf16 %v9594, %v9593
      %v9612 = vsel %vm658, %v9562, 0
      %v9615 = vsel %vm658, %v9595, 0
      %v9618 = vsel %vm658, %v9596, 0
      %v9621 = vsel %vm658, %v9597, 0
      %v9624 = vsel %vm658, %v9598, 0
      %v9627 = vsel %vm658, %v9599, 0
      %v9630 = vsel %vm658, %v9600, 0
      %v9633 = vsel %vm658, %v9601, 0
      %v9636 = vsel %vm658, %v9602, 0
      %v9639 = vsel %vm658, %v9603, 0
      %v9642 = vsel %vm658, %v9604, 0
      %v9645 = vsel %vm658, %v9605, 0
      %v9648 = vsel %vm658, %v9606, 0
      %v9651 = vsel %vm658, %v9607, 0
      %v9654 = vsel %vm658, %v9608, 0
      %v9657 = vsel %vm658, %v9609, 0
      %v9660 = vsel %vm658, %v9610, 0
      %9662 = vmatprep.subr.bf16.mxu0 0
      %9663 = vmatpush1.bf16.xpose.msra.mxu0 %v9615
      %9664 = vmatprep.subr.bf16.mxu0 0
      %9665 = vmatpush1.bf16.xpose.msra.mxu0 %v9618
      %9666 = vmatprep.subr.bf16.mxu0 0
      %9667 = vmatpush1.bf16.xpose.msra.mxu0 %v9621
      %9668 = vmatprep.subr.bf16.mxu0 0
      %9669 = vmatpush1.bf16.xpose.msra.mxu0 %v9624
      %9670 = vmatprep.subr.bf16.mxu0 0
      %9671 = vmatpush1.bf16.xpose.msra.mxu0 %v9627
      %9672 = vmatprep.subr.bf16.mxu0 0
      %9673 = vmatpush1.bf16.xpose.msra.mxu0 %v9630
      %9674 = vmatprep.subr.bf16.mxu0 0
      %9675 = vmatpush1.bf16.xpose.msra.mxu0 %v9633
      %9676 = vmatprep.subr.bf16.mxu0 0
      %9677 = vmatpush1.bf16.xpose.msra.mxu0 %v9636
      %9678 = vmatprep.subr.bf16.mxu0 0
      %9679 = vmatpush1.bf16.xpose.msra.mxu0 %v9639
      %9680 = vmatprep.subr.bf16.mxu0 0
      %9681 = vmatpush1.bf16.xpose.msra.mxu0 %v9642
      %9682 = vmatprep.subr.bf16.mxu0 0
      %9683 = vmatpush1.bf16.xpose.msra.mxu0 %v9645
      %9684 = vmatprep.subr.bf16.mxu0 0
      %9685 = vmatpush1.bf16.xpose.msra.mxu0 %v9648
      %9686 = vmatprep.subr.bf16.mxu0 0
      %9687 = vmatpush1.bf16.xpose.msra.mxu0 %v9651
      %9688 = vmatprep.subr.bf16.mxu0 0
      %9689 = vmatpush1.bf16.xpose.msra.mxu0 %v9654
      %9690 = vmatprep.subr.bf16.mxu0 0
      %9691 = vmatpush1.bf16.xpose.msra.mxu0 %v9657
      %9692 = vmatprep.subr.bf16.mxu0 0
      %9693 = vmatpush1.bf16.xpose.msra.mxu0 %v9660
      %9694 = vmatprep.mubr.bf16.mxu0 0
      %9695 = vmatmul.mubr.bf16.gmra.mrb[0].mxu0 %v9612
      %v9696 = vpop.f32.mrb[0].mxu0
      %v9697 = vadd.f32 0.0, %v9696
      %v9698 = vpop.f32.mrb[0].mxu0
      %v9699 = vadd.f32 0.0, %v9698
      %v9700 = vpop.f32.mrb[0].mxu0
      %v9701 = vpop.f32.mrb[0].mxu0
      %9702 = vdwg.mxu0
      %v9704 = vsel %vm658, %v9561, 0
      %v9707 = vsel %vm658, %v9545, 0
      %v9710 = vsel %vm658, %v9546, 0
      %v9713 = vsel %vm658, %v9547, 0
      %v9716 = vsel %vm658, %v9548, 0
      %v9719 = vsel %vm658, %v9549, 0
      %v9722 = vsel %vm658, %v9550, 0
      %v9725 = vsel %vm658, %v9551, 0
      %v9728 = vsel %vm658, %v9552, 0
      %v9731 = vsel %vm658, %v9553, 0
      %v9734 = vsel %vm658, %v9554, 0
      %v9737 = vsel %vm658, %v9555, 0
      %v9740 = vsel %vm658, %v9556, 0
      %v9743 = vsel %vm658, %v9557, 0
      %v9746 = vsel %vm658, %v9558, 0
      %v9749 = vsel %vm658, %v9559, 0
      %v9752 = vsel %vm658, %v9560, 0
      %9754 = vmatprep.subr.bf16.mxu0 0
      %9755 = vmatpush1.bf16.xpose.msra.mxu0 %v9707
      %9756 = vmatprep.subr.bf16.mxu0 0
      %9757 = vmatpush1.bf16.xpose.msra.mxu0 %v9710
      %9758 = vmatprep.subr.bf16.mxu0 0
      %9759 = vmatpush1.bf16.xpose.msra.mxu0 %v9713
      %9760 = vmatprep.subr.bf16.mxu0 0
      %9761 = vmatpush1.bf16.xpose.msra.mxu0 %v9716
      %9762 = vmatprep.subr.bf16.mxu0 0
      %9763 = vmatpush1.bf16.xpose.msra.mxu0 %v9719
      %9764 = vmatprep.subr.bf16.mxu0 0
      %9765 = vmatpush1.bf16.xpose.msra.mxu0 %v9722
      %9766 = vmatprep.subr.bf16.mxu0 0
      %9767 = vmatpush1.bf16.xpose.msra.mxu0 %v9725
      %9768 = vmatprep.subr.bf16.mxu0 0
      %9769 = vmatpush1.bf16.xpose.msra.mxu0 %v9728
      %9770 = vmatprep.subr.bf16.mxu0 0
      %9771 = vmatpush1.bf16.xpose.msra.mxu0 %v9731
      %9772 = vmatprep.subr.bf16.mxu0 0
      %9773 = vmatpush1.bf16.xpose.msra.mxu0 %v9734
      %9774 = vmatprep.subr.bf16.mxu0 0
      %9775 = vmatpush1.bf16.xpose.msra.mxu0 %v9737
      %9776 = vmatprep.subr.bf16.mxu0 0
      %9777 = vmatpush1.bf16.xpose.msra.mxu0 %v9740
      %9778 = vmatprep.subr.bf16.mxu0 0
      %9779 = vmatpush1.bf16.xpose.msra.mxu0 %v9743
      %9780 = vmatprep.subr.bf16.mxu0 0
      %9781 = vmatpush1.bf16.xpose.msra.mxu0 %v9746
      %9782 = vmatprep.subr.bf16.mxu0 0
      %9783 = vmatpush1.bf16.xpose.msra.mxu0 %v9749
      %9784 = vmatprep.subr.bf16.mxu0 0
      %9785 = vmatpush1.bf16.xpose.msra.mxu0 %v9752
      %9786 = vmatprep.mubr.bf16.mxu0 0
      %9787 = vmatmul.mubr.bf16.gmra.mrb[0].mxu0 %v9704
      %v9788 = vpop.f32.mrb[0].mxu0
      %v9789 = vadd.f32 %v9697, %v9788
      %v9790 = vpop.f32.mrb[0].mxu0
      %v9791 = vadd.f32 %v9699, %v9790
      %v9792 = vpop.f32.mrb[0].mxu0
      %v9793 = vpop.f32.mrb[0].mxu0
      %9794 = vdwg.mxu0
      %v9795 = vld [vmem:[%s20] sm:$0xff]
      %9797 = vset.pattern.permute.xlu0 0
      %9798 = vperm.xlu0 %9797, %v9795
      %v9799 = vpop.permute.xlu0 %9798
      %v9801 = vadd.f32 %v9789, %v9799
      %v9802 = vadd.f32 %v9791, %v9799
      %9803 = vst [vmem:[%s656] sm:$0xff] %v9801
      %9804 = vst [vmem:[%s656 + $0x8] sm:$0xff] %v9802
      %p9805 = scmp.lt.s32.totalorder %s32, 1
      %s9806 = scalar_select %p9805, %s32, 1
      %s9807 = smul.addr %s9806, 2
      %s9808 = smul.addr %s9807, 8
      %s9809 = scalar_lea.vmem %s21, %s9808
      // Predicated region
      $region105: #{unet_forward.1} parent=103 // pred_check
        %p9810 = pneg %p496
      $region106: #{unet_forward.1} parent=103 // pred_check_branch
        %9812 = sbr.rel (%p9810) target = $region108
      $region107: #{unet_forward.1} parent=103 // pred_region
        _
      $region108: #{unet_forward.1} parent=103 // pred_fallthru
        _
    $region104: #{unet_forward.1} parent=5 // pred_fallthru
      _
    %p9813 = scmp.le.s32.totalorder 2, %s27
    // Predicated region
    $region109: #{unet_forward.1} parent=5 // pred_check
      %p9814 = pneg %p9813
    $region110: #{unet_forward.1} parent=5 // pred_check_branch
      %9816 = sbr.rel (%p9814) target = $region112
    $region111: #{unet_forward.1} parent=5 // pred_region
      %s9817 = ssub.s32 %s27, 2
      // Predicated region
      $region113: #{unet_forward.1} parent=111 // pred_check
        %p9818 = pneg %p502
      $region114: #{unet_forward.1} parent=111 // pred_check_branch
        %9820 = sbr.rel (%p9818) target = $region116
      $region115: #{unet_forward.1} parent=111 // pred_region
        %p9821 = scmp.lt.s32.totalorder %s33, 1
        %s9822 = scalar_select %p9821, %s33, 1
        %s9823 = smul.addr %s9822, 2
        %s9824 = smul.addr %s9823, 8
        %s9825 = scalar_lea.vmem %s21, %s9824
      $region116: #{unet_forward.1} parent=111 // pred_fallthru
        _
    $region112: #{unet_forward.1} parent=5 // pred_fallthru
      _
  $region6: #{unet_forward.1} parent=0 // loop_footer
    %s31 = sadd.s32 1, %s27
  $region7: #{unet_forward.1} parent=0 // loop_footer_branch
    %26 = sbr.rel target = $region3
  $region8: #{unet_forward.1} parent=0 // loop_exit
    _

</llo_original>
